<compile_context>
chip_gen: v7x
topology: tpu7x:2x2x1
jax: 0.10.0
libtpu: 0.0.40
codegen_flags: <defaults>
</compile_context>

<pallas_src>
import functools
import math

import jax
import jax.numpy as jnp
from jax.experimental import pallas as pl
from jax.experimental.pallas import tpu as pltpu


# ----------------------------------------------------------------------------
# Pallas kernel: all flows fused, one batch element per grid step
# ----------------------------------------------------------------------------
def _fused_flows_kernel(
    x_ref, mask_ref,
    pre_w_ref, pre_b_ref,
    in_w_ref, in_b_ref,
    rs_w_ref, rs_b_ref,
    post_w_ref, post_b_ref,
    x_out_ref, logdet_ref,
    h_buf,
    *, half, hidden, num_layers, kernel_size, dilation_rate, num_flows,
    max_pad, compute_dtype,
):
  t_len = x_ref.shape[-1]
  cdt = compute_dtype

  mask = mask_ref[...]                       # [1, T] f32
  a = x_ref[:half, :]                        # "conditioning" half (f32)
  b = x_ref[half:, :]                        # "transformed" half (f32)

  # Zero once: afterwards only the centre [max_pad:max_pad+T] is written, so
  # the dilation halo stays zero for every layer of every flow.
  h_buf[...] = jnp.zeros_like(h_buf)

  ld = jnp.zeros((1, 1), jnp.float32)

  for f in range(num_flows):
    # --- pre: 1x1 conv (half -> hidden), masked ------------------------------
    h = (jnp.dot(pre_w_ref[f], a.astype(cdt),
                 preferred_element_type=jnp.float32)
         + pre_b_ref[f]) * mask               # [H, T] f32

    # --- WN encoder (dilated gated convs + res/skip 1x1) ---------------------
    out = jnp.zeros((hidden, t_len), jnp.float32)
    for i in range(num_layers):
      dil = dilation_rate ** i
      pad = (kernel_size * dil - dil) // 2
      # write current h into the centre of the zero-haloed scratch
      h_buf[:, max_pad:max_pad + t_len] = h
      # all taps fused into one [2H, k*H] x [k*H, T] MXU matmul
      segs = []
      for k in range(kernel_size):
        off = max_pad - pad + k * dil
        segs.append(h_buf[:, off:off + t_len])
      stacked = jnp.concatenate(segs, axis=0).astype(cdt)   # [k*H, T]
      x_in = jnp.dot(in_w_ref[f, i], stacked,
                     preferred_element_type=jnp.float32) + in_b_ref[f, i]
      # dropout_p == 0 in this module -> dropout is the identity.
      acts = (jnp.tanh(x_in[:hidden, :])
              * jax.nn.sigmoid(x_in[hidden:, :])).astype(cdt)
      if i < num_layers - 1:
        rs = jnp.dot(rs_w_ref[f, i], acts,
                     preferred_element_type=jnp.float32) + rs_b_ref[f, i]
        h = (h + rs[:hidden, :]) * mask
        out = out + rs[hidden:, :]
      else:
        # last layer only has `hidden` live output rows -> skip the zero half
        rs_w_last = rs_w_ref[f, i][:hidden]
        rs_b_last = rs_b_ref[f, i][:hidden]
        rs = jnp.dot(rs_w_last, acts,
                     preferred_element_type=jnp.float32) + rs_b_last
        out = out + rs
    out = out * mask

    # --- post: 1x1 conv (hidden -> 2*half), affine coupling ------------------
    stats = (jnp.dot(post_w_ref[f], out.astype(cdt),
                     preferred_element_type=jnp.float32)
             + post_b_ref[f]) * mask
    m = stats[:half, :]
    logs = stats[half:, :]
    b_new = m + b * jnp.exp(logs) * mask
    ld = ld + jnp.sum(jnp.sum(logs, axis=0, keepdims=True),
                      axis=1, keepdims=True)

    # torch.flip(x, [1]) is folded into the per-flow weight permutations done
    # on the host; inside the kernel it reduces to swapping the two halves.
    a, b = b_new, a

  x_out_ref[:half, :] = a.astype(x_out_ref.dtype)
  x_out_ref[half:, :] = b.astype(x_out_ref.dtype)
  logdet_ref[...] = ld


# ----------------------------------------------------------------------------
# Host-side parameter preparation: stack flows, fold the channel flips into
# the pre/post weights, fuse the conv taps into one [2H, k*H] weight.
# ----------------------------------------------------------------------------
def _prepare_params(params, cfg, compute_dtype):
  half, hidden = cfg['half'], cfg['hidden']
  nl, ksz = cfg['num_layers'], cfg['kernel_size']

  pre_w, pre_b, in_w, in_b, rs_w, rs_b, post_w, post_b = ([] for _ in range(8))
  p_par, q_par = 0, 0        # channel-reversal parity of the (a, b) halves
  for p in params:
    pw = p['pre_w']
    if p_par:
      pw = pw[:, ::-1]                        # fold rev of the input half
    ow, ob = p['post_w'], p['post_b']
    if q_par:                                 # fold rev of the output half
      ow = jnp.concatenate([ow[:half][::-1], ow[half:][::-1]], axis=0)
      ob = jnp.concatenate([ob[:half][::-1], ob[half:][::-1]], axis=0)
    # [L, k, 2H, H] -> [L, 2H, k*H] so each layer is a single matmul
    iw = jnp.transpose(p['in_w'], (0, 2, 1, 3)).reshape(nl, 2 * hidden,
                                                        ksz * hidden)
    pre_w.append(pw);  pre_b.append(p['pre_b'])
    in_w.append(iw);   in_b.append(p['in_b'])
    rs_w.append(p['rs_w']); rs_b.append(p['rs_b'])
    post_w.append(ow); post_b.append(ob)
    # after the coupling the halves are swapped and each gets one extra flip
    p_par, q_par = q_par ^ 1, p_par ^ 1

  stk = lambda xs, dt: jnp.stack(xs).astype(dt)
  prep = dict(
      pre_w=stk(pre_w, compute_dtype), pre_b=stk(pre_b, jnp.float32),
      in_w=stk(in_w, compute_dtype),   in_b=stk(in_b, jnp.float32),
      rs_w=stk(rs_w, compute_dtype),   rs_b=stk(rs_b, jnp.float32),
      post_w=stk(post_w, compute_dtype), post_b=stk(post_b, jnp.float32))
  return prep, bool(p_par)     # p_par == q_par always


# ----------------------------------------------------------------------------
# Public wrapper: ResidualCouplingBlocksScale.forward (reverse=False, g=None)
# ----------------------------------------------------------------------------
def residual_coupling_blocks_scale_forward(x, x_mask, params, cfg,
                                           compute_dtype=jnp.bfloat16):
  batch, channels, t_len = x.shape
  half, hidden = cfg['half'], cfg['hidden']
  nl, ksz, dr = cfg['num_layers'], cfg['kernel_size'], cfg['dilation_rate']
  num_flows = len(params)

  prep, flip_final = _prepare_params(params, cfg, compute_dtype)
  max_pad = max((ksz * dr ** i - dr ** i) // 2 for i in range(nl))

  kern = functools.partial(
      _fused_flows_kernel,
      half=half, hidden=hidden, num_layers=nl, kernel_size=ksz,
      dilation_rate=dr, num_flows=num_flows, max_pad=max_pad,
      compute_dtype=compute_dtype)

  def full_spec(arr):
    shape = arr.shape
    return pl.BlockSpec(shape, lambda b, _n=len(shape): (0,) * _n)

  x_out, logdet = pl.pallas_call(
      kern,
      grid=(batch,),
      in_specs=[
          pl.BlockSpec((None, channels, t_len), lambda b: (b, 0, 0)),
          pl.BlockSpec((None, 1, t_len), lambda b: (b, 0, 0)),
          full_spec(prep['pre_w']), full_spec(prep['pre_b']),
          full_spec(prep['in_w']), full_spec(prep['in_b']),
          full_spec(prep['rs_w']), full_spec(prep['rs_b']),
          full_spec(prep['post_w']), full_spec(prep['post_b']),
      ],
      out_specs=(pl.BlockSpec((None, channels, t_len), lambda b: (b, 0, 0)),
                 pl.BlockSpec((None, 1, 1), lambda b: (b, 0, 0))),
      out_shape=(jax.ShapeDtypeStruct((batch, channels, t_len), jnp.float32),
                 jax.ShapeDtypeStruct((batch, 1, 1), jnp.float32)),
      scratch_shapes=[pltpu.VMEM((hidden, t_len + 2 * max_pad), jnp.float32)],
      compiler_params=pltpu.CompilerParams(
          dimension_semantics=("parallel",),
          vmem_limit_bytes=32 * 1024 * 1024),
  )(x, x_mask, prep['pre_w'], prep['pre_b'], prep['in_w'], prep['in_b'],
    prep['rs_w'], prep['rs_b'], prep['post_w'], prep['post_b'])

  if flip_final:   # odd num_flows: undo the residual channel reversal
    x_out = jnp.concatenate(
        [x_out[:, :half][:, ::-1], x_out[:, half:][:, ::-1]], axis=1)
  return x_out, logdet[:, 0, 0]


# ----------------------------------------------------------------------------
# Pure-JAX reference (per-flow, with an explicit jnp.flip) for correctness
# ----------------------------------------------------------------------------
def _flow_forward_ref(x, x_mask, p, cfg):
  half, hidden = cfg['half'], cfg['hidden']
  ksz, nl, dr = cfg['kernel_size'], cfg['num_layers'], cfg['dilation_rate']
  hi = jax.lax.Precision.HIGHEST
  t = x.shape[-1]
  x0, x1 = x[:, :half], x[:, half:]
  h = (jnp.einsum('oc,bct->bot', p['pre_w'], x0, precision=hi)
       + p['pre_b'][None]) * x_mask
  out = jnp.zeros_like(h)
  for i in range(nl):
    dil = dr ** i
    pad = (ksz * dil - dil) // 2
    h_pad = jnp.pad(h, ((0, 0), (0, 0), (pad, pad)))
    x_in = jnp.broadcast_to(p['in_b'][i][None], (x.shape[0], 2 * hidden, t))
    for k in range(ksz):
      x_in = x_in + jnp.einsum('oc,bct->bot', p['in_w'][i, k],
                               h_pad[:, :, k * dil:k * dil + t], precision=hi)
    acts = jnp.tanh(x_in[:, :hidden]) * jax.nn.sigmoid(x_in[:, hidden:])
    rs = jnp.einsum('oc,bct->bot', p['rs_w'][i], acts,
                    precision=hi) + p['rs_b'][i][None]
    if i < nl - 1:
      h = (h + rs[:, :hidden]) * x_mask
      out = out + rs[:, hidden:]
    else:
      out = out + rs[:, :hidden]
  out = out * x_mask
  stats = (jnp.einsum('oh,bht->bot', p['post_w'], out, precision=hi)
           + p['post_b'][None]) * x_mask
  m, logs = stats[:, :half], stats[:, half:]
  x1n = m + x1 * jnp.exp(logs) * x_mask
  return jnp.concatenate([x0, x1n], axis=1), jnp.sum(logs, axis=(1, 2))


def reference_forward(x, x_mask, params, cfg):
  logdet = jnp.zeros((x.shape[0],), jnp.float32)
  for p in params:
    x, ld = _flow_forward_ref(x, x_mask, p, cfg)
    x = jnp.flip(x, axis=1)
    logdet = logdet + ld
  return x, logdet


# ----------------------------------------------------------------------------
# Deterministic synthetic parameters (shapes follow the PyTorch __init__)
# ----------------------------------------------------------------------------
def init_params(key, cfg, num_flows):
  half, hidden = cfg['half'], cfg['hidden']
  nl, ksz = cfg['num_layers'], cfg['kernel_size']
  channels = 2 * half
  params = []
  for f in range(num_flows):
    k = jax.random.split(jax.random.fold_in(key, f), 8)
    p = {
        'pre_w': 0.1 * jax.random.normal(k[0], (hidden, half), jnp.float32),
        'pre_b': 0.1 * jax.random.normal(k[1], (hidden, 1), jnp.float32),
        'in_w': (0.3 / math.sqrt(hidden * ksz))
                * jax.random.normal(k[2], (nl, ksz, 2 * hidden, hidden),
                                    jnp.float32),
        'in_b': 0.1 * jax.random.normal(k[3], (nl, 2 * hidden, 1), jnp.float32),
        'rs_w': (0.3 / math.sqrt(hidden))
                * jax.random.normal(k[4], (nl, 2 * hidden, hidden), jnp.float32),
        'rs_b': 0.1 * jax.random.normal(k[5], (nl, 2 * hidden, 1), jnp.float32),
        # NOTE: the PyTorch module zero-inits `post`; small random weights here
        # so the synthetic test exercises a non-trivial coupling.
        'post_w': 0.05 * jax.random.normal(k[6], (channels, hidden), jnp.float32),
        'post_b': 0.05 * jax.random.normal(k[7], (channels, 1), jnp.float32),
    }
    # Last WN layer's res_skip conv only has `hidden` output channels; the
    # stacked tensor pads it to 2*hidden -> zero the unused half.
    p['rs_w'] = p['rs_w'].at[nl - 1, hidden:].set(0.0)
    p['rs_b'] = p['rs_b'].at[nl - 1, hidden:].set(0.0)
    params.append(p)
  return params


if __name__ == "__main__":
  cfg = dict(half=2, hidden=32, kernel_size=5, dilation_rate=1, num_layers=4)
  channels = 2 * cfg['half']       # channels = 4
  num_flows = 4
  B, T = 2, 16

  key = jax.random.PRNGKey(0)
  kx, kp = jax.random.split(key)
  x = jax.random.normal(kx, (B, channels, T), jnp.float32)
  lengths = jnp.array([T, T - 4], jnp.int32)
  x_mask = (jnp.arange(T)[None, None, :]
            < lengths[:, None, None]).astype(jnp.float32)   # [B, 1, T]

  params = init_params(kp, cfg, num_flows)
  y_ref, ld_ref = reference_forward(x, x_mask, params, cfg)

  # f32 compute path: bit-faithful check against the HIGHEST-precision reference.
  y32, ld32 = residual_coupling_blocks_scale_forward(
      x, x_mask, params, cfg, compute_dtype=jnp.float32)
  y32 = jax.block_until_ready(y32)
  ld32 = jax.block_until_ready(ld32)
  assert jnp.allclose(y32, y_ref, atol=2e-3, rtol=2e-3), "f32 x mismatch"
  assert jnp.allclose(ld32, ld_ref, atol=2e-3, rtol=2e-3), "f32 logdet mismatch"

  # bf16 MXU path (production default): loose numerical check.
  ybf, ldbf = residual_coupling_blocks_scale_forward(x, x_mask, params, cfg)
  ybf = jax.block_until_ready(ybf)
  ldbf = jax.block_until_ready(ldbf)
  assert jnp.allclose(ybf, y_ref, atol=1e-1, rtol=1e-1), "bf16 x mismatch"
  assert jnp.allclose(ldbf, ld_ref, atol=3e-1, rtol=1e-1), "bf16 logdet mismatch"

  print("KERNEL_OK")
</pallas_src>

<mosaic_0001>
module attributes {stable_mosaic.version = 11 : i64} {
  func.func @_fused_flows_kernel(%arg0: i32, %arg1: memref<1x4x16xf32, #tpu.memory_space<vmem>>, %arg2: memref<1x1x16xf32, #tpu.memory_space<vmem>>, %arg3: memref<4x32x2xf32, #tpu.memory_space<vmem>>, %arg4: memref<4x32x1xf32, #tpu.memory_space<vmem>>, %arg5: memref<4x4x64x160xf32, #tpu.memory_space<vmem>>, %arg6: memref<4x4x64x1xf32, #tpu.memory_space<vmem>>, %arg7: memref<4x4x64x32xf32, #tpu.memory_space<vmem>>, %arg8: memref<4x4x64x1xf32, #tpu.memory_space<vmem>>, %arg9: memref<4x4x32xf32, #tpu.memory_space<vmem>>, %arg10: memref<4x4x1xf32, #tpu.memory_space<vmem>>, %arg11: memref<1x4x16xf32, #tpu.memory_space<vmem>>, %arg12: memref<1x1x1xf32, #tpu.memory_space<vmem>>, %arg13: memref<32x20xf32, #tpu.memory_space<vmem>>) attributes {dimension_semantics = [#tpu.dimension_semantics<parallel>], iteration_bounds = array<i64: 2>, scalar_prefetch = 0 : i64, scratch_operands = 1 : i64, tpu.core_type = #tpu.core_type<tc>, window_params = [{transform_indices = @transform_0, window_bounds = array<i64: 1, 4, 16>}, {transform_indices = @transform_1, window_bounds = array<i64: 1, 1, 16>}, {pipeline_mode = #tpu.pipeline_mode<synchronous>, transform_indices = @transform_2, window_bounds = array<i64: 4, 32, 2>}, {pipeline_mode = #tpu.pipeline_mode<synchronous>, transform_indices = @transform_3, window_bounds = array<i64: 4, 32, 1>}, {pipeline_mode = #tpu.pipeline_mode<synchronous>, transform_indices = @transform_4, window_bounds = array<i64: 4, 4, 64, 160>}, {pipeline_mode = #tpu.pipeline_mode<synchronous>, transform_indices = @transform_5, window_bounds = array<i64: 4, 4, 64, 1>}, {pipeline_mode = #tpu.pipeline_mode<synchronous>, transform_indices = @transform_6, window_bounds = array<i64: 4, 4, 64, 32>}, {pipeline_mode = #tpu.pipeline_mode<synchronous>, transform_indices = @transform_7, window_bounds = array<i64: 4, 4, 64, 1>}, {pipeline_mode = #tpu.pipeline_mode<synchronous>, transform_indices = @transform_8, window_bounds = array<i64: 4, 4, 32>}, {pipeline_mode = #tpu.pipeline_mode<synchronous>, transform_indices = @transform_9, window_bounds = array<i64: 4, 4, 1>}, {transform_indices = @transform_10, window_bounds = array<i64: 1, 4, 16>}, {transform_indices = @transform_11, window_bounds = array<i64: 1, 1, 1>}]} {
    %c0 = arith.constant 0 : index
    %c0_0 = arith.constant 0 : index
    %c0_1 = arith.constant 0 : index
    %0 = vector.load %arg2[%c0, %c0_0, %c0_1] : memref<1x1x16xf32, #tpu.memory_space<vmem>>, vector<1x1x16xf32>
    %1 = vector.shape_cast %0 : vector<1x1x16xf32> to vector<1x16xf32>
    %c0_2 = arith.constant 0 : index
    %c0_3 = arith.constant 0 : index
    %c0_4 = arith.constant 0 : index
    %2 = vector.load %arg1[%c0_2, %c0_3, %c0_4] : memref<1x4x16xf32, #tpu.memory_space<vmem>>, vector<1x2x16xf32>
    %3 = vector.shape_cast %2 : vector<1x2x16xf32> to vector<2x16xf32>
    %c0_5 = arith.constant 0 : index
    %c2 = arith.constant 2 : index
    %c0_6 = arith.constant 0 : index
    %4 = vector.load %arg1[%c0_5, %c2, %c0_6] : memref<1x4x16xf32, #tpu.memory_space<vmem>>, vector<1x2x16xf32>
    %5 = vector.shape_cast %4 : vector<1x2x16xf32> to vector<2x16xf32>
    %cst = arith.constant 0.000000e+00 : f32
    %6 = vector.broadcast %cst : f32 to vector<32x20xf32>
    %c0_7 = arith.constant 0 : index
    %c0_8 = arith.constant 0 : index
    %7 = vector.load %arg13[%c0_7, %c0_8] : memref<32x20xf32, #tpu.memory_space<vmem>>, vector<32x20xf32>
    tpu.vector_store %arg13[%c0_7, %c0_8], %6 {strides = array<i32>} : memref<32x20xf32, #tpu.memory_space<vmem>>, vector<32x20xf32>,
    %cst_9 = arith.constant 0.000000e+00 : f32
    %8 = vector.broadcast %cst_9 : f32 to vector<1x1xf32>
    %c0_10 = arith.constant 0 : index
    %c0_11 = arith.constant 0 : index
    %c0_12 = arith.constant 0 : index
    %9 = vector.load %arg3[%c0_10, %c0_11, %c0_12] : memref<4x32x2xf32, #tpu.memory_space<vmem>>, vector<1x32x2xf32>
    %10 = vector.shape_cast %9 : vector<1x32x2xf32> to vector<32x2xf32>
    %cst_13 = arith.constant dense<0.000000e+00> : vector<32x16xf32>
    %11 = tpu.matmul %10, %3, %cst_13 {dimension_numbers = #tpu.dot_dimension_numbers<[1], [0], [0], [1], [0, 0, 1, 1], [], []>} : vector<32x2xf32>, vector<2x16xf32>, vector<32x16xf32> -> vector<32x16xf32>
    %c0_14 = arith.constant 0 : index
    %c0_15 = arith.constant 0 : index
    %c0_16 = arith.constant 0 : index
    %12 = vector.load %arg4[%c0_14, %c0_15, %c0_16] : memref<4x32x1xf32, #tpu.memory_space<vmem>>, vector<1x32x1xf32>
    %13 = vector.shape_cast %12 : vector<1x32x1xf32> to vector<32x1xf32>
    %14 = vector.broadcast %13 : vector<32x1xf32> to vector<32x16xf32>
    %15 = arith.addf %11, %14 : vector<32x16xf32>
    %16 = vector.broadcast %1 : vector<1x16xf32> to vector<32x16xf32>
    %17 = arith.mulf %15, %16 : vector<32x16xf32>
    %cst_17 = arith.constant 0.000000e+00 : f32
    %18 = vector.broadcast %cst_17 : f32 to vector<32x16xf32>
    %c0_18 = arith.constant 0 : index
    %c2_19 = arith.constant 2 : index
    %19 = vector.load %arg13[%c0_18, %c2_19] : memref<32x20xf32, #tpu.memory_space<vmem>>, vector<32x16xf32>
    tpu.vector_store %arg13[%c0_18, %c2_19], %17 {strides = array<i32>} : memref<32x20xf32, #tpu.memory_space<vmem>>, vector<32x16xf32>,
    %c0_20 = arith.constant 0 : index
    %c0_21 = arith.constant 0 : index
    %20 = vector.load %arg13[%c0_20, %c0_21] : memref<32x20xf32, #tpu.memory_space<vmem>>, vector<32x16xf32>
    %c0_22 = arith.constant 0 : index
    %c1 = arith.constant 1 : index
    %21 = vector.load %arg13[%c0_22, %c1] : memref<32x20xf32, #tpu.memory_space<vmem>>, vector<32x16xf32>
    %c0_23 = arith.constant 0 : index
    %c2_24 = arith.constant 2 : index
    %22 = vector.load %arg13[%c0_23, %c2_24] : memref<32x20xf32, #tpu.memory_space<vmem>>, vector<32x16xf32>
    %c0_25 = arith.constant 0 : index
    %c3 = arith.constant 3 : index
    %23 = vector.load %arg13[%c0_25, %c3] : memref<32x20xf32, #tpu.memory_space<vmem>>, vector<32x16xf32>
    %c0_26 = arith.constant 0 : index
    %c4 = arith.constant 4 : index
    %24 = vector.load %arg13[%c0_26, %c4] : memref<32x20xf32, #tpu.memory_space<vmem>>, vector<32x16xf32>
    %25 = tpu.concatenate %20, %21, %22, %23, %24 in 0 : vector<32x16xf32>, vector<32x16xf32>, vector<32x16xf32>, vector<32x16xf32>, vector<32x16xf32> -> vector<160x16xf32>
    %c0_27 = arith.constant 0 : index
    %c0_28 = arith.constant 0 : index
    %c0_29 = arith.constant 0 : index
    %c0_30 = arith.constant 0 : index
    %26 = vector.load %arg5[%c0_27, %c0_28, %c0_29, %c0_30] : memref<4x4x64x160xf32, #tpu.memory_space<vmem>>, vector<1x1x64x160xf32>
    %27 = vector.shape_cast %26 : vector<1x1x64x160xf32> to vector<64x160xf32>
    %cst_31 = arith.constant dense<0.000000e+00> : vector<64x16xf32>
    %28 = tpu.matmul %27, %25, %cst_31 {dimension_numbers = #tpu.dot_dimension_numbers<[1], [0], [0], [1], [0, 0, 1, 1], [], []>} : vector<64x160xf32>, vector<160x16xf32>, vector<64x16xf32> -> vector<64x16xf32>
    %c0_32 = arith.constant 0 : index
    %c0_33 = arith.constant 0 : index
    %c0_34 = arith.constant 0 : index
    %c0_35 = arith.constant 0 : index
    %29 = vector.load %arg6[%c0_32, %c0_33, %c0_34, %c0_35] : memref<4x4x64x1xf32, #tpu.memory_space<vmem>>, vector<1x1x64x1xf32>
    %30 = vector.shape_cast %29 : vector<1x1x64x1xf32> to vector<64x1xf32>
    %31 = vector.broadcast %30 : vector<64x1xf32> to vector<64x16xf32>
    %32 = arith.addf %28, %31 : vector<64x16xf32>
    %33 = vector.extract_strided_slice %32 {offsets = [0, 0], sizes = [32, 16], strides = [1, 1]} : vector<64x16xf32> to vector<32x16xf32>
    %34 = math.tanh %33 : vector<32x16xf32>
    %35 = vector.extract_strided_slice %32 {offsets = [32, 0], sizes = [32, 16], strides = [1, 1]} : vector<64x16xf32> to vector<32x16xf32>
    %36 = arith.negf %35 : vector<32x16xf32>
    %37 = math.exp %36 : vector<32x16xf32>
    %cst_36 = arith.constant 1.000000e+00 : f32
    %38 = vector.broadcast %cst_36 : f32 to vector<32x16xf32>
    %39 = arith.addf %38, %37 : vector<32x16xf32>
    %40 = arith.divf %38, %39 : vector<32x16xf32>
    %41 = arith.mulf %34, %40 : vector<32x16xf32>
    %c0_37 = arith.constant 0 : index
    %c0_38 = arith.constant 0 : index
    %c0_39 = arith.constant 0 : index
    %c0_40 = arith.constant 0 : index
    %42 = vector.load %arg7[%c0_37, %c0_38, %c0_39, %c0_40] : memref<4x4x64x32xf32, #tpu.memory_space<vmem>>, vector<1x1x64x32xf32>
    %43 = vector.shape_cast %42 : vector<1x1x64x32xf32> to vector<64x32xf32>
    %cst_41 = arith.constant dense<0.000000e+00> : vector<64x16xf32>
    %44 = tpu.matmul %43, %41, %cst_41 {dimension_numbers = #tpu.dot_dimension_numbers<[1], [0], [0], [1], [0, 0, 1, 1], [], []>} : vector<64x32xf32>, vector<32x16xf32>, vector<64x16xf32> -> vector<64x16xf32>
    %c0_42 = arith.constant 0 : index
    %c0_43 = arith.constant 0 : index
    %c0_44 = arith.constant 0 : index
    %c0_45 = arith.constant 0 : index
    %45 = vector.load %arg8[%c0_42, %c0_43, %c0_44, %c0_45] : memref<4x4x64x1xf32, #tpu.memory_space<vmem>>, vector<1x1x64x1xf32>
    %46 = vector.shape_cast %45 : vector<1x1x64x1xf32> to vector<64x1xf32>
    %47 = vector.broadcast %46 : vector<64x1xf32> to vector<64x16xf32>
    %48 = arith.addf %44, %47 : vector<64x16xf32>
    %49 = vector.extract_strided_slice %48 {offsets = [0, 0], sizes = [32, 16], strides = [1, 1]} : vector<64x16xf32> to vector<32x16xf32>
    %50 = arith.addf %17, %49 : vector<32x16xf32>
    %51 = vector.broadcast %1 : vector<1x16xf32> to vector<32x16xf32>
    %52 = arith.mulf %50, %51 : vector<32x16xf32>
    %53 = vector.extract_strided_slice %48 {offsets = [32, 0], sizes = [32, 16], strides = [1, 1]} : vector<64x16xf32> to vector<32x16xf32>
    %54 = arith.addf %18, %53 : vector<32x16xf32>
    %c0_46 = arith.constant 0 : index
    %c2_47 = arith.constant 2 : index
    %55 = vector.load %arg13[%c0_46, %c2_47] : memref<32x20xf32, #tpu.memory_space<vmem>>, vector<32x16xf32>
    tpu.vector_store %arg13[%c0_46, %c2_47], %52 {strides = array<i32>} : memref<32x20xf32, #tpu.memory_space<vmem>>, vector<32x16xf32>,
    %c0_48 = arith.constant 0 : index
    %c0_49 = arith.constant 0 : index
    %56 = vector.load %arg13[%c0_48, %c0_49] : memref<32x20xf32, #tpu.memory_space<vmem>>, vector<32x16xf32>
    %c0_50 = arith.constant 0 : index
    %c1_51 = arith.constant 1 : index
    %57 = vector.load %arg13[%c0_50, %c1_51] : memref<32x20xf32, #tpu.memory_space<vmem>>, vector<32x16xf32>
    %c0_52 = arith.constant 0 : index
    %c2_53 = arith.constant 2 : index
    %58 = vector.load %arg13[%c0_52, %c2_53] : memref<32x20xf32, #tpu.memory_space<vmem>>, vector<32x16xf32>
    %c0_54 = arith.constant 0 : index
    %c3_55 = arith.constant 3 : index
    %59 = vector.load %arg13[%c0_54, %c3_55] : memref<32x20xf32, #tpu.memory_space<vmem>>, vector<32x16xf32>
    %c0_56 = arith.constant 0 : index
    %c4_57 = arith.constant 4 : index
    %60 = vector.load %arg13[%c0_56, %c4_57] : memref<32x20xf32, #tpu.memory_space<vmem>>, vector<32x16xf32>
    %61 = tpu.concatenate %56, %57, %58, %59, %60 in 0 : vector<32x16xf32>, vector<32x16xf32>, vector<32x16xf32>, vector<32x16xf32>, vector<32x16xf32> -> vector<160x16xf32>
    %c0_58 = arith.constant 0 : index
    %c1_59 = arith.constant 1 : index
    %c0_60 = arith.constant 0 : index
    %c0_61 = arith.constant 0 : index
    %62 = vector.load %arg5[%c0_58, %c1_59, %c0_60, %c0_61] : memref<4x4x64x160xf32, #tpu.memory_space<vmem>>, vector<1x1x64x160xf32>
    %63 = vector.shape_cast %62 : vector<1x1x64x160xf32> to vector<64x160xf32>
    %cst_62 = arith.constant dense<0.000000e+00> : vector<64x16xf32>
    %64 = tpu.matmul %63, %61, %cst_62 {dimension_numbers = #tpu.dot_dimension_numbers<[1], [0], [0], [1], [0, 0, 1, 1], [], []>} : vector<64x160xf32>, vector<160x16xf32>, vector<64x16xf32> -> vector<64x16xf32>
    %c0_63 = arith.constant 0 : index
    %c1_64 = arith.constant 1 : index
    %c0_65 = arith.constant 0 : index
    %c0_66 = arith.constant 0 : index
    %65 = vector.load %arg6[%c0_63, %c1_64, %c0_65, %c0_66] : memref<4x4x64x1xf32, #tpu.memory_space<vmem>>, vector<1x1x64x1xf32>
    %66 = vector.shape_cast %65 : vector<1x1x64x1xf32> to vector<64x1xf32>
    %67 = vector.broadcast %66 : vector<64x1xf32> to vector<64x16xf32>
    %68 = arith.addf %64, %67 : vector<64x16xf32>
    %69 = vector.extract_strided_slice %68 {offsets = [0, 0], sizes = [32, 16], strides = [1, 1]} : vector<64x16xf32> to vector<32x16xf32>
    %70 = math.tanh %69 : vector<32x16xf32>
    %71 = vector.extract_strided_slice %68 {offsets = [32, 0], sizes = [32, 16], strides = [1, 1]} : vector<64x16xf32> to vector<32x16xf32>
    %72 = arith.negf %71 : vector<32x16xf32>
    %73 = math.exp %72 : vector<32x16xf32>
    %cst_67 = arith.constant 1.000000e+00 : f32
    %74 = vector.broadcast %cst_67 : f32 to vector<32x16xf32>
    %75 = arith.addf %74, %73 : vector<32x16xf32>
    %76 = arith.divf %74, %75 : vector<32x16xf32>
    %77 = arith.mulf %70, %76 : vector<32x16xf32>
    %c0_68 = arith.constant 0 : index
    %c1_69 = arith.constant 1 : index
    %c0_70 = arith.constant 0 : index
    %c0_71 = arith.constant 0 : index
    %78 = vector.load %arg7[%c0_68, %c1_69, %c0_70, %c0_71] : memref<4x4x64x32xf32, #tpu.memory_space<vmem>>, vector<1x1x64x32xf32>
    %79 = vector.shape_cast %78 : vector<1x1x64x32xf32> to vector<64x32xf32>
    %cst_72 = arith.constant dense<0.000000e+00> : vector<64x16xf32>
    %80 = tpu.matmul %79, %77, %cst_72 {dimension_numbers = #tpu.dot_dimension_numbers<[1], [0], [0], [1], [0, 0, 1, 1], [], []>} : vector<64x32xf32>, vector<32x16xf32>, vector<64x16xf32> -> vector<64x16xf32>
    %c0_73 = arith.constant 0 : index
    %c1_74 = arith.constant 1 : index
    %c0_75 = arith.constant 0 : index
    %c0_76 = arith.constant 0 : index
    %81 = vector.load %arg8[%c0_73, %c1_74, %c0_75, %c0_76] : memref<4x4x64x1xf32, #tpu.memory_space<vmem>>, vector<1x1x64x1xf32>
    %82 = vector.shape_cast %81 : vector<1x1x64x1xf32> to vector<64x1xf32>
    %83 = vector.broadcast %82 : vector<64x1xf32> to vector<64x16xf32>
    %84 = arith.addf %80, %83 : vector<64x16xf32>
    %85 = vector.extract_strided_slice %84 {offsets = [0, 0], sizes = [32, 16], strides = [1, 1]} : vector<64x16xf32> to vector<32x16xf32>
    %86 = arith.addf %52, %85 : vector<32x16xf32>
    %87 = vector.broadcast %1 : vector<1x16xf32> to vector<32x16xf32>
    %88 = arith.mulf %86, %87 : vector<32x16xf32>
    %89 = vector.extract_strided_slice %84 {offsets = [32, 0], sizes = [32, 16], strides = [1, 1]} : vector<64x16xf32> to vector<32x16xf32>
    %90 = arith.addf %54, %89 : vector<32x16xf32>
    %c0_77 = arith.constant 0 : index
    %c2_78 = arith.constant 2 : index
    %91 = vector.load %arg13[%c0_77, %c2_78] : memref<32x20xf32, #tpu.memory_space<vmem>>, vector<32x16xf32>
    tpu.vector_store %arg13[%c0_77, %c2_78], %88 {strides = array<i32>} : memref<32x20xf32, #tpu.memory_space<vmem>>, vector<32x16xf32>,
    %c0_79 = arith.constant 0 : index
    %c0_80 = arith.constant 0 : index
    %92 = vector.load %arg13[%c0_79, %c0_80] : memref<32x20xf32, #tpu.memory_space<vmem>>, vector<32x16xf32>
    %c0_81 = arith.constant 0 : index
    %c1_82 = arith.constant 1 : index
    %93 = vector.load %arg13[%c0_81, %c1_82] : memref<32x20xf32, #tpu.memory_space<vmem>>, vector<32x16xf32>
    %c0_83 = arith.constant 0 : index
    %c2_84 = arith.constant 2 : index
    %94 = vector.load %arg13[%c0_83, %c2_84] : memref<32x20xf32, #tpu.memory_space<vmem>>, vector<32x16xf32>
    %c0_85 = arith.constant 0 : index
    %c3_86 = arith.constant 3 : index
    %95 = vector.load %arg13[%c0_85, %c3_86] : memref<32x20xf32, #tpu.memory_space<vmem>>, vector<32x16xf32>
    %c0_87 = arith.constant 0 : index
    %c4_88 = arith.constant 4 : index
    %96 = vector.load %arg13[%c0_87, %c4_88] : memref<32x20xf32, #tpu.memory_space<vmem>>, vector<32x16xf32>
    %97 = tpu.concatenate %92, %93, %94, %95, %96 in 0 : vector<32x16xf32>, vector<32x16xf32>, vector<32x16xf32>, vector<32x16xf32>, vector<32x16xf32> -> vector<160x16xf32>
    %c0_89 = arith.constant 0 : index
    %c2_90 = arith.constant 2 : index
    %c0_91 = arith.constant 0 : index
    %c0_92 = arith.constant 0 : index
    %98 = vector.load %arg5[%c0_89, %c2_90, %c0_91, %c0_92] : memref<4x4x64x160xf32, #tpu.memory_space<vmem>>, vector<1x1x64x160xf32>
    %99 = vector.shape_cast %98 : vector<1x1x64x160xf32> to vector<64x160xf32>
    %cst_93 = arith.constant dense<0.000000e+00> : vector<64x16xf32>
    %100 = tpu.matmul %99, %97, %cst_93 {dimension_numbers = #tpu.dot_dimension_numbers<[1], [0], [0], [1], [0, 0, 1, 1], [], []>} : vector<64x160xf32>, vector<160x16xf32>, vector<64x16xf32> -> vector<64x16xf32>
    %c0_94 = arith.constant 0 : index
    %c2_95 = arith.constant 2 : index
    %c0_96 = arith.constant 0 : index
    %c0_97 = arith.constant 0 : index
    %101 = vector.load %arg6[%c0_94, %c2_95, %c0_96, %c0_97] : memref<4x4x64x1xf32, #tpu.memory_space<vmem>>, vector<1x1x64x1xf32>
    %102 = vector.shape_cast %101 : vector<1x1x64x1xf32> to vector<64x1xf32>
    %103 = vector.broadcast %102 : vector<64x1xf32> to vector<64x16xf32>
    %104 = arith.addf %100, %103 : vector<64x16xf32>
    %105 = vector.extract_strided_slice %104 {offsets = [0, 0], sizes = [32, 16], strides = [1, 1]} : vector<64x16xf32> to vector<32x16xf32>
    %106 = math.tanh %105 : vector<32x16xf32>
    %107 = vector.extract_strided_slice %104 {offsets = [32, 0], sizes = [32, 16], strides = [1, 1]} : vector<64x16xf32> to vector<32x16xf32>
    %108 = arith.negf %107 : vector<32x16xf32>
    %109 = math.exp %108 : vector<32x16xf32>
    %cst_98 = arith.constant 1.000000e+00 : f32
    %110 = vector.broadcast %cst_98 : f32 to vector<32x16xf32>
    %111 = arith.addf %110, %109 : vector<32x16xf32>
    %112 = arith.divf %110, %111 : vector<32x16xf32>
    %113 = arith.mulf %106, %112 : vector<32x16xf32>
    %c0_99 = arith.constant 0 : index
    %c2_100 = arith.constant 2 : index
    %c0_101 = arith.constant 0 : index
    %c0_102 = arith.constant 0 : index
    %114 = vector.load %arg7[%c0_99, %c2_100, %c0_101, %c0_102] : memref<4x4x64x32xf32, #tpu.memory_space<vmem>>, vector<1x1x64x32xf32>
    %115 = vector.shape_cast %114 : vector<1x1x64x32xf32> to vector<64x32xf32>
    %cst_103 = arith.constant dense<0.000000e+00> : vector<64x16xf32>
    %116 = tpu.matmul %115, %113, %cst_103 {dimension_numbers = #tpu.dot_dimension_numbers<[1], [0], [0], [1], [0, 0, 1, 1], [], []>} : vector<64x32xf32>, vector<32x16xf32>, vector<64x16xf32> -> vector<64x16xf32>
    %c0_104 = arith.constant 0 : index
    %c2_105 = arith.constant 2 : index
    %c0_106 = arith.constant 0 : index
    %c0_107 = arith.constant 0 : index
    %117 = vector.load %arg8[%c0_104, %c2_105, %c0_106, %c0_107] : memref<4x4x64x1xf32, #tpu.memory_space<vmem>>, vector<1x1x64x1xf32>
    %118 = vector.shape_cast %117 : vector<1x1x64x1xf32> to vector<64x1xf32>
    %119 = vector.broadcast %118 : vector<64x1xf32> to vector<64x16xf32>
    %120 = arith.addf %116, %119 : vector<64x16xf32>
    %121 = vector.extract_strided_slice %120 {offsets = [0, 0], sizes = [32, 16], strides = [1, 1]} : vector<64x16xf32> to vector<32x16xf32>
    %122 = arith.addf %88, %121 : vector<32x16xf32>
    %123 = vector.broadcast %1 : vector<1x16xf32> to vector<32x16xf32>
    %124 = arith.mulf %122, %123 : vector<32x16xf32>
    %125 = vector.extract_strided_slice %120 {offsets = [32, 0], sizes = [32, 16], strides = [1, 1]} : vector<64x16xf32> to vector<32x16xf32>
    %126 = arith.addf %90, %125 : vector<32x16xf32>
    %c0_108 = arith.constant 0 : index
    %c2_109 = arith.constant 2 : index
    %127 = vector.load %arg13[%c0_108, %c2_109] : memref<32x20xf32, #tpu.memory_space<vmem>>, vector<32x16xf32>
    tpu.vector_store %arg13[%c0_108, %c2_109], %124 {strides = array<i32>} : memref<32x20xf32, #tpu.memory_space<vmem>>, vector<32x16xf32>,
    %c0_110 = arith.constant 0 : index
    %c0_111 = arith.constant 0 : index
    %128 = vector.load %arg13[%c0_110, %c0_111] : memref<32x20xf32, #tpu.memory_space<vmem>>, vector<32x16xf32>
    %c0_112 = arith.constant 0 : index
    %c1_113 = arith.constant 1 : index
    %129 = vector.load %arg13[%c0_112, %c1_113] : memref<32x20xf32, #tpu.memory_space<vmem>>, vector<32x16xf32>
    %c0_114 = arith.constant 0 : index
    %c2_115 = arith.constant 2 : index
    %130 = vector.load %arg13[%c0_114, %c2_115] : memref<32x20xf32, #tpu.memory_space<vmem>>, vector<32x16xf32>
    %c0_116 = arith.constant 0 : index
    %c3_117 = arith.constant 3 : index
    %131 = vector.load %arg13[%c0_116, %c3_117] : memref<32x20xf32, #tpu.memory_space<vmem>>, vector<32x16xf32>
    %c0_118 = arith.constant 0 : index
    %c4_119 = arith.constant 4 : index
    %132 = vector.load %arg13[%c0_118, %c4_119] : memref<32x20xf32, #tpu.memory_space<vmem>>, vector<32x16xf32>
    %133 = tpu.concatenate %128, %129, %130, %131, %132 in 0 : vector<32x16xf32>, vector<32x16xf32>, vector<32x16xf32>, vector<32x16xf32>, vector<32x16xf32> -> vector<160x16xf32>
    %c0_120 = arith.constant 0 : index
    %c3_121 = arith.constant 3 : index
    %c0_122 = arith.constant 0 : index
    %c0_123 = arith.constant 0 : index
    %134 = vector.load %arg5[%c0_120, %c3_121, %c0_122, %c0_123] : memref<4x4x64x160xf32, #tpu.memory_space<vmem>>, vector<1x1x64x160xf32>
    %135 = vector.shape_cast %134 : vector<1x1x64x160xf32> to vector<64x160xf32>
    %cst_124 = arith.constant dense<0.000000e+00> : vector<64x16xf32>
    %136 = tpu.matmul %135, %133, %cst_124 {dimension_numbers = #tpu.dot_dimension_numbers<[1], [0], [0], [1], [0, 0, 1, 1], [], []>} : vector<64x160xf32>, vector<160x16xf32>, vector<64x16xf32> -> vector<64x16xf32>
    %c0_125 = arith.constant 0 : index
    %c3_126 = arith.constant 3 : index
    %c0_127 = arith.constant 0 : index
    %c0_128 = arith.constant 0 : index
    %137 = vector.load %arg6[%c0_125, %c3_126, %c0_127, %c0_128] : memref<4x4x64x1xf32, #tpu.memory_space<vmem>>, vector<1x1x64x1xf32>
    %138 = vector.shape_cast %137 : vector<1x1x64x1xf32> to vector<64x1xf32>
    %139 = vector.broadcast %138 : vector<64x1xf32> to vector<64x16xf32>
    %140 = arith.addf %136, %139 : vector<64x16xf32>
    %141 = vector.extract_strided_slice %140 {offsets = [0, 0], sizes = [32, 16], strides = [1, 1]} : vector<64x16xf32> to vector<32x16xf32>
    %142 = math.tanh %141 : vector<32x16xf32>
    %143 = vector.extract_strided_slice %140 {offsets = [32, 0], sizes = [32, 16], strides = [1, 1]} : vector<64x16xf32> to vector<32x16xf32>
    %144 = arith.negf %143 : vector<32x16xf32>
    %145 = math.exp %144 : vector<32x16xf32>
    %cst_129 = arith.constant 1.000000e+00 : f32
    %146 = vector.broadcast %cst_129 : f32 to vector<32x16xf32>
    %147 = arith.addf %146, %145 : vector<32x16xf32>
    %148 = arith.divf %146, %147 : vector<32x16xf32>
    %149 = arith.mulf %142, %148 : vector<32x16xf32>
    %c0_130 = arith.constant 0 : index
    %c3_131 = arith.constant 3 : index
    %c0_132 = arith.constant 0 : index
    %c0_133 = arith.constant 0 : index
    %150 = vector.load %arg7[%c0_130, %c3_131, %c0_132, %c0_133] : memref<4x4x64x32xf32, #tpu.memory_space<vmem>>, vector<1x1x64x32xf32>
    %151 = vector.shape_cast %150 : vector<1x1x64x32xf32> to vector<64x32xf32>
    %152 = vector.extract_strided_slice %151 {offsets = [0, 0], sizes = [32, 32], strides = [1, 1]} : vector<64x32xf32> to vector<32x32xf32>
    %c0_134 = arith.constant 0 : index
    %c3_135 = arith.constant 3 : index
    %c0_136 = arith.constant 0 : index
    %c0_137 = arith.constant 0 : index
    %153 = vector.load %arg8[%c0_134, %c3_135, %c0_136, %c0_137] : memref<4x4x64x1xf32, #tpu.memory_space<vmem>>, vector<1x1x64x1xf32>
    %154 = vector.shape_cast %153 : vector<1x1x64x1xf32> to vector<64x1xf32>
    %155 = vector.extract_strided_slice %154 {offsets = [0, 0], sizes = [32, 1], strides = [1, 1]} : vector<64x1xf32> to vector<32x1xf32>
    %cst_138 = arith.constant dense<0.000000e+00> : vector<32x16xf32>
    %156 = tpu.matmul %152, %149, %cst_138 {dimension_numbers = #tpu.dot_dimension_numbers<[1], [0], [0], [1], [0, 0, 1, 1], [], []>} : vector<32x32xf32>, vector<32x16xf32>, vector<32x16xf32> -> vector<32x16xf32>
    %157 = vector.broadcast %155 : vector<32x1xf32> to vector<32x16xf32>
    %158 = arith.addf %156, %157 : vector<32x16xf32>
    %159 = arith.addf %126, %158 : vector<32x16xf32>
    %160 = vector.broadcast %1 : vector<1x16xf32> to vector<32x16xf32>
    %161 = arith.mulf %159, %160 : vector<32x16xf32>
    %c0_139 = arith.constant 0 : index
    %c0_140 = arith.constant 0 : index
    %c0_141 = arith.constant 0 : index
    %162 = vector.load %arg9[%c0_139, %c0_140, %c0_141] : memref<4x4x32xf32, #tpu.memory_space<vmem>>, vector<1x4x32xf32>
    %163 = vector.shape_cast %162 : vector<1x4x32xf32> to vector<4x32xf32>
    %cst_142 = arith.constant dense<0.000000e+00> : vector<4x16xf32>
    %164 = tpu.matmul %163, %161, %cst_142 {dimension_numbers = #tpu.dot_dimension_numbers<[1], [0], [0], [1], [0, 0, 1, 1], [], []>} : vector<4x32xf32>, vector<32x16xf32>, vector<4x16xf32> -> vector<4x16xf32>
    %c0_143 = arith.constant 0 : index
    %c0_144 = arith.constant 0 : index
    %c0_145 = arith.constant 0 : index
    %165 = vector.load %arg10[%c0_143, %c0_144, %c0_145] : memref<4x4x1xf32, #tpu.memory_space<vmem>>, vector<1x4x1xf32>
    %166 = vector.shape_cast %165 : vector<1x4x1xf32> to vector<4x1xf32>
    %167 = vector.broadcast %166 : vector<4x1xf32> to vector<4x16xf32>
    %168 = arith.addf %164, %167 : vector<4x16xf32>
    %169 = vector.broadcast %1 : vector<1x16xf32> to vector<4x16xf32>
    %170 = arith.mulf %168, %169 : vector<4x16xf32>
    %171 = vector.extract_strided_slice %170 {offsets = [0, 0], sizes = [2, 16], strides = [1, 1]} : vector<4x16xf32> to vector<2x16xf32>
    %172 = vector.extract_strided_slice %170 {offsets = [2, 0], sizes = [2, 16], strides = [1, 1]} : vector<4x16xf32> to vector<2x16xf32>
    %173 = math.exp %172 : vector<2x16xf32>
    %174 = arith.mulf %5, %173 : vector<2x16xf32>
    %175 = vector.broadcast %1 : vector<1x16xf32> to vector<2x16xf32>
    %176 = arith.mulf %174, %175 : vector<2x16xf32>
    %177 = arith.addf %171, %176 : vector<2x16xf32>
    %cst_146 = arith.constant dense<0.000000e+00> : vector<16xf32>
    %178 = vector.multi_reduction <add>, %172, %cst_146 [0] : vector<2x16xf32> to vector<16xf32>
    %179 = vector.shape_cast %178 : vector<16xf32> to vector<1x16xf32>
    %cst_147 = arith.constant dense<0.000000e+00> : vector<1xf32>
    %180 = vector.multi_reduction <add>, %179, %cst_147 [1] : vector<1x16xf32> to vector<1xf32>
    %181 = vector.shape_cast %180 : vector<1xf32> to vector<1x1xf32>
    %182 = arith.addf %8, %181 : vector<1x1xf32>
    %c1_148 = arith.constant 1 : index
    %c0_149 = arith.constant 0 : index
    %c0_150 = arith.constant 0 : index
    %183 = vector.load %arg3[%c1_148, %c0_149, %c0_150] : memref<4x32x2xf32, #tpu.memory_space<vmem>>, vector<1x32x2xf32>
    %184 = vector.shape_cast %183 : vector<1x32x2xf32> to vector<32x2xf32>
    %cst_151 = arith.constant dense<0.000000e+00> : vector<32x16xf32>
    %185 = tpu.matmul %184, %177, %cst_151 {dimension_numbers = #tpu.dot_dimension_numbers<[1], [0], [0], [1], [0, 0, 1, 1], [], []>} : vector<32x2xf32>, vector<2x16xf32>, vector<32x16xf32> -> vector<32x16xf32>
    %c1_152 = arith.constant 1 : index
    %c0_153 = arith.constant 0 : index
    %c0_154 = arith.constant 0 : index
    %186 = vector.load %arg4[%c1_152, %c0_153, %c0_154] : memref<4x32x1xf32, #tpu.memory_space<vmem>>, vector<1x32x1xf32>
    %187 = vector.shape_cast %186 : vector<1x32x1xf32> to vector<32x1xf32>
    %188 = vector.broadcast %187 : vector<32x1xf32> to vector<32x16xf32>
    %189 = arith.addf %185, %188 : vector<32x16xf32>
    %190 = vector.broadcast %1 : vector<1x16xf32> to vector<32x16xf32>
    %191 = arith.mulf %189, %190 : vector<32x16xf32>
    %cst_155 = arith.constant 0.000000e+00 : f32
    %192 = vector.broadcast %cst_155 : f32 to vector<32x16xf32>
    %c0_156 = arith.constant 0 : index
    %c2_157 = arith.constant 2 : index
    %193 = vector.load %arg13[%c0_156, %c2_157] : memref<32x20xf32, #tpu.memory_space<vmem>>, vector<32x16xf32>
    tpu.vector_store %arg13[%c0_156, %c2_157], %191 {strides = array<i32>} : memref<32x20xf32, #tpu.memory_space<vmem>>, vector<32x16xf32>,
    %c0_158 = arith.constant 0 : index
    %c0_159 = arith.constant 0 : index
    %194 = vector.load %arg13[%c0_158, %c0_159] : memref<32x20xf32, #tpu.memory_space<vmem>>, vector<32x16xf32>
    %c0_160 = arith.constant 0 : index
    %c1_161 = arith.constant 1 : index
    %195 = vector.load %arg13[%c0_160, %c1_161] : memref<32x20xf32, #tpu.memory_space<vmem>>, vector<32x16xf32>
    %c0_162 = arith.constant 0 : index
    %c2_163 = arith.constant 2 : index
    %196 = vector.load %arg13[%c0_162, %c2_163] : memref<32x20xf32, #tpu.memory_space<vmem>>, vector<32x16xf32>
    %c0_164 = arith.constant 0 : index
    %c3_165 = arith.constant 3 : index
    %197 = vector.load %arg13[%c0_164, %c3_165] : memref<32x20xf32, #tpu.memory_space<vmem>>, vector<32x16xf32>
    %c0_166 = arith.constant 0 : index
    %c4_167 = arith.constant 4 : index
    %198 = vector.load %arg13[%c0_166, %c4_167] : memref<32x20xf32, #tpu.memory_space<vmem>>, vector<32x16xf32>
    %199 = tpu.concatenate %194, %195, %196, %197, %198 in 0 : vector<32x16xf32>, vector<32x16xf32>, vector<32x16xf32>, vector<32x16xf32>, vector<32x16xf32> -> vector<160x16xf32>
    %c1_168 = arith.constant 1 : index
    %c0_169 = arith.constant 0 : index
    %c0_170 = arith.constant 0 : index
    %c0_171 = arith.constant 0 : index
    %200 = vector.load %arg5[%c1_168, %c0_169, %c0_170, %c0_171] : memref<4x4x64x160xf32, #tpu.memory_space<vmem>>, vector<1x1x64x160xf32>
    %201 = vector.shape_cast %200 : vector<1x1x64x160xf32> to vector<64x160xf32>
    %cst_172 = arith.constant dense<0.000000e+00> : vector<64x16xf32>
    %202 = tpu.matmul %201, %199, %cst_172 {dimension_numbers = #tpu.dot_dimension_numbers<[1], [0], [0], [1], [0, 0, 1, 1], [], []>} : vector<64x160xf32>, vector<160x16xf32>, vector<64x16xf32> -> vector<64x16xf32>
    %c1_173 = arith.constant 1 : index
    %c0_174 = arith.constant 0 : index
    %c0_175 = arith.constant 0 : index
    %c0_176 = arith.constant 0 : index
    %203 = vector.load %arg6[%c1_173, %c0_174, %c0_175, %c0_176] : memref<4x4x64x1xf32, #tpu.memory_space<vmem>>, vector<1x1x64x1xf32>
    %204 = vector.shape_cast %203 : vector<1x1x64x1xf32> to vector<64x1xf32>
    %205 = vector.broadcast %204 : vector<64x1xf32> to vector<64x16xf32>
    %206 = arith.addf %202, %205 : vector<64x16xf32>
    %207 = vector.extract_strided_slice %206 {offsets = [0, 0], sizes = [32, 16], strides = [1, 1]} : vector<64x16xf32> to vector<32x16xf32>
    %208 = math.tanh %207 : vector<32x16xf32>
    %209 = vector.extract_strided_slice %206 {offsets = [32, 0], sizes = [32, 16], strides = [1, 1]} : vector<64x16xf32> to vector<32x16xf32>
    %210 = arith.negf %209 : vector<32x16xf32>
    %211 = math.exp %210 : vector<32x16xf32>
    %cst_177 = arith.constant 1.000000e+00 : f32
    %212 = vector.broadcast %cst_177 : f32 to vector<32x16xf32>
    %213 = arith.addf %212, %211 : vector<32x16xf32>
    %214 = arith.divf %212, %213 : vector<32x16xf32>
    %215 = arith.mulf %208, %214 : vector<32x16xf32>
    %c1_178 = arith.constant 1 : index
    %c0_179 = arith.constant 0 : index
    %c0_180 = arith.constant 0 : index
    %c0_181 = arith.constant 0 : index
    %216 = vector.load %arg7[%c1_178, %c0_179, %c0_180, %c0_181] : memref<4x4x64x32xf32, #tpu.memory_space<vmem>>, vector<1x1x64x32xf32>
    %217 = vector.shape_cast %216 : vector<1x1x64x32xf32> to vector<64x32xf32>
    %cst_182 = arith.constant dense<0.000000e+00> : vector<64x16xf32>
    %218 = tpu.matmul %217, %215, %cst_182 {dimension_numbers = #tpu.dot_dimension_numbers<[1], [0], [0], [1], [0, 0, 1, 1], [], []>} : vector<64x32xf32>, vector<32x16xf32>, vector<64x16xf32> -> vector<64x16xf32>
    %c1_183 = arith.constant 1 : index
    %c0_184 = arith.constant 0 : index
    %c0_185 = arith.constant 0 : index
    %c0_186 = arith.constant 0 : index
    %219 = vector.load %arg8[%c1_183, %c0_184, %c0_185, %c0_186] : memref<4x4x64x1xf32, #tpu.memory_space<vmem>>, vector<1x1x64x1xf32>
    %220 = vector.shape_cast %219 : vector<1x1x64x1xf32> to vector<64x1xf32>
    %221 = vector.broadcast %220 : vector<64x1xf32> to vector<64x16xf32>
    %222 = arith.addf %218, %221 : vector<64x16xf32>
    %223 = vector.extract_strided_slice %222 {offsets = [0, 0], sizes = [32, 16], strides = [1, 1]} : vector<64x16xf32> to vector<32x16xf32>
    %224 = arith.addf %191, %223 : vector<32x16xf32>
    %225 = vector.broadcast %1 : vector<1x16xf32> to vector<32x16xf32>
    %226 = arith.mulf %224, %225 : vector<32x16xf32>
    %227 = vector.extract_strided_slice %222 {offsets = [32, 0], sizes = [32, 16], strides = [1, 1]} : vector<64x16xf32> to vector<32x16xf32>
    %228 = arith.addf %192, %227 : vector<32x16xf32>
    %c0_187 = arith.constant 0 : index
    %c2_188 = arith.constant 2 : index
    %229 = vector.load %arg13[%c0_187, %c2_188] : memref<32x20xf32, #tpu.memory_space<vmem>>, vector<32x16xf32>
    tpu.vector_store %arg13[%c0_187, %c2_188], %226 {strides = array<i32>} : memref<32x20xf32, #tpu.memory_space<vmem>>, vector<32x16xf32>,
    %c0_189 = arith.constant 0 : index
    %c0_190 = arith.constant 0 : index
    %230 = vector.load %arg13[%c0_189, %c0_190] : memref<32x20xf32, #tpu.memory_space<vmem>>, vector<32x16xf32>
    %c0_191 = arith.constant 0 : index
    %c1_192 = arith.constant 1 : index
    %231 = vector.load %arg13[%c0_191, %c1_192] : memref<32x20xf32, #tpu.memory_space<vmem>>, vector<32x16xf32>
    %c0_193 = arith.constant 0 : index
    %c2_194 = arith.constant 2 : index
    %232 = vector.load %arg13[%c0_193, %c2_194] : memref<32x20xf32, #tpu.memory_space<vmem>>, vector<32x16xf32>
    %c0_195 = arith.constant 0 : index
    %c3_196 = arith.constant 3 : index
    %233 = vector.load %arg13[%c0_195, %c3_196] : memref<32x20xf32, #tpu.memory_space<vmem>>, vector<32x16xf32>
    %c0_197 = arith.constant 0 : index
    %c4_198 = arith.constant 4 : index
    %234 = vector.load %arg13[%c0_197, %c4_198] : memref<32x20xf32, #tpu.memory_space<vmem>>, vector<32x16xf32>
    %235 = tpu.concatenate %230, %231, %232, %233, %234 in 0 : vector<32x16xf32>, vector<32x16xf32>, vector<32x16xf32>, vector<32x16xf32>, vector<32x16xf32> -> vector<160x16xf32>
    %c1_199 = arith.constant 1 : index
    %c1_200 = arith.constant 1 : index
    %c0_201 = arith.constant 0 : index
    %c0_202 = arith.constant 0 : index
    %236 = vector.load %arg5[%c1_199, %c1_200, %c0_201, %c0_202] : memref<4x4x64x160xf32, #tpu.memory_space<vmem>>, vector<1x1x64x160xf32>
    %237 = vector.shape_cast %236 : vector<1x1x64x160xf32> to vector<64x160xf32>
    %cst_203 = arith.constant dense<0.000000e+00> : vector<64x16xf32>
    %238 = tpu.matmul %237, %235, %cst_203 {dimension_numbers = #tpu.dot_dimension_numbers<[1], [0], [0], [1], [0, 0, 1, 1], [], []>} : vector<64x160xf32>, vector<160x16xf32>, vector<64x16xf32> -> vector<64x16xf32>
    %c1_204 = arith.constant 1 : index
    %c1_205 = arith.constant 1 : index
    %c0_206 = arith.constant 0 : index
    %c0_207 = arith.constant 0 : index
    %239 = vector.load %arg6[%c1_204, %c1_205, %c0_206, %c0_207] : memref<4x4x64x1xf32, #tpu.memory_space<vmem>>, vector<1x1x64x1xf32>
    %240 = vector.shape_cast %239 : vector<1x1x64x1xf32> to vector<64x1xf32>
    %241 = vector.broadcast %240 : vector<64x1xf32> to vector<64x16xf32>
    %242 = arith.addf %238, %241 : vector<64x16xf32>
    %243 = vector.extract_strided_slice %242 {offsets = [0, 0], sizes = [32, 16], strides = [1, 1]} : vector<64x16xf32> to vector<32x16xf32>
    %244 = math.tanh %243 : vector<32x16xf32>
    %245 = vector.extract_strided_slice %242 {offsets = [32, 0], sizes = [32, 16], strides = [1, 1]} : vector<64x16xf32> to vector<32x16xf32>
    %246 = arith.negf %245 : vector<32x16xf32>
    %247 = math.exp %246 : vector<32x16xf32>
    %cst_208 = arith.constant 1.000000e+00 : f32
    %248 = vector.broadcast %cst_208 : f32 to vector<32x16xf32>
    %249 = arith.addf %248, %247 : vector<32x16xf32>
    %250 = arith.divf %248, %249 : vector<32x16xf32>
    %251 = arith.mulf %244, %250 : vector<32x16xf32>
    %c1_209 = arith.constant 1 : index
    %c1_210 = arith.constant 1 : index
    %c0_211 = arith.constant 0 : index
    %c0_212 = arith.constant 0 : index
    %252 = vector.load %arg7[%c1_209, %c1_210, %c0_211, %c0_212] : memref<4x4x64x32xf32, #tpu.memory_space<vmem>>, vector<1x1x64x32xf32>
    %253 = vector.shape_cast %252 : vector<1x1x64x32xf32> to vector<64x32xf32>
    %cst_213 = arith.constant dense<0.000000e+00> : vector<64x16xf32>
    %254 = tpu.matmul %253, %251, %cst_213 {dimension_numbers = #tpu.dot_dimension_numbers<[1], [0], [0], [1], [0, 0, 1, 1], [], []>} : vector<64x32xf32>, vector<32x16xf32>, vector<64x16xf32> -> vector<64x16xf32>
    %c1_214 = arith.constant 1 : index
    %c1_215 = arith.constant 1 : index
    %c0_216 = arith.constant 0 : index
    %c0_217 = arith.constant 0 : index
    %255 = vector.load %arg8[%c1_214, %c1_215, %c0_216, %c0_217] : memref<4x4x64x1xf32, #tpu.memory_space<vmem>>, vector<1x1x64x1xf32>
    %256 = vector.shape_cast %255 : vector<1x1x64x1xf32> to vector<64x1xf32>
    %257 = vector.broadcast %256 : vector<64x1xf32> to vector<64x16xf32>
    %258 = arith.addf %254, %257 : vector<64x16xf32>
    %259 = vector.extract_strided_slice %258 {offsets = [0, 0], sizes = [32, 16], strides = [1, 1]} : vector<64x16xf32> to vector<32x16xf32>
    %260 = arith.addf %226, %259 : vector<32x16xf32>
    %261 = vector.broadcast %1 : vector<1x16xf32> to vector<32x16xf32>
    %262 = arith.mulf %260, %261 : vector<32x16xf32>
    %263 = vector.extract_strided_slice %258 {offsets = [32, 0], sizes = [32, 16], strides = [1, 1]} : vector<64x16xf32> to vector<32x16xf32>
    %264 = arith.addf %228, %263 : vector<32x16xf32>
    %c0_218 = arith.constant 0 : index
    %c2_219 = arith.constant 2 : index
    %265 = vector.load %arg13[%c0_218, %c2_219] : memref<32x20xf32, #tpu.memory_space<vmem>>, vector<32x16xf32>
    tpu.vector_store %arg13[%c0_218, %c2_219], %262 {strides = array<i32>} : memref<32x20xf32, #tpu.memory_space<vmem>>, vector<32x16xf32>,
    %c0_220 = arith.constant 0 : index
    %c0_221 = arith.constant 0 : index
    %266 = vector.load %arg13[%c0_220, %c0_221] : memref<32x20xf32, #tpu.memory_space<vmem>>, vector<32x16xf32>
    %c0_222 = arith.constant 0 : index
    %c1_223 = arith.constant 1 : index
    %267 = vector.load %arg13[%c0_222, %c1_223] : memref<32x20xf32, #tpu.memory_space<vmem>>, vector<32x16xf32>
    %c0_224 = arith.constant 0 : index
    %c2_225 = arith.constant 2 : index
    %268 = vector.load %arg13[%c0_224, %c2_225] : memref<32x20xf32, #tpu.memory_space<vmem>>, vector<32x16xf32>
    %c0_226 = arith.constant 0 : index
    %c3_227 = arith.constant 3 : index
    %269 = vector.load %arg13[%c0_226, %c3_227] : memref<32x20xf32, #tpu.memory_space<vmem>>, vector<32x16xf32>
    %c0_228 = arith.constant 0 : index
    %c4_229 = arith.constant 4 : index
    %270 = vector.load %arg13[%c0_228, %c4_229] : memref<32x20xf32, #tpu.memory_space<vmem>>, vector<32x16xf32>
    %271 = tpu.concatenate %266, %267, %268, %269, %270 in 0 : vector<32x16xf32>, vector<32x16xf32>, vector<32x16xf32>, vector<32x16xf32>, vector<32x16xf32> -> vector<160x16xf32>
    %c1_230 = arith.constant 1 : index
    %c2_231 = arith.constant 2 : index
    %c0_232 = arith.constant 0 : index
    %c0_233 = arith.constant 0 : index
    %272 = vector.load %arg5[%c1_230, %c2_231, %c0_232, %c0_233] : memref<4x4x64x160xf32, #tpu.memory_space<vmem>>, vector<1x1x64x160xf32>
    %273 = vector.shape_cast %272 : vector<1x1x64x160xf32> to vector<64x160xf32>
    %cst_234 = arith.constant dense<0.000000e+00> : vector<64x16xf32>
    %274 = tpu.matmul %273, %271, %cst_234 {dimension_numbers = #tpu.dot_dimension_numbers<[1], [0], [0], [1], [0, 0, 1, 1], [], []>} : vector<64x160xf32>, vector<160x16xf32>, vector<64x16xf32> -> vector<64x16xf32>
    %c1_235 = arith.constant 1 : index
    %c2_236 = arith.constant 2 : index
    %c0_237 = arith.constant 0 : index
    %c0_238 = arith.constant 0 : index
    %275 = vector.load %arg6[%c1_235, %c2_236, %c0_237, %c0_238] : memref<4x4x64x1xf32, #tpu.memory_space<vmem>>, vector<1x1x64x1xf32>
    %276 = vector.shape_cast %275 : vector<1x1x64x1xf32> to vector<64x1xf32>
    %277 = vector.broadcast %276 : vector<64x1xf32> to vector<64x16xf32>
    %278 = arith.addf %274, %277 : vector<64x16xf32>
    %279 = vector.extract_strided_slice %278 {offsets = [0, 0], sizes = [32, 16], strides = [1, 1]} : vector<64x16xf32> to vector<32x16xf32>
    %280 = math.tanh %279 : vector<32x16xf32>
    %281 = vector.extract_strided_slice %278 {offsets = [32, 0], sizes = [32, 16], strides = [1, 1]} : vector<64x16xf32> to vector<32x16xf32>
    %282 = arith.negf %281 : vector<32x16xf32>
    %283 = math.exp %282 : vector<32x16xf32>
    %cst_239 = arith.constant 1.000000e+00 : f32
    %284 = vector.broadcast %cst_239 : f32 to vector<32x16xf32>
    %285 = arith.addf %284, %283 : vector<32x16xf32>
    %286 = arith.divf %284, %285 : vector<32x16xf32>
    %287 = arith.mulf %280, %286 : vector<32x16xf32>
    %c1_240 = arith.constant 1 : index
    %c2_241 = arith.constant 2 : index
    %c0_242 = arith.constant 0 : index
    %c0_243 = arith.constant 0 : index
    %288 = vector.load %arg7[%c1_240, %c2_241, %c0_242, %c0_243] : memref<4x4x64x32xf32, #tpu.memory_space<vmem>>, vector<1x1x64x32xf32>
    %289 = vector.shape_cast %288 : vector<1x1x64x32xf32> to vector<64x32xf32>
    %cst_244 = arith.constant dense<0.000000e+00> : vector<64x16xf32>
    %290 = tpu.matmul %289, %287, %cst_244 {dimension_numbers = #tpu.dot_dimension_numbers<[1], [0], [0], [1], [0, 0, 1, 1], [], []>} : vector<64x32xf32>, vector<32x16xf32>, vector<64x16xf32> -> vector<64x16xf32>
    %c1_245 = arith.constant 1 : index
    %c2_246 = arith.constant 2 : index
    %c0_247 = arith.constant 0 : index
    %c0_248 = arith.constant 0 : index
    %291 = vector.load %arg8[%c1_245, %c2_246, %c0_247, %c0_248] : memref<4x4x64x1xf32, #tpu.memory_space<vmem>>, vector<1x1x64x1xf32>
    %292 = vector.shape_cast %291 : vector<1x1x64x1xf32> to vector<64x1xf32>
    %293 = vector.broadcast %292 : vector<64x1xf32> to vector<64x16xf32>
    %294 = arith.addf %290, %293 : vector<64x16xf32>
    %295 = vector.extract_strided_slice %294 {offsets = [0, 0], sizes = [32, 16], strides = [1, 1]} : vector<64x16xf32> to vector<32x16xf32>
    %296 = arith.addf %262, %295 : vector<32x16xf32>
    %297 = vector.broadcast %1 : vector<1x16xf32> to vector<32x16xf32>
    %298 = arith.mulf %296, %297 : vector<32x16xf32>
    %299 = vector.extract_strided_slice %294 {offsets = [32, 0], sizes = [32, 16], strides = [1, 1]} : vector<64x16xf32> to vector<32x16xf32>
    %300 = arith.addf %264, %299 : vector<32x16xf32>
    %c0_249 = arith.constant 0 : index
    %c2_250 = arith.constant 2 : index
    %301 = vector.load %arg13[%c0_249, %c2_250] : memref<32x20xf32, #tpu.memory_space<vmem>>, vector<32x16xf32>
    tpu.vector_store %arg13[%c0_249, %c2_250], %298 {strides = array<i32>} : memref<32x20xf32, #tpu.memory_space<vmem>>, vector<32x16xf32>,
    %c0_251 = arith.constant 0 : index
    %c0_252 = arith.constant 0 : index
    %302 = vector.load %arg13[%c0_251, %c0_252] : memref<32x20xf32, #tpu.memory_space<vmem>>, vector<32x16xf32>
    %c0_253 = arith.constant 0 : index
    %c1_254 = arith.constant 1 : index
    %303 = vector.load %arg13[%c0_253, %c1_254] : memref<32x20xf32, #tpu.memory_space<vmem>>, vector<32x16xf32>
    %c0_255 = arith.constant 0 : index
    %c2_256 = arith.constant 2 : index
    %304 = vector.load %arg13[%c0_255, %c2_256] : memref<32x20xf32, #tpu.memory_space<vmem>>, vector<32x16xf32>
    %c0_257 = arith.constant 0 : index
    %c3_258 = arith.constant 3 : index
    %305 = vector.load %arg13[%c0_257, %c3_258] : memref<32x20xf32, #tpu.memory_space<vmem>>, vector<32x16xf32>
    %c0_259 = arith.constant 0 : index
    %c4_260 = arith.constant 4 : index
    %306 = vector.load %arg13[%c0_259, %c4_260] : memref<32x20xf32, #tpu.memory_space<vmem>>, vector<32x16xf32>
    %307 = tpu.concatenate %302, %303, %304, %305, %306 in 0 : vector<32x16xf32>, vector<32x16xf32>, vector<32x16xf32>, vector<32x16xf32>, vector<32x16xf32> -> vector<160x16xf32>
    %c1_261 = arith.constant 1 : index
    %c3_262 = arith.constant 3 : index
    %c0_263 = arith.constant 0 : index
    %c0_264 = arith.constant 0 : index
    %308 = vector.load %arg5[%c1_261, %c3_262, %c0_263, %c0_264] : memref<4x4x64x160xf32, #tpu.memory_space<vmem>>, vector<1x1x64x160xf32>
    %309 = vector.shape_cast %308 : vector<1x1x64x160xf32> to vector<64x160xf32>
    %cst_265 = arith.constant dense<0.000000e+00> : vector<64x16xf32>
    %310 = tpu.matmul %309, %307, %cst_265 {dimension_numbers = #tpu.dot_dimension_numbers<[1], [0], [0], [1], [0, 0, 1, 1], [], []>} : vector<64x160xf32>, vector<160x16xf32>, vector<64x16xf32> -> vector<64x16xf32>
    %c1_266 = arith.constant 1 : index
    %c3_267 = arith.constant 3 : index
    %c0_268 = arith.constant 0 : index
    %c0_269 = arith.constant 0 : index
    %311 = vector.load %arg6[%c1_266, %c3_267, %c0_268, %c0_269] : memref<4x4x64x1xf32, #tpu.memory_space<vmem>>, vector<1x1x64x1xf32>
    %312 = vector.shape_cast %311 : vector<1x1x64x1xf32> to vector<64x1xf32>
    %313 = vector.broadcast %312 : vector<64x1xf32> to vector<64x16xf32>
    %314 = arith.addf %310, %313 : vector<64x16xf32>
    %315 = vector.extract_strided_slice %314 {offsets = [0, 0], sizes = [32, 16], strides = [1, 1]} : vector<64x16xf32> to vector<32x16xf32>
    %316 = math.tanh %315 : vector<32x16xf32>
    %317 = vector.extract_strided_slice %314 {offsets = [32, 0], sizes = [32, 16], strides = [1, 1]} : vector<64x16xf32> to vector<32x16xf32>
    %318 = arith.negf %317 : vector<32x16xf32>
    %319 = math.exp %318 : vector<32x16xf32>
    %cst_270 = arith.constant 1.000000e+00 : f32
    %320 = vector.broadcast %cst_270 : f32 to vector<32x16xf32>
    %321 = arith.addf %320, %319 : vector<32x16xf32>
    %322 = arith.divf %320, %321 : vector<32x16xf32>
    %323 = arith.mulf %316, %322 : vector<32x16xf32>
    %c1_271 = arith.constant 1 : index
    %c3_272 = arith.constant 3 : index
    %c0_273 = arith.constant 0 : index
    %c0_274 = arith.constant 0 : index
    %324 = vector.load %arg7[%c1_271, %c3_272, %c0_273, %c0_274] : memref<4x4x64x32xf32, #tpu.memory_space<vmem>>, vector<1x1x64x32xf32>
    %325 = vector.shape_cast %324 : vector<1x1x64x32xf32> to vector<64x32xf32>
    %326 = vector.extract_strided_slice %325 {offsets = [0, 0], sizes = [32, 32], strides = [1, 1]} : vector<64x32xf32> to vector<32x32xf32>
    %c1_275 = arith.constant 1 : index
    %c3_276 = arith.constant 3 : index
    %c0_277 = arith.constant 0 : index
    %c0_278 = arith.constant 0 : index
    %327 = vector.load %arg8[%c1_275, %c3_276, %c0_277, %c0_278] : memref<4x4x64x1xf32, #tpu.memory_space<vmem>>, vector<1x1x64x1xf32>
    %328 = vector.shape_cast %327 : vector<1x1x64x1xf32> to vector<64x1xf32>
    %329 = vector.extract_strided_slice %328 {offsets = [0, 0], sizes = [32, 1], strides = [1, 1]} : vector<64x1xf32> to vector<32x1xf32>
    %cst_279 = arith.constant dense<0.000000e+00> : vector<32x16xf32>
    %330 = tpu.matmul %326, %323, %cst_279 {dimension_numbers = #tpu.dot_dimension_numbers<[1], [0], [0], [1], [0, 0, 1, 1], [], []>} : vector<32x32xf32>, vector<32x16xf32>, vector<32x16xf32> -> vector<32x16xf32>
    %331 = vector.broadcast %329 : vector<32x1xf32> to vector<32x16xf32>
    %332 = arith.addf %330, %331 : vector<32x16xf32>
    %333 = arith.addf %300, %332 : vector<32x16xf32>
    %334 = vector.broadcast %1 : vector<1x16xf32> to vector<32x16xf32>
    %335 = arith.mulf %333, %334 : vector<32x16xf32>
    %c1_280 = arith.constant 1 : index
    %c0_281 = arith.constant 0 : index
    %c0_282 = arith.constant 0 : index
    %336 = vector.load %arg9[%c1_280, %c0_281, %c0_282] : memref<4x4x32xf32, #tpu.memory_space<vmem>>, vector<1x4x32xf32>
    %337 = vector.shape_cast %336 : vector<1x4x32xf32> to vector<4x32xf32>
    %cst_283 = arith.constant dense<0.000000e+00> : vector<4x16xf32>
    %338 = tpu.matmul %337, %335, %cst_283 {dimension_numbers = #tpu.dot_dimension_numbers<[1], [0], [0], [1], [0, 0, 1, 1], [], []>} : vector<4x32xf32>, vector<32x16xf32>, vector<4x16xf32> -> vector<4x16xf32>
    %c1_284 = arith.constant 1 : index
    %c0_285 = arith.constant 0 : index
    %c0_286 = arith.constant 0 : index
    %339 = vector.load %arg10[%c1_284, %c0_285, %c0_286] : memref<4x4x1xf32, #tpu.memory_space<vmem>>, vector<1x4x1xf32>
    %340 = vector.shape_cast %339 : vector<1x4x1xf32> to vector<4x1xf32>
    %341 = vector.broadcast %340 : vector<4x1xf32> to vector<4x16xf32>
    %342 = arith.addf %338, %341 : vector<4x16xf32>
    %343 = vector.broadcast %1 : vector<1x16xf32> to vector<4x16xf32>
    %344 = arith.mulf %342, %343 : vector<4x16xf32>
    %345 = vector.extract_strided_slice %344 {offsets = [0, 0], sizes = [2, 16], strides = [1, 1]} : vector<4x16xf32> to vector<2x16xf32>
    %346 = vector.extract_strided_slice %344 {offsets = [2, 0], sizes = [2, 16], strides = [1, 1]} : vector<4x16xf32> to vector<2x16xf32>
    %347 = math.exp %346 : vector<2x16xf32>
    %348 = arith.mulf %3, %347 : vector<2x16xf32>
    %349 = vector.broadcast %1 : vector<1x16xf32> to vector<2x16xf32>
    %350 = arith.mulf %348, %349 : vector<2x16xf32>
    %351 = arith.addf %345, %350 : vector<2x16xf32>
    %cst_287 = arith.constant dense<0.000000e+00> : vector<16xf32>
    %352 = vector.multi_reduction <add>, %346, %cst_287 [0] : vector<2x16xf32> to vector<16xf32>
    %353 = vector.shape_cast %352 : vector<16xf32> to vector<1x16xf32>
    %cst_288 = arith.constant dense<0.000000e+00> : vector<1xf32>
    %354 = vector.multi_reduction <add>, %353, %cst_288 [1] : vector<1x16xf32> to vector<1xf32>
    %355 = vector.shape_cast %354 : vector<1xf32> to vector<1x1xf32>
    %356 = arith.addf %182, %355 : vector<1x1xf32>
    %c2_289 = arith.constant 2 : index
    %c0_290 = arith.constant 0 : index
    %c0_291 = arith.constant 0 : index
    %357 = vector.load %arg3[%c2_289, %c0_290, %c0_291] : memref<4x32x2xf32, #tpu.memory_space<vmem>>, vector<1x32x2xf32>
    %358 = vector.shape_cast %357 : vector<1x32x2xf32> to vector<32x2xf32>
    %cst_292 = arith.constant dense<0.000000e+00> : vector<32x16xf32>
    %359 = tpu.matmul %358, %351, %cst_292 {dimension_numbers = #tpu.dot_dimension_numbers<[1], [0], [0], [1], [0, 0, 1, 1], [], []>} : vector<32x2xf32>, vector<2x16xf32>, vector<32x16xf32> -> vector<32x16xf32>
    %c2_293 = arith.constant 2 : index
    %c0_294 = arith.constant 0 : index
    %c0_295 = arith.constant 0 : index
    %360 = vector.load %arg4[%c2_293, %c0_294, %c0_295] : memref<4x32x1xf32, #tpu.memory_space<vmem>>, vector<1x32x1xf32>
    %361 = vector.shape_cast %360 : vector<1x32x1xf32> to vector<32x1xf32>
    %362 = vector.broadcast %361 : vector<32x1xf32> to vector<32x16xf32>
    %363 = arith.addf %359, %362 : vector<32x16xf32>
    %364 = vector.broadcast %1 : vector<1x16xf32> to vector<32x16xf32>
    %365 = arith.mulf %363, %364 : vector<32x16xf32>
    %cst_296 = arith.constant 0.000000e+00 : f32
    %366 = vector.broadcast %cst_296 : f32 to vector<32x16xf32>
    %c0_297 = arith.constant 0 : index
    %c2_298 = arith.constant 2 : index
    %367 = vector.load %arg13[%c0_297, %c2_298] : memref<32x20xf32, #tpu.memory_space<vmem>>, vector<32x16xf32>
    tpu.vector_store %arg13[%c0_297, %c2_298], %365 {strides = array<i32>} : memref<32x20xf32, #tpu.memory_space<vmem>>, vector<32x16xf32>,
    %c0_299 = arith.constant 0 : index
    %c0_300 = arith.constant 0 : index
    %368 = vector.load %arg13[%c0_299, %c0_300] : memref<32x20xf32, #tpu.memory_space<vmem>>, vector<32x16xf32>
    %c0_301 = arith.constant 0 : index
    %c1_302 = arith.constant 1 : index
    %369 = vector.load %arg13[%c0_301, %c1_302] : memref<32x20xf32, #tpu.memory_space<vmem>>, vector<32x16xf32>
    %c0_303 = arith.constant 0 : index
    %c2_304 = arith.constant 2 : index
    %370 = vector.load %arg13[%c0_303, %c2_304] : memref<32x20xf32, #tpu.memory_space<vmem>>, vector<32x16xf32>
    %c0_305 = arith.constant 0 : index
    %c3_306 = arith.constant 3 : index
    %371 = vector.load %arg13[%c0_305, %c3_306] : memref<32x20xf32, #tpu.memory_space<vmem>>, vector<32x16xf32>
    %c0_307 = arith.constant 0 : index
    %c4_308 = arith.constant 4 : index
    %372 = vector.load %arg13[%c0_307, %c4_308] : memref<32x20xf32, #tpu.memory_space<vmem>>, vector<32x16xf32>
    %373 = tpu.concatenate %368, %369, %370, %371, %372 in 0 : vector<32x16xf32>, vector<32x16xf32>, vector<32x16xf32>, vector<32x16xf32>, vector<32x16xf32> -> vector<160x16xf32>
    %c2_309 = arith.constant 2 : index
    %c0_310 = arith.constant 0 : index
    %c0_311 = arith.constant 0 : index
    %c0_312 = arith.constant 0 : index
    %374 = vector.load %arg5[%c2_309, %c0_310, %c0_311, %c0_312] : memref<4x4x64x160xf32, #tpu.memory_space<vmem>>, vector<1x1x64x160xf32>
    %375 = vector.shape_cast %374 : vector<1x1x64x160xf32> to vector<64x160xf32>
    %cst_313 = arith.constant dense<0.000000e+00> : vector<64x16xf32>
    %376 = tpu.matmul %375, %373, %cst_313 {dimension_numbers = #tpu.dot_dimension_numbers<[1], [0], [0], [1], [0, 0, 1, 1], [], []>} : vector<64x160xf32>, vector<160x16xf32>, vector<64x16xf32> -> vector<64x16xf32>
    %c2_314 = arith.constant 2 : index
    %c0_315 = arith.constant 0 : index
    %c0_316 = arith.constant 0 : index
    %c0_317 = arith.constant 0 : index
    %377 = vector.load %arg6[%c2_314, %c0_315, %c0_316, %c0_317] : memref<4x4x64x1xf32, #tpu.memory_space<vmem>>, vector<1x1x64x1xf32>
    %378 = vector.shape_cast %377 : vector<1x1x64x1xf32> to vector<64x1xf32>
    %379 = vector.broadcast %378 : vector<64x1xf32> to vector<64x16xf32>
    %380 = arith.addf %376, %379 : vector<64x16xf32>
    %381 = vector.extract_strided_slice %380 {offsets = [0, 0], sizes = [32, 16], strides = [1, 1]} : vector<64x16xf32> to vector<32x16xf32>
    %382 = math.tanh %381 : vector<32x16xf32>
    %383 = vector.extract_strided_slice %380 {offsets = [32, 0], sizes = [32, 16], strides = [1, 1]} : vector<64x16xf32> to vector<32x16xf32>
    %384 = arith.negf %383 : vector<32x16xf32>
    %385 = math.exp %384 : vector<32x16xf32>
    %cst_318 = arith.constant 1.000000e+00 : f32
    %386 = vector.broadcast %cst_318 : f32 to vector<32x16xf32>
    %387 = arith.addf %386, %385 : vector<32x16xf32>
    %388 = arith.divf %386, %387 : vector<32x16xf32>
    %389 = arith.mulf %382, %388 : vector<32x16xf32>
    %c2_319 = arith.constant 2 : index
    %c0_320 = arith.constant 0 : index
    %c0_321 = arith.constant 0 : index
    %c0_322 = arith.constant 0 : index
    %390 = vector.load %arg7[%c2_319, %c0_320, %c0_321, %c0_322] : memref<4x4x64x32xf32, #tpu.memory_space<vmem>>, vector<1x1x64x32xf32>
    %391 = vector.shape_cast %390 : vector<1x1x64x32xf32> to vector<64x32xf32>
    %cst_323 = arith.constant dense<0.000000e+00> : vector<64x16xf32>
    %392 = tpu.matmul %391, %389, %cst_323 {dimension_numbers = #tpu.dot_dimension_numbers<[1], [0], [0], [1], [0, 0, 1, 1], [], []>} : vector<64x32xf32>, vector<32x16xf32>, vector<64x16xf32> -> vector<64x16xf32>
    %c2_324 = arith.constant 2 : index
    %c0_325 = arith.constant 0 : index
    %c0_326 = arith.constant 0 : index
    %c0_327 = arith.constant 0 : index
    %393 = vector.load %arg8[%c2_324, %c0_325, %c0_326, %c0_327] : memref<4x4x64x1xf32, #tpu.memory_space<vmem>>, vector<1x1x64x1xf32>
    %394 = vector.shape_cast %393 : vector<1x1x64x1xf32> to vector<64x1xf32>
    %395 = vector.broadcast %394 : vector<64x1xf32> to vector<64x16xf32>
    %396 = arith.addf %392, %395 : vector<64x16xf32>
    %397 = vector.extract_strided_slice %396 {offsets = [0, 0], sizes = [32, 16], strides = [1, 1]} : vector<64x16xf32> to vector<32x16xf32>
    %398 = arith.addf %365, %397 : vector<32x16xf32>
    %399 = vector.broadcast %1 : vector<1x16xf32> to vector<32x16xf32>
    %400 = arith.mulf %398, %399 : vector<32x16xf32>
    %401 = vector.extract_strided_slice %396 {offsets = [32, 0], sizes = [32, 16], strides = [1, 1]} : vector<64x16xf32> to vector<32x16xf32>
    %402 = arith.addf %366, %401 : vector<32x16xf32>
    %c0_328 = arith.constant 0 : index
    %c2_329 = arith.constant 2 : index
    %403 = vector.load %arg13[%c0_328, %c2_329] : memref<32x20xf32, #tpu.memory_space<vmem>>, vector<32x16xf32>
    tpu.vector_store %arg13[%c0_328, %c2_329], %400 {strides = array<i32>} : memref<32x20xf32, #tpu.memory_space<vmem>>, vector<32x16xf32>,
    %c0_330 = arith.constant 0 : index
    %c0_331 = arith.constant 0 : index
    %404 = vector.load %arg13[%c0_330, %c0_331] : memref<32x20xf32, #tpu.memory_space<vmem>>, vector<32x16xf32>
    %c0_332 = arith.constant 0 : index
    %c1_333 = arith.constant 1 : index
    %405 = vector.load %arg13[%c0_332, %c1_333] : memref<32x20xf32, #tpu.memory_space<vmem>>, vector<32x16xf32>
    %c0_334 = arith.constant 0 : index
    %c2_335 = arith.constant 2 : index
    %406 = vector.load %arg13[%c0_334, %c2_335] : memref<32x20xf32, #tpu.memory_space<vmem>>, vector<32x16xf32>
    %c0_336 = arith.constant 0 : index
    %c3_337 = arith.constant 3 : index
    %407 = vector.load %arg13[%c0_336, %c3_337] : memref<32x20xf32, #tpu.memory_space<vmem>>, vector<32x16xf32>
    %c0_338 = arith.constant 0 : index
    %c4_339 = arith.constant 4 : index
    %408 = vector.load %arg13[%c0_338, %c4_339] : memref<32x20xf32, #tpu.memory_space<vmem>>, vector<32x16xf32>
    %409 = tpu.concatenate %404, %405, %406, %407, %408 in 0 : vector<32x16xf32>, vector<32x16xf32>, vector<32x16xf32>, vector<32x16xf32>, vector<32x16xf32> -> vector<160x16xf32>
    %c2_340 = arith.constant 2 : index
    %c1_341 = arith.constant 1 : index
    %c0_342 = arith.constant 0 : index
    %c0_343 = arith.constant 0 : index
    %410 = vector.load %arg5[%c2_340, %c1_341, %c0_342, %c0_343] : memref<4x4x64x160xf32, #tpu.memory_space<vmem>>, vector<1x1x64x160xf32>
    %411 = vector.shape_cast %410 : vector<1x1x64x160xf32> to vector<64x160xf32>
    %cst_344 = arith.constant dense<0.000000e+00> : vector<64x16xf32>
    %412 = tpu.matmul %411, %409, %cst_344 {dimension_numbers = #tpu.dot_dimension_numbers<[1], [0], [0], [1], [0, 0, 1, 1], [], []>} : vector<64x160xf32>, vector<160x16xf32>, vector<64x16xf32> -> vector<64x16xf32>
    %c2_345 = arith.constant 2 : index
    %c1_346 = arith.constant 1 : index
    %c0_347 = arith.constant 0 : index
    %c0_348 = arith.constant 0 : index
    %413 = vector.load %arg6[%c2_345, %c1_346, %c0_347, %c0_348] : memref<4x4x64x1xf32, #tpu.memory_space<vmem>>, vector<1x1x64x1xf32>
    %414 = vector.shape_cast %413 : vector<1x1x64x1xf32> to vector<64x1xf32>
    %415 = vector.broadcast %414 : vector<64x1xf32> to vector<64x16xf32>
    %416 = arith.addf %412, %415 : vector<64x16xf32>
    %417 = vector.extract_strided_slice %416 {offsets = [0, 0], sizes = [32, 16], strides = [1, 1]} : vector<64x16xf32> to vector<32x16xf32>
    %418 = math.tanh %417 : vector<32x16xf32>
    %419 = vector.extract_strided_slice %416 {offsets = [32, 0], sizes = [32, 16], strides = [1, 1]} : vector<64x16xf32> to vector<32x16xf32>
    %420 = arith.negf %419 : vector<32x16xf32>
    %421 = math.exp %420 : vector<32x16xf32>
    %cst_349 = arith.constant 1.000000e+00 : f32
    %422 = vector.broadcast %cst_349 : f32 to vector<32x16xf32>
    %423 = arith.addf %422, %421 : vector<32x16xf32>
    %424 = arith.divf %422, %423 : vector<32x16xf32>
    %425 = arith.mulf %418, %424 : vector<32x16xf32>
    %c2_350 = arith.constant 2 : index
    %c1_351 = arith.constant 1 : index
    %c0_352 = arith.constant 0 : index
    %c0_353 = arith.constant 0 : index
    %426 = vector.load %arg7[%c2_350, %c1_351, %c0_352, %c0_353] : memref<4x4x64x32xf32, #tpu.memory_space<vmem>>, vector<1x1x64x32xf32>
    %427 = vector.shape_cast %426 : vector<1x1x64x32xf32> to vector<64x32xf32>
    %cst_354 = arith.constant dense<0.000000e+00> : vector<64x16xf32>
    %428 = tpu.matmul %427, %425, %cst_354 {dimension_numbers = #tpu.dot_dimension_numbers<[1], [0], [0], [1], [0, 0, 1, 1], [], []>} : vector<64x32xf32>, vector<32x16xf32>, vector<64x16xf32> -> vector<64x16xf32>
    %c2_355 = arith.constant 2 : index
    %c1_356 = arith.constant 1 : index
    %c0_357 = arith.constant 0 : index
    %c0_358 = arith.constant 0 : index
    %429 = vector.load %arg8[%c2_355, %c1_356, %c0_357, %c0_358] : memref<4x4x64x1xf32, #tpu.memory_space<vmem>>, vector<1x1x64x1xf32>
    %430 = vector.shape_cast %429 : vector<1x1x64x1xf32> to vector<64x1xf32>
    %431 = vector.broadcast %430 : vector<64x1xf32> to vector<64x16xf32>
    %432 = arith.addf %428, %431 : vector<64x16xf32>
    %433 = vector.extract_strided_slice %432 {offsets = [0, 0], sizes = [32, 16], strides = [1, 1]} : vector<64x16xf32> to vector<32x16xf32>
    %434 = arith.addf %400, %433 : vector<32x16xf32>
    %435 = vector.broadcast %1 : vector<1x16xf32> to vector<32x16xf32>
    %436 = arith.mulf %434, %435 : vector<32x16xf32>
    %437 = vector.extract_strided_slice %432 {offsets = [32, 0], sizes = [32, 16], strides = [1, 1]} : vector<64x16xf32> to vector<32x16xf32>
    %438 = arith.addf %402, %437 : vector<32x16xf32>
    %c0_359 = arith.constant 0 : index
    %c2_360 = arith.constant 2 : index
    %439 = vector.load %arg13[%c0_359, %c2_360] : memref<32x20xf32, #tpu.memory_space<vmem>>, vector<32x16xf32>
    tpu.vector_store %arg13[%c0_359, %c2_360], %436 {strides = array<i32>} : memref<32x20xf32, #tpu.memory_space<vmem>>, vector<32x16xf32>,
    %c0_361 = arith.constant 0 : index
    %c0_362 = arith.constant 0 : index
    %440 = vector.load %arg13[%c0_361, %c0_362] : memref<32x20xf32, #tpu.memory_space<vmem>>, vector<32x16xf32>
    %c0_363 = arith.constant 0 : index
    %c1_364 = arith.constant 1 : index
    %441 = vector.load %arg13[%c0_363, %c1_364] : memref<32x20xf32, #tpu.memory_space<vmem>>, vector<32x16xf32>
    %c0_365 = arith.constant 0 : index
    %c2_366 = arith.constant 2 : index
    %442 = vector.load %arg13[%c0_365, %c2_366] : memref<32x20xf32, #tpu.memory_space<vmem>>, vector<32x16xf32>
    %c0_367 = arith.constant 0 : index
    %c3_368 = arith.constant 3 : index
    %443 = vector.load %arg13[%c0_367, %c3_368] : memref<32x20xf32, #tpu.memory_space<vmem>>, vector<32x16xf32>
    %c0_369 = arith.constant 0 : index
    %c4_370 = arith.constant 4 : index
    %444 = vector.load %arg13[%c0_369, %c4_370] : memref<32x20xf32, #tpu.memory_space<vmem>>, vector<32x16xf32>
    %445 = tpu.concatenate %440, %441, %442, %443, %444 in 0 : vector<32x16xf32>, vector<32x16xf32>, vector<32x16xf32>, vector<32x16xf32>, vector<32x16xf32> -> vector<160x16xf32>
    %c2_371 = arith.constant 2 : index
    %c2_372 = arith.constant 2 : index
    %c0_373 = arith.constant 0 : index
    %c0_374 = arith.constant 0 : index
    %446 = vector.load %arg5[%c2_371, %c2_372, %c0_373, %c0_374] : memref<4x4x64x160xf32, #tpu.memory_space<vmem>>, vector<1x1x64x160xf32>
    %447 = vector.shape_cast %446 : vector<1x1x64x160xf32> to vector<64x160xf32>
    %cst_375 = arith.constant dense<0.000000e+00> : vector<64x16xf32>
    %448 = tpu.matmul %447, %445, %cst_375 {dimension_numbers = #tpu.dot_dimension_numbers<[1], [0], [0], [1], [0, 0, 1, 1], [], []>} : vector<64x160xf32>, vector<160x16xf32>, vector<64x16xf32> -> vector<64x16xf32>
    %c2_376 = arith.constant 2 : index
    %c2_377 = arith.constant 2 : index
    %c0_378 = arith.constant 0 : index
    %c0_379 = arith.constant 0 : index
    %449 = vector.load %arg6[%c2_376, %c2_377, %c0_378, %c0_379] : memref<4x4x64x1xf32, #tpu.memory_space<vmem>>, vector<1x1x64x1xf32>
    %450 = vector.shape_cast %449 : vector<1x1x64x1xf32> to vector<64x1xf32>
    %451 = vector.broadcast %450 : vector<64x1xf32> to vector<64x16xf32>
    %452 = arith.addf %448, %451 : vector<64x16xf32>
    %453 = vector.extract_strided_slice %452 {offsets = [0, 0], sizes = [32, 16], strides = [1, 1]} : vector<64x16xf32> to vector<32x16xf32>
    %454 = math.tanh %453 : vector<32x16xf32>
    %455 = vector.extract_strided_slice %452 {offsets = [32, 0], sizes = [32, 16], strides = [1, 1]} : vector<64x16xf32> to vector<32x16xf32>
    %456 = arith.negf %455 : vector<32x16xf32>
    %457 = math.exp %456 : vector<32x16xf32>
    %cst_380 = arith.constant 1.000000e+00 : f32
    %458 = vector.broadcast %cst_380 : f32 to vector<32x16xf32>
    %459 = arith.addf %458, %457 : vector<32x16xf32>
    %460 = arith.divf %458, %459 : vector<32x16xf32>
    %461 = arith.mulf %454, %460 : vector<32x16xf32>
    %c2_381 = arith.constant 2 : index
    %c2_382 = arith.constant 2 : index
    %c0_383 = arith.constant 0 : index
    %c0_384 = arith.constant 0 : index
    %462 = vector.load %arg7[%c2_381, %c2_382, %c0_383, %c0_384] : memref<4x4x64x32xf32, #tpu.memory_space<vmem>>, vector<1x1x64x32xf32>
    %463 = vector.shape_cast %462 : vector<1x1x64x32xf32> to vector<64x32xf32>
    %cst_385 = arith.constant dense<0.000000e+00> : vector<64x16xf32>
    %464 = tpu.matmul %463, %461, %cst_385 {dimension_numbers = #tpu.dot_dimension_numbers<[1], [0], [0], [1], [0, 0, 1, 1], [], []>} : vector<64x32xf32>, vector<32x16xf32>, vector<64x16xf32> -> vector<64x16xf32>
    %c2_386 = arith.constant 2 : index
    %c2_387 = arith.constant 2 : index
    %c0_388 = arith.constant 0 : index
    %c0_389 = arith.constant 0 : index
    %465 = vector.load %arg8[%c2_386, %c2_387, %c0_388, %c0_389] : memref<4x4x64x1xf32, #tpu.memory_space<vmem>>, vector<1x1x64x1xf32>
    %466 = vector.shape_cast %465 : vector<1x1x64x1xf32> to vector<64x1xf32>
    %467 = vector.broadcast %466 : vector<64x1xf32> to vector<64x16xf32>
    %468 = arith.addf %464, %467 : vector<64x16xf32>
    %469 = vector.extract_strided_slice %468 {offsets = [0, 0], sizes = [32, 16], strides = [1, 1]} : vector<64x16xf32> to vector<32x16xf32>
    %470 = arith.addf %436, %469 : vector<32x16xf32>
    %471 = vector.broadcast %1 : vector<1x16xf32> to vector<32x16xf32>
    %472 = arith.mulf %470, %471 : vector<32x16xf32>
    %473 = vector.extract_strided_slice %468 {offsets = [32, 0], sizes = [32, 16], strides = [1, 1]} : vector<64x16xf32> to vector<32x16xf32>
    %474 = arith.addf %438, %473 : vector<32x16xf32>
    %c0_390 = arith.constant 0 : index
    %c2_391 = arith.constant 2 : index
    %475 = vector.load %arg13[%c0_390, %c2_391] : memref<32x20xf32, #tpu.memory_space<vmem>>, vector<32x16xf32>
    tpu.vector_store %arg13[%c0_390, %c2_391], %472 {strides = array<i32>} : memref<32x20xf32, #tpu.memory_space<vmem>>, vector<32x16xf32>,
    %c0_392 = arith.constant 0 : index
    %c0_393 = arith.constant 0 : index
    %476 = vector.load %arg13[%c0_392, %c0_393] : memref<32x20xf32, #tpu.memory_space<vmem>>, vector<32x16xf32>
    %c0_394 = arith.constant 0 : index
    %c1_395 = arith.constant 1 : index
    %477 = vector.load %arg13[%c0_394, %c1_395] : memref<32x20xf32, #tpu.memory_space<vmem>>, vector<32x16xf32>
    %c0_396 = arith.constant 0 : index
    %c2_397 = arith.constant 2 : index
    %478 = vector.load %arg13[%c0_396, %c2_397] : memref<32x20xf32, #tpu.memory_space<vmem>>, vector<32x16xf32>
    %c0_398 = arith.constant 0 : index
    %c3_399 = arith.constant 3 : index
    %479 = vector.load %arg13[%c0_398, %c3_399] : memref<32x20xf32, #tpu.memory_space<vmem>>, vector<32x16xf32>
    %c0_400 = arith.constant 0 : index
    %c4_401 = arith.constant 4 : index
    %480 = vector.load %arg13[%c0_400, %c4_401] : memref<32x20xf32, #tpu.memory_space<vmem>>, vector<32x16xf32>
    %481 = tpu.concatenate %476, %477, %478, %479, %480 in 0 : vector<32x16xf32>, vector<32x16xf32>, vector<32x16xf32>, vector<32x16xf32>, vector<32x16xf32> -> vector<160x16xf32>
    %c2_402 = arith.constant 2 : index
    %c3_403 = arith.constant 3 : index
    %c0_404 = arith.constant 0 : index
    %c0_405 = arith.constant 0 : index
    %482 = vector.load %arg5[%c2_402, %c3_403, %c0_404, %c0_405] : memref<4x4x64x160xf32, #tpu.memory_space<vmem>>, vector<1x1x64x160xf32>
    %483 = vector.shape_cast %482 : vector<1x1x64x160xf32> to vector<64x160xf32>
    %cst_406 = arith.constant dense<0.000000e+00> : vector<64x16xf32>
    %484 = tpu.matmul %483, %481, %cst_406 {dimension_numbers = #tpu.dot_dimension_numbers<[1], [0], [0], [1], [0, 0, 1, 1], [], []>} : vector<64x160xf32>, vector<160x16xf32>, vector<64x16xf32> -> vector<64x16xf32>
    %c2_407 = arith.constant 2 : index
    %c3_408 = arith.constant 3 : index
    %c0_409 = arith.constant 0 : index
    %c0_410 = arith.constant 0 : index
    %485 = vector.load %arg6[%c2_407, %c3_408, %c0_409, %c0_410] : memref<4x4x64x1xf32, #tpu.memory_space<vmem>>, vector<1x1x64x1xf32>
    %486 = vector.shape_cast %485 : vector<1x1x64x1xf32> to vector<64x1xf32>
    %487 = vector.broadcast %486 : vector<64x1xf32> to vector<64x16xf32>
    %488 = arith.addf %484, %487 : vector<64x16xf32>
    %489 = vector.extract_strided_slice %488 {offsets = [0, 0], sizes = [32, 16], strides = [1, 1]} : vector<64x16xf32> to vector<32x16xf32>
    %490 = math.tanh %489 : vector<32x16xf32>
    %491 = vector.extract_strided_slice %488 {offsets = [32, 0], sizes = [32, 16], strides = [1, 1]} : vector<64x16xf32> to vector<32x16xf32>
    %492 = arith.negf %491 : vector<32x16xf32>
    %493 = math.exp %492 : vector<32x16xf32>
    %cst_411 = arith.constant 1.000000e+00 : f32
    %494 = vector.broadcast %cst_411 : f32 to vector<32x16xf32>
    %495 = arith.addf %494, %493 : vector<32x16xf32>
    %496 = arith.divf %494, %495 : vector<32x16xf32>
    %497 = arith.mulf %490, %496 : vector<32x16xf32>
    %c2_412 = arith.constant 2 : index
    %c3_413 = arith.constant 3 : index
    %c0_414 = arith.constant 0 : index
    %c0_415 = arith.constant 0 : index
    %498 = vector.load %arg7[%c2_412, %c3_413, %c0_414, %c0_415] : memref<4x4x64x32xf32, #tpu.memory_space<vmem>>, vector<1x1x64x32xf32>
    %499 = vector.shape_cast %498 : vector<1x1x64x32xf32> to vector<64x32xf32>
    %500 = vector.extract_strided_slice %499 {offsets = [0, 0], sizes = [32, 32], strides = [1, 1]} : vector<64x32xf32> to vector<32x32xf32>
    %c2_416 = arith.constant 2 : index
    %c3_417 = arith.constant 3 : index
    %c0_418 = arith.constant 0 : index
    %c0_419 = arith.constant 0 : index
    %501 = vector.load %arg8[%c2_416, %c3_417, %c0_418, %c0_419] : memref<4x4x64x1xf32, #tpu.memory_space<vmem>>, vector<1x1x64x1xf32>
    %502 = vector.shape_cast %501 : vector<1x1x64x1xf32> to vector<64x1xf32>
    %503 = vector.extract_strided_slice %502 {offsets = [0, 0], sizes = [32, 1], strides = [1, 1]} : vector<64x1xf32> to vector<32x1xf32>
    %cst_420 = arith.constant dense<0.000000e+00> : vector<32x16xf32>
    %504 = tpu.matmul %500, %497, %cst_420 {dimension_numbers = #tpu.dot_dimension_numbers<[1], [0], [0], [1], [0, 0, 1, 1], [], []>} : vector<32x32xf32>, vector<32x16xf32>, vector<32x16xf32> -> vector<32x16xf32>
    %505 = vector.broadcast %503 : vector<32x1xf32> to vector<32x16xf32>
    %506 = arith.addf %504, %505 : vector<32x16xf32>
    %507 = arith.addf %474, %506 : vector<32x16xf32>
    %508 = vector.broadcast %1 : vector<1x16xf32> to vector<32x16xf32>
    %509 = arith.mulf %507, %508 : vector<32x16xf32>
    %c2_421 = arith.constant 2 : index
    %c0_422 = arith.constant 0 : index
    %c0_423 = arith.constant 0 : index
    %510 = vector.load %arg9[%c2_421, %c0_422, %c0_423] : memref<4x4x32xf32, #tpu.memory_space<vmem>>, vector<1x4x32xf32>
    %511 = vector.shape_cast %510 : vector<1x4x32xf32> to vector<4x32xf32>
    %cst_424 = arith.constant dense<0.000000e+00> : vector<4x16xf32>
    %512 = tpu.matmul %511, %509, %cst_424 {dimension_numbers = #tpu.dot_dimension_numbers<[1], [0], [0], [1], [0, 0, 1, 1], [], []>} : vector<4x32xf32>, vector<32x16xf32>, vector<4x16xf32> -> vector<4x16xf32>
    %c2_425 = arith.constant 2 : index
    %c0_426 = arith.constant 0 : index
    %c0_427 = arith.constant 0 : index
    %513 = vector.load %arg10[%c2_425, %c0_426, %c0_427] : memref<4x4x1xf32, #tpu.memory_space<vmem>>, vector<1x4x1xf32>
    %514 = vector.shape_cast %513 : vector<1x4x1xf32> to vector<4x1xf32>
    %515 = vector.broadcast %514 : vector<4x1xf32> to vector<4x16xf32>
    %516 = arith.addf %512, %515 : vector<4x16xf32>
    %517 = vector.broadcast %1 : vector<1x16xf32> to vector<4x16xf32>
    %518 = arith.mulf %516, %517 : vector<4x16xf32>
    %519 = vector.extract_strided_slice %518 {offsets = [0, 0], sizes = [2, 16], strides = [1, 1]} : vector<4x16xf32> to vector<2x16xf32>
    %520 = vector.extract_strided_slice %518 {offsets = [2, 0], sizes = [2, 16], strides = [1, 1]} : vector<4x16xf32> to vector<2x16xf32>
    %521 = math.exp %520 : vector<2x16xf32>
    %522 = arith.mulf %177, %521 : vector<2x16xf32>
    %523 = vector.broadcast %1 : vector<1x16xf32> to vector<2x16xf32>
    %524 = arith.mulf %522, %523 : vector<2x16xf32>
    %525 = arith.addf %519, %524 : vector<2x16xf32>
    %cst_428 = arith.constant dense<0.000000e+00> : vector<16xf32>
    %526 = vector.multi_reduction <add>, %520, %cst_428 [0] : vector<2x16xf32> to vector<16xf32>
    %527 = vector.shape_cast %526 : vector<16xf32> to vector<1x16xf32>
    %cst_429 = arith.constant dense<0.000000e+00> : vector<1xf32>
    %528 = vector.multi_reduction <add>, %527, %cst_429 [1] : vector<1x16xf32> to vector<1xf32>
    %529 = vector.shape_cast %528 : vector<1xf32> to vector<1x1xf32>
    %530 = arith.addf %356, %529 : vector<1x1xf32>
    %c3_430 = arith.constant 3 : index
    %c0_431 = arith.constant 0 : index
    %c0_432 = arith.constant 0 : index
    %531 = vector.load %arg3[%c3_430, %c0_431, %c0_432] : memref<4x32x2xf32, #tpu.memory_space<vmem>>, vector<1x32x2xf32>
    %532 = vector.shape_cast %531 : vector<1x32x2xf32> to vector<32x2xf32>
    %cst_433 = arith.constant dense<0.000000e+00> : vector<32x16xf32>
    %533 = tpu.matmul %532, %525, %cst_433 {dimension_numbers = #tpu.dot_dimension_numbers<[1], [0], [0], [1], [0, 0, 1, 1], [], []>} : vector<32x2xf32>, vector<2x16xf32>, vector<32x16xf32> -> vector<32x16xf32>
    %c3_434 = arith.constant 3 : index
    %c0_435 = arith.constant 0 : index
    %c0_436 = arith.constant 0 : index
    %534 = vector.load %arg4[%c3_434, %c0_435, %c0_436] : memref<4x32x1xf32, #tpu.memory_space<vmem>>, vector<1x32x1xf32>
    %535 = vector.shape_cast %534 : vector<1x32x1xf32> to vector<32x1xf32>
    %536 = vector.broadcast %535 : vector<32x1xf32> to vector<32x16xf32>
    %537 = arith.addf %533, %536 : vector<32x16xf32>
    %538 = vector.broadcast %1 : vector<1x16xf32> to vector<32x16xf32>
    %539 = arith.mulf %537, %538 : vector<32x16xf32>
    %cst_437 = arith.constant 0.000000e+00 : f32
    %540 = vector.broadcast %cst_437 : f32 to vector<32x16xf32>
    %c0_438 = arith.constant 0 : index
    %c2_439 = arith.constant 2 : index
    %541 = vector.load %arg13[%c0_438, %c2_439] : memref<32x20xf32, #tpu.memory_space<vmem>>, vector<32x16xf32>
    tpu.vector_store %arg13[%c0_438, %c2_439], %539 {strides = array<i32>} : memref<32x20xf32, #tpu.memory_space<vmem>>, vector<32x16xf32>,
    %c0_440 = arith.constant 0 : index
    %c0_441 = arith.constant 0 : index
    %542 = vector.load %arg13[%c0_440, %c0_441] : memref<32x20xf32, #tpu.memory_space<vmem>>, vector<32x16xf32>
    %c0_442 = arith.constant 0 : index
    %c1_443 = arith.constant 1 : index
    %543 = vector.load %arg13[%c0_442, %c1_443] : memref<32x20xf32, #tpu.memory_space<vmem>>, vector<32x16xf32>
    %c0_444 = arith.constant 0 : index
    %c2_445 = arith.constant 2 : index
    %544 = vector.load %arg13[%c0_444, %c2_445] : memref<32x20xf32, #tpu.memory_space<vmem>>, vector<32x16xf32>
    %c0_446 = arith.constant 0 : index
    %c3_447 = arith.constant 3 : index
    %545 = vector.load %arg13[%c0_446, %c3_447] : memref<32x20xf32, #tpu.memory_space<vmem>>, vector<32x16xf32>
    %c0_448 = arith.constant 0 : index
    %c4_449 = arith.constant 4 : index
    %546 = vector.load %arg13[%c0_448, %c4_449] : memref<32x20xf32, #tpu.memory_space<vmem>>, vector<32x16xf32>
    %547 = tpu.concatenate %542, %543, %544, %545, %546 in 0 : vector<32x16xf32>, vector<32x16xf32>, vector<32x16xf32>, vector<32x16xf32>, vector<32x16xf32> -> vector<160x16xf32>
    %c3_450 = arith.constant 3 : index
    %c0_451 = arith.constant 0 : index
    %c0_452 = arith.constant 0 : index
    %c0_453 = arith.constant 0 : index
    %548 = vector.load %arg5[%c3_450, %c0_451, %c0_452, %c0_453] : memref<4x4x64x160xf32, #tpu.memory_space<vmem>>, vector<1x1x64x160xf32>
    %549 = vector.shape_cast %548 : vector<1x1x64x160xf32> to vector<64x160xf32>
    %cst_454 = arith.constant dense<0.000000e+00> : vector<64x16xf32>
    %550 = tpu.matmul %549, %547, %cst_454 {dimension_numbers = #tpu.dot_dimension_numbers<[1], [0], [0], [1], [0, 0, 1, 1], [], []>} : vector<64x160xf32>, vector<160x16xf32>, vector<64x16xf32> -> vector<64x16xf32>
    %c3_455 = arith.constant 3 : index
    %c0_456 = arith.constant 0 : index
    %c0_457 = arith.constant 0 : index
    %c0_458 = arith.constant 0 : index
    %551 = vector.load %arg6[%c3_455, %c0_456, %c0_457, %c0_458] : memref<4x4x64x1xf32, #tpu.memory_space<vmem>>, vector<1x1x64x1xf32>
    %552 = vector.shape_cast %551 : vector<1x1x64x1xf32> to vector<64x1xf32>
    %553 = vector.broadcast %552 : vector<64x1xf32> to vector<64x16xf32>
    %554 = arith.addf %550, %553 : vector<64x16xf32>
    %555 = vector.extract_strided_slice %554 {offsets = [0, 0], sizes = [32, 16], strides = [1, 1]} : vector<64x16xf32> to vector<32x16xf32>
    %556 = math.tanh %555 : vector<32x16xf32>
    %557 = vector.extract_strided_slice %554 {offsets = [32, 0], sizes = [32, 16], strides = [1, 1]} : vector<64x16xf32> to vector<32x16xf32>
    %558 = arith.negf %557 : vector<32x16xf32>
    %559 = math.exp %558 : vector<32x16xf32>
    %cst_459 = arith.constant 1.000000e+00 : f32
    %560 = vector.broadcast %cst_459 : f32 to vector<32x16xf32>
    %561 = arith.addf %560, %559 : vector<32x16xf32>
    %562 = arith.divf %560, %561 : vector<32x16xf32>
    %563 = arith.mulf %556, %562 : vector<32x16xf32>
    %c3_460 = arith.constant 3 : index
    %c0_461 = arith.constant 0 : index
    %c0_462 = arith.constant 0 : index
    %c0_463 = arith.constant 0 : index
    %564 = vector.load %arg7[%c3_460, %c0_461, %c0_462, %c0_463] : memref<4x4x64x32xf32, #tpu.memory_space<vmem>>, vector<1x1x64x32xf32>
    %565 = vector.shape_cast %564 : vector<1x1x64x32xf32> to vector<64x32xf32>
    %cst_464 = arith.constant dense<0.000000e+00> : vector<64x16xf32>
    %566 = tpu.matmul %565, %563, %cst_464 {dimension_numbers = #tpu.dot_dimension_numbers<[1], [0], [0], [1], [0, 0, 1, 1], [], []>} : vector<64x32xf32>, vector<32x16xf32>, vector<64x16xf32> -> vector<64x16xf32>
    %c3_465 = arith.constant 3 : index
    %c0_466 = arith.constant 0 : index
    %c0_467 = arith.constant 0 : index
    %c0_468 = arith.constant 0 : index
    %567 = vector.load %arg8[%c3_465, %c0_466, %c0_467, %c0_468] : memref<4x4x64x1xf32, #tpu.memory_space<vmem>>, vector<1x1x64x1xf32>
    %568 = vector.shape_cast %567 : vector<1x1x64x1xf32> to vector<64x1xf32>
    %569 = vector.broadcast %568 : vector<64x1xf32> to vector<64x16xf32>
    %570 = arith.addf %566, %569 : vector<64x16xf32>
    %571 = vector.extract_strided_slice %570 {offsets = [0, 0], sizes = [32, 16], strides = [1, 1]} : vector<64x16xf32> to vector<32x16xf32>
    %572 = arith.addf %539, %571 : vector<32x16xf32>
    %573 = vector.broadcast %1 : vector<1x16xf32> to vector<32x16xf32>
    %574 = arith.mulf %572, %573 : vector<32x16xf32>
    %575 = vector.extract_strided_slice %570 {offsets = [32, 0], sizes = [32, 16], strides = [1, 1]} : vector<64x16xf32> to vector<32x16xf32>
    %576 = arith.addf %540, %575 : vector<32x16xf32>
    %c0_469 = arith.constant 0 : index
    %c2_470 = arith.constant 2 : index
    %577 = vector.load %arg13[%c0_469, %c2_470] : memref<32x20xf32, #tpu.memory_space<vmem>>, vector<32x16xf32>
    tpu.vector_store %arg13[%c0_469, %c2_470], %574 {strides = array<i32>} : memref<32x20xf32, #tpu.memory_space<vmem>>, vector<32x16xf32>,
    %c0_471 = arith.constant 0 : index
    %c0_472 = arith.constant 0 : index
    %578 = vector.load %arg13[%c0_471, %c0_472] : memref<32x20xf32, #tpu.memory_space<vmem>>, vector<32x16xf32>
    %c0_473 = arith.constant 0 : index
    %c1_474 = arith.constant 1 : index
    %579 = vector.load %arg13[%c0_473, %c1_474] : memref<32x20xf32, #tpu.memory_space<vmem>>, vector<32x16xf32>
    %c0_475 = arith.constant 0 : index
    %c2_476 = arith.constant 2 : index
    %580 = vector.load %arg13[%c0_475, %c2_476] : memref<32x20xf32, #tpu.memory_space<vmem>>, vector<32x16xf32>
    %c0_477 = arith.constant 0 : index
    %c3_478 = arith.constant 3 : index
    %581 = vector.load %arg13[%c0_477, %c3_478] : memref<32x20xf32, #tpu.memory_space<vmem>>, vector<32x16xf32>
    %c0_479 = arith.constant 0 : index
    %c4_480 = arith.constant 4 : index
    %582 = vector.load %arg13[%c0_479, %c4_480] : memref<32x20xf32, #tpu.memory_space<vmem>>, vector<32x16xf32>
    %583 = tpu.concatenate %578, %579, %580, %581, %582 in 0 : vector<32x16xf32>, vector<32x16xf32>, vector<32x16xf32>, vector<32x16xf32>, vector<32x16xf32> -> vector<160x16xf32>
    %c3_481 = arith.constant 3 : index
    %c1_482 = arith.constant 1 : index
    %c0_483 = arith.constant 0 : index
    %c0_484 = arith.constant 0 : index
    %584 = vector.load %arg5[%c3_481, %c1_482, %c0_483, %c0_484] : memref<4x4x64x160xf32, #tpu.memory_space<vmem>>, vector<1x1x64x160xf32>
    %585 = vector.shape_cast %584 : vector<1x1x64x160xf32> to vector<64x160xf32>
    %cst_485 = arith.constant dense<0.000000e+00> : vector<64x16xf32>
    %586 = tpu.matmul %585, %583, %cst_485 {dimension_numbers = #tpu.dot_dimension_numbers<[1], [0], [0], [1], [0, 0, 1, 1], [], []>} : vector<64x160xf32>, vector<160x16xf32>, vector<64x16xf32> -> vector<64x16xf32>
    %c3_486 = arith.constant 3 : index
    %c1_487 = arith.constant 1 : index
    %c0_488 = arith.constant 0 : index
    %c0_489 = arith.constant 0 : index
    %587 = vector.load %arg6[%c3_486, %c1_487, %c0_488, %c0_489] : memref<4x4x64x1xf32, #tpu.memory_space<vmem>>, vector<1x1x64x1xf32>
    %588 = vector.shape_cast %587 : vector<1x1x64x1xf32> to vector<64x1xf32>
    %589 = vector.broadcast %588 : vector<64x1xf32> to vector<64x16xf32>
    %590 = arith.addf %586, %589 : vector<64x16xf32>
    %591 = vector.extract_strided_slice %590 {offsets = [0, 0], sizes = [32, 16], strides = [1, 1]} : vector<64x16xf32> to vector<32x16xf32>
    %592 = math.tanh %591 : vector<32x16xf32>
    %593 = vector.extract_strided_slice %590 {offsets = [32, 0], sizes = [32, 16], strides = [1, 1]} : vector<64x16xf32> to vector<32x16xf32>
    %594 = arith.negf %593 : vector<32x16xf32>
    %595 = math.exp %594 : vector<32x16xf32>
    %cst_490 = arith.constant 1.000000e+00 : f32
    %596 = vector.broadcast %cst_490 : f32 to vector<32x16xf32>
    %597 = arith.addf %596, %595 : vector<32x16xf32>
    %598 = arith.divf %596, %597 : vector<32x16xf32>
    %599 = arith.mulf %592, %598 : vector<32x16xf32>
    %c3_491 = arith.constant 3 : index
    %c1_492 = arith.constant 1 : index
    %c0_493 = arith.constant 0 : index
    %c0_494 = arith.constant 0 : index
    %600 = vector.load %arg7[%c3_491, %c1_492, %c0_493, %c0_494] : memref<4x4x64x32xf32, #tpu.memory_space<vmem>>, vector<1x1x64x32xf32>
    %601 = vector.shape_cast %600 : vector<1x1x64x32xf32> to vector<64x32xf32>
    %cst_495 = arith.constant dense<0.000000e+00> : vector<64x16xf32>
    %602 = tpu.matmul %601, %599, %cst_495 {dimension_numbers = #tpu.dot_dimension_numbers<[1], [0], [0], [1], [0, 0, 1, 1], [], []>} : vector<64x32xf32>, vector<32x16xf32>, vector<64x16xf32> -> vector<64x16xf32>
    %c3_496 = arith.constant 3 : index
    %c1_497 = arith.constant 1 : index
    %c0_498 = arith.constant 0 : index
    %c0_499 = arith.constant 0 : index
    %603 = vector.load %arg8[%c3_496, %c1_497, %c0_498, %c0_499] : memref<4x4x64x1xf32, #tpu.memory_space<vmem>>, vector<1x1x64x1xf32>
    %604 = vector.shape_cast %603 : vector<1x1x64x1xf32> to vector<64x1xf32>
    %605 = vector.broadcast %604 : vector<64x1xf32> to vector<64x16xf32>
    %606 = arith.addf %602, %605 : vector<64x16xf32>
    %607 = vector.extract_strided_slice %606 {offsets = [0, 0], sizes = [32, 16], strides = [1, 1]} : vector<64x16xf32> to vector<32x16xf32>
    %608 = arith.addf %574, %607 : vector<32x16xf32>
    %609 = vector.broadcast %1 : vector<1x16xf32> to vector<32x16xf32>
    %610 = arith.mulf %608, %609 : vector<32x16xf32>
    %611 = vector.extract_strided_slice %606 {offsets = [32, 0], sizes = [32, 16], strides = [1, 1]} : vector<64x16xf32> to vector<32x16xf32>
    %612 = arith.addf %576, %611 : vector<32x16xf32>
    %c0_500 = arith.constant 0 : index
    %c2_501 = arith.constant 2 : index
    %613 = vector.load %arg13[%c0_500, %c2_501] : memref<32x20xf32, #tpu.memory_space<vmem>>, vector<32x16xf32>
    tpu.vector_store %arg13[%c0_500, %c2_501], %610 {strides = array<i32>} : memref<32x20xf32, #tpu.memory_space<vmem>>, vector<32x16xf32>,
    %c0_502 = arith.constant 0 : index
    %c0_503 = arith.constant 0 : index
    %614 = vector.load %arg13[%c0_502, %c0_503] : memref<32x20xf32, #tpu.memory_space<vmem>>, vector<32x16xf32>
    %c0_504 = arith.constant 0 : index
    %c1_505 = arith.constant 1 : index
    %615 = vector.load %arg13[%c0_504, %c1_505] : memref<32x20xf32, #tpu.memory_space<vmem>>, vector<32x16xf32>
    %c0_506 = arith.constant 0 : index
    %c2_507 = arith.constant 2 : index
    %616 = vector.load %arg13[%c0_506, %c2_507] : memref<32x20xf32, #tpu.memory_space<vmem>>, vector<32x16xf32>
    %c0_508 = arith.constant 0 : index
    %c3_509 = arith.constant 3 : index
    %617 = vector.load %arg13[%c0_508, %c3_509] : memref<32x20xf32, #tpu.memory_space<vmem>>, vector<32x16xf32>
    %c0_510 = arith.constant 0 : index
    %c4_511 = arith.constant 4 : index
    %618 = vector.load %arg13[%c0_510, %c4_511] : memref<32x20xf32, #tpu.memory_space<vmem>>, vector<32x16xf32>
    %619 = tpu.concatenate %614, %615, %616, %617, %618 in 0 : vector<32x16xf32>, vector<32x16xf32>, vector<32x16xf32>, vector<32x16xf32>, vector<32x16xf32> -> vector<160x16xf32>
    %c3_512 = arith.constant 3 : index
    %c2_513 = arith.constant 2 : index
    %c0_514 = arith.constant 0 : index
    %c0_515 = arith.constant 0 : index
    %620 = vector.load %arg5[%c3_512, %c2_513, %c0_514, %c0_515] : memref<4x4x64x160xf32, #tpu.memory_space<vmem>>, vector<1x1x64x160xf32>
    %621 = vector.shape_cast %620 : vector<1x1x64x160xf32> to vector<64x160xf32>
    %cst_516 = arith.constant dense<0.000000e+00> : vector<64x16xf32>
    %622 = tpu.matmul %621, %619, %cst_516 {dimension_numbers = #tpu.dot_dimension_numbers<[1], [0], [0], [1], [0, 0, 1, 1], [], []>} : vector<64x160xf32>, vector<160x16xf32>, vector<64x16xf32> -> vector<64x16xf32>
    %c3_517 = arith.constant 3 : index
    %c2_518 = arith.constant 2 : index
    %c0_519 = arith.constant 0 : index
    %c0_520 = arith.constant 0 : index
    %623 = vector.load %arg6[%c3_517, %c2_518, %c0_519, %c0_520] : memref<4x4x64x1xf32, #tpu.memory_space<vmem>>, vector<1x1x64x1xf32>
    %624 = vector.shape_cast %623 : vector<1x1x64x1xf32> to vector<64x1xf32>
    %625 = vector.broadcast %624 : vector<64x1xf32> to vector<64x16xf32>
    %626 = arith.addf %622, %625 : vector<64x16xf32>
    %627 = vector.extract_strided_slice %626 {offsets = [0, 0], sizes = [32, 16], strides = [1, 1]} : vector<64x16xf32> to vector<32x16xf32>
    %628 = math.tanh %627 : vector<32x16xf32>
    %629 = vector.extract_strided_slice %626 {offsets = [32, 0], sizes = [32, 16], strides = [1, 1]} : vector<64x16xf32> to vector<32x16xf32>
    %630 = arith.negf %629 : vector<32x16xf32>
    %631 = math.exp %630 : vector<32x16xf32>
    %cst_521 = arith.constant 1.000000e+00 : f32
    %632 = vector.broadcast %cst_521 : f32 to vector<32x16xf32>
    %633 = arith.addf %632, %631 : vector<32x16xf32>
    %634 = arith.divf %632, %633 : vector<32x16xf32>
    %635 = arith.mulf %628, %634 : vector<32x16xf32>
    %c3_522 = arith.constant 3 : index
    %c2_523 = arith.constant 2 : index
    %c0_524 = arith.constant 0 : index
    %c0_525 = arith.constant 0 : index
    %636 = vector.load %arg7[%c3_522, %c2_523, %c0_524, %c0_525] : memref<4x4x64x32xf32, #tpu.memory_space<vmem>>, vector<1x1x64x32xf32>
    %637 = vector.shape_cast %636 : vector<1x1x64x32xf32> to vector<64x32xf32>
    %cst_526 = arith.constant dense<0.000000e+00> : vector<64x16xf32>
    %638 = tpu.matmul %637, %635, %cst_526 {dimension_numbers = #tpu.dot_dimension_numbers<[1], [0], [0], [1], [0, 0, 1, 1], [], []>} : vector<64x32xf32>, vector<32x16xf32>, vector<64x16xf32> -> vector<64x16xf32>
    %c3_527 = arith.constant 3 : index
    %c2_528 = arith.constant 2 : index
    %c0_529 = arith.constant 0 : index
    %c0_530 = arith.constant 0 : index
    %639 = vector.load %arg8[%c3_527, %c2_528, %c0_529, %c0_530] : memref<4x4x64x1xf32, #tpu.memory_space<vmem>>, vector<1x1x64x1xf32>
    %640 = vector.shape_cast %639 : vector<1x1x64x1xf32> to vector<64x1xf32>
    %641 = vector.broadcast %640 : vector<64x1xf32> to vector<64x16xf32>
    %642 = arith.addf %638, %641 : vector<64x16xf32>
    %643 = vector.extract_strided_slice %642 {offsets = [0, 0], sizes = [32, 16], strides = [1, 1]} : vector<64x16xf32> to vector<32x16xf32>
    %644 = arith.addf %610, %643 : vector<32x16xf32>
    %645 = vector.broadcast %1 : vector<1x16xf32> to vector<32x16xf32>
    %646 = arith.mulf %644, %645 : vector<32x16xf32>
    %647 = vector.extract_strided_slice %642 {offsets = [32, 0], sizes = [32, 16], strides = [1, 1]} : vector<64x16xf32> to vector<32x16xf32>
    %648 = arith.addf %612, %647 : vector<32x16xf32>
    %c0_531 = arith.constant 0 : index
    %c2_532 = arith.constant 2 : index
    %649 = vector.load %arg13[%c0_531, %c2_532] : memref<32x20xf32, #tpu.memory_space<vmem>>, vector<32x16xf32>
    tpu.vector_store %arg13[%c0_531, %c2_532], %646 {strides = array<i32>} : memref<32x20xf32, #tpu.memory_space<vmem>>, vector<32x16xf32>,
    %c0_533 = arith.constant 0 : index
    %c0_534 = arith.constant 0 : index
    %650 = vector.load %arg13[%c0_533, %c0_534] : memref<32x20xf32, #tpu.memory_space<vmem>>, vector<32x16xf32>
    %c0_535 = arith.constant 0 : index
    %c1_536 = arith.constant 1 : index
    %651 = vector.load %arg13[%c0_535, %c1_536] : memref<32x20xf32, #tpu.memory_space<vmem>>, vector<32x16xf32>
    %c0_537 = arith.constant 0 : index
    %c2_538 = arith.constant 2 : index
    %652 = vector.load %arg13[%c0_537, %c2_538] : memref<32x20xf32, #tpu.memory_space<vmem>>, vector<32x16xf32>
    %c0_539 = arith.constant 0 : index
    %c3_540 = arith.constant 3 : index
    %653 = vector.load %arg13[%c0_539, %c3_540] : memref<32x20xf32, #tpu.memory_space<vmem>>, vector<32x16xf32>
    %c0_541 = arith.constant 0 : index
    %c4_542 = arith.constant 4 : index
    %654 = vector.load %arg13[%c0_541, %c4_542] : memref<32x20xf32, #tpu.memory_space<vmem>>, vector<32x16xf32>
    %655 = tpu.concatenate %650, %651, %652, %653, %654 in 0 : vector<32x16xf32>, vector<32x16xf32>, vector<32x16xf32>, vector<32x16xf32>, vector<32x16xf32> -> vector<160x16xf32>
    %c3_543 = arith.constant 3 : index
    %c3_544 = arith.constant 3 : index
    %c0_545 = arith.constant 0 : index
    %c0_546 = arith.constant 0 : index
    %656 = vector.load %arg5[%c3_543, %c3_544, %c0_545, %c0_546] : memref<4x4x64x160xf32, #tpu.memory_space<vmem>>, vector<1x1x64x160xf32>
    %657 = vector.shape_cast %656 : vector<1x1x64x160xf32> to vector<64x160xf32>
    %cst_547 = arith.constant dense<0.000000e+00> : vector<64x16xf32>
    %658 = tpu.matmul %657, %655, %cst_547 {dimension_numbers = #tpu.dot_dimension_numbers<[1], [0], [0], [1], [0, 0, 1, 1], [], []>} : vector<64x160xf32>, vector<160x16xf32>, vector<64x16xf32> -> vector<64x16xf32>
    %c3_548 = arith.constant 3 : index
    %c3_549 = arith.constant 3 : index
    %c0_550 = arith.constant 0 : index
    %c0_551 = arith.constant 0 : index
    %659 = vector.load %arg6[%c3_548, %c3_549, %c0_550, %c0_551] : memref<4x4x64x1xf32, #tpu.memory_space<vmem>>, vector<1x1x64x1xf32>
    %660 = vector.shape_cast %659 : vector<1x1x64x1xf32> to vector<64x1xf32>
    %661 = vector.broadcast %660 : vector<64x1xf32> to vector<64x16xf32>
    %662 = arith.addf %658, %661 : vector<64x16xf32>
    %663 = vector.extract_strided_slice %662 {offsets = [0, 0], sizes = [32, 16], strides = [1, 1]} : vector<64x16xf32> to vector<32x16xf32>
    %664 = math.tanh %663 : vector<32x16xf32>
    %665 = vector.extract_strided_slice %662 {offsets = [32, 0], sizes = [32, 16], strides = [1, 1]} : vector<64x16xf32> to vector<32x16xf32>
    %666 = arith.negf %665 : vector<32x16xf32>
    %667 = math.exp %666 : vector<32x16xf32>
    %cst_552 = arith.constant 1.000000e+00 : f32
    %668 = vector.broadcast %cst_552 : f32 to vector<32x16xf32>
    %669 = arith.addf %668, %667 : vector<32x16xf32>
    %670 = arith.divf %668, %669 : vector<32x16xf32>
    %671 = arith.mulf %664, %670 : vector<32x16xf32>
    %c3_553 = arith.constant 3 : index
    %c3_554 = arith.constant 3 : index
    %c0_555 = arith.constant 0 : index
    %c0_556 = arith.constant 0 : index
    %672 = vector.load %arg7[%c3_553, %c3_554, %c0_555, %c0_556] : memref<4x4x64x32xf32, #tpu.memory_space<vmem>>, vector<1x1x64x32xf32>
    %673 = vector.shape_cast %672 : vector<1x1x64x32xf32> to vector<64x32xf32>
    %674 = vector.extract_strided_slice %673 {offsets = [0, 0], sizes = [32, 32], strides = [1, 1]} : vector<64x32xf32> to vector<32x32xf32>
    %c3_557 = arith.constant 3 : index
    %c3_558 = arith.constant 3 : index
    %c0_559 = arith.constant 0 : index
    %c0_560 = arith.constant 0 : index
    %675 = vector.load %arg8[%c3_557, %c3_558, %c0_559, %c0_560] : memref<4x4x64x1xf32, #tpu.memory_space<vmem>>, vector<1x1x64x1xf32>
    %676 = vector.shape_cast %675 : vector<1x1x64x1xf32> to vector<64x1xf32>
    %677 = vector.extract_strided_slice %676 {offsets = [0, 0], sizes = [32, 1], strides = [1, 1]} : vector<64x1xf32> to vector<32x1xf32>
    %cst_561 = arith.constant dense<0.000000e+00> : vector<32x16xf32>
    %678 = tpu.matmul %674, %671, %cst_561 {dimension_numbers = #tpu.dot_dimension_numbers<[1], [0], [0], [1], [0, 0, 1, 1], [], []>} : vector<32x32xf32>, vector<32x16xf32>, vector<32x16xf32> -> vector<32x16xf32>
    %679 = vector.broadcast %677 : vector<32x1xf32> to vector<32x16xf32>
    %680 = arith.addf %678, %679 : vector<32x16xf32>
    %681 = arith.addf %648, %680 : vector<32x16xf32>
    %682 = vector.broadcast %1 : vector<1x16xf32> to vector<32x16xf32>
    %683 = arith.mulf %681, %682 : vector<32x16xf32>
    %c3_562 = arith.constant 3 : index
    %c0_563 = arith.constant 0 : index
    %c0_564 = arith.constant 0 : index
    %684 = vector.load %arg9[%c3_562, %c0_563, %c0_564] : memref<4x4x32xf32, #tpu.memory_space<vmem>>, vector<1x4x32xf32>
    %685 = vector.shape_cast %684 : vector<1x4x32xf32> to vector<4x32xf32>
    %cst_565 = arith.constant dense<0.000000e+00> : vector<4x16xf32>
    %686 = tpu.matmul %685, %683, %cst_565 {dimension_numbers = #tpu.dot_dimension_numbers<[1], [0], [0], [1], [0, 0, 1, 1], [], []>} : vector<4x32xf32>, vector<32x16xf32>, vector<4x16xf32> -> vector<4x16xf32>
    %c3_566 = arith.constant 3 : index
    %c0_567 = arith.constant 0 : index
    %c0_568 = arith.constant 0 : index
    %687 = vector.load %arg10[%c3_566, %c0_567, %c0_568] : memref<4x4x1xf32, #tpu.memory_space<vmem>>, vector<1x4x1xf32>
    %688 = vector.shape_cast %687 : vector<1x4x1xf32> to vector<4x1xf32>
    %689 = vector.broadcast %688 : vector<4x1xf32> to vector<4x16xf32>
    %690 = arith.addf %686, %689 : vector<4x16xf32>
    %691 = vector.broadcast %1 : vector<1x16xf32> to vector<4x16xf32>
    %692 = arith.mulf %690, %691 : vector<4x16xf32>
    %693 = vector.extract_strided_slice %692 {offsets = [0, 0], sizes = [2, 16], strides = [1, 1]} : vector<4x16xf32> to vector<2x16xf32>
    %694 = vector.extract_strided_slice %692 {offsets = [2, 0], sizes = [2, 16], strides = [1, 1]} : vector<4x16xf32> to vector<2x16xf32>
    %695 = math.exp %694 : vector<2x16xf32>
    %696 = arith.mulf %351, %695 : vector<2x16xf32>
    %697 = vector.broadcast %1 : vector<1x16xf32> to vector<2x16xf32>
    %698 = arith.mulf %696, %697 : vector<2x16xf32>
    %699 = arith.addf %693, %698 : vector<2x16xf32>
    %cst_569 = arith.constant dense<0.000000e+00> : vector<16xf32>
    %700 = vector.multi_reduction <add>, %694, %cst_569 [0] : vector<2x16xf32> to vector<16xf32>
    %701 = vector.shape_cast %700 : vector<16xf32> to vector<1x16xf32>
    %cst_570 = arith.constant dense<0.000000e+00> : vector<1xf32>
    %702 = vector.multi_reduction <add>, %701, %cst_570 [1] : vector<1x16xf32> to vector<1xf32>
    %703 = vector.shape_cast %702 : vector<1xf32> to vector<1x1xf32>
    %704 = arith.addf %530, %703 : vector<1x1xf32>
    %c0_571 = arith.constant 0 : index
    %c0_572 = arith.constant 0 : index
    %c0_573 = arith.constant 0 : index
    %705 = vector.load %arg11[%c0_571, %c0_572, %c0_573] : memref<1x4x16xf32, #tpu.memory_space<vmem>>, vector<1x2x16xf32>
    %706 = vector.shape_cast %705 : vector<1x2x16xf32> to vector<2x16xf32>
    %707 = vector.shape_cast %699 : vector<2x16xf32> to vector<1x2x16xf32>
    tpu.vector_store %arg11[%c0_571, %c0_572, %c0_573], %707 {strides = array<i32>} : memref<1x4x16xf32, #tpu.memory_space<vmem>>, vector<1x2x16xf32>,
    %c0_574 = arith.constant 0 : index
    %c2_575 = arith.constant 2 : index
    %c0_576 = arith.constant 0 : index
    %708 = vector.load %arg11[%c0_574, %c2_575, %c0_576] : memref<1x4x16xf32, #tpu.memory_space<vmem>>, vector<1x2x16xf32>
    %709 = vector.shape_cast %708 : vector<1x2x16xf32> to vector<2x16xf32>
    %710 = vector.shape_cast %525 : vector<2x16xf32> to vector<1x2x16xf32>
    tpu.vector_store %arg11[%c0_574, %c2_575, %c0_576], %710 {strides = array<i32>} : memref<1x4x16xf32, #tpu.memory_space<vmem>>, vector<1x2x16xf32>,
    %c0_577 = arith.constant 0 : index
    %c0_578 = arith.constant 0 : index
    %c0_579 = arith.constant 0 : index
    %711 = vector.load %arg12[%c0_577, %c0_578, %c0_579] : memref<1x1x1xf32, #tpu.memory_space<vmem>>, vector<1x1x1xf32>
    %712 = vector.shape_cast %711 : vector<1x1x1xf32> to vector<1x1xf32>
    %713 = vector.shape_cast %704 : vector<1x1xf32> to vector<1x1x1xf32>
    tpu.vector_store %arg12[%c0_577, %c0_578, %c0_579], %713 {strides = array<i32>} : memref<1x1x1xf32, #tpu.memory_space<vmem>>, vector<1x1x1xf32>,
    return
  }
  func.func @transform_0(%arg0: i32) -> (i32, i32, i32) {
    %c0_i32 = arith.constant 0 : i32
    %c0_i32_0 = arith.constant 0 : i32
    %c0_i32_1 = arith.constant 0 : i32
    return %arg0, %c0_i32, %c0_i32_0 : i32, i32, i32
  }
  func.func @transform_1(%arg0: i32) -> (i32, i32, i32) {
    %c0_i32 = arith.constant 0 : i32
    %c0_i32_0 = arith.constant 0 : i32
    %c0_i32_1 = arith.constant 0 : i32
    return %arg0, %c0_i32, %c0_i32_0 : i32, i32, i32
  }
  func.func @transform_2(%arg0: i32) -> (i32, i32, i32) {
    %c0_i32 = arith.constant 0 : i32
    %c0_i32_0 = arith.constant 0 : i32
    %c0_i32_1 = arith.constant 0 : i32
    %c0_i32_2 = arith.constant 0 : i32
    return %c0_i32, %c0_i32_0, %c0_i32_1 : i32, i32, i32
  }
  func.func @transform_3(%arg0: i32) -> (i32, i32, i32) {
    %c0_i32 = arith.constant 0 : i32
    %c0_i32_0 = arith.constant 0 : i32
    %c0_i32_1 = arith.constant 0 : i32
    %c0_i32_2 = arith.constant 0 : i32
    return %c0_i32, %c0_i32_0, %c0_i32_1 : i32, i32, i32
  }
  func.func @transform_4(%arg0: i32) -> (i32, i32, i32, i32) {
    %c0_i32 = arith.constant 0 : i32
    %c0_i32_0 = arith.constant 0 : i32
    %c0_i32_1 = arith.constant 0 : i32
    %c0_i32_2 = arith.constant 0 : i32
    %c0_i32_3 = arith.constant 0 : i32
    return %c0_i32, %c0_i32_0, %c0_i32_1, %c0_i32_2 : i32, i32, i32, i32
  }
  func.func @transform_5(%arg0: i32) -> (i32, i32, i32, i32) {
    %c0_i32 = arith.constant 0 : i32
    %c0_i32_0 = arith.constant 0 : i32
    %c0_i32_1 = arith.constant 0 : i32
    %c0_i32_2 = arith.constant 0 : i32
    %c0_i32_3 = arith.constant 0 : i32
    return %c0_i32, %c0_i32_0, %c0_i32_1, %c0_i32_2 : i32, i32, i32, i32
  }
  func.func @transform_6(%arg0: i32) -> (i32, i32, i32, i32) {
    %c0_i32 = arith.constant 0 : i32
    %c0_i32_0 = arith.constant 0 : i32
    %c0_i32_1 = arith.constant 0 : i32
    %c0_i32_2 = arith.constant 0 : i32
    %c0_i32_3 = arith.constant 0 : i32
    return %c0_i32, %c0_i32_0, %c0_i32_1, %c0_i32_2 : i32, i32, i32, i32
  }
  func.func @transform_7(%arg0: i32) -> (i32, i32, i32, i32) {
    %c0_i32 = arith.constant 0 : i32
    %c0_i32_0 = arith.constant 0 : i32
    %c0_i32_1 = arith.constant 0 : i32
    %c0_i32_2 = arith.constant 0 : i32
    %c0_i32_3 = arith.constant 0 : i32
    return %c0_i32, %c0_i32_0, %c0_i32_1, %c0_i32_2 : i32, i32, i32, i32
  }
  func.func @transform_8(%arg0: i32) -> (i32, i32, i32) {
    %c0_i32 = arith.constant 0 : i32
    %c0_i32_0 = arith.constant 0 : i32
    %c0_i32_1 = arith.constant 0 : i32
    %c0_i32_2 = arith.constant 0 : i32
    return %c0_i32, %c0_i32_0, %c0_i32_1 : i32, i32, i32
  }
  func.func @transform_9(%arg0: i32) -> (i32, i32, i32) {
    %c0_i32 = arith.constant 0 : i32
    %c0_i32_0 = arith.constant 0 : i32
    %c0_i32_1 = arith.constant 0 : i32
    %c0_i32_2 = arith.constant 0 : i32
    return %c0_i32, %c0_i32_0, %c0_i32_1 : i32, i32, i32
  }
  func.func @transform_10(%arg0: i32) -> (i32, i32, i32) {
    %c0_i32 = arith.constant 0 : i32
    %c0_i32_0 = arith.constant 0 : i32
    %c0_i32_1 = arith.constant 0 : i32
    return %arg0, %c0_i32, %c0_i32_0 : i32, i32, i32
  }
  func.func @transform_11(%arg0: i32) -> (i32, i32, i32) {
    %c0_i32 = arith.constant 0 : i32
    %c0_i32_0 = arith.constant 0 : i32
    %c0_i32_1 = arith.constant 0 : i32
    return %arg0, %c0_i32, %c0_i32_0 : i32, i32, i32
  }
}

</mosaic_0001>

<llo_original>
// kernel: tpu_custom_call.1
$region0: #{tpu_custom_call.1}
  #allocation0 [shape = 'u32[]', space=smem, size = 0x4, offset = 0x4, fixed_abs, tag = 'smem constant byte address 0x4 - core index']
  #allocation1 [shape = 'u32[144,128]{1,0:T(1,128)}', space=vmem, size = 0x12000, scoped, tag = 'internal scratch']
  #allocation2 [shape = 'f32[32,20]{1,0:T(8,128)}', space=vmem, size = 0x4000, scoped, tag = 'scratch operand']
  %s0 = inlined_call_operand.vmem [shape: f32[2,4,16], index: 0, kind: input, shape index: {}]
  %s1 = inlined_call_operand.vmem [shape: f32[2,1,16], index: 1, kind: input, shape index: {}]
  %s2 = inlined_call_operand.vmem [shape: f32[4,32,2], index: 2, kind: input, shape index: {}]
  %s3 = inlined_call_operand.vmem [shape: f32[4,32,1], index: 3, kind: input, shape index: {}]
  %s4 = inlined_call_operand.vmem [shape: f32[4,4,64,160], index: 4, kind: input, shape index: {}]
  %s5 = inlined_call_operand.vmem [shape: f32[4,4,64,1], index: 5, kind: input, shape index: {}]
  %s6 = inlined_call_operand.vmem [shape: f32[4,4,64,32], index: 6, kind: input, shape index: {}]
  %s7 = inlined_call_operand.vmem [shape: f32[4,4,64,1], index: 7, kind: input, shape index: {}]
  %s8 = inlined_call_operand.vmem [shape: f32[4,4,32], index: 8, kind: input, shape index: {}]
  %s9 = inlined_call_operand.vmem [shape: f32[4,4,1], index: 9, kind: input, shape index: {}]
  %s10 = inlined_call_operand.hbm [shape: f32[2,4,16], index: 10, kind: output, shape index: {0}]
  %s11 = inlined_call_operand.vmem [shape: f32[2,1,1], index: 11, kind: output, shape index: {1}]
  %12 = xla_tuple %s10, %s11
  %s13 = sld [smem:[#allocation0]]
  $region81: #{tpu_custom_call.1} parent=0
    _
  %s15 = ssub.s32 1, %s13
  %s16 = scalar_select 0, %s15, %s13
  $region1: #{tpu_custom_call.1} parent=0
    #allocation3 [shape = 'u8[4096]{0}', space=vmem, size = 0x1000, scoped, tag = 'output window, operand 0']
    #allocation4 [shape = 's32[2]{0}', space=sflag, size = 0x8, scoped, tag = 'scoped memory for tpu_custom_call.1']
    %17 = vsyncpa [#allocation4], 0
    %s18 = scalar_lea.sflag [#allocation4], 1
    %19 = vsyncpa %s18, 0
    loop: start=0, step=1, limit=4
    $region2: #{tpu_custom_call.1} parent=1 // loop_pre_header
      _
    $region3: #{tpu_custom_call.1} parent=1 // loop_header
      %s21 = sphi 0, %s25
      %p22 = scmp.ge.s32.totalorder %s21, 4
      %s31 = sphi 0, %s33
      %s34 = sphi 0, %s31
      %s35 = sphi 0, %s34
      %s51 = sphi 0, %s35
      %s57 = sphi 0, %s59
      %s60 = sphi 0, %s57
      %s61 = sphi 0, %s60
      %s77 = sphi 0, %s61
      %s81 = sphi 0, %s81
      %s83 = sphi 0, %s81
      %s84 = sphi 0, %s83
      %s98 = sphi 0, %s84
      %s102 = sphi 0, %s102
      %s104 = sphi 0, %s102
      %s105 = sphi 0, %s104
      %s119 = sphi 0, %s105
      %s123 = sphi 0, %s123
      %s125 = sphi 0, %s123
      %s126 = sphi 0, %s125
      %s140 = sphi 0, %s126
      %s144 = sphi 0, %s144
      %s146 = sphi 0, %s144
      %s147 = sphi 0, %s146
      %s161 = sphi 0, %s147
      %s165 = sphi 0, %s165
      %s167 = sphi 0, %s165
      %s168 = sphi 0, %s167
      %s182 = sphi 0, %s168
      %s186 = sphi 0, %s186
      %s188 = sphi 0, %s186
      %s189 = sphi 0, %s188
      %s203 = sphi 0, %s189
      %s207 = sphi 0, %s207
      %s209 = sphi 0, %s207
      %s210 = sphi 0, %s209
      %s224 = sphi 0, %s210
      %s228 = sphi 0, %s228
      %s230 = sphi 0, %s228
      %s231 = sphi 0, %s230
      %s245 = sphi 0, %s231
      %s251 = sphi 0, %s253
      %s254 = sphi 0, %s251
      %s255 = sphi 0, %s254
      %s271 = sphi 0, %s255
      %s277 = sphi 0, %s279
      %s280 = sphi 0, %s277
      %s281 = sphi 0, %s280
      %s297 = sphi 0, %s281
    $region4: #{tpu_custom_call.1} parent=1 // loop_header_branch
      %24 = sbr.rel (%p22) target = $region8
    $region5: #{tpu_custom_call.1} parent=1 // loop_body
      %s26 = ssub.s32 %s21, 1
      %s27 = ssub.s32 %s21, 2
      %s28 = sadd.s32 %s21, 1
      %s29 = ssub.s32 %s21, %s28
      %p30 = scmp.eq.s32.totalorder %s29, 0
      %s32 = sadd.s32 %s31, 1
      %s33 = scalar_select %p30, %s31, %s32
      %p36 = pneg %p30
      %p37 = scmp.eq.s32.totalorder %s21, 1
      %p38 = por %p36, %p37
      %p39 = scmp.ne.s32.totalorder %s31, %s34
      %p40 = scmp.eq.s32.totalorder %s21, 0
      %p41 = por %p39, %p40
      %p42 = scmp.ne.s32.totalorder %s31, %s34
      %p43 = scmp.eq.s32.totalorder %s26, 1
      %p44 = por %p42, %p43
      %p45 = scmp.ne.s32.totalorder %s34, %s35
      %p46 = scmp.eq.s32.totalorder %s26, 0
      %p47 = por %p45, %p46
      %p48 = scmp.ne.s32.totalorder %s34, %s35
      %p49 = scmp.eq.s32.totalorder %s27, 1
      %p50 = por %p48, %p49
      %p52 = scmp.ne.s32.totalorder %s35, %s51
      %p53 = scmp.eq.s32.totalorder %s27, 0
      %p54 = por %p52, %p53
      %s55 = ssub.s32 %s21, %s28
      %p56 = scmp.eq.s32.totalorder %s55, 0
      %s58 = sadd.s32 %s57, 1
      %s59 = scalar_select %p56, %s57, %s58
      %p62 = pneg %p56
      %p63 = scmp.eq.s32.totalorder %s21, 1
      %p64 = por %p62, %p63
      %p65 = scmp.ne.s32.totalorder %s57, %s60
      %p66 = scmp.eq.s32.totalorder %s21, 0
      %p67 = por %p65, %p66
      %p68 = scmp.ne.s32.totalorder %s57, %s60
      %p69 = scmp.eq.s32.totalorder %s26, 1
      %p70 = por %p68, %p69
      %p71 = scmp.ne.s32.totalorder %s60, %s61
      %p72 = scmp.eq.s32.totalorder %s26, 0
      %p73 = por %p71, %p72
      %p74 = scmp.ne.s32.totalorder %s60, %s61
      %p75 = scmp.eq.s32.totalorder %s27, 1
      %p76 = por %p74, %p75
      %p78 = scmp.ne.s32.totalorder %s61, %s77
      %p79 = scmp.eq.s32.totalorder %s27, 0
      %p80 = por %p78, %p79
      %s82 = sadd.s32 %s81, 1
      %p85 = scmp.eq.s32.totalorder %s21, 1
      %p86 = scmp.ne.s32.totalorder %s81, %s83
      %p87 = scmp.eq.s32.totalorder %s21, 0
      %p88 = por %p86, %p87
      %p89 = scmp.ne.s32.totalorder %s81, %s83
      %p90 = scmp.eq.s32.totalorder %s26, 1
      %p91 = por %p89, %p90
      %p92 = scmp.ne.s32.totalorder %s83, %s84
      %p93 = scmp.eq.s32.totalorder %s26, 0
      %p94 = por %p92, %p93
      %p95 = scmp.ne.s32.totalorder %s83, %s84
      %p96 = scmp.eq.s32.totalorder %s27, 1
      %p97 = por %p95, %p96
      %p99 = scmp.ne.s32.totalorder %s84, %s98
      %p100 = scmp.eq.s32.totalorder %s27, 0
      %p101 = por %p99, %p100
      %s103 = sadd.s32 %s102, 1
      %p106 = scmp.eq.s32.totalorder %s21, 1
      %p107 = scmp.ne.s32.totalorder %s102, %s104
      %p108 = scmp.eq.s32.totalorder %s21, 0
      %p109 = por %p107, %p108
      %p110 = scmp.ne.s32.totalorder %s102, %s104
      %p111 = scmp.eq.s32.totalorder %s26, 1
      %p112 = por %p110, %p111
      %p113 = scmp.ne.s32.totalorder %s104, %s105
      %p114 = scmp.eq.s32.totalorder %s26, 0
      %p115 = por %p113, %p114
      %p116 = scmp.ne.s32.totalorder %s104, %s105
      %p117 = scmp.eq.s32.totalorder %s27, 1
      %p118 = por %p116, %p117
      %p120 = scmp.ne.s32.totalorder %s105, %s119
      %p121 = scmp.eq.s32.totalorder %s27, 0
      %p122 = por %p120, %p121
      %s124 = sadd.s32 %s123, 1
      %p127 = scmp.eq.s32.totalorder %s21, 1
      %p128 = scmp.ne.s32.totalorder %s123, %s125
      %p129 = scmp.eq.s32.totalorder %s21, 0
      %p130 = por %p128, %p129
      %p131 = scmp.ne.s32.totalorder %s123, %s125
      %p132 = scmp.eq.s32.totalorder %s26, 1
      %p133 = por %p131, %p132
      %p134 = scmp.ne.s32.totalorder %s125, %s126
      %p135 = scmp.eq.s32.totalorder %s26, 0
      %p136 = por %p134, %p135
      %p137 = scmp.ne.s32.totalorder %s125, %s126
      %p138 = scmp.eq.s32.totalorder %s27, 1
      %p139 = por %p137, %p138
      %p141 = scmp.ne.s32.totalorder %s126, %s140
      %p142 = scmp.eq.s32.totalorder %s27, 0
      %p143 = por %p141, %p142
      %s145 = sadd.s32 %s144, 1
      %p148 = scmp.eq.s32.totalorder %s21, 1
      %p149 = scmp.ne.s32.totalorder %s144, %s146
      %p150 = scmp.eq.s32.totalorder %s21, 0
      %p151 = por %p149, %p150
      %p152 = scmp.ne.s32.totalorder %s144, %s146
      %p153 = scmp.eq.s32.totalorder %s26, 1
      %p154 = por %p152, %p153
      %p155 = scmp.ne.s32.totalorder %s146, %s147
      %p156 = scmp.eq.s32.totalorder %s26, 0
      %p157 = por %p155, %p156
      %p158 = scmp.ne.s32.totalorder %s146, %s147
      %p159 = scmp.eq.s32.totalorder %s27, 1
      %p160 = por %p158, %p159
      %p162 = scmp.ne.s32.totalorder %s147, %s161
      %p163 = scmp.eq.s32.totalorder %s27, 0
      %p164 = por %p162, %p163
      %s166 = sadd.s32 %s165, 1
      %p169 = scmp.eq.s32.totalorder %s21, 1
      %p170 = scmp.ne.s32.totalorder %s165, %s167
      %p171 = scmp.eq.s32.totalorder %s21, 0
      %p172 = por %p170, %p171
      %p173 = scmp.ne.s32.totalorder %s165, %s167
      %p174 = scmp.eq.s32.totalorder %s26, 1
      %p175 = por %p173, %p174
      %p176 = scmp.ne.s32.totalorder %s167, %s168
      %p177 = scmp.eq.s32.totalorder %s26, 0
      %p178 = por %p176, %p177
      %p179 = scmp.ne.s32.totalorder %s167, %s168
      %p180 = scmp.eq.s32.totalorder %s27, 1
      %p181 = por %p179, %p180
      %p183 = scmp.ne.s32.totalorder %s168, %s182
      %p184 = scmp.eq.s32.totalorder %s27, 0
      %p185 = por %p183, %p184
      %s187 = sadd.s32 %s186, 1
      %p190 = scmp.eq.s32.totalorder %s21, 1
      %p191 = scmp.ne.s32.totalorder %s186, %s188
      %p192 = scmp.eq.s32.totalorder %s21, 0
      %p193 = por %p191, %p192
      %p194 = scmp.ne.s32.totalorder %s186, %s188
      %p195 = scmp.eq.s32.totalorder %s26, 1
      %p196 = por %p194, %p195
      %p197 = scmp.ne.s32.totalorder %s188, %s189
      %p198 = scmp.eq.s32.totalorder %s26, 0
      %p199 = por %p197, %p198
      %p200 = scmp.ne.s32.totalorder %s188, %s189
      %p201 = scmp.eq.s32.totalorder %s27, 1
      %p202 = por %p200, %p201
      %p204 = scmp.ne.s32.totalorder %s189, %s203
      %p205 = scmp.eq.s32.totalorder %s27, 0
      %p206 = por %p204, %p205
      %s208 = sadd.s32 %s207, 1
      %p211 = scmp.eq.s32.totalorder %s21, 1
      %p212 = scmp.ne.s32.totalorder %s207, %s209
      %p213 = scmp.eq.s32.totalorder %s21, 0
      %p214 = por %p212, %p213
      %p215 = scmp.ne.s32.totalorder %s207, %s209
      %p216 = scmp.eq.s32.totalorder %s26, 1
      %p217 = por %p215, %p216
      %p218 = scmp.ne.s32.totalorder %s209, %s210
      %p219 = scmp.eq.s32.totalorder %s26, 0
      %p220 = por %p218, %p219
      %p221 = scmp.ne.s32.totalorder %s209, %s210
      %p222 = scmp.eq.s32.totalorder %s27, 1
      %p223 = por %p221, %p222
      %p225 = scmp.ne.s32.totalorder %s210, %s224
      %p226 = scmp.eq.s32.totalorder %s27, 0
      %p227 = por %p225, %p226
      %s229 = sadd.s32 %s228, 1
      %p232 = scmp.eq.s32.totalorder %s21, 1
      %p233 = scmp.ne.s32.totalorder %s228, %s230
      %p234 = scmp.eq.s32.totalorder %s21, 0
      %p235 = por %p233, %p234
      %p236 = scmp.ne.s32.totalorder %s228, %s230
      %p237 = scmp.eq.s32.totalorder %s26, 1
      %p238 = por %p236, %p237
      %p239 = scmp.ne.s32.totalorder %s230, %s231
      %p240 = scmp.eq.s32.totalorder %s26, 0
      %p241 = por %p239, %p240
      %p242 = scmp.ne.s32.totalorder %s230, %s231
      %p243 = scmp.eq.s32.totalorder %s27, 1
      %p244 = por %p242, %p243
      %p246 = scmp.ne.s32.totalorder %s231, %s245
      %p247 = scmp.eq.s32.totalorder %s27, 0
      %p248 = por %p246, %p247
      %s249 = ssub.s32 %s21, %s28
      %p250 = scmp.eq.s32.totalorder %s249, 0
      %s252 = sadd.s32 %s251, 1
      %s253 = scalar_select %p250, %s251, %s252
      %p256 = pneg %p250
      %p257 = scmp.eq.s32.totalorder %s21, 1
      %p258 = por %p256, %p257
      %p259 = scmp.ne.s32.totalorder %s251, %s254
      %p260 = scmp.eq.s32.totalorder %s21, 0
      %p261 = por %p259, %p260
      %p262 = scmp.ne.s32.totalorder %s251, %s254
      %p263 = scmp.eq.s32.totalorder %s26, 1
      %p264 = por %p262, %p263
      %p265 = scmp.ne.s32.totalorder %s254, %s255
      %p266 = scmp.eq.s32.totalorder %s26, 0
      %p267 = por %p265, %p266
      %p268 = scmp.ne.s32.totalorder %s254, %s255
      %p269 = scmp.eq.s32.totalorder %s27, 1
      %p270 = por %p268, %p269
      %p272 = scmp.ne.s32.totalorder %s255, %s271
      %p273 = scmp.eq.s32.totalorder %s27, 0
      %p274 = por %p272, %p273
      %s275 = ssub.s32 %s21, %s28
      %p276 = scmp.eq.s32.totalorder %s275, 0
      %s278 = sadd.s32 %s277, 1
      %s279 = scalar_select %p276, %s277, %s278
      %p282 = pneg %p276
      %p283 = scmp.eq.s32.totalorder %s21, 1
      %p284 = por %p282, %p283
      %p285 = scmp.ne.s32.totalorder %s277, %s280
      %p286 = scmp.eq.s32.totalorder %s21, 0
      %p287 = por %p285, %p286
      %p288 = scmp.ne.s32.totalorder %s277, %s280
      %p289 = scmp.eq.s32.totalorder %s26, 1
      %p290 = por %p288, %p289
      %p291 = scmp.ne.s32.totalorder %s280, %s281
      %p292 = scmp.eq.s32.totalorder %s26, 0
      %p293 = por %p291, %p292
      %p294 = scmp.ne.s32.totalorder %s280, %s281
      %p295 = scmp.eq.s32.totalorder %s27, 1
      %p296 = por %p294, %p295
      %p298 = scmp.ne.s32.totalorder %s281, %s297
      %p299 = scmp.eq.s32.totalorder %s27, 0
      %p300 = por %p298, %p299
      %p301 = scmp.le.s32.totalorder 1, %s21
      %p302 = scmp.lt.s32.totalorder %s21, 3
      %p303 = pnand %p301, %p302
      %p304 = pneg %p303
      // Predicated region
      $region9: #{tpu_custom_call.1} parent=5 // pred_check
        _
      $region10: #{tpu_custom_call.1} parent=5 // pred_check_branch
        %306 = sbr.rel (%p303) target = $region12
      $region11: #{tpu_custom_call.1} parent=5 // pred_region
        %s307 = ssub.s32 %s21, 1
        // Predicated region
        $region13: #{tpu_custom_call.1} parent=11 // pred_check
          %p308 = pneg %p94
        $region14: #{tpu_custom_call.1} parent=11 // pred_check_branch
          %310 = sbr.rel (%p308) target = $region16
        $region15: #{tpu_custom_call.1} parent=11 // pred_region
          _
        $region16: #{tpu_custom_call.1} parent=11 // pred_fallthru
          _
        // Predicated region
        $region17: #{tpu_custom_call.1} parent=11 // pred_check
          %p311 = pneg %p115
        $region18: #{tpu_custom_call.1} parent=11 // pred_check_branch
          %313 = sbr.rel (%p311) target = $region20
        $region19: #{tpu_custom_call.1} parent=11 // pred_region
          _
        $region20: #{tpu_custom_call.1} parent=11 // pred_fallthru
          _
        // Predicated region
        $region21: #{tpu_custom_call.1} parent=11 // pred_check
          %p314 = pneg %p136
        $region22: #{tpu_custom_call.1} parent=11 // pred_check_branch
          %316 = sbr.rel (%p314) target = $region24
        $region23: #{tpu_custom_call.1} parent=11 // pred_region
          _
        $region24: #{tpu_custom_call.1} parent=11 // pred_fallthru
          _
        // Predicated region
        $region25: #{tpu_custom_call.1} parent=11 // pred_check
          %p317 = pneg %p157
        $region26: #{tpu_custom_call.1} parent=11 // pred_check_branch
          %319 = sbr.rel (%p317) target = $region28
        $region27: #{tpu_custom_call.1} parent=11 // pred_region
          _
        $region28: #{tpu_custom_call.1} parent=11 // pred_fallthru
          _
        // Predicated region
        $region29: #{tpu_custom_call.1} parent=11 // pred_check
          %p320 = pneg %p178
        $region30: #{tpu_custom_call.1} parent=11 // pred_check_branch
          %322 = sbr.rel (%p320) target = $region32
        $region31: #{tpu_custom_call.1} parent=11 // pred_region
          _
        $region32: #{tpu_custom_call.1} parent=11 // pred_fallthru
          _
        // Predicated region
        $region33: #{tpu_custom_call.1} parent=11 // pred_check
          %p323 = pneg %p199
        $region34: #{tpu_custom_call.1} parent=11 // pred_check_branch
          %325 = sbr.rel (%p323) target = $region36
        $region35: #{tpu_custom_call.1} parent=11 // pred_region
          _
        $region36: #{tpu_custom_call.1} parent=11 // pred_fallthru
          _
        // Predicated region
        $region37: #{tpu_custom_call.1} parent=11 // pred_check
          %p326 = pneg %p220
        $region38: #{tpu_custom_call.1} parent=11 // pred_check_branch
          %328 = sbr.rel (%p326) target = $region40
        $region39: #{tpu_custom_call.1} parent=11 // pred_region
          _
        $region40: #{tpu_custom_call.1} parent=11 // pred_fallthru
          _
        // Predicated region
        $region41: #{tpu_custom_call.1} parent=11 // pred_check
          %p329 = pneg %p241
        $region42: #{tpu_custom_call.1} parent=11 // pred_check_branch
          %331 = sbr.rel (%p329) target = $region44
        $region43: #{tpu_custom_call.1} parent=11 // pred_region
          _
        $region44: #{tpu_custom_call.1} parent=11 // pred_fallthru
          _
      $region12: #{tpu_custom_call.1} parent=5 // pred_fallthru
        _
      %p332 = scmp.lt.s32.totalorder %s21, 2
      // Predicated region
      $region45: #{tpu_custom_call.1} parent=5 // pred_check
        %p333 = pneg %p332
      $region46: #{tpu_custom_call.1} parent=5 // pred_check_branch
        %335 = sbr.rel (%p333) target = $region48
      $region47: #{tpu_custom_call.1} parent=5 // pred_region
        // Predicated region
        $region49: #{tpu_custom_call.1} parent=47 // pred_check
          %p336 = pneg %p41
        $region50: #{tpu_custom_call.1} parent=47 // pred_check_branch
          %338 = sbr.rel (%p336) target = $region52
        $region51: #{tpu_custom_call.1} parent=47 // pred_region
          %p339 = scmp.lt.s32.totalorder %s21, 1
          %s340 = scalar_select %p339, %s21, 1
          %s341 = smul.addr %s340, 4
          %s342 = scalar_lea.vmem %s0, %s341
        $region52: #{tpu_custom_call.1} parent=47 // pred_fallthru
          _
        // Predicated region
        $region53: #{tpu_custom_call.1} parent=47 // pred_check
          %p343 = pneg %p67
        $region54: #{tpu_custom_call.1} parent=47 // pred_check_branch
          %345 = sbr.rel (%p343) target = $region56
        $region55: #{tpu_custom_call.1} parent=47 // pred_region
          %p346 = scmp.lt.s32.totalorder %s21, 1
          %s347 = scalar_select %p346, %s21, 1
          %s348 = scalar_lea.vmem %s1, %s347
        $region56: #{tpu_custom_call.1} parent=47 // pred_fallthru
          _
      $region48: #{tpu_custom_call.1} parent=5 // pred_fallthru
        _
      %p349 = scmp.le.s32.totalorder 1, %s21
      %p350 = scmp.lt.s32.totalorder %s21, 3
      %p351 = pnand %p349, %p350
      %p352 = pneg %p351
      // Predicated region
      $region57: #{tpu_custom_call.1} parent=5 // pred_check
        _
      $region58: #{tpu_custom_call.1} parent=5 // pred_check_branch
        %354 = sbr.rel (%p351) target = $region60
      $region59: #{tpu_custom_call.1} parent=5 // pred_region
        %s355 = ssub.s32 %s21, 1
        %p356 = scmp.lt.s32.totalorder %s26, 1
        %s357 = scalar_select %p356, %s26, 1
        %s358 = smul.addr %s357, 4
        %s359 = scalar_lea.vmem %s0, %s358
        %p360 = pneg %p47
        %p361 = pneg %p44
        %p362 = scmp.lt.s32.totalorder %s26, 1
        %s363 = scalar_select %p362, %s26, 1
        %s364 = scalar_lea.vmem %s1, %s363
        %p365 = pneg %p73
        %p366 = pneg %p70
        %p367 = pneg %p94
        %p368 = pneg %p91
        %p369 = pneg %p115
        %p370 = pneg %p112
        %p371 = pneg %p136
        %p372 = pneg %p133
        %p373 = pneg %p157
        %p374 = pneg %p154
        %p375 = pneg %p178
        %p376 = pneg %p175
        %p377 = pneg %p199
        %p378 = pneg %p196
        %p379 = pneg %p220
        %p380 = pneg %p217
        %p381 = pneg %p241
        %p382 = pneg %p238
        %p383 = pneg %p267
        %p384 = pneg %p264
        %s385 = sand.u32 %s254, 1
        %s386 = scalar_lea.sflag [#allocation4], %s385
        %s387 = sand.u32 %s254, 1
        %s388 = smul.addr %s387, 4
        %s389 = scalar_lea.vmem [#allocation3], %s388
        %p390 = pneg %p293
        %p391 = pneg %p290
        %p392 = scmp.lt.s32.totalorder %s26, 1
        %s393 = scalar_select %p392, %s26, 1
        %s394 = scalar_lea.vmem %s11, %s393
        %p395 = scmp.lt.s32.totalorder %s26, 1
        %s396 = scalar_select %p395, %s26, 1
        %s397 = smul.addr %s396, 4
        %s398 = scalar_lea.vmem %s0, %s397
        %p399 = scmp.lt.s32.totalorder %s26, 1
        %s400 = scalar_select %p399, %s26, 1
        %s401 = scalar_lea.vmem %s1, %s400
        %p402 = scmp.lt.s32.totalorder %s26, 1
        %s403 = scalar_select %p402, %s26, 1
        %s404 = scalar_lea.vmem %s11, %s403
        %v405 = vld [vmem:[%s401] sm:$0x1]
        %v406 = vld [vmem:[%s398] sm:$0x3]
        %v407 = vld [vmem:[%s398 + $0x2] sm:$0x3]
        %vm408 = vcmask 162816
        %409 = vst.msk [vmem:[#allocation2] sm:$0xff] %vm408, 0.0
        %410 = vst.msk [vmem:[#allocation2 + $0x8] sm:$0xff] %vm408, 0.0
        %411 = vst.msk [vmem:[#allocation2 + $0x10] sm:$0xff] %vm408, 0.0
        %412 = vst.msk [vmem:[#allocation2 + $0x18] sm:$0xff] %vm408, 0.0
        %v413 = vld [vmem:[%s2] sm:$0xff]
        %v414 = vld [vmem:[%s2 + $0x8] sm:$0xff]
        %v415 = vld [vmem:[%s2 + $0x10] sm:$0xff]
        %v416 = vld [vmem:[%s2 + $0x18] sm:$0xff]
        %v417 = vld [vmem:[%s3] sm:$0xff]
        %v418 = vld [vmem:[%s3 + $0x8] sm:$0xff]
        %v419 = vld [vmem:[%s3 + $0x10] sm:$0xff]
        %v420 = vld [vmem:[%s3 + $0x18] sm:$0xff]
        %422 = vset.pattern.permute.xlu0 0
        %423 = vperm.xlu0 %422, %v417
        %v424 = vpop.permute.xlu0 %423
        %427 = vset.pattern.permute.xlu0 0
        %428 = vperm.xlu0 %427, %v418
        %v429 = vpop.permute.xlu0 %428
        %432 = vset.pattern.permute.xlu0 0
        %433 = vperm.xlu0 %432, %v419
        %v434 = vpop.permute.xlu0 %433
        %437 = vset.pattern.permute.xlu0 0
        %438 = vperm.xlu0 %437, %v420
        %v439 = vpop.permute.xlu0 %438
        %vm441 = vcmask 15360
        %v443 = vsel %vm441, %v413, 0
        %v446 = vsel %vm441, %v414, 0
        %v449 = vsel %vm441, %v415, 0
        %v452 = vsel %vm441, %v416, 0
        %vm454 = vcmask 1041408
        %v456 = vsel %vm454, %v406, 0
        %458 = vmatprep.subr.mxu0 0.0
        %459 = vmatpush1.msra.mxu0 %v456
        %460 = vmatprep.subr.mxu0 0.0
        %461 = vmatpush1.msra.mxu0 0.0
        %462 = vmatprep.subr.mxu0 0.0
        %463 = vmatpush1.msra.mxu0 0.0
        %464 = vmatprep.subr.mxu0 0.0
        %465 = vmatpush1.msra.mxu0 0.0
        %466 = vmatprep.subr.mxu0 0.0
        %467 = vmatpush1.msra.mxu0 0.0
        %468 = vmatprep.subr.mxu0 0.0
        %469 = vmatpush1.msra.mxu0 0.0
        %470 = vmatprep.subr.mxu0 0.0
        %471 = vmatpush1.msra.mxu0 0.0
        %472 = vmatprep.subr.mxu0 0.0
        %473 = vmatpush1.msra.mxu0 0.0
        %474 = vmatprep.subr.mxu0 0.0
        %475 = vmatpush1.msra.mxu0 0.0
        %476 = vmatprep.subr.mxu0 0.0
        %477 = vmatpush1.msra.mxu0 0.0
        %478 = vmatprep.subr.mxu0 0.0
        %479 = vmatpush1.msra.mxu0 0.0
        %480 = vmatprep.subr.mxu0 0.0
        %481 = vmatpush1.msra.mxu0 0.0
        %482 = vmatprep.subr.mxu0 0.0
        %483 = vmatpush1.msra.mxu0 0.0
        %484 = vmatprep.subr.mxu0 0.0
        %485 = vmatpush1.msra.mxu0 0.0
        %486 = vmatprep.subr.mxu0 0.0
        %487 = vmatpush1.msra.mxu0 0.0
        %488 = vmatprep.subr.mxu0 0.0
        %489 = vmatpush1.msra.mxu0 0.0
        %490 = vmatprep.subr.mxu0 0.0
        %491 = vmatpush1.msra.mxu0 0.0
        %492 = vmatprep.subr.mxu0 0.0
        %493 = vmatpush1.msra.mxu0 0.0
        %494 = vmatprep.subr.mxu0 0.0
        %495 = vmatpush1.msra.mxu0 0.0
        %496 = vmatprep.subr.mxu0 0.0
        %497 = vmatpush1.msra.mxu0 0.0
        %498 = vmatprep.subr.mxu0 0.0
        %499 = vmatpush1.msra.mxu0 0.0
        %500 = vmatprep.subr.mxu0 0.0
        %501 = vmatpush1.msra.mxu0 0.0
        %502 = vmatprep.subr.mxu0 0.0
        %503 = vmatpush1.msra.mxu0 0.0
        %504 = vmatprep.subr.mxu0 0.0
        %505 = vmatpush1.msra.mxu0 0.0
        %506 = vmatprep.subr.mxu0 0.0
        %507 = vmatpush1.msra.mxu0 0.0
        %508 = vmatprep.subr.mxu0 0.0
        %509 = vmatpush1.msra.mxu0 0.0
        %510 = vmatprep.subr.mxu0 0.0
        %511 = vmatpush1.msra.mxu0 0.0
        %512 = vmatprep.subr.mxu0 0.0
        %513 = vmatpush1.msra.mxu0 0.0
        %514 = vmatprep.subr.mxu0 0.0
        %515 = vmatpush1.msra.mxu0 0.0
        %516 = vmatprep.subr.mxu0 0.0
        %517 = vmatpush1.msra.mxu0 0.0
        %518 = vmatprep.subr.mxu0 0.0
        %519 = vmatpush1.msra.mxu0 0.0
        %520 = vmatprep.subr.mxu0 0.0
        %521 = vmatpush1.msra.mxu0 0.0
        %522 = vmatprep.mubr.f32.mxu0 0.0
        %523 = vmatmul.mubr.f32.gmra.mrb[0].mxu0 %v443
        %v524 = vpop.f32.mrb[0].mxu0
        %v525 = vadd.f32 %v424, %v524
        %v526 = vpop.f32.mrb[0].mxu0
        %527 = vmatprep.mubr.f32.mxu0 0.0
        %528 = vmatmul.mubr.f32.gmra.mrb[0].mxu0 %v446
        %v529 = vpop.f32.mrb[0].mxu0
        %v530 = vadd.f32 %v429, %v529
        %v531 = vpop.f32.mrb[0].mxu0
        %532 = vmatprep.mubr.f32.mxu0 0.0
        %533 = vmatmul.mubr.f32.gmra.mrb[0].mxu0 %v449
        %v534 = vpop.f32.mrb[0].mxu0
        %v535 = vadd.f32 %v434, %v534
        %v536 = vpop.f32.mrb[0].mxu0
        %537 = vmatprep.mubr.f32.mxu0 0.0
        %538 = vmatmul.mubr.f32.gmra.mrb[0].mxu0 %v452
        %v539 = vpop.f32.mrb[0].mxu0
        %v540 = vadd.f32 %v439, %v539
        %v541 = vpop.f32.mrb[0].mxu0
        %542 = vdwg.mxu0
        %v544 = vlaneseq
        %v545 = vshrl.u32 %v544, 7
        %v546 = vsub.s32 0, %v545
        %v547 = vrot.slane %v405, %v546
        %v549 = vmul.f32 %v525, %v547
        %v550 = vmul.f32 %v530, %v547
        %v551 = vmul.f32 %v535, %v547
        %v552 = vmul.f32 %v540, %v547
        %557 = vrot.lane.b32.xlu0 %v549, 2
        %v558 = vpop.permute.xlu0 %557
        %559 = vrot.lane.b32.xlu0 %v550, 2
        %v560 = vpop.permute.xlu0 %559
        %561 = vrot.lane.b32.xlu0 %v551, 2
        %v562 = vpop.permute.xlu0 %561
        %563 = vrot.lane.b32.xlu0 %v552, 2
        %v564 = vpop.permute.xlu0 %563
        %vm569 = vcmask 146448
        %570 = vst.msk [vmem:[#allocation2] sm:$0xff] %vm569, %v558
        %571 = vst.msk [vmem:[#allocation2 + $0x8] sm:$0xff] %vm569, %v560
        %572 = vst.msk [vmem:[#allocation2 + $0x10] sm:$0xff] %vm569, %v562
        %573 = vst.msk [vmem:[#allocation2 + $0x18] sm:$0xff] %vm569, %v564
        %v574 = vld [vmem:[#allocation2] sm:$0xff]
        %v575 = vld [vmem:[#allocation2 + $0x8] sm:$0xff]
        %v576 = vld [vmem:[#allocation2 + $0x10] sm:$0xff]
        %v577 = vld [vmem:[#allocation2 + $0x18] sm:$0xff]
        %582 = vrot.lane.b32.xlu0 %v574, 127
        %v583 = vpop.permute.xlu0 %582
        %584 = vrot.lane.b32.xlu0 %v575, 127
        %v585 = vpop.permute.xlu0 %584
        %586 = vrot.lane.b32.xlu0 %v576, 127
        %v587 = vpop.permute.xlu0 %586
        %588 = vrot.lane.b32.xlu0 %v577, 127
        %v589 = vpop.permute.xlu0 %588
        %594 = vrot.lane.b32.xlu0 %v574, 126
        %v595 = vpop.permute.xlu0 %594
        %596 = vrot.lane.b32.xlu0 %v575, 126
        %v597 = vpop.permute.xlu0 %596
        %598 = vrot.lane.b32.xlu0 %v576, 126
        %v599 = vpop.permute.xlu0 %598
        %600 = vrot.lane.b32.xlu0 %v577, 126
        %v601 = vpop.permute.xlu0 %600
        %606 = vrot.lane.b32.xlu0 %v574, 125
        %v607 = vpop.permute.xlu0 %606
        %608 = vrot.lane.b32.xlu0 %v575, 125
        %v609 = vpop.permute.xlu0 %608
        %610 = vrot.lane.b32.xlu0 %v576, 125
        %v611 = vpop.permute.xlu0 %610
        %612 = vrot.lane.b32.xlu0 %v577, 125
        %v613 = vpop.permute.xlu0 %612
        %618 = vrot.lane.b32.xlu0 %v574, 124
        %v619 = vpop.permute.xlu0 %618
        %620 = vrot.lane.b32.xlu0 %v575, 124
        %v621 = vpop.permute.xlu0 %620
        %622 = vrot.lane.b32.xlu0 %v576, 124
        %v623 = vpop.permute.xlu0 %622
        %624 = vrot.lane.b32.xlu0 %v577, 124
        %v625 = vpop.permute.xlu0 %624
        %v630 = vld [vmem:[%s4] sm:$0xff]
        %v631 = vld [vmem:[%s4 + $0x8] sm:$0xff]
        %v632 = vld [vmem:[%s4 + $0x10] sm:$0xff]
        %v633 = vld [vmem:[%s4 + $0x18] sm:$0xff]
        %v634 = vld [vmem:[%s4 + $0x20] sm:$0xff]
        %v635 = vld [vmem:[%s4 + $0x28] sm:$0xff]
        %v636 = vld [vmem:[%s4 + $0x30] sm:$0xff]
        %v637 = vld [vmem:[%s4 + $0x38] sm:$0xff]
        %v638 = vld [vmem:[%s4 + $0x40] sm:$0xff]
        %v639 = vld [vmem:[%s4 + $0x48] sm:$0xff]
        %v640 = vld [vmem:[%s4 + $0x50] sm:$0xff]
        %v641 = vld [vmem:[%s4 + $0x58] sm:$0xff]
        %v642 = vld [vmem:[%s4 + $0x60] sm:$0xff]
        %v643 = vld [vmem:[%s4 + $0x68] sm:$0xff]
        %v644 = vld [vmem:[%s4 + $0x70] sm:$0xff]
        %v645 = vld [vmem:[%s4 + $0x78] sm:$0xff]
        %v646 = vld [vmem:[%s5] sm:$0xff]
        %v647 = vld [vmem:[%s5 + $0x8] sm:$0xff]
        %v648 = vld [vmem:[%s5 + $0x10] sm:$0xff]
        %v649 = vld [vmem:[%s5 + $0x18] sm:$0xff]
        %v650 = vld [vmem:[%s5 + $0x20] sm:$0xff]
        %v651 = vld [vmem:[%s5 + $0x28] sm:$0xff]
        %v652 = vld [vmem:[%s5 + $0x30] sm:$0xff]
        %v653 = vld [vmem:[%s5 + $0x38] sm:$0xff]
        %655 = vset.pattern.permute.xlu0 0
        %656 = vperm.xlu0 %655, %v646
        %v657 = vpop.permute.xlu0 %656
        %660 = vset.pattern.permute.xlu0 0
        %661 = vperm.xlu0 %660, %v647
        %v662 = vpop.permute.xlu0 %661
        %665 = vset.pattern.permute.xlu0 0
        %666 = vperm.xlu0 %665, %v648
        %v667 = vpop.permute.xlu0 %666
        %670 = vset.pattern.permute.xlu0 0
        %671 = vperm.xlu0 %670, %v649
        %v672 = vpop.permute.xlu0 %671
        %675 = vset.pattern.permute.xlu0 0
        %676 = vperm.xlu0 %675, %v650
        %v677 = vpop.permute.xlu0 %676
        %680 = vset.pattern.permute.xlu0 0
        %681 = vperm.xlu0 %680, %v651
        %v682 = vpop.permute.xlu0 %681
        %685 = vset.pattern.permute.xlu0 0
        %686 = vperm.xlu0 %685, %v652
        %v687 = vpop.permute.xlu0 %686
        %690 = vset.pattern.permute.xlu0 0
        %691 = vperm.xlu0 %690, %v653
        %v692 = vpop.permute.xlu0 %691
        %vm694 = vcmask 261120
        %v696 = vsel %vm694, %v631, 0
        %v699 = vsel %vm694, %v633, 0
        %v702 = vsel %vm694, %v635, 0
        %v705 = vsel %vm694, %v637, 0
        %v708 = vsel %vm694, %v639, 0
        %v711 = vsel %vm694, %v641, 0
        %v714 = vsel %vm694, %v643, 0
        %v717 = vsel %vm694, %v645, 0
        %719 = vmatprep.subr.mxu0 0.0
        %720 = vmatpush1.msra.mxu0 %v574
        %721 = vmatprep.subr.mxu0 0.0
        %722 = vmatpush1.msra.mxu0 %v575
        %723 = vmatprep.subr.mxu0 0.0
        %724 = vmatpush1.msra.mxu0 %v576
        %725 = vmatprep.subr.mxu0 0.0
        %726 = vmatpush1.msra.mxu0 %v577
        %727 = vmatprep.subr.mxu0 0.0
        %728 = vmatpush1.msra.mxu0 %v583
        %729 = vmatprep.subr.mxu0 0.0
        %730 = vmatpush1.msra.mxu0 %v585
        %731 = vmatprep.subr.mxu0 0.0
        %732 = vmatpush1.msra.mxu0 %v587
        %733 = vmatprep.subr.mxu0 0.0
        %734 = vmatpush1.msra.mxu0 %v589
        %735 = vmatprep.subr.mxu0 0.0
        %736 = vmatpush1.msra.mxu0 %v595
        %737 = vmatprep.subr.mxu0 0.0
        %738 = vmatpush1.msra.mxu0 %v597
        %739 = vmatprep.subr.mxu0 0.0
        %740 = vmatpush1.msra.mxu0 %v599
        %741 = vmatprep.subr.mxu0 0.0
        %742 = vmatpush1.msra.mxu0 %v601
        %743 = vmatprep.subr.mxu0 0.0
        %744 = vmatpush1.msra.mxu0 %v607
        %745 = vmatprep.subr.mxu0 0.0
        %746 = vmatpush1.msra.mxu0 %v609
        %747 = vmatprep.subr.mxu0 0.0
        %748 = vmatpush1.msra.mxu0 %v611
        %749 = vmatprep.subr.mxu0 0.0
        %750 = vmatpush1.msra.mxu0 %v613
        %751 = vmatprep.subr.mxu0 0.0
        %752 = vmatpush1.msra.mxu0 %v619
        %753 = vmatprep.subr.mxu0 0.0
        %754 = vmatpush1.msra.mxu0 %v621
        %755 = vmatprep.subr.mxu0 0.0
        %756 = vmatpush1.msra.mxu0 %v623
        %757 = vmatprep.subr.mxu0 0.0
        %758 = vmatpush1.msra.mxu0 %v625
        %759 = vmatprep.subr.mxu0 0.0
        %760 = vmatpush1.msra.mxu0 0.0
        %761 = vmatprep.subr.mxu0 0.0
        %762 = vmatpush1.msra.mxu0 0.0
        %763 = vmatprep.subr.mxu0 0.0
        %764 = vmatpush1.msra.mxu0 0.0
        %765 = vmatprep.subr.mxu0 0.0
        %766 = vmatpush1.msra.mxu0 0.0
        %767 = vmatprep.subr.mxu0 0.0
        %768 = vmatpush1.msra.mxu0 0.0
        %769 = vmatprep.subr.mxu0 0.0
        %770 = vmatpush1.msra.mxu0 0.0
        %771 = vmatprep.subr.mxu0 0.0
        %772 = vmatpush1.msra.mxu0 0.0
        %773 = vmatprep.subr.mxu0 0.0
        %774 = vmatpush1.msra.mxu0 0.0
        %775 = vmatprep.subr.mxu0 0.0
        %776 = vmatpush1.msra.mxu0 0.0
        %777 = vmatprep.subr.mxu0 0.0
        %778 = vmatpush1.msra.mxu0 0.0
        %779 = vmatprep.subr.mxu0 0.0
        %780 = vmatpush1.msra.mxu0 0.0
        %781 = vmatprep.subr.mxu0 0.0
        %782 = vmatpush1.msra.mxu0 0.0
        %783 = vmatprep.mubr.f32.mxu0 %v696
        %784 = vmatmul.mubr.f32.gmra.mrb[0].mxu0 %v630
        %v785 = vpop.f32.mrb[0].mxu0
        %v786 = vadd.f32 %v657, %v785
        %v787 = vpop.f32.mrb[0].mxu0
        %788 = vmatprep.mubr.f32.mxu0 %v699
        %789 = vmatmul.mubr.f32.gmra.mrb[0].mxu0 %v632
        %v790 = vpop.f32.mrb[0].mxu0
        %v791 = vadd.f32 %v662, %v790
        %v792 = vpop.f32.mrb[0].mxu0
        %793 = vmatprep.mubr.f32.mxu0 %v702
        %794 = vmatmul.mubr.f32.gmra.mrb[0].mxu0 %v634
        %v795 = vpop.f32.mrb[0].mxu0
        %v796 = vadd.f32 %v667, %v795
        %v797 = vpop.f32.mrb[0].mxu0
        %798 = vmatprep.mubr.f32.mxu0 %v705
        %799 = vmatmul.mubr.f32.gmra.mrb[0].mxu0 %v636
        %v800 = vpop.f32.mrb[0].mxu0
        %v801 = vadd.f32 %v672, %v800
        %v802 = vpop.f32.mrb[0].mxu0
        %803 = vmatprep.mubr.f32.mxu0 %v708
        %804 = vmatmul.mubr.f32.gmra.mrb[0].mxu0 %v638
        %v805 = vpop.f32.mrb[0].mxu0
        %v806 = vadd.f32 %v677, %v805
        %v807 = vpop.f32.mrb[0].mxu0
        %808 = vmatprep.mubr.f32.mxu0 %v711
        %809 = vmatmul.mubr.f32.gmra.mrb[0].mxu0 %v640
        %v810 = vpop.f32.mrb[0].mxu0
        %v811 = vadd.f32 %v682, %v810
        %v812 = vpop.f32.mrb[0].mxu0
        %813 = vmatprep.mubr.f32.mxu0 %v714
        %814 = vmatmul.mubr.f32.gmra.mrb[0].mxu0 %v642
        %v815 = vpop.f32.mrb[0].mxu0
        %v816 = vadd.f32 %v687, %v815
        %v817 = vpop.f32.mrb[0].mxu0
        %818 = vmatprep.mubr.f32.mxu0 %v717
        %819 = vmatmul.mubr.f32.gmra.mrb[0].mxu0 %v644
        %v820 = vpop.f32.mrb[0].mxu0
        %v821 = vadd.f32 %v692, %v820
        %v822 = vpop.f32.mrb[0].mxu0
        %823 = vdwg.mxu0
        %v824 = vtanh.pop %v786
        %v825 = vtanh.pop %v791
        %v826 = vtanh.pop %v796
        %v827 = vtanh.pop %v801
        %v828 = vxor.u32 %v806, 2147483648
        %v829 = vxor.u32 %v811, 2147483648
        %v830 = vxor.u32 %v816, 2147483648
        %v831 = vxor.u32 %v821, 2147483648
        %v832 = vmul.f32 %v828, 1.442695
        %v833 = vpow.pop %v832
        %v834 = vmul.f32 %v829, 1.442695
        %v835 = vpow.pop %v834
        %v836 = vmul.f32 %v830, 1.442695
        %v837 = vpow.pop %v836
        %v838 = vmul.f32 %v831, 1.442695
        %v839 = vpow.pop %v838
        %v840 = vadd.f32 %v833, 1.0
        %v841 = vadd.f32 %v835, 1.0
        %v842 = vadd.f32 %v837, 1.0
        %v843 = vadd.f32 %v839, 1.0
        %v844 = vrcp.pop %v840
        %v845 = vmul.f32 1.0, %v844
        %v846 = vrcp.pop %v841
        %v847 = vmul.f32 1.0, %v846
        %v848 = vrcp.pop %v842
        %v849 = vmul.f32 1.0, %v848
        %v850 = vrcp.pop %v843
        %v851 = vmul.f32 1.0, %v850
        %v852 = vmul.f32 %v824, %v845
        %v853 = vmul.f32 %v825, %v847
        %v854 = vmul.f32 %v826, %v849
        %v855 = vmul.f32 %v827, %v851
        %v856 = vld [vmem:[%s6] sm:$0xff]
        %v857 = vld [vmem:[%s6 + $0x8] sm:$0xff]
        %v858 = vld [vmem:[%s6 + $0x10] sm:$0xff]
        %v859 = vld [vmem:[%s6 + $0x18] sm:$0xff]
        %v860 = vld [vmem:[%s6 + $0x20] sm:$0xff]
        %v861 = vld [vmem:[%s6 + $0x28] sm:$0xff]
        %v862 = vld [vmem:[%s6 + $0x30] sm:$0xff]
        %v863 = vld [vmem:[%s6 + $0x38] sm:$0xff]
        %v864 = vld [vmem:[%s7] sm:$0xff]
        %v865 = vld [vmem:[%s7 + $0x8] sm:$0xff]
        %v866 = vld [vmem:[%s7 + $0x10] sm:$0xff]
        %v867 = vld [vmem:[%s7 + $0x18] sm:$0xff]
        %v868 = vld [vmem:[%s7 + $0x20] sm:$0xff]
        %v869 = vld [vmem:[%s7 + $0x28] sm:$0xff]
        %v870 = vld [vmem:[%s7 + $0x30] sm:$0xff]
        %v871 = vld [vmem:[%s7 + $0x38] sm:$0xff]
        %873 = vset.pattern.permute.xlu0 0
        %874 = vperm.xlu0 %873, %v864
        %v875 = vpop.permute.xlu0 %874
        %878 = vset.pattern.permute.xlu0 0
        %879 = vperm.xlu0 %878, %v865
        %v880 = vpop.permute.xlu0 %879
        %883 = vset.pattern.permute.xlu0 0
        %884 = vperm.xlu0 %883, %v866
        %v885 = vpop.permute.xlu0 %884
        %888 = vset.pattern.permute.xlu0 0
        %889 = vperm.xlu0 %888, %v867
        %v890 = vpop.permute.xlu0 %889
        %893 = vset.pattern.permute.xlu0 0
        %894 = vperm.xlu0 %893, %v868
        %v895 = vpop.permute.xlu0 %894
        %898 = vset.pattern.permute.xlu0 0
        %899 = vperm.xlu0 %898, %v869
        %v900 = vpop.permute.xlu0 %899
        %903 = vset.pattern.permute.xlu0 0
        %904 = vperm.xlu0 %903, %v870
        %v905 = vpop.permute.xlu0 %904
        %908 = vset.pattern.permute.xlu0 0
        %909 = vperm.xlu0 %908, %v871
        %v910 = vpop.permute.xlu0 %909
        %v913 = vsel %vm694, %v856, 0
        %v916 = vsel %vm694, %v857, 0
        %v919 = vsel %vm694, %v858, 0
        %v922 = vsel %vm694, %v859, 0
        %v925 = vsel %vm694, %v860, 0
        %v928 = vsel %vm694, %v861, 0
        %v931 = vsel %vm694, %v862, 0
        %v934 = vsel %vm694, %v863, 0
        %936 = vmatprep.subr.mxu0 0.0
        %937 = vmatpush1.msra.mxu0 %v852
        %938 = vmatprep.subr.mxu0 0.0
        %939 = vmatpush1.msra.mxu0 %v853
        %940 = vmatprep.subr.mxu0 0.0
        %941 = vmatpush1.msra.mxu0 %v854
        %942 = vmatprep.subr.mxu0 0.0
        %943 = vmatpush1.msra.mxu0 %v855
        %944 = vmatprep.subr.mxu0 0.0
        %945 = vmatpush1.msra.mxu0 0.0
        %946 = vmatprep.subr.mxu0 0.0
        %947 = vmatpush1.msra.mxu0 0.0
        %948 = vmatprep.subr.mxu0 0.0
        %949 = vmatpush1.msra.mxu0 0.0
        %950 = vmatprep.subr.mxu0 0.0
        %951 = vmatpush1.msra.mxu0 0.0
        %952 = vmatprep.subr.mxu0 0.0
        %953 = vmatpush1.msra.mxu0 0.0
        %954 = vmatprep.subr.mxu0 0.0
        %955 = vmatpush1.msra.mxu0 0.0
        %956 = vmatprep.subr.mxu0 0.0
        %957 = vmatpush1.msra.mxu0 0.0
        %958 = vmatprep.subr.mxu0 0.0
        %959 = vmatpush1.msra.mxu0 0.0
        %960 = vmatprep.subr.mxu0 0.0
        %961 = vmatpush1.msra.mxu0 0.0
        %962 = vmatprep.subr.mxu0 0.0
        %963 = vmatpush1.msra.mxu0 0.0
        %964 = vmatprep.subr.mxu0 0.0
        %965 = vmatpush1.msra.mxu0 0.0
        %966 = vmatprep.subr.mxu0 0.0
        %967 = vmatpush1.msra.mxu0 0.0
        %968 = vmatprep.subr.mxu0 0.0
        %969 = vmatpush1.msra.mxu0 0.0
        %970 = vmatprep.subr.mxu0 0.0
        %971 = vmatpush1.msra.mxu0 0.0
        %972 = vmatprep.subr.mxu0 0.0
        %973 = vmatpush1.msra.mxu0 0.0
        %974 = vmatprep.subr.mxu0 0.0
        %975 = vmatpush1.msra.mxu0 0.0
        %976 = vmatprep.subr.mxu0 0.0
        %977 = vmatpush1.msra.mxu0 0.0
        %978 = vmatprep.subr.mxu0 0.0
        %979 = vmatpush1.msra.mxu0 0.0
        %980 = vmatprep.subr.mxu0 0.0
        %981 = vmatpush1.msra.mxu0 0.0
        %982 = vmatprep.subr.mxu0 0.0
        %983 = vmatpush1.msra.mxu0 0.0
        %984 = vmatprep.subr.mxu0 0.0
        %985 = vmatpush1.msra.mxu0 0.0
        %986 = vmatprep.subr.mxu0 0.0
        %987 = vmatpush1.msra.mxu0 0.0
        %988 = vmatprep.subr.mxu0 0.0
        %989 = vmatpush1.msra.mxu0 0.0
        %990 = vmatprep.subr.mxu0 0.0
        %991 = vmatpush1.msra.mxu0 0.0
        %992 = vmatprep.subr.mxu0 0.0
        %993 = vmatpush1.msra.mxu0 0.0
        %994 = vmatprep.subr.mxu0 0.0
        %995 = vmatpush1.msra.mxu0 0.0
        %996 = vmatprep.subr.mxu0 0.0
        %997 = vmatpush1.msra.mxu0 0.0
        %998 = vmatprep.subr.mxu0 0.0
        %999 = vmatpush1.msra.mxu0 0.0
        %1000 = vmatprep.mubr.f32.mxu0 0.0
        %1001 = vmatmul.mubr.f32.gmra.mrb[0].mxu0 %v913
        %v1002 = vpop.f32.mrb[0].mxu0
        %v1003 = vadd.f32 %v875, %v1002
        %v1004 = vpop.f32.mrb[0].mxu0
        %1005 = vmatprep.mubr.f32.mxu0 0.0
        %1006 = vmatmul.mubr.f32.gmra.mrb[0].mxu0 %v916
        %v1007 = vpop.f32.mrb[0].mxu0
        %v1008 = vadd.f32 %v880, %v1007
        %v1009 = vpop.f32.mrb[0].mxu0
        %1010 = vmatprep.mubr.f32.mxu0 0.0
        %1011 = vmatmul.mubr.f32.gmra.mrb[0].mxu0 %v919
        %v1012 = vpop.f32.mrb[0].mxu0
        %v1013 = vadd.f32 %v885, %v1012
        %v1014 = vpop.f32.mrb[0].mxu0
        %1015 = vmatprep.mubr.f32.mxu0 0.0
        %1016 = vmatmul.mubr.f32.gmra.mrb[0].mxu0 %v922
        %v1017 = vpop.f32.mrb[0].mxu0
        %v1018 = vadd.f32 %v890, %v1017
        %v1019 = vpop.f32.mrb[0].mxu0
        %1020 = vmatprep.mubr.f32.mxu0 0.0
        %1021 = vmatmul.mubr.f32.gmra.mrb[0].mxu0 %v925
        %v1022 = vpop.f32.mrb[0].mxu0
        %v1023 = vadd.f32 %v895, %v1022
        %v1024 = vpop.f32.mrb[0].mxu0
        %1025 = vmatprep.mubr.f32.mxu0 0.0
        %1026 = vmatmul.mubr.f32.gmra.mrb[0].mxu0 %v928
        %v1027 = vpop.f32.mrb[0].mxu0
        %v1028 = vadd.f32 %v900, %v1027
        %v1029 = vpop.f32.mrb[0].mxu0
        %1030 = vmatprep.mubr.f32.mxu0 0.0
        %1031 = vmatmul.mubr.f32.gmra.mrb[0].mxu0 %v931
        %v1032 = vpop.f32.mrb[0].mxu0
        %v1033 = vadd.f32 %v905, %v1032
        %v1034 = vpop.f32.mrb[0].mxu0
        %1035 = vmatprep.mubr.f32.mxu0 0.0
        %1036 = vmatmul.mubr.f32.gmra.mrb[0].mxu0 %v934
        %v1037 = vpop.f32.mrb[0].mxu0
        %v1038 = vadd.f32 %v910, %v1037
        %v1039 = vpop.f32.mrb[0].mxu0
        %1040 = vdwg.mxu0
        %v1041 = vadd.f32 %v549, %v1003
        %v1042 = vadd.f32 %v550, %v1008
        %v1043 = vadd.f32 %v551, %v1013
        %v1044 = vadd.f32 %v552, %v1018
        %v1045 = vmul.f32 %v1041, %v547
        %v1046 = vmul.f32 %v1042, %v547
        %v1047 = vmul.f32 %v1043, %v547
        %v1048 = vmul.f32 %v1044, %v547
        %v1049 = vadd.f32 %v1023, 0.0
        %v1050 = vadd.f32 %v1028, 0.0
        %v1051 = vadd.f32 %v1033, 0.0
        %v1052 = vadd.f32 %v1038, 0.0
        %1057 = vrot.lane.b32.xlu0 %v1045, 2
        %v1058 = vpop.permute.xlu0 %1057
        %1059 = vrot.lane.b32.xlu0 %v1046, 2
        %v1060 = vpop.permute.xlu0 %1059
        %1061 = vrot.lane.b32.xlu0 %v1047, 2
        %v1062 = vpop.permute.xlu0 %1061
        %1063 = vrot.lane.b32.xlu0 %v1048, 2
        %v1064 = vpop.permute.xlu0 %1063
        %1069 = vst.msk [vmem:[#allocation2] sm:$0xff] %vm569, %v1058
        %1070 = vst.msk [vmem:[#allocation2 + $0x8] sm:$0xff] %vm569, %v1060
        %1071 = vst.msk [vmem:[#allocation2 + $0x10] sm:$0xff] %vm569, %v1062
        %1072 = vst.msk [vmem:[#allocation2 + $0x18] sm:$0xff] %vm569, %v1064
        %v1073 = vld [vmem:[#allocation2] sm:$0xff]
        %v1074 = vld [vmem:[#allocation2 + $0x8] sm:$0xff]
        %v1075 = vld [vmem:[#allocation2 + $0x10] sm:$0xff]
        %v1076 = vld [vmem:[#allocation2 + $0x18] sm:$0xff]
        %1081 = vrot.lane.b32.xlu0 %v1073, 127
        %v1082 = vpop.permute.xlu0 %1081
        %1083 = vrot.lane.b32.xlu0 %v1074, 127
        %v1084 = vpop.permute.xlu0 %1083
        %1085 = vrot.lane.b32.xlu0 %v1075, 127
        %v1086 = vpop.permute.xlu0 %1085
        %1087 = vrot.lane.b32.xlu0 %v1076, 127
        %v1088 = vpop.permute.xlu0 %1087
        %1093 = vrot.lane.b32.xlu0 %v1073, 126
        %v1094 = vpop.permute.xlu0 %1093
        %1095 = vrot.lane.b32.xlu0 %v1074, 126
        %v1096 = vpop.permute.xlu0 %1095
        %1097 = vrot.lane.b32.xlu0 %v1075, 126
        %v1098 = vpop.permute.xlu0 %1097
        %1099 = vrot.lane.b32.xlu0 %v1076, 126
        %v1100 = vpop.permute.xlu0 %1099
        %1105 = vrot.lane.b32.xlu0 %v1073, 125
        %v1106 = vpop.permute.xlu0 %1105
        %1107 = vrot.lane.b32.xlu0 %v1074, 125
        %v1108 = vpop.permute.xlu0 %1107
        %1109 = vrot.lane.b32.xlu0 %v1075, 125
        %v1110 = vpop.permute.xlu0 %1109
        %1111 = vrot.lane.b32.xlu0 %v1076, 125
        %v1112 = vpop.permute.xlu0 %1111
        %1117 = vrot.lane.b32.xlu0 %v1073, 124
        %v1118 = vpop.permute.xlu0 %1117
        %1119 = vrot.lane.b32.xlu0 %v1074, 124
        %v1120 = vpop.permute.xlu0 %1119
        %1121 = vrot.lane.b32.xlu0 %v1075, 124
        %v1122 = vpop.permute.xlu0 %1121
        %1123 = vrot.lane.b32.xlu0 %v1076, 124
        %v1124 = vpop.permute.xlu0 %1123
        %s1129 = scalar_lea.vmem %s4, 128
        %v1130 = vld [vmem:[%s1129] sm:$0xff]
        %v1131 = vld [vmem:[%s1129 + $0x8] sm:$0xff]
        %v1132 = vld [vmem:[%s1129 + $0x10] sm:$0xff]
        %v1133 = vld [vmem:[%s1129 + $0x18] sm:$0xff]
        %v1134 = vld [vmem:[%s1129 + $0x20] sm:$0xff]
        %v1135 = vld [vmem:[%s1129 + $0x28] sm:$0xff]
        %v1136 = vld [vmem:[%s1129 + $0x30] sm:$0xff]
        %v1137 = vld [vmem:[%s1129 + $0x38] sm:$0xff]
        %v1138 = vld [vmem:[%s1129 + $0x40] sm:$0xff]
        %v1139 = vld [vmem:[%s1129 + $0x48] sm:$0xff]
        %v1140 = vld [vmem:[%s1129 + $0x50] sm:$0xff]
        %v1141 = vld [vmem:[%s1129 + $0x58] sm:$0xff]
        %v1142 = vld [vmem:[%s1129 + $0x60] sm:$0xff]
        %v1143 = vld [vmem:[%s1129 + $0x68] sm:$0xff]
        %v1144 = vld [vmem:[%s1129 + $0x70] sm:$0xff]
        %v1145 = vld [vmem:[%s1129 + $0x78] sm:$0xff]
        %s1146 = scalar_lea.vmem %s5, 64
        %v1147 = vld [vmem:[%s1146] sm:$0xff]
        %v1148 = vld [vmem:[%s1146 + $0x8] sm:$0xff]
        %v1149 = vld [vmem:[%s1146 + $0x10] sm:$0xff]
        %v1150 = vld [vmem:[%s1146 + $0x18] sm:$0xff]
        %v1151 = vld [vmem:[%s1146 + $0x20] sm:$0xff]
        %v1152 = vld [vmem:[%s1146 + $0x28] sm:$0xff]
        %v1153 = vld [vmem:[%s1146 + $0x30] sm:$0xff]
        %v1154 = vld [vmem:[%s1146 + $0x38] sm:$0xff]
        %1156 = vset.pattern.permute.xlu0 0
        %1157 = vperm.xlu0 %1156, %v1147
        %v1158 = vpop.permute.xlu0 %1157
        %1161 = vset.pattern.permute.xlu0 0
        %1162 = vperm.xlu0 %1161, %v1148
        %v1163 = vpop.permute.xlu0 %1162
        %1166 = vset.pattern.permute.xlu0 0
        %1167 = vperm.xlu0 %1166, %v1149
        %v1168 = vpop.permute.xlu0 %1167
        %1171 = vset.pattern.permute.xlu0 0
        %1172 = vperm.xlu0 %1171, %v1150
        %v1173 = vpop.permute.xlu0 %1172
        %1176 = vset.pattern.permute.xlu0 0
        %1177 = vperm.xlu0 %1176, %v1151
        %v1178 = vpop.permute.xlu0 %1177
        %1181 = vset.pattern.permute.xlu0 0
        %1182 = vperm.xlu0 %1181, %v1152
        %v1183 = vpop.permute.xlu0 %1182
        %1186 = vset.pattern.permute.xlu0 0
        %1187 = vperm.xlu0 %1186, %v1153
        %v1188 = vpop.permute.xlu0 %1187
        %1191 = vset.pattern.permute.xlu0 0
        %1192 = vperm.xlu0 %1191, %v1154
        %v1193 = vpop.permute.xlu0 %1192
        %v1196 = vsel %vm694, %v1131, 0
        %v1199 = vsel %vm694, %v1133, 0
        %v1202 = vsel %vm694, %v1135, 0
        %v1205 = vsel %vm694, %v1137, 0
        %v1208 = vsel %vm694, %v1139, 0
        %v1211 = vsel %vm694, %v1141, 0
        %v1214 = vsel %vm694, %v1143, 0
        %v1217 = vsel %vm694, %v1145, 0
        %1219 = vmatprep.subr.mxu0 0.0
        %1220 = vmatpush1.msra.mxu0 %v1073
        %1221 = vmatprep.subr.mxu0 0.0
        %1222 = vmatpush1.msra.mxu0 %v1074
        %1223 = vmatprep.subr.mxu0 0.0
        %1224 = vmatpush1.msra.mxu0 %v1075
        %1225 = vmatprep.subr.mxu0 0.0
        %1226 = vmatpush1.msra.mxu0 %v1076
        %1227 = vmatprep.subr.mxu0 0.0
        %1228 = vmatpush1.msra.mxu0 %v1082
        %1229 = vmatprep.subr.mxu0 0.0
        %1230 = vmatpush1.msra.mxu0 %v1084
        %1231 = vmatprep.subr.mxu0 0.0
        %1232 = vmatpush1.msra.mxu0 %v1086
        %1233 = vmatprep.subr.mxu0 0.0
        %1234 = vmatpush1.msra.mxu0 %v1088
        %1235 = vmatprep.subr.mxu0 0.0
        %1236 = vmatpush1.msra.mxu0 %v1094
        %1237 = vmatprep.subr.mxu0 0.0
        %1238 = vmatpush1.msra.mxu0 %v1096
        %1239 = vmatprep.subr.mxu0 0.0
        %1240 = vmatpush1.msra.mxu0 %v1098
        %1241 = vmatprep.subr.mxu0 0.0
        %1242 = vmatpush1.msra.mxu0 %v1100
        %1243 = vmatprep.subr.mxu0 0.0
        %1244 = vmatpush1.msra.mxu0 %v1106
        %1245 = vmatprep.subr.mxu0 0.0
        %1246 = vmatpush1.msra.mxu0 %v1108
        %1247 = vmatprep.subr.mxu0 0.0
        %1248 = vmatpush1.msra.mxu0 %v1110
        %1249 = vmatprep.subr.mxu0 0.0
        %1250 = vmatpush1.msra.mxu0 %v1112
        %1251 = vmatprep.subr.mxu0 0.0
        %1252 = vmatpush1.msra.mxu0 %v1118
        %1253 = vmatprep.subr.mxu0 0.0
        %1254 = vmatpush1.msra.mxu0 %v1120
        %1255 = vmatprep.subr.mxu0 0.0
        %1256 = vmatpush1.msra.mxu0 %v1122
        %1257 = vmatprep.subr.mxu0 0.0
        %1258 = vmatpush1.msra.mxu0 %v1124
        %1259 = vmatprep.subr.mxu0 0.0
        %1260 = vmatpush1.msra.mxu0 0.0
        %1261 = vmatprep.subr.mxu0 0.0
        %1262 = vmatpush1.msra.mxu0 0.0
        %1263 = vmatprep.subr.mxu0 0.0
        %1264 = vmatpush1.msra.mxu0 0.0
        %1265 = vmatprep.subr.mxu0 0.0
        %1266 = vmatpush1.msra.mxu0 0.0
        %1267 = vmatprep.subr.mxu0 0.0
        %1268 = vmatpush1.msra.mxu0 0.0
        %1269 = vmatprep.subr.mxu0 0.0
        %1270 = vmatpush1.msra.mxu0 0.0
        %1271 = vmatprep.subr.mxu0 0.0
        %1272 = vmatpush1.msra.mxu0 0.0
        %1273 = vmatprep.subr.mxu0 0.0
        %1274 = vmatpush1.msra.mxu0 0.0
        %1275 = vmatprep.subr.mxu0 0.0
        %1276 = vmatpush1.msra.mxu0 0.0
        %1277 = vmatprep.subr.mxu0 0.0
        %1278 = vmatpush1.msra.mxu0 0.0
        %1279 = vmatprep.subr.mxu0 0.0
        %1280 = vmatpush1.msra.mxu0 0.0
        %1281 = vmatprep.subr.mxu0 0.0
        %1282 = vmatpush1.msra.mxu0 0.0
        %1283 = vmatprep.mubr.f32.mxu0 %v1196
        %1284 = vmatmul.mubr.f32.gmra.mrb[0].mxu0 %v1130
        %v1285 = vpop.f32.mrb[0].mxu0
        %v1286 = vadd.f32 %v1158, %v1285
        %v1287 = vpop.f32.mrb[0].mxu0
        %1288 = vmatprep.mubr.f32.mxu0 %v1199
        %1289 = vmatmul.mubr.f32.gmra.mrb[0].mxu0 %v1132
        %v1290 = vpop.f32.mrb[0].mxu0
        %v1291 = vadd.f32 %v1163, %v1290
        %v1292 = vpop.f32.mrb[0].mxu0
        %1293 = vmatprep.mubr.f32.mxu0 %v1202
        %1294 = vmatmul.mubr.f32.gmra.mrb[0].mxu0 %v1134
        %v1295 = vpop.f32.mrb[0].mxu0
        %v1296 = vadd.f32 %v1168, %v1295
        %v1297 = vpop.f32.mrb[0].mxu0
        %1298 = vmatprep.mubr.f32.mxu0 %v1205
        %1299 = vmatmul.mubr.f32.gmra.mrb[0].mxu0 %v1136
        %v1300 = vpop.f32.mrb[0].mxu0
        %v1301 = vadd.f32 %v1173, %v1300
        %v1302 = vpop.f32.mrb[0].mxu0
        %1303 = vmatprep.mubr.f32.mxu0 %v1208
        %1304 = vmatmul.mubr.f32.gmra.mrb[0].mxu0 %v1138
        %v1305 = vpop.f32.mrb[0].mxu0
        %v1306 = vadd.f32 %v1178, %v1305
        %v1307 = vpop.f32.mrb[0].mxu0
        %1308 = vmatprep.mubr.f32.mxu0 %v1211
        %1309 = vmatmul.mubr.f32.gmra.mrb[0].mxu0 %v1140
        %v1310 = vpop.f32.mrb[0].mxu0
        %v1311 = vadd.f32 %v1183, %v1310
        %v1312 = vpop.f32.mrb[0].mxu0
        %1313 = vmatprep.mubr.f32.mxu0 %v1214
        %1314 = vmatmul.mubr.f32.gmra.mrb[0].mxu0 %v1142
        %v1315 = vpop.f32.mrb[0].mxu0
        %v1316 = vadd.f32 %v1188, %v1315
        %v1317 = vpop.f32.mrb[0].mxu0
        %1318 = vmatprep.mubr.f32.mxu0 %v1217
        %1319 = vmatmul.mubr.f32.gmra.mrb[0].mxu0 %v1144
        %v1320 = vpop.f32.mrb[0].mxu0
        %v1321 = vadd.f32 %v1193, %v1320
        %v1322 = vpop.f32.mrb[0].mxu0
        %1323 = vdwg.mxu0
        %v1324 = vtanh.pop %v1286
        %v1325 = vtanh.pop %v1291
        %v1326 = vtanh.pop %v1296
        %v1327 = vtanh.pop %v1301
        %v1328 = vxor.u32 %v1306, 2147483648
        %v1329 = vxor.u32 %v1311, 2147483648
        %v1330 = vxor.u32 %v1316, 2147483648
        %v1331 = vxor.u32 %v1321, 2147483648
        %v1332 = vmul.f32 %v1328, 1.442695
        %v1333 = vpow.pop %v1332
        %v1334 = vmul.f32 %v1329, 1.442695
        %v1335 = vpow.pop %v1334
        %v1336 = vmul.f32 %v1330, 1.442695
        %v1337 = vpow.pop %v1336
        %v1338 = vmul.f32 %v1331, 1.442695
        %v1339 = vpow.pop %v1338
        %v1340 = vadd.f32 %v1333, 1.0
        %v1341 = vadd.f32 %v1335, 1.0
        %v1342 = vadd.f32 %v1337, 1.0
        %v1343 = vadd.f32 %v1339, 1.0
        %v1344 = vrcp.pop %v1340
        %v1345 = vmul.f32 1.0, %v1344
        %v1346 = vrcp.pop %v1341
        %v1347 = vmul.f32 1.0, %v1346
        %v1348 = vrcp.pop %v1342
        %v1349 = vmul.f32 1.0, %v1348
        %v1350 = vrcp.pop %v1343
        %v1351 = vmul.f32 1.0, %v1350
        %v1352 = vmul.f32 %v1324, %v1345
        %v1353 = vmul.f32 %v1325, %v1347
        %v1354 = vmul.f32 %v1326, %v1349
        %v1355 = vmul.f32 %v1327, %v1351
        %s1356 = scalar_lea.vmem %s6, 64
        %v1357 = vld [vmem:[%s1356] sm:$0xff]
        %v1358 = vld [vmem:[%s1356 + $0x8] sm:$0xff]
        %v1359 = vld [vmem:[%s1356 + $0x10] sm:$0xff]
        %v1360 = vld [vmem:[%s1356 + $0x18] sm:$0xff]
        %v1361 = vld [vmem:[%s1356 + $0x20] sm:$0xff]
        %v1362 = vld [vmem:[%s1356 + $0x28] sm:$0xff]
        %v1363 = vld [vmem:[%s1356 + $0x30] sm:$0xff]
        %v1364 = vld [vmem:[%s1356 + $0x38] sm:$0xff]
        %s1365 = scalar_lea.vmem %s7, 64
        %v1366 = vld [vmem:[%s1365] sm:$0xff]
        %v1367 = vld [vmem:[%s1365 + $0x8] sm:$0xff]
        %v1368 = vld [vmem:[%s1365 + $0x10] sm:$0xff]
        %v1369 = vld [vmem:[%s1365 + $0x18] sm:$0xff]
        %v1370 = vld [vmem:[%s1365 + $0x20] sm:$0xff]
        %v1371 = vld [vmem:[%s1365 + $0x28] sm:$0xff]
        %v1372 = vld [vmem:[%s1365 + $0x30] sm:$0xff]
        %v1373 = vld [vmem:[%s1365 + $0x38] sm:$0xff]
        %1375 = vset.pattern.permute.xlu0 0
        %1376 = vperm.xlu0 %1375, %v1366
        %v1377 = vpop.permute.xlu0 %1376
        %1380 = vset.pattern.permute.xlu0 0
        %1381 = vperm.xlu0 %1380, %v1367
        %v1382 = vpop.permute.xlu0 %1381
        %1385 = vset.pattern.permute.xlu0 0
        %1386 = vperm.xlu0 %1385, %v1368
        %v1387 = vpop.permute.xlu0 %1386
        %1390 = vset.pattern.permute.xlu0 0
        %1391 = vperm.xlu0 %1390, %v1369
        %v1392 = vpop.permute.xlu0 %1391
        %1395 = vset.pattern.permute.xlu0 0
        %1396 = vperm.xlu0 %1395, %v1370
        %v1397 = vpop.permute.xlu0 %1396
        %1400 = vset.pattern.permute.xlu0 0
        %1401 = vperm.xlu0 %1400, %v1371
        %v1402 = vpop.permute.xlu0 %1401
        %1405 = vset.pattern.permute.xlu0 0
        %1406 = vperm.xlu0 %1405, %v1372
        %v1407 = vpop.permute.xlu0 %1406
        %1410 = vset.pattern.permute.xlu0 0
        %1411 = vperm.xlu0 %1410, %v1373
        %v1412 = vpop.permute.xlu0 %1411
        %v1415 = vsel %vm694, %v1357, 0
        %v1418 = vsel %vm694, %v1358, 0
        %v1421 = vsel %vm694, %v1359, 0
        %v1424 = vsel %vm694, %v1360, 0
        %v1427 = vsel %vm694, %v1361, 0
        %v1430 = vsel %vm694, %v1362, 0
        %v1433 = vsel %vm694, %v1363, 0
        %v1436 = vsel %vm694, %v1364, 0
        %1438 = vmatprep.subr.mxu0 0.0
        %1439 = vmatpush1.msra.mxu0 %v1352
        %1440 = vmatprep.subr.mxu0 0.0
        %1441 = vmatpush1.msra.mxu0 %v1353
        %1442 = vmatprep.subr.mxu0 0.0
        %1443 = vmatpush1.msra.mxu0 %v1354
        %1444 = vmatprep.subr.mxu0 0.0
        %1445 = vmatpush1.msra.mxu0 %v1355
        %1446 = vmatprep.subr.mxu0 0.0
        %1447 = vmatpush1.msra.mxu0 0.0
        %1448 = vmatprep.subr.mxu0 0.0
        %1449 = vmatpush1.msra.mxu0 0.0
        %1450 = vmatprep.subr.mxu0 0.0
        %1451 = vmatpush1.msra.mxu0 0.0
        %1452 = vmatprep.subr.mxu0 0.0
        %1453 = vmatpush1.msra.mxu0 0.0
        %1454 = vmatprep.subr.mxu0 0.0
        %1455 = vmatpush1.msra.mxu0 0.0
        %1456 = vmatprep.subr.mxu0 0.0
        %1457 = vmatpush1.msra.mxu0 0.0
        %1458 = vmatprep.subr.mxu0 0.0
        %1459 = vmatpush1.msra.mxu0 0.0
        %1460 = vmatprep.subr.mxu0 0.0
        %1461 = vmatpush1.msra.mxu0 0.0
        %1462 = vmatprep.subr.mxu0 0.0
        %1463 = vmatpush1.msra.mxu0 0.0
        %1464 = vmatprep.subr.mxu0 0.0
        %1465 = vmatpush1.msra.mxu0 0.0
        %1466 = vmatprep.subr.mxu0 0.0
        %1467 = vmatpush1.msra.mxu0 0.0
        %1468 = vmatprep.subr.mxu0 0.0
        %1469 = vmatpush1.msra.mxu0 0.0
        %1470 = vmatprep.subr.mxu0 0.0
        %1471 = vmatpush1.msra.mxu0 0.0
        %1472 = vmatprep.subr.mxu0 0.0
        %1473 = vmatpush1.msra.mxu0 0.0
        %1474 = vmatprep.subr.mxu0 0.0
        %1475 = vmatpush1.msra.mxu0 0.0
        %1476 = vmatprep.subr.mxu0 0.0
        %1477 = vmatpush1.msra.mxu0 0.0
        %1478 = vmatprep.subr.mxu0 0.0
        %1479 = vmatpush1.msra.mxu0 0.0
        %1480 = vmatprep.subr.mxu0 0.0
        %1481 = vmatpush1.msra.mxu0 0.0
        %1482 = vmatprep.subr.mxu0 0.0
        %1483 = vmatpush1.msra.mxu0 0.0
        %1484 = vmatprep.subr.mxu0 0.0
        %1485 = vmatpush1.msra.mxu0 0.0
        %1486 = vmatprep.subr.mxu0 0.0
        %1487 = vmatpush1.msra.mxu0 0.0
        %1488 = vmatprep.subr.mxu0 0.0
        %1489 = vmatpush1.msra.mxu0 0.0
        %1490 = vmatprep.subr.mxu0 0.0
        %1491 = vmatpush1.msra.mxu0 0.0
        %1492 = vmatprep.subr.mxu0 0.0
        %1493 = vmatpush1.msra.mxu0 0.0
        %1494 = vmatprep.subr.mxu0 0.0
        %1495 = vmatpush1.msra.mxu0 0.0
        %1496 = vmatprep.subr.mxu0 0.0
        %1497 = vmatpush1.msra.mxu0 0.0
        %1498 = vmatprep.subr.mxu0 0.0
        %1499 = vmatpush1.msra.mxu0 0.0
        %1500 = vmatprep.subr.mxu0 0.0
        %1501 = vmatpush1.msra.mxu0 0.0
        %1502 = vmatprep.mubr.f32.mxu0 0.0
        %1503 = vmatmul.mubr.f32.gmra.mrb[0].mxu0 %v1415
        %v1504 = vpop.f32.mrb[0].mxu0
        %v1505 = vadd.f32 %v1377, %v1504
        %v1506 = vpop.f32.mrb[0].mxu0
        %1507 = vmatprep.mubr.f32.mxu0 0.0
        %1508 = vmatmul.mubr.f32.gmra.mrb[0].mxu0 %v1418
        %v1509 = vpop.f32.mrb[0].mxu0
        %v1510 = vadd.f32 %v1382, %v1509
        %v1511 = vpop.f32.mrb[0].mxu0
        %1512 = vmatprep.mubr.f32.mxu0 0.0
        %1513 = vmatmul.mubr.f32.gmra.mrb[0].mxu0 %v1421
        %v1514 = vpop.f32.mrb[0].mxu0
        %v1515 = vadd.f32 %v1387, %v1514
        %v1516 = vpop.f32.mrb[0].mxu0
        %1517 = vmatprep.mubr.f32.mxu0 0.0
        %1518 = vmatmul.mubr.f32.gmra.mrb[0].mxu0 %v1424
        %v1519 = vpop.f32.mrb[0].mxu0
        %v1520 = vadd.f32 %v1392, %v1519
        %v1521 = vpop.f32.mrb[0].mxu0
        %1522 = vmatprep.mubr.f32.mxu0 0.0
        %1523 = vmatmul.mubr.f32.gmra.mrb[0].mxu0 %v1427
        %v1524 = vpop.f32.mrb[0].mxu0
        %v1525 = vadd.f32 %v1397, %v1524
        %v1526 = vpop.f32.mrb[0].mxu0
        %1527 = vmatprep.mubr.f32.mxu0 0.0
        %1528 = vmatmul.mubr.f32.gmra.mrb[0].mxu0 %v1430
        %v1529 = vpop.f32.mrb[0].mxu0
        %v1530 = vadd.f32 %v1402, %v1529
        %v1531 = vpop.f32.mrb[0].mxu0
        %1532 = vmatprep.mubr.f32.mxu0 0.0
        %1533 = vmatmul.mubr.f32.gmra.mrb[0].mxu0 %v1433
        %v1534 = vpop.f32.mrb[0].mxu0
        %v1535 = vadd.f32 %v1407, %v1534
        %v1536 = vpop.f32.mrb[0].mxu0
        %1537 = vmatprep.mubr.f32.mxu0 0.0
        %1538 = vmatmul.mubr.f32.gmra.mrb[0].mxu0 %v1436
        %v1539 = vpop.f32.mrb[0].mxu0
        %v1540 = vadd.f32 %v1412, %v1539
        %v1541 = vpop.f32.mrb[0].mxu0
        %1542 = vdwg.mxu0
        %v1543 = vadd.f32 %v1045, %v1505
        %v1544 = vadd.f32 %v1046, %v1510
        %v1545 = vadd.f32 %v1047, %v1515
        %v1546 = vadd.f32 %v1048, %v1520
        %v1547 = vmul.f32 %v1543, %v547
        %v1548 = vmul.f32 %v1544, %v547
        %v1549 = vmul.f32 %v1545, %v547
        %v1550 = vmul.f32 %v1546, %v547
        %v1551 = vadd.f32 %v1049, %v1525
        %v1552 = vadd.f32 %v1050, %v1530
        %v1553 = vadd.f32 %v1051, %v1535
        %v1554 = vadd.f32 %v1052, %v1540
        %1559 = vrot.lane.b32.xlu0 %v1547, 2
        %v1560 = vpop.permute.xlu0 %1559
        %1561 = vrot.lane.b32.xlu0 %v1548, 2
        %v1562 = vpop.permute.xlu0 %1561
        %1563 = vrot.lane.b32.xlu0 %v1549, 2
        %v1564 = vpop.permute.xlu0 %1563
        %1565 = vrot.lane.b32.xlu0 %v1550, 2
        %v1566 = vpop.permute.xlu0 %1565
        %1571 = vst.msk [vmem:[#allocation2] sm:$0xff] %vm569, %v1560
        %1572 = vst.msk [vmem:[#allocation2 + $0x8] sm:$0xff] %vm569, %v1562
        %1573 = vst.msk [vmem:[#allocation2 + $0x10] sm:$0xff] %vm569, %v1564
        %1574 = vst.msk [vmem:[#allocation2 + $0x18] sm:$0xff] %vm569, %v1566
        %v1575 = vld [vmem:[#allocation2] sm:$0xff]
        %v1576 = vld [vmem:[#allocation2 + $0x8] sm:$0xff]
        %v1577 = vld [vmem:[#allocation2 + $0x10] sm:$0xff]
        %v1578 = vld [vmem:[#allocation2 + $0x18] sm:$0xff]
        %1583 = vrot.lane.b32.xlu0 %v1575, 127
        %v1584 = vpop.permute.xlu0 %1583
        %1585 = vrot.lane.b32.xlu0 %v1576, 127
        %v1586 = vpop.permute.xlu0 %1585
        %1587 = vrot.lane.b32.xlu0 %v1577, 127
        %v1588 = vpop.permute.xlu0 %1587
        %1589 = vrot.lane.b32.xlu0 %v1578, 127
        %v1590 = vpop.permute.xlu0 %1589
        %1595 = vrot.lane.b32.xlu0 %v1575, 126
        %v1596 = vpop.permute.xlu0 %1595
        %1597 = vrot.lane.b32.xlu0 %v1576, 126
        %v1598 = vpop.permute.xlu0 %1597
        %1599 = vrot.lane.b32.xlu0 %v1577, 126
        %v1600 = vpop.permute.xlu0 %1599
        %1601 = vrot.lane.b32.xlu0 %v1578, 126
        %v1602 = vpop.permute.xlu0 %1601
        %1607 = vrot.lane.b32.xlu0 %v1575, 125
        %v1608 = vpop.permute.xlu0 %1607
        %1609 = vrot.lane.b32.xlu0 %v1576, 125
        %v1610 = vpop.permute.xlu0 %1609
        %1611 = vrot.lane.b32.xlu0 %v1577, 125
        %v1612 = vpop.permute.xlu0 %1611
        %1613 = vrot.lane.b32.xlu0 %v1578, 125
        %v1614 = vpop.permute.xlu0 %1613
        %1619 = vrot.lane.b32.xlu0 %v1575, 124
        %v1620 = vpop.permute.xlu0 %1619
        %1621 = vrot.lane.b32.xlu0 %v1576, 124
        %v1622 = vpop.permute.xlu0 %1621
        %1623 = vrot.lane.b32.xlu0 %v1577, 124
        %v1624 = vpop.permute.xlu0 %1623
        %1625 = vrot.lane.b32.xlu0 %v1578, 124
        %v1626 = vpop.permute.xlu0 %1625
        %s1631 = scalar_lea.vmem %s4, 256
        %v1632 = vld [vmem:[%s1631] sm:$0xff]
        %v1633 = vld [vmem:[%s1631 + $0x8] sm:$0xff]
        %v1634 = vld [vmem:[%s1631 + $0x10] sm:$0xff]
        %v1635 = vld [vmem:[%s1631 + $0x18] sm:$0xff]
        %v1636 = vld [vmem:[%s1631 + $0x20] sm:$0xff]
        %v1637 = vld [vmem:[%s1631 + $0x28] sm:$0xff]
        %v1638 = vld [vmem:[%s1631 + $0x30] sm:$0xff]
        %v1639 = vld [vmem:[%s1631 + $0x38] sm:$0xff]
        %v1640 = vld [vmem:[%s1631 + $0x40] sm:$0xff]
        %v1641 = vld [vmem:[%s1631 + $0x48] sm:$0xff]
        %v1642 = vld [vmem:[%s1631 + $0x50] sm:$0xff]
        %v1643 = vld [vmem:[%s1631 + $0x58] sm:$0xff]
        %v1644 = vld [vmem:[%s1631 + $0x60] sm:$0xff]
        %v1645 = vld [vmem:[%s1631 + $0x68] sm:$0xff]
        %v1646 = vld [vmem:[%s1631 + $0x70] sm:$0xff]
        %v1647 = vld [vmem:[%s1631 + $0x78] sm:$0xff]
        %s1648 = scalar_lea.vmem %s5, 128
        %v1649 = vld [vmem:[%s1648] sm:$0xff]
        %v1650 = vld [vmem:[%s1648 + $0x8] sm:$0xff]
        %v1651 = vld [vmem:[%s1648 + $0x10] sm:$0xff]
        %v1652 = vld [vmem:[%s1648 + $0x18] sm:$0xff]
        %v1653 = vld [vmem:[%s1648 + $0x20] sm:$0xff]
        %v1654 = vld [vmem:[%s1648 + $0x28] sm:$0xff]
        %v1655 = vld [vmem:[%s1648 + $0x30] sm:$0xff]
        %v1656 = vld [vmem:[%s1648 + $0x38] sm:$0xff]
        %1658 = vset.pattern.permute.xlu0 0
        %1659 = vperm.xlu0 %1658, %v1649
        %v1660 = vpop.permute.xlu0 %1659
        %1663 = vset.pattern.permute.xlu0 0
        %1664 = vperm.xlu0 %1663, %v1650
        %v1665 = vpop.permute.xlu0 %1664
        %1668 = vset.pattern.permute.xlu0 0
        %1669 = vperm.xlu0 %1668, %v1651
        %v1670 = vpop.permute.xlu0 %1669
        %1673 = vset.pattern.permute.xlu0 0
        %1674 = vperm.xlu0 %1673, %v1652
        %v1675 = vpop.permute.xlu0 %1674
        %1678 = vset.pattern.permute.xlu0 0
        %1679 = vperm.xlu0 %1678, %v1653
        %v1680 = vpop.permute.xlu0 %1679
        %1683 = vset.pattern.permute.xlu0 0
        %1684 = vperm.xlu0 %1683, %v1654
        %v1685 = vpop.permute.xlu0 %1684
        %1688 = vset.pattern.permute.xlu0 0
        %1689 = vperm.xlu0 %1688, %v1655
        %v1690 = vpop.permute.xlu0 %1689
        %1693 = vset.pattern.permute.xlu0 0
        %1694 = vperm.xlu0 %1693, %v1656
        %v1695 = vpop.permute.xlu0 %1694
        %v1698 = vsel %vm694, %v1633, 0
        %v1701 = vsel %vm694, %v1635, 0
        %v1704 = vsel %vm694, %v1637, 0
        %v1707 = vsel %vm694, %v1639, 0
        %v1710 = vsel %vm694, %v1641, 0
        %v1713 = vsel %vm694, %v1643, 0
        %v1716 = vsel %vm694, %v1645, 0
        %v1719 = vsel %vm694, %v1647, 0
        %1721 = vmatprep.subr.mxu0 0.0
        %1722 = vmatpush1.msra.mxu0 %v1575
        %1723 = vmatprep.subr.mxu0 0.0
        %1724 = vmatpush1.msra.mxu0 %v1576
        %1725 = vmatprep.subr.mxu0 0.0
        %1726 = vmatpush1.msra.mxu0 %v1577
        %1727 = vmatprep.subr.mxu0 0.0
        %1728 = vmatpush1.msra.mxu0 %v1578
        %1729 = vmatprep.subr.mxu0 0.0
        %1730 = vmatpush1.msra.mxu0 %v1584
        %1731 = vmatprep.subr.mxu0 0.0
        %1732 = vmatpush1.msra.mxu0 %v1586
        %1733 = vmatprep.subr.mxu0 0.0
        %1734 = vmatpush1.msra.mxu0 %v1588
        %1735 = vmatprep.subr.mxu0 0.0
        %1736 = vmatpush1.msra.mxu0 %v1590
        %1737 = vmatprep.subr.mxu0 0.0
        %1738 = vmatpush1.msra.mxu0 %v1596
        %1739 = vmatprep.subr.mxu0 0.0
        %1740 = vmatpush1.msra.mxu0 %v1598
        %1741 = vmatprep.subr.mxu0 0.0
        %1742 = vmatpush1.msra.mxu0 %v1600
        %1743 = vmatprep.subr.mxu0 0.0
        %1744 = vmatpush1.msra.mxu0 %v1602
        %1745 = vmatprep.subr.mxu0 0.0
        %1746 = vmatpush1.msra.mxu0 %v1608
        %1747 = vmatprep.subr.mxu0 0.0
        %1748 = vmatpush1.msra.mxu0 %v1610
        %1749 = vmatprep.subr.mxu0 0.0
        %1750 = vmatpush1.msra.mxu0 %v1612
        %1751 = vmatprep.subr.mxu0 0.0
        %1752 = vmatpush1.msra.mxu0 %v1614
        %1753 = vmatprep.subr.mxu0 0.0
        %1754 = vmatpush1.msra.mxu0 %v1620
        %1755 = vmatprep.subr.mxu0 0.0
        %1756 = vmatpush1.msra.mxu0 %v1622
        %1757 = vmatprep.subr.mxu0 0.0
        %1758 = vmatpush1.msra.mxu0 %v1624
        %1759 = vmatprep.subr.mxu0 0.0
        %1760 = vmatpush1.msra.mxu0 %v1626
        %1761 = vmatprep.subr.mxu0 0.0
        %1762 = vmatpush1.msra.mxu0 0.0
        %1763 = vmatprep.subr.mxu0 0.0
        %1764 = vmatpush1.msra.mxu0 0.0
        %1765 = vmatprep.subr.mxu0 0.0
        %1766 = vmatpush1.msra.mxu0 0.0
        %1767 = vmatprep.subr.mxu0 0.0
        %1768 = vmatpush1.msra.mxu0 0.0
        %1769 = vmatprep.subr.mxu0 0.0
        %1770 = vmatpush1.msra.mxu0 0.0
        %1771 = vmatprep.subr.mxu0 0.0
        %1772 = vmatpush1.msra.mxu0 0.0
        %1773 = vmatprep.subr.mxu0 0.0
        %1774 = vmatpush1.msra.mxu0 0.0
        %1775 = vmatprep.subr.mxu0 0.0
        %1776 = vmatpush1.msra.mxu0 0.0
        %1777 = vmatprep.subr.mxu0 0.0
        %1778 = vmatpush1.msra.mxu0 0.0
        %1779 = vmatprep.subr.mxu0 0.0
        %1780 = vmatpush1.msra.mxu0 0.0
        %1781 = vmatprep.subr.mxu0 0.0
        %1782 = vmatpush1.msra.mxu0 0.0
        %1783 = vmatprep.subr.mxu0 0.0
        %1784 = vmatpush1.msra.mxu0 0.0
        %1785 = vmatprep.mubr.f32.mxu0 %v1698
        %1786 = vmatmul.mubr.f32.gmra.mrb[0].mxu0 %v1632
        %v1787 = vpop.f32.mrb[0].mxu0
        %v1788 = vadd.f32 %v1660, %v1787
        %v1789 = vpop.f32.mrb[0].mxu0
        %1790 = vmatprep.mubr.f32.mxu0 %v1701
        %1791 = vmatmul.mubr.f32.gmra.mrb[0].mxu0 %v1634
        %v1792 = vpop.f32.mrb[0].mxu0
        %v1793 = vadd.f32 %v1665, %v1792
        %v1794 = vpop.f32.mrb[0].mxu0
        %1795 = vmatprep.mubr.f32.mxu0 %v1704
        %1796 = vmatmul.mubr.f32.gmra.mrb[0].mxu0 %v1636
        %v1797 = vpop.f32.mrb[0].mxu0
        %v1798 = vadd.f32 %v1670, %v1797
        %v1799 = vpop.f32.mrb[0].mxu0
        %1800 = vmatprep.mubr.f32.mxu0 %v1707
        %1801 = vmatmul.mubr.f32.gmra.mrb[0].mxu0 %v1638
        %v1802 = vpop.f32.mrb[0].mxu0
        %v1803 = vadd.f32 %v1675, %v1802
        %v1804 = vpop.f32.mrb[0].mxu0
        %1805 = vmatprep.mubr.f32.mxu0 %v1710
        %1806 = vmatmul.mubr.f32.gmra.mrb[0].mxu0 %v1640
        %v1807 = vpop.f32.mrb[0].mxu0
        %v1808 = vadd.f32 %v1680, %v1807
        %v1809 = vpop.f32.mrb[0].mxu0
        %1810 = vmatprep.mubr.f32.mxu0 %v1713
        %1811 = vmatmul.mubr.f32.gmra.mrb[0].mxu0 %v1642
        %v1812 = vpop.f32.mrb[0].mxu0
        %v1813 = vadd.f32 %v1685, %v1812
        %v1814 = vpop.f32.mrb[0].mxu0
        %1815 = vmatprep.mubr.f32.mxu0 %v1716
        %1816 = vmatmul.mubr.f32.gmra.mrb[0].mxu0 %v1644
        %v1817 = vpop.f32.mrb[0].mxu0
        %v1818 = vadd.f32 %v1690, %v1817
        %v1819 = vpop.f32.mrb[0].mxu0
        %1820 = vmatprep.mubr.f32.mxu0 %v1719
        %1821 = vmatmul.mubr.f32.gmra.mrb[0].mxu0 %v1646
        %v1822 = vpop.f32.mrb[0].mxu0
        %v1823 = vadd.f32 %v1695, %v1822
        %v1824 = vpop.f32.mrb[0].mxu0
        %1825 = vdwg.mxu0
        %v1826 = vtanh.pop %v1788
        %v1827 = vtanh.pop %v1793
        %v1828 = vtanh.pop %v1798
        %v1829 = vtanh.pop %v1803
        %v1830 = vxor.u32 %v1808, 2147483648
        %v1831 = vxor.u32 %v1813, 2147483648
        %v1832 = vxor.u32 %v1818, 2147483648
        %v1833 = vxor.u32 %v1823, 2147483648
        %v1834 = vmul.f32 %v1830, 1.442695
        %v1835 = vpow.pop %v1834
        %v1836 = vmul.f32 %v1831, 1.442695
        %v1837 = vpow.pop %v1836
        %v1838 = vmul.f32 %v1832, 1.442695
        %v1839 = vpow.pop %v1838
        %v1840 = vmul.f32 %v1833, 1.442695
        %v1841 = vpow.pop %v1840
        %v1842 = vadd.f32 %v1835, 1.0
        %v1843 = vadd.f32 %v1837, 1.0
        %v1844 = vadd.f32 %v1839, 1.0
        %v1845 = vadd.f32 %v1841, 1.0
        %v1846 = vrcp.pop %v1842
        %v1847 = vmul.f32 1.0, %v1846
        %v1848 = vrcp.pop %v1843
        %v1849 = vmul.f32 1.0, %v1848
        %v1850 = vrcp.pop %v1844
        %v1851 = vmul.f32 1.0, %v1850
        %v1852 = vrcp.pop %v1845
        %v1853 = vmul.f32 1.0, %v1852
        %v1854 = vmul.f32 %v1826, %v1847
        %v1855 = vmul.f32 %v1827, %v1849
        %v1856 = vmul.f32 %v1828, %v1851
        %v1857 = vmul.f32 %v1829, %v1853
        %s1858 = scalar_lea.vmem %s6, 128
        %v1859 = vld [vmem:[%s1858] sm:$0xff]
        %v1860 = vld [vmem:[%s1858 + $0x8] sm:$0xff]
        %v1861 = vld [vmem:[%s1858 + $0x10] sm:$0xff]
        %v1862 = vld [vmem:[%s1858 + $0x18] sm:$0xff]
        %v1863 = vld [vmem:[%s1858 + $0x20] sm:$0xff]
        %v1864 = vld [vmem:[%s1858 + $0x28] sm:$0xff]
        %v1865 = vld [vmem:[%s1858 + $0x30] sm:$0xff]
        %v1866 = vld [vmem:[%s1858 + $0x38] sm:$0xff]
        %s1867 = scalar_lea.vmem %s7, 128
        %v1868 = vld [vmem:[%s1867] sm:$0xff]
        %v1869 = vld [vmem:[%s1867 + $0x8] sm:$0xff]
        %v1870 = vld [vmem:[%s1867 + $0x10] sm:$0xff]
        %v1871 = vld [vmem:[%s1867 + $0x18] sm:$0xff]
        %v1872 = vld [vmem:[%s1867 + $0x20] sm:$0xff]
        %v1873 = vld [vmem:[%s1867 + $0x28] sm:$0xff]
        %v1874 = vld [vmem:[%s1867 + $0x30] sm:$0xff]
        %v1875 = vld [vmem:[%s1867 + $0x38] sm:$0xff]
        %1877 = vset.pattern.permute.xlu0 0
        %1878 = vperm.xlu0 %1877, %v1868
        %v1879 = vpop.permute.xlu0 %1878
        %1882 = vset.pattern.permute.xlu0 0
        %1883 = vperm.xlu0 %1882, %v1869
        %v1884 = vpop.permute.xlu0 %1883
        %1887 = vset.pattern.permute.xlu0 0
        %1888 = vperm.xlu0 %1887, %v1870
        %v1889 = vpop.permute.xlu0 %1888
        %1892 = vset.pattern.permute.xlu0 0
        %1893 = vperm.xlu0 %1892, %v1871
        %v1894 = vpop.permute.xlu0 %1893
        %1897 = vset.pattern.permute.xlu0 0
        %1898 = vperm.xlu0 %1897, %v1872
        %v1899 = vpop.permute.xlu0 %1898
        %1902 = vset.pattern.permute.xlu0 0
        %1903 = vperm.xlu0 %1902, %v1873
        %v1904 = vpop.permute.xlu0 %1903
        %1907 = vset.pattern.permute.xlu0 0
        %1908 = vperm.xlu0 %1907, %v1874
        %v1909 = vpop.permute.xlu0 %1908
        %1912 = vset.pattern.permute.xlu0 0
        %1913 = vperm.xlu0 %1912, %v1875
        %v1914 = vpop.permute.xlu0 %1913
        %v1917 = vsel %vm694, %v1859, 0
        %v1920 = vsel %vm694, %v1860, 0
        %v1923 = vsel %vm694, %v1861, 0
        %v1926 = vsel %vm694, %v1862, 0
        %v1929 = vsel %vm694, %v1863, 0
        %v1932 = vsel %vm694, %v1864, 0
        %v1935 = vsel %vm694, %v1865, 0
        %v1938 = vsel %vm694, %v1866, 0
        %1940 = vmatprep.subr.mxu0 0.0
        %1941 = vmatpush1.msra.mxu0 %v1854
        %1942 = vmatprep.subr.mxu0 0.0
        %1943 = vmatpush1.msra.mxu0 %v1855
        %1944 = vmatprep.subr.mxu0 0.0
        %1945 = vmatpush1.msra.mxu0 %v1856
        %1946 = vmatprep.subr.mxu0 0.0
        %1947 = vmatpush1.msra.mxu0 %v1857
        %1948 = vmatprep.subr.mxu0 0.0
        %1949 = vmatpush1.msra.mxu0 0.0
        %1950 = vmatprep.subr.mxu0 0.0
        %1951 = vmatpush1.msra.mxu0 0.0
        %1952 = vmatprep.subr.mxu0 0.0
        %1953 = vmatpush1.msra.mxu0 0.0
        %1954 = vmatprep.subr.mxu0 0.0
        %1955 = vmatpush1.msra.mxu0 0.0
        %1956 = vmatprep.subr.mxu0 0.0
        %1957 = vmatpush1.msra.mxu0 0.0
        %1958 = vmatprep.subr.mxu0 0.0
        %1959 = vmatpush1.msra.mxu0 0.0
        %1960 = vmatprep.subr.mxu0 0.0
        %1961 = vmatpush1.msra.mxu0 0.0
        %1962 = vmatprep.subr.mxu0 0.0
        %1963 = vmatpush1.msra.mxu0 0.0
        %1964 = vmatprep.subr.mxu0 0.0
        %1965 = vmatpush1.msra.mxu0 0.0
        %1966 = vmatprep.subr.mxu0 0.0
        %1967 = vmatpush1.msra.mxu0 0.0
        %1968 = vmatprep.subr.mxu0 0.0
        %1969 = vmatpush1.msra.mxu0 0.0
        %1970 = vmatprep.subr.mxu0 0.0
        %1971 = vmatpush1.msra.mxu0 0.0
        %1972 = vmatprep.subr.mxu0 0.0
        %1973 = vmatpush1.msra.mxu0 0.0
        %1974 = vmatprep.subr.mxu0 0.0
        %1975 = vmatpush1.msra.mxu0 0.0
        %1976 = vmatprep.subr.mxu0 0.0
        %1977 = vmatpush1.msra.mxu0 0.0
        %1978 = vmatprep.subr.mxu0 0.0
        %1979 = vmatpush1.msra.mxu0 0.0
        %1980 = vmatprep.subr.mxu0 0.0
        %1981 = vmatpush1.msra.mxu0 0.0
        %1982 = vmatprep.subr.mxu0 0.0
        %1983 = vmatpush1.msra.mxu0 0.0
        %1984 = vmatprep.subr.mxu0 0.0
        %1985 = vmatpush1.msra.mxu0 0.0
        %1986 = vmatprep.subr.mxu0 0.0
        %1987 = vmatpush1.msra.mxu0 0.0
        %1988 = vmatprep.subr.mxu0 0.0
        %1989 = vmatpush1.msra.mxu0 0.0
        %1990 = vmatprep.subr.mxu0 0.0
        %1991 = vmatpush1.msra.mxu0 0.0
        %1992 = vmatprep.subr.mxu0 0.0
        %1993 = vmatpush1.msra.mxu0 0.0
        %1994 = vmatprep.subr.mxu0 0.0
        %1995 = vmatpush1.msra.mxu0 0.0
        %1996 = vmatprep.subr.mxu0 0.0
        %1997 = vmatpush1.msra.mxu0 0.0
        %1998 = vmatprep.subr.mxu0 0.0
        %1999 = vmatpush1.msra.mxu0 0.0
        %2000 = vmatprep.subr.mxu0 0.0
        %2001 = vmatpush1.msra.mxu0 0.0
        %2002 = vmatprep.subr.mxu0 0.0
        %2003 = vmatpush1.msra.mxu0 0.0
        %2004 = vmatprep.mubr.f32.mxu0 0.0
        %2005 = vmatmul.mubr.f32.gmra.mrb[0].mxu0 %v1917
        %v2006 = vpop.f32.mrb[0].mxu0
        %v2007 = vadd.f32 %v1879, %v2006
        %v2008 = vpop.f32.mrb[0].mxu0
        %2009 = vmatprep.mubr.f32.mxu0 0.0
        %2010 = vmatmul.mubr.f32.gmra.mrb[0].mxu0 %v1920
        %v2011 = vpop.f32.mrb[0].mxu0
        %v2012 = vadd.f32 %v1884, %v2011
        %v2013 = vpop.f32.mrb[0].mxu0
        %2014 = vmatprep.mubr.f32.mxu0 0.0
        %2015 = vmatmul.mubr.f32.gmra.mrb[0].mxu0 %v1923
        %v2016 = vpop.f32.mrb[0].mxu0
        %v2017 = vadd.f32 %v1889, %v2016
        %v2018 = vpop.f32.mrb[0].mxu0
        %2019 = vmatprep.mubr.f32.mxu0 0.0
        %2020 = vmatmul.mubr.f32.gmra.mrb[0].mxu0 %v1926
        %v2021 = vpop.f32.mrb[0].mxu0
        %v2022 = vadd.f32 %v1894, %v2021
        %v2023 = vpop.f32.mrb[0].mxu0
        %2024 = vmatprep.mubr.f32.mxu0 0.0
        %2025 = vmatmul.mubr.f32.gmra.mrb[0].mxu0 %v1929
        %v2026 = vpop.f32.mrb[0].mxu0
        %v2027 = vadd.f32 %v1899, %v2026
        %v2028 = vpop.f32.mrb[0].mxu0
        %2029 = vmatprep.mubr.f32.mxu0 0.0
        %2030 = vmatmul.mubr.f32.gmra.mrb[0].mxu0 %v1932
        %v2031 = vpop.f32.mrb[0].mxu0
        %v2032 = vadd.f32 %v1904, %v2031
        %v2033 = vpop.f32.mrb[0].mxu0
        %2034 = vmatprep.mubr.f32.mxu0 0.0
        %2035 = vmatmul.mubr.f32.gmra.mrb[0].mxu0 %v1935
        %v2036 = vpop.f32.mrb[0].mxu0
        %v2037 = vadd.f32 %v1909, %v2036
        %v2038 = vpop.f32.mrb[0].mxu0
        %2039 = vmatprep.mubr.f32.mxu0 0.0
        %2040 = vmatmul.mubr.f32.gmra.mrb[0].mxu0 %v1938
        %v2041 = vpop.f32.mrb[0].mxu0
        %v2042 = vadd.f32 %v1914, %v2041
        %v2043 = vpop.f32.mrb[0].mxu0
        %2044 = vdwg.mxu0
        %v2045 = vadd.f32 %v1547, %v2007
        %v2046 = vadd.f32 %v1548, %v2012
        %v2047 = vadd.f32 %v1549, %v2017
        %v2048 = vadd.f32 %v1550, %v2022
        %v2049 = vmul.f32 %v2045, %v547
        %v2050 = vmul.f32 %v2046, %v547
        %v2051 = vmul.f32 %v2047, %v547
        %v2052 = vmul.f32 %v2048, %v547
        %v2053 = vadd.f32 %v1551, %v2027
        %v2054 = vadd.f32 %v1552, %v2032
        %v2055 = vadd.f32 %v1553, %v2037
        %v2056 = vadd.f32 %v1554, %v2042
        %2061 = vrot.lane.b32.xlu0 %v2049, 2
        %v2062 = vpop.permute.xlu0 %2061
        %2063 = vrot.lane.b32.xlu0 %v2050, 2
        %v2064 = vpop.permute.xlu0 %2063
        %2065 = vrot.lane.b32.xlu0 %v2051, 2
        %v2066 = vpop.permute.xlu0 %2065
        %2067 = vrot.lane.b32.xlu0 %v2052, 2
        %v2068 = vpop.permute.xlu0 %2067
        %2073 = vst.msk [vmem:[#allocation2] sm:$0xff] %vm569, %v2062
        %2074 = vst.msk [vmem:[#allocation2 + $0x8] sm:$0xff] %vm569, %v2064
        %2075 = vst.msk [vmem:[#allocation2 + $0x10] sm:$0xff] %vm569, %v2066
        %2076 = vst.msk [vmem:[#allocation2 + $0x18] sm:$0xff] %vm569, %v2068
        %v2077 = vld [vmem:[#allocation2] sm:$0xff]
        %v2078 = vld [vmem:[#allocation2 + $0x8] sm:$0xff]
        %v2079 = vld [vmem:[#allocation2 + $0x10] sm:$0xff]
        %v2080 = vld [vmem:[#allocation2 + $0x18] sm:$0xff]
        %2085 = vrot.lane.b32.xlu0 %v2077, 127
        %v2086 = vpop.permute.xlu0 %2085
        %2087 = vrot.lane.b32.xlu0 %v2078, 127
        %v2088 = vpop.permute.xlu0 %2087
        %2089 = vrot.lane.b32.xlu0 %v2079, 127
        %v2090 = vpop.permute.xlu0 %2089
        %2091 = vrot.lane.b32.xlu0 %v2080, 127
        %v2092 = vpop.permute.xlu0 %2091
        %2097 = vrot.lane.b32.xlu0 %v2077, 126
        %v2098 = vpop.permute.xlu0 %2097
        %2099 = vrot.lane.b32.xlu0 %v2078, 126
        %v2100 = vpop.permute.xlu0 %2099
        %2101 = vrot.lane.b32.xlu0 %v2079, 126
        %v2102 = vpop.permute.xlu0 %2101
        %2103 = vrot.lane.b32.xlu0 %v2080, 126
        %v2104 = vpop.permute.xlu0 %2103
        %2109 = vrot.lane.b32.xlu0 %v2077, 125
        %v2110 = vpop.permute.xlu0 %2109
        %2111 = vrot.lane.b32.xlu0 %v2078, 125
        %v2112 = vpop.permute.xlu0 %2111
        %2113 = vrot.lane.b32.xlu0 %v2079, 125
        %v2114 = vpop.permute.xlu0 %2113
        %2115 = vrot.lane.b32.xlu0 %v2080, 125
        %v2116 = vpop.permute.xlu0 %2115
        %2121 = vrot.lane.b32.xlu0 %v2077, 124
        %v2122 = vpop.permute.xlu0 %2121
        %2123 = vrot.lane.b32.xlu0 %v2078, 124
        %v2124 = vpop.permute.xlu0 %2123
        %2125 = vrot.lane.b32.xlu0 %v2079, 124
        %v2126 = vpop.permute.xlu0 %2125
        %2127 = vrot.lane.b32.xlu0 %v2080, 124
        %v2128 = vpop.permute.xlu0 %2127
        %s2133 = scalar_lea.vmem %s4, 384
        %v2134 = vld [vmem:[%s2133] sm:$0xff]
        %v2135 = vld [vmem:[%s2133 + $0x8] sm:$0xff]
        %v2136 = vld [vmem:[%s2133 + $0x10] sm:$0xff]
        %v2137 = vld [vmem:[%s2133 + $0x18] sm:$0xff]
        %v2138 = vld [vmem:[%s2133 + $0x20] sm:$0xff]
        %v2139 = vld [vmem:[%s2133 + $0x28] sm:$0xff]
        %v2140 = vld [vmem:[%s2133 + $0x30] sm:$0xff]
        %v2141 = vld [vmem:[%s2133 + $0x38] sm:$0xff]
        %v2142 = vld [vmem:[%s2133 + $0x40] sm:$0xff]
        %v2143 = vld [vmem:[%s2133 + $0x48] sm:$0xff]
        %v2144 = vld [vmem:[%s2133 + $0x50] sm:$0xff]
        %v2145 = vld [vmem:[%s2133 + $0x58] sm:$0xff]
        %v2146 = vld [vmem:[%s2133 + $0x60] sm:$0xff]
        %v2147 = vld [vmem:[%s2133 + $0x68] sm:$0xff]
        %v2148 = vld [vmem:[%s2133 + $0x70] sm:$0xff]
        %v2149 = vld [vmem:[%s2133 + $0x78] sm:$0xff]
        %s2150 = scalar_lea.vmem %s5, 192
        %v2151 = vld [vmem:[%s2150] sm:$0xff]
        %v2152 = vld [vmem:[%s2150 + $0x8] sm:$0xff]
        %v2153 = vld [vmem:[%s2150 + $0x10] sm:$0xff]
        %v2154 = vld [vmem:[%s2150 + $0x18] sm:$0xff]
        %v2155 = vld [vmem:[%s2150 + $0x20] sm:$0xff]
        %v2156 = vld [vmem:[%s2150 + $0x28] sm:$0xff]
        %v2157 = vld [vmem:[%s2150 + $0x30] sm:$0xff]
        %v2158 = vld [vmem:[%s2150 + $0x38] sm:$0xff]
        %2160 = vset.pattern.permute.xlu0 0
        %2161 = vperm.xlu0 %2160, %v2151
        %v2162 = vpop.permute.xlu0 %2161
        %2165 = vset.pattern.permute.xlu0 0
        %2166 = vperm.xlu0 %2165, %v2152
        %v2167 = vpop.permute.xlu0 %2166
        %2170 = vset.pattern.permute.xlu0 0
        %2171 = vperm.xlu0 %2170, %v2153
        %v2172 = vpop.permute.xlu0 %2171
        %2175 = vset.pattern.permute.xlu0 0
        %2176 = vperm.xlu0 %2175, %v2154
        %v2177 = vpop.permute.xlu0 %2176
        %2180 = vset.pattern.permute.xlu0 0
        %2181 = vperm.xlu0 %2180, %v2155
        %v2182 = vpop.permute.xlu0 %2181
        %2185 = vset.pattern.permute.xlu0 0
        %2186 = vperm.xlu0 %2185, %v2156
        %v2187 = vpop.permute.xlu0 %2186
        %2190 = vset.pattern.permute.xlu0 0
        %2191 = vperm.xlu0 %2190, %v2157
        %v2192 = vpop.permute.xlu0 %2191
        %2195 = vset.pattern.permute.xlu0 0
        %2196 = vperm.xlu0 %2195, %v2158
        %v2197 = vpop.permute.xlu0 %2196
        %v2200 = vsel %vm694, %v2135, 0
        %v2203 = vsel %vm694, %v2137, 0
        %v2206 = vsel %vm694, %v2139, 0
        %v2209 = vsel %vm694, %v2141, 0
        %v2212 = vsel %vm694, %v2143, 0
        %v2215 = vsel %vm694, %v2145, 0
        %v2218 = vsel %vm694, %v2147, 0
        %v2221 = vsel %vm694, %v2149, 0
        %2223 = vmatprep.subr.mxu0 0.0
        %2224 = vmatpush1.msra.mxu0 %v2077
        %2225 = vmatprep.subr.mxu0 0.0
        %2226 = vmatpush1.msra.mxu0 %v2078
        %2227 = vmatprep.subr.mxu0 0.0
        %2228 = vmatpush1.msra.mxu0 %v2079
        %2229 = vmatprep.subr.mxu0 0.0
        %2230 = vmatpush1.msra.mxu0 %v2080
        %2231 = vmatprep.subr.mxu0 0.0
        %2232 = vmatpush1.msra.mxu0 %v2086
        %2233 = vmatprep.subr.mxu0 0.0
        %2234 = vmatpush1.msra.mxu0 %v2088
        %2235 = vmatprep.subr.mxu0 0.0
        %2236 = vmatpush1.msra.mxu0 %v2090
        %2237 = vmatprep.subr.mxu0 0.0
        %2238 = vmatpush1.msra.mxu0 %v2092
        %2239 = vmatprep.subr.mxu0 0.0
        %2240 = vmatpush1.msra.mxu0 %v2098
        %2241 = vmatprep.subr.mxu0 0.0
        %2242 = vmatpush1.msra.mxu0 %v2100
        %2243 = vmatprep.subr.mxu0 0.0
        %2244 = vmatpush1.msra.mxu0 %v2102
        %2245 = vmatprep.subr.mxu0 0.0
        %2246 = vmatpush1.msra.mxu0 %v2104
        %2247 = vmatprep.subr.mxu0 0.0
        %2248 = vmatpush1.msra.mxu0 %v2110
        %2249 = vmatprep.subr.mxu0 0.0
        %2250 = vmatpush1.msra.mxu0 %v2112
        %2251 = vmatprep.subr.mxu0 0.0
        %2252 = vmatpush1.msra.mxu0 %v2114
        %2253 = vmatprep.subr.mxu0 0.0
        %2254 = vmatpush1.msra.mxu0 %v2116
        %2255 = vmatprep.subr.mxu0 0.0
        %2256 = vmatpush1.msra.mxu0 %v2122
        %2257 = vmatprep.subr.mxu0 0.0
        %2258 = vmatpush1.msra.mxu0 %v2124
        %2259 = vmatprep.subr.mxu0 0.0
        %2260 = vmatpush1.msra.mxu0 %v2126
        %2261 = vmatprep.subr.mxu0 0.0
        %2262 = vmatpush1.msra.mxu0 %v2128
        %2263 = vmatprep.subr.mxu0 0.0
        %2264 = vmatpush1.msra.mxu0 0.0
        %2265 = vmatprep.subr.mxu0 0.0
        %2266 = vmatpush1.msra.mxu0 0.0
        %2267 = vmatprep.subr.mxu0 0.0
        %2268 = vmatpush1.msra.mxu0 0.0
        %2269 = vmatprep.subr.mxu0 0.0
        %2270 = vmatpush1.msra.mxu0 0.0
        %2271 = vmatprep.subr.mxu0 0.0
        %2272 = vmatpush1.msra.mxu0 0.0
        %2273 = vmatprep.subr.mxu0 0.0
        %2274 = vmatpush1.msra.mxu0 0.0
        %2275 = vmatprep.subr.mxu0 0.0
        %2276 = vmatpush1.msra.mxu0 0.0
        %2277 = vmatprep.subr.mxu0 0.0
        %2278 = vmatpush1.msra.mxu0 0.0
        %2279 = vmatprep.subr.mxu0 0.0
        %2280 = vmatpush1.msra.mxu0 0.0
        %2281 = vmatprep.subr.mxu0 0.0
        %2282 = vmatpush1.msra.mxu0 0.0
        %2283 = vmatprep.subr.mxu0 0.0
        %2284 = vmatpush1.msra.mxu0 0.0
        %2285 = vmatprep.subr.mxu0 0.0
        %2286 = vmatpush1.msra.mxu0 0.0
        %2287 = vmatprep.mubr.f32.mxu0 %v2200
        %2288 = vmatmul.mubr.f32.gmra.mrb[0].mxu0 %v2134
        %v2289 = vpop.f32.mrb[0].mxu0
        %v2290 = vadd.f32 %v2162, %v2289
        %v2291 = vpop.f32.mrb[0].mxu0
        %2292 = vmatprep.mubr.f32.mxu0 %v2203
        %2293 = vmatmul.mubr.f32.gmra.mrb[0].mxu0 %v2136
        %v2294 = vpop.f32.mrb[0].mxu0
        %v2295 = vadd.f32 %v2167, %v2294
        %v2296 = vpop.f32.mrb[0].mxu0
        %2297 = vmatprep.mubr.f32.mxu0 %v2206
        %2298 = vmatmul.mubr.f32.gmra.mrb[0].mxu0 %v2138
        %v2299 = vpop.f32.mrb[0].mxu0
        %v2300 = vadd.f32 %v2172, %v2299
        %v2301 = vpop.f32.mrb[0].mxu0
        %2302 = vmatprep.mubr.f32.mxu0 %v2209
        %2303 = vmatmul.mubr.f32.gmra.mrb[0].mxu0 %v2140
        %v2304 = vpop.f32.mrb[0].mxu0
        %v2305 = vadd.f32 %v2177, %v2304
        %v2306 = vpop.f32.mrb[0].mxu0
        %2307 = vmatprep.mubr.f32.mxu0 %v2212
        %2308 = vmatmul.mubr.f32.gmra.mrb[0].mxu0 %v2142
        %v2309 = vpop.f32.mrb[0].mxu0
        %v2310 = vadd.f32 %v2182, %v2309
        %v2311 = vpop.f32.mrb[0].mxu0
        %2312 = vmatprep.mubr.f32.mxu0 %v2215
        %2313 = vmatmul.mubr.f32.gmra.mrb[0].mxu0 %v2144
        %v2314 = vpop.f32.mrb[0].mxu0
        %v2315 = vadd.f32 %v2187, %v2314
        %v2316 = vpop.f32.mrb[0].mxu0
        %2317 = vmatprep.mubr.f32.mxu0 %v2218
        %2318 = vmatmul.mubr.f32.gmra.mrb[0].mxu0 %v2146
        %v2319 = vpop.f32.mrb[0].mxu0
        %v2320 = vadd.f32 %v2192, %v2319
        %v2321 = vpop.f32.mrb[0].mxu0
        %2322 = vmatprep.mubr.f32.mxu0 %v2221
        %2323 = vmatmul.mubr.f32.gmra.mrb[0].mxu0 %v2148
        %v2324 = vpop.f32.mrb[0].mxu0
        %v2325 = vadd.f32 %v2197, %v2324
        %v2326 = vpop.f32.mrb[0].mxu0
        %2327 = vdwg.mxu0
        %v2328 = vtanh.pop %v2290
        %v2329 = vtanh.pop %v2295
        %v2330 = vtanh.pop %v2300
        %v2331 = vtanh.pop %v2305
        %v2332 = vxor.u32 %v2310, 2147483648
        %v2333 = vxor.u32 %v2315, 2147483648
        %v2334 = vxor.u32 %v2320, 2147483648
        %v2335 = vxor.u32 %v2325, 2147483648
        %v2336 = vmul.f32 %v2332, 1.442695
        %v2337 = vpow.pop %v2336
        %v2338 = vmul.f32 %v2333, 1.442695
        %v2339 = vpow.pop %v2338
        %v2340 = vmul.f32 %v2334, 1.442695
        %v2341 = vpow.pop %v2340
        %v2342 = vmul.f32 %v2335, 1.442695
        %v2343 = vpow.pop %v2342
        %v2344 = vadd.f32 %v2337, 1.0
        %v2345 = vadd.f32 %v2339, 1.0
        %v2346 = vadd.f32 %v2341, 1.0
        %v2347 = vadd.f32 %v2343, 1.0
        %v2348 = vrcp.pop %v2344
        %v2349 = vmul.f32 1.0, %v2348
        %v2350 = vrcp.pop %v2345
        %v2351 = vmul.f32 1.0, %v2350
        %v2352 = vrcp.pop %v2346
        %v2353 = vmul.f32 1.0, %v2352
        %v2354 = vrcp.pop %v2347
        %v2355 = vmul.f32 1.0, %v2354
        %v2356 = vmul.f32 %v2328, %v2349
        %v2357 = vmul.f32 %v2329, %v2351
        %v2358 = vmul.f32 %v2330, %v2353
        %v2359 = vmul.f32 %v2331, %v2355
        %s2360 = scalar_lea.vmem %s6, 192
        %v2361 = vld [vmem:[%s2360] sm:$0xff]
        %v2362 = vld [vmem:[%s2360 + $0x8] sm:$0xff]
        %v2363 = vld [vmem:[%s2360 + $0x10] sm:$0xff]
        %v2364 = vld [vmem:[%s2360 + $0x18] sm:$0xff]
        %s2365 = scalar_lea.vmem %s7, 192
        %v2366 = vld [vmem:[%s2365] sm:$0xff]
        %v2367 = vld [vmem:[%s2365 + $0x8] sm:$0xff]
        %v2368 = vld [vmem:[%s2365 + $0x10] sm:$0xff]
        %v2369 = vld [vmem:[%s2365 + $0x18] sm:$0xff]
        %2371 = vset.pattern.permute.xlu0 0
        %2372 = vperm.xlu0 %2371, %v2366
        %v2373 = vpop.permute.xlu0 %2372
        %2376 = vset.pattern.permute.xlu0 0
        %2377 = vperm.xlu0 %2376, %v2367
        %v2378 = vpop.permute.xlu0 %2377
        %2381 = vset.pattern.permute.xlu0 0
        %2382 = vperm.xlu0 %2381, %v2368
        %v2383 = vpop.permute.xlu0 %2382
        %2386 = vset.pattern.permute.xlu0 0
        %2387 = vperm.xlu0 %2386, %v2369
        %v2388 = vpop.permute.xlu0 %2387
        %v2391 = vsel %vm694, %v2361, 0
        %v2394 = vsel %vm694, %v2362, 0
        %v2397 = vsel %vm694, %v2363, 0
        %v2400 = vsel %vm694, %v2364, 0
        %2402 = vmatprep.subr.mxu0 0.0
        %2403 = vmatpush1.msra.mxu0 %v2356
        %2404 = vmatprep.subr.mxu0 0.0
        %2405 = vmatpush1.msra.mxu0 %v2357
        %2406 = vmatprep.subr.mxu0 0.0
        %2407 = vmatpush1.msra.mxu0 %v2358
        %2408 = vmatprep.subr.mxu0 0.0
        %2409 = vmatpush1.msra.mxu0 %v2359
        %2410 = vmatprep.subr.mxu0 0.0
        %2411 = vmatpush1.msra.mxu0 0.0
        %2412 = vmatprep.subr.mxu0 0.0
        %2413 = vmatpush1.msra.mxu0 0.0
        %2414 = vmatprep.subr.mxu0 0.0
        %2415 = vmatpush1.msra.mxu0 0.0
        %2416 = vmatprep.subr.mxu0 0.0
        %2417 = vmatpush1.msra.mxu0 0.0
        %2418 = vmatprep.subr.mxu0 0.0
        %2419 = vmatpush1.msra.mxu0 0.0
        %2420 = vmatprep.subr.mxu0 0.0
        %2421 = vmatpush1.msra.mxu0 0.0
        %2422 = vmatprep.subr.mxu0 0.0
        %2423 = vmatpush1.msra.mxu0 0.0
        %2424 = vmatprep.subr.mxu0 0.0
        %2425 = vmatpush1.msra.mxu0 0.0
        %2426 = vmatprep.subr.mxu0 0.0
        %2427 = vmatpush1.msra.mxu0 0.0
        %2428 = vmatprep.subr.mxu0 0.0
        %2429 = vmatpush1.msra.mxu0 0.0
        %2430 = vmatprep.subr.mxu0 0.0
        %2431 = vmatpush1.msra.mxu0 0.0
        %2432 = vmatprep.subr.mxu0 0.0
        %2433 = vmatpush1.msra.mxu0 0.0
        %2434 = vmatprep.subr.mxu0 0.0
        %2435 = vmatpush1.msra.mxu0 0.0
        %2436 = vmatprep.subr.mxu0 0.0
        %2437 = vmatpush1.msra.mxu0 0.0
        %2438 = vmatprep.subr.mxu0 0.0
        %2439 = vmatpush1.msra.mxu0 0.0
        %2440 = vmatprep.subr.mxu0 0.0
        %2441 = vmatpush1.msra.mxu0 0.0
        %2442 = vmatprep.subr.mxu0 0.0
        %2443 = vmatpush1.msra.mxu0 0.0
        %2444 = vmatprep.subr.mxu0 0.0
        %2445 = vmatpush1.msra.mxu0 0.0
        %2446 = vmatprep.subr.mxu0 0.0
        %2447 = vmatpush1.msra.mxu0 0.0
        %2448 = vmatprep.subr.mxu0 0.0
        %2449 = vmatpush1.msra.mxu0 0.0
        %2450 = vmatprep.subr.mxu0 0.0
        %2451 = vmatpush1.msra.mxu0 0.0
        %2452 = vmatprep.subr.mxu0 0.0
        %2453 = vmatpush1.msra.mxu0 0.0
        %2454 = vmatprep.subr.mxu0 0.0
        %2455 = vmatpush1.msra.mxu0 0.0
        %2456 = vmatprep.subr.mxu0 0.0
        %2457 = vmatpush1.msra.mxu0 0.0
        %2458 = vmatprep.subr.mxu0 0.0
        %2459 = vmatpush1.msra.mxu0 0.0
        %2460 = vmatprep.subr.mxu0 0.0
        %2461 = vmatpush1.msra.mxu0 0.0
        %2462 = vmatprep.subr.mxu0 0.0
        %2463 = vmatpush1.msra.mxu0 0.0
        %2464 = vmatprep.subr.mxu0 0.0
        %2465 = vmatpush1.msra.mxu0 0.0
        %2466 = vmatprep.mubr.f32.mxu0 0.0
        %2467 = vmatmul.mubr.f32.gmra.mrb[0].mxu0 %v2391
        %v2468 = vpop.f32.mrb[0].mxu0
        %v2469 = vadd.f32 %v2373, %v2468
        %v2470 = vpop.f32.mrb[0].mxu0
        %2471 = vmatprep.mubr.f32.mxu0 0.0
        %2472 = vmatmul.mubr.f32.gmra.mrb[0].mxu0 %v2394
        %v2473 = vpop.f32.mrb[0].mxu0
        %v2474 = vadd.f32 %v2378, %v2473
        %v2475 = vpop.f32.mrb[0].mxu0
        %2476 = vmatprep.mubr.f32.mxu0 0.0
        %2477 = vmatmul.mubr.f32.gmra.mrb[0].mxu0 %v2397
        %v2478 = vpop.f32.mrb[0].mxu0
        %v2479 = vadd.f32 %v2383, %v2478
        %v2480 = vpop.f32.mrb[0].mxu0
        %2481 = vmatprep.mubr.f32.mxu0 0.0
        %2482 = vmatmul.mubr.f32.gmra.mrb[0].mxu0 %v2400
        %v2483 = vpop.f32.mrb[0].mxu0
        %v2484 = vadd.f32 %v2388, %v2483
        %v2485 = vpop.f32.mrb[0].mxu0
        %2486 = vdwg.mxu0
        %v2487 = vadd.f32 %v2053, %v2469
        %v2488 = vadd.f32 %v2054, %v2474
        %v2489 = vadd.f32 %v2055, %v2479
        %v2490 = vadd.f32 %v2056, %v2484
        %v2491 = vmul.f32 %v2487, %v547
        %v2492 = vmul.f32 %v2488, %v547
        %v2493 = vmul.f32 %v2489, %v547
        %v2494 = vmul.f32 %v2490, %v547
        %v2495 = vld [vmem:[%s8] sm:$0xf]
        %v2496 = vld [vmem:[%s9] sm:$0xf]
        %2498 = vset.pattern.permute.xlu0 0
        %2499 = vperm.xlu0 %2498, %v2496
        %v2500 = vpop.permute.xlu0 %2499
        %v2503 = vsel %vm694, %v2495, 0
        %2505 = vmatprep.subr.mxu0 0.0
        %2506 = vmatpush1.msra.mxu0 %v2491
        %2507 = vmatprep.subr.mxu0 0.0
        %2508 = vmatpush1.msra.mxu0 %v2492
        %2509 = vmatprep.subr.mxu0 0.0
        %2510 = vmatpush1.msra.mxu0 %v2493
        %2511 = vmatprep.subr.mxu0 0.0
        %2512 = vmatpush1.msra.mxu0 %v2494
        %2513 = vmatprep.subr.mxu0 0.0
        %2514 = vmatpush1.msra.mxu0 0.0
        %2515 = vmatprep.subr.mxu0 0.0
        %2516 = vmatpush1.msra.mxu0 0.0
        %2517 = vmatprep.subr.mxu0 0.0
        %2518 = vmatpush1.msra.mxu0 0.0
        %2519 = vmatprep.subr.mxu0 0.0
        %2520 = vmatpush1.msra.mxu0 0.0
        %2521 = vmatprep.subr.mxu0 0.0
        %2522 = vmatpush1.msra.mxu0 0.0
        %2523 = vmatprep.subr.mxu0 0.0
        %2524 = vmatpush1.msra.mxu0 0.0
        %2525 = vmatprep.subr.mxu0 0.0
        %2526 = vmatpush1.msra.mxu0 0.0
        %2527 = vmatprep.subr.mxu0 0.0
        %2528 = vmatpush1.msra.mxu0 0.0
        %2529 = vmatprep.subr.mxu0 0.0
        %2530 = vmatpush1.msra.mxu0 0.0
        %2531 = vmatprep.subr.mxu0 0.0
        %2532 = vmatpush1.msra.mxu0 0.0
        %2533 = vmatprep.subr.mxu0 0.0
        %2534 = vmatpush1.msra.mxu0 0.0
        %2535 = vmatprep.subr.mxu0 0.0
        %2536 = vmatpush1.msra.mxu0 0.0
        %2537 = vmatprep.subr.mxu0 0.0
        %2538 = vmatpush1.msra.mxu0 0.0
        %2539 = vmatprep.subr.mxu0 0.0
        %2540 = vmatpush1.msra.mxu0 0.0
        %2541 = vmatprep.subr.mxu0 0.0
        %2542 = vmatpush1.msra.mxu0 0.0
        %2543 = vmatprep.subr.mxu0 0.0
        %2544 = vmatpush1.msra.mxu0 0.0
        %2545 = vmatprep.subr.mxu0 0.0
        %2546 = vmatpush1.msra.mxu0 0.0
        %2547 = vmatprep.subr.mxu0 0.0
        %2548 = vmatpush1.msra.mxu0 0.0
        %2549 = vmatprep.subr.mxu0 0.0
        %2550 = vmatpush1.msra.mxu0 0.0
        %2551 = vmatprep.subr.mxu0 0.0
        %2552 = vmatpush1.msra.mxu0 0.0
        %2553 = vmatprep.subr.mxu0 0.0
        %2554 = vmatpush1.msra.mxu0 0.0
        %2555 = vmatprep.subr.mxu0 0.0
        %2556 = vmatpush1.msra.mxu0 0.0
        %2557 = vmatprep.subr.mxu0 0.0
        %2558 = vmatpush1.msra.mxu0 0.0
        %2559 = vmatprep.subr.mxu0 0.0
        %2560 = vmatpush1.msra.mxu0 0.0
        %2561 = vmatprep.subr.mxu0 0.0
        %2562 = vmatpush1.msra.mxu0 0.0
        %2563 = vmatprep.subr.mxu0 0.0
        %2564 = vmatpush1.msra.mxu0 0.0
        %2565 = vmatprep.subr.mxu0 0.0
        %2566 = vmatpush1.msra.mxu0 0.0
        %2567 = vmatprep.subr.mxu0 0.0
        %2568 = vmatpush1.msra.mxu0 0.0
        %2569 = vmatprep.mubr.f32.mxu0 0.0
        %2570 = vmatmul.mubr.f32.gmra.mrb[0].mxu0 %v2503
        %v2571 = vpop.f32.mrb[0].mxu0
        %v2572 = vadd.f32 %v2500, %v2571
        %v2573 = vpop.f32.mrb[0].mxu0
        %2574 = vdwg.mxu0
        %v2575 = vmul.f32 %v2572, %v547
        %v2576 = vmul.f32 %v2575, 1.442695
        %v2577 = vpow.pop %v2576
        %v2579 = vrot.slane %v2577, 2
        %v2581 = vmul.f32 %v407, %v2579
        %v2582 = vmul.f32 %v2581, %v547
        %v2583 = vadd.f32 %v2575, %v2582
        %v2585 = vrot.slane %v2575, 2
        %vm2587 = vcmask 123904
        %v2588 = vsel %vm2587, %v2585, 0.0
        %v2589 = vrot.slane %v2588, 4
        %v2590 = vadd.f32 %v2588, %v2589
        %v2591 = vrot.slane %v2590, 2
        %v2592 = vadd.f32 %v2590, %v2591
        %v2593 = vrot.slane %v2592, 1
        %v2594 = vadd.f32 %v2592, %v2593
        %vm2595 = vcmask 130048
        %v2596 = vsel %vm2595, %v2594, 0.0
        %2597 = vadd.xlane.f32.xlu0 %v2596
        %v2598 = vpop.xlane.xlu0 %2597
        %v2599 = vadd.f32 %v2598, 0.0
        %s2600 = scalar_lea.vmem %s2, 32
        %v2601 = vld [vmem:[%s2600] sm:$0xff]
        %v2602 = vld [vmem:[%s2600 + $0x8] sm:$0xff]
        %v2603 = vld [vmem:[%s2600 + $0x10] sm:$0xff]
        %v2604 = vld [vmem:[%s2600 + $0x18] sm:$0xff]
        %s2605 = scalar_lea.vmem %s3, 32
        %v2606 = vld [vmem:[%s2605] sm:$0xff]
        %v2607 = vld [vmem:[%s2605 + $0x8] sm:$0xff]
        %v2608 = vld [vmem:[%s2605 + $0x10] sm:$0xff]
        %v2609 = vld [vmem:[%s2605 + $0x18] sm:$0xff]
        %2611 = vset.pattern.permute.xlu0 0
        %2612 = vperm.xlu0 %2611, %v2606
        %v2613 = vpop.permute.xlu0 %2612
        %2616 = vset.pattern.permute.xlu0 0
        %2617 = vperm.xlu0 %2616, %v2607
        %v2618 = vpop.permute.xlu0 %2617
        %2621 = vset.pattern.permute.xlu0 0
        %2622 = vperm.xlu0 %2621, %v2608
        %v2623 = vpop.permute.xlu0 %2622
        %2626 = vset.pattern.permute.xlu0 0
        %2627 = vperm.xlu0 %2626, %v2609
        %v2628 = vpop.permute.xlu0 %2627
        %v2631 = vsel %vm441, %v2601, 0
        %v2634 = vsel %vm441, %v2602, 0
        %v2637 = vsel %vm441, %v2603, 0
        %v2640 = vsel %vm441, %v2604, 0
        %v2643 = vsel %vm454, %v2583, 0
        %2645 = vmatprep.subr.mxu0 0.0
        %2646 = vmatpush1.msra.mxu0 %v2643
        %2647 = vmatprep.subr.mxu0 0.0
        %2648 = vmatpush1.msra.mxu0 0.0
        %2649 = vmatprep.subr.mxu0 0.0
        %2650 = vmatpush1.msra.mxu0 0.0
        %2651 = vmatprep.subr.mxu0 0.0
        %2652 = vmatpush1.msra.mxu0 0.0
        %2653 = vmatprep.subr.mxu0 0.0
        %2654 = vmatpush1.msra.mxu0 0.0
        %2655 = vmatprep.subr.mxu0 0.0
        %2656 = vmatpush1.msra.mxu0 0.0
        %2657 = vmatprep.subr.mxu0 0.0
        %2658 = vmatpush1.msra.mxu0 0.0
        %2659 = vmatprep.subr.mxu0 0.0
        %2660 = vmatpush1.msra.mxu0 0.0
        %2661 = vmatprep.subr.mxu0 0.0
        %2662 = vmatpush1.msra.mxu0 0.0
        %2663 = vmatprep.subr.mxu0 0.0
        %2664 = vmatpush1.msra.mxu0 0.0
        %2665 = vmatprep.subr.mxu0 0.0
        %2666 = vmatpush1.msra.mxu0 0.0
        %2667 = vmatprep.subr.mxu0 0.0
        %2668 = vmatpush1.msra.mxu0 0.0
        %2669 = vmatprep.subr.mxu0 0.0
        %2670 = vmatpush1.msra.mxu0 0.0
        %2671 = vmatprep.subr.mxu0 0.0
        %2672 = vmatpush1.msra.mxu0 0.0
        %2673 = vmatprep.subr.mxu0 0.0
        %2674 = vmatpush1.msra.mxu0 0.0
        %2675 = vmatprep.subr.mxu0 0.0
        %2676 = vmatpush1.msra.mxu0 0.0
        %2677 = vmatprep.subr.mxu0 0.0
        %2678 = vmatpush1.msra.mxu0 0.0
        %2679 = vmatprep.subr.mxu0 0.0
        %2680 = vmatpush1.msra.mxu0 0.0
        %2681 = vmatprep.subr.mxu0 0.0
        %2682 = vmatpush1.msra.mxu0 0.0
        %2683 = vmatprep.subr.mxu0 0.0
        %2684 = vmatpush1.msra.mxu0 0.0
        %2685 = vmatprep.subr.mxu0 0.0
        %2686 = vmatpush1.msra.mxu0 0.0
        %2687 = vmatprep.subr.mxu0 0.0
        %2688 = vmatpush1.msra.mxu0 0.0
        %2689 = vmatprep.subr.mxu0 0.0
        %2690 = vmatpush1.msra.mxu0 0.0
        %2691 = vmatprep.subr.mxu0 0.0
        %2692 = vmatpush1.msra.mxu0 0.0
        %2693 = vmatprep.subr.mxu0 0.0
        %2694 = vmatpush1.msra.mxu0 0.0
        %2695 = vmatprep.subr.mxu0 0.0
        %2696 = vmatpush1.msra.mxu0 0.0
        %2697 = vmatprep.subr.mxu0 0.0
        %2698 = vmatpush1.msra.mxu0 0.0
        %2699 = vmatprep.subr.mxu0 0.0
        %2700 = vmatpush1.msra.mxu0 0.0
        %2701 = vmatprep.subr.mxu0 0.0
        %2702 = vmatpush1.msra.mxu0 0.0
        %2703 = vmatprep.subr.mxu0 0.0
        %2704 = vmatpush1.msra.mxu0 0.0
        %2705 = vmatprep.subr.mxu0 0.0
        %2706 = vmatpush1.msra.mxu0 0.0
        %2707 = vmatprep.subr.mxu0 0.0
        %2708 = vmatpush1.msra.mxu0 0.0
        %2709 = vmatprep.mubr.f32.mxu0 0.0
        %2710 = vmatmul.mubr.f32.gmra.mrb[0].mxu0 %v2631
        %v2711 = vpop.f32.mrb[0].mxu0
        %v2712 = vadd.f32 %v2613, %v2711
        %v2713 = vpop.f32.mrb[0].mxu0
        %2714 = vmatprep.mubr.f32.mxu0 0.0
        %2715 = vmatmul.mubr.f32.gmra.mrb[0].mxu0 %v2634
        %v2716 = vpop.f32.mrb[0].mxu0
        %v2717 = vadd.f32 %v2618, %v2716
        %v2718 = vpop.f32.mrb[0].mxu0
        %2719 = vmatprep.mubr.f32.mxu0 0.0
        %2720 = vmatmul.mubr.f32.gmra.mrb[0].mxu0 %v2637
        %v2721 = vpop.f32.mrb[0].mxu0
        %v2722 = vadd.f32 %v2623, %v2721
        %v2723 = vpop.f32.mrb[0].mxu0
        %2724 = vmatprep.mubr.f32.mxu0 0.0
        %2725 = vmatmul.mubr.f32.gmra.mrb[0].mxu0 %v2640
        %v2726 = vpop.f32.mrb[0].mxu0
        %v2727 = vadd.f32 %v2628, %v2726
        %v2728 = vpop.f32.mrb[0].mxu0
        %2729 = vdwg.mxu0
        %v2730 = vmul.f32 %v2712, %v547
        %v2731 = vmul.f32 %v2717, %v547
        %v2732 = vmul.f32 %v2722, %v547
        %v2733 = vmul.f32 %v2727, %v547
        %2738 = vrot.lane.b32.xlu0 %v2730, 2
        %v2739 = vpop.permute.xlu0 %2738
        %2740 = vrot.lane.b32.xlu0 %v2731, 2
        %v2741 = vpop.permute.xlu0 %2740
        %2742 = vrot.lane.b32.xlu0 %v2732, 2
        %v2743 = vpop.permute.xlu0 %2742
        %2744 = vrot.lane.b32.xlu0 %v2733, 2
        %v2745 = vpop.permute.xlu0 %2744
        %2750 = vst.msk [vmem:[#allocation2] sm:$0xff] %vm569, %v2739
        %2751 = vst.msk [vmem:[#allocation2 + $0x8] sm:$0xff] %vm569, %v2741
        %2752 = vst.msk [vmem:[#allocation2 + $0x10] sm:$0xff] %vm569, %v2743
        %2753 = vst.msk [vmem:[#allocation2 + $0x18] sm:$0xff] %vm569, %v2745
        %v2754 = vld [vmem:[#allocation2] sm:$0xff]
        %v2755 = vld [vmem:[#allocation2 + $0x8] sm:$0xff]
        %v2756 = vld [vmem:[#allocation2 + $0x10] sm:$0xff]
        %v2757 = vld [vmem:[#allocation2 + $0x18] sm:$0xff]
        %2762 = vrot.lane.b32.xlu0 %v2754, 127
        %v2763 = vpop.permute.xlu0 %2762
        %2764 = vrot.lane.b32.xlu0 %v2755, 127
        %v2765 = vpop.permute.xlu0 %2764
        %2766 = vrot.lane.b32.xlu0 %v2756, 127
        %v2767 = vpop.permute.xlu0 %2766
        %2768 = vrot.lane.b32.xlu0 %v2757, 127
        %v2769 = vpop.permute.xlu0 %2768
        %2774 = vrot.lane.b32.xlu0 %v2754, 126
        %v2775 = vpop.permute.xlu0 %2774
        %2776 = vrot.lane.b32.xlu0 %v2755, 126
        %v2777 = vpop.permute.xlu0 %2776
        %2778 = vrot.lane.b32.xlu0 %v2756, 126
        %v2779 = vpop.permute.xlu0 %2778
        %2780 = vrot.lane.b32.xlu0 %v2757, 126
        %v2781 = vpop.permute.xlu0 %2780
        %2786 = vrot.lane.b32.xlu0 %v2754, 125
        %v2787 = vpop.permute.xlu0 %2786
        %2788 = vrot.lane.b32.xlu0 %v2755, 125
        %v2789 = vpop.permute.xlu0 %2788
        %2790 = vrot.lane.b32.xlu0 %v2756, 125
        %v2791 = vpop.permute.xlu0 %2790
        %2792 = vrot.lane.b32.xlu0 %v2757, 125
        %v2793 = vpop.permute.xlu0 %2792
        %2798 = vrot.lane.b32.xlu0 %v2754, 124
        %v2799 = vpop.permute.xlu0 %2798
        %2800 = vrot.lane.b32.xlu0 %v2755, 124
        %v2801 = vpop.permute.xlu0 %2800
        %2802 = vrot.lane.b32.xlu0 %v2756, 124
        %v2803 = vpop.permute.xlu0 %2802
        %2804 = vrot.lane.b32.xlu0 %v2757, 124
        %v2805 = vpop.permute.xlu0 %2804
        %s2810 = scalar_lea.vmem %s4, 512
        %v2811 = vld [vmem:[%s2810] sm:$0xff]
        %v2812 = vld [vmem:[%s2810 + $0x8] sm:$0xff]
        %v2813 = vld [vmem:[%s2810 + $0x10] sm:$0xff]
        %v2814 = vld [vmem:[%s2810 + $0x18] sm:$0xff]
        %v2815 = vld [vmem:[%s2810 + $0x20] sm:$0xff]
        %v2816 = vld [vmem:[%s2810 + $0x28] sm:$0xff]
        %v2817 = vld [vmem:[%s2810 + $0x30] sm:$0xff]
        %v2818 = vld [vmem:[%s2810 + $0x38] sm:$0xff]
        %v2819 = vld [vmem:[%s2810 + $0x40] sm:$0xff]
        %v2820 = vld [vmem:[%s2810 + $0x48] sm:$0xff]
        %v2821 = vld [vmem:[%s2810 + $0x50] sm:$0xff]
        %v2822 = vld [vmem:[%s2810 + $0x58] sm:$0xff]
        %v2823 = vld [vmem:[%s2810 + $0x60] sm:$0xff]
        %v2824 = vld [vmem:[%s2810 + $0x68] sm:$0xff]
        %v2825 = vld [vmem:[%s2810 + $0x70] sm:$0xff]
        %v2826 = vld [vmem:[%s2810 + $0x78] sm:$0xff]
        %s2827 = scalar_lea.vmem %s5, 256
        %v2828 = vld [vmem:[%s2827] sm:$0xff]
        %v2829 = vld [vmem:[%s2827 + $0x8] sm:$0xff]
        %v2830 = vld [vmem:[%s2827 + $0x10] sm:$0xff]
        %v2831 = vld [vmem:[%s2827 + $0x18] sm:$0xff]
        %v2832 = vld [vmem:[%s2827 + $0x20] sm:$0xff]
        %v2833 = vld [vmem:[%s2827 + $0x28] sm:$0xff]
        %v2834 = vld [vmem:[%s2827 + $0x30] sm:$0xff]
        %v2835 = vld [vmem:[%s2827 + $0x38] sm:$0xff]
        %2837 = vset.pattern.permute.xlu0 0
        %2838 = vperm.xlu0 %2837, %v2828
        %v2839 = vpop.permute.xlu0 %2838
        %2842 = vset.pattern.permute.xlu0 0
        %2843 = vperm.xlu0 %2842, %v2829
        %v2844 = vpop.permute.xlu0 %2843
        %2847 = vset.pattern.permute.xlu0 0
        %2848 = vperm.xlu0 %2847, %v2830
        %v2849 = vpop.permute.xlu0 %2848
        %2852 = vset.pattern.permute.xlu0 0
        %2853 = vperm.xlu0 %2852, %v2831
        %v2854 = vpop.permute.xlu0 %2853
        %2857 = vset.pattern.permute.xlu0 0
        %2858 = vperm.xlu0 %2857, %v2832
        %v2859 = vpop.permute.xlu0 %2858
        %2862 = vset.pattern.permute.xlu0 0
        %2863 = vperm.xlu0 %2862, %v2833
        %v2864 = vpop.permute.xlu0 %2863
        %2867 = vset.pattern.permute.xlu0 0
        %2868 = vperm.xlu0 %2867, %v2834
        %v2869 = vpop.permute.xlu0 %2868
        %2872 = vset.pattern.permute.xlu0 0
        %2873 = vperm.xlu0 %2872, %v2835
        %v2874 = vpop.permute.xlu0 %2873
        %v2877 = vsel %vm694, %v2812, 0
        %v2880 = vsel %vm694, %v2814, 0
        %v2883 = vsel %vm694, %v2816, 0
        %v2886 = vsel %vm694, %v2818, 0
        %v2889 = vsel %vm694, %v2820, 0
        %v2892 = vsel %vm694, %v2822, 0
        %v2895 = vsel %vm694, %v2824, 0
        %v2898 = vsel %vm694, %v2826, 0
        %2900 = vmatprep.subr.mxu0 0.0
        %2901 = vmatpush1.msra.mxu0 %v2754
        %2902 = vmatprep.subr.mxu0 0.0
        %2903 = vmatpush1.msra.mxu0 %v2755
        %2904 = vmatprep.subr.mxu0 0.0
        %2905 = vmatpush1.msra.mxu0 %v2756
        %2906 = vmatprep.subr.mxu0 0.0
        %2907 = vmatpush1.msra.mxu0 %v2757
        %2908 = vmatprep.subr.mxu0 0.0
        %2909 = vmatpush1.msra.mxu0 %v2763
        %2910 = vmatprep.subr.mxu0 0.0
        %2911 = vmatpush1.msra.mxu0 %v2765
        %2912 = vmatprep.subr.mxu0 0.0
        %2913 = vmatpush1.msra.mxu0 %v2767
        %2914 = vmatprep.subr.mxu0 0.0
        %2915 = vmatpush1.msra.mxu0 %v2769
        %2916 = vmatprep.subr.mxu0 0.0
        %2917 = vmatpush1.msra.mxu0 %v2775
        %2918 = vmatprep.subr.mxu0 0.0
        %2919 = vmatpush1.msra.mxu0 %v2777
        %2920 = vmatprep.subr.mxu0 0.0
        %2921 = vmatpush1.msra.mxu0 %v2779
        %2922 = vmatprep.subr.mxu0 0.0
        %2923 = vmatpush1.msra.mxu0 %v2781
        %2924 = vmatprep.subr.mxu0 0.0
        %2925 = vmatpush1.msra.mxu0 %v2787
        %2926 = vmatprep.subr.mxu0 0.0
        %2927 = vmatpush1.msra.mxu0 %v2789
        %2928 = vmatprep.subr.mxu0 0.0
        %2929 = vmatpush1.msra.mxu0 %v2791
        %2930 = vmatprep.subr.mxu0 0.0
        %2931 = vmatpush1.msra.mxu0 %v2793
        %2932 = vmatprep.subr.mxu0 0.0
        %2933 = vmatpush1.msra.mxu0 %v2799
        %2934 = vmatprep.subr.mxu0 0.0
        %2935 = vmatpush1.msra.mxu0 %v2801
        %2936 = vmatprep.subr.mxu0 0.0
        %2937 = vmatpush1.msra.mxu0 %v2803
        %2938 = vmatprep.subr.mxu0 0.0
        %2939 = vmatpush1.msra.mxu0 %v2805
        %2940 = vmatprep.subr.mxu0 0.0
        %2941 = vmatpush1.msra.mxu0 0.0
        %2942 = vmatprep.subr.mxu0 0.0
        %2943 = vmatpush1.msra.mxu0 0.0
        %2944 = vmatprep.subr.mxu0 0.0
        %2945 = vmatpush1.msra.mxu0 0.0
        %2946 = vmatprep.subr.mxu0 0.0
        %2947 = vmatpush1.msra.mxu0 0.0
        %2948 = vmatprep.subr.mxu0 0.0
        %2949 = vmatpush1.msra.mxu0 0.0
        %2950 = vmatprep.subr.mxu0 0.0
        %2951 = vmatpush1.msra.mxu0 0.0
        %2952 = vmatprep.subr.mxu0 0.0
        %2953 = vmatpush1.msra.mxu0 0.0
        %2954 = vmatprep.subr.mxu0 0.0
        %2955 = vmatpush1.msra.mxu0 0.0
        %2956 = vmatprep.subr.mxu0 0.0
        %2957 = vmatpush1.msra.mxu0 0.0
        %2958 = vmatprep.subr.mxu0 0.0
        %2959 = vmatpush1.msra.mxu0 0.0
        %2960 = vmatprep.subr.mxu0 0.0
        %2961 = vmatpush1.msra.mxu0 0.0
        %2962 = vmatprep.subr.mxu0 0.0
        %2963 = vmatpush1.msra.mxu0 0.0
        %2964 = vmatprep.mubr.f32.mxu0 %v2877
        %2965 = vmatmul.mubr.f32.gmra.mrb[0].mxu0 %v2811
        %v2966 = vpop.f32.mrb[0].mxu0
        %v2967 = vadd.f32 %v2839, %v2966
        %v2968 = vpop.f32.mrb[0].mxu0
        %2969 = vmatprep.mubr.f32.mxu0 %v2880
        %2970 = vmatmul.mubr.f32.gmra.mrb[0].mxu0 %v2813
        %v2971 = vpop.f32.mrb[0].mxu0
        %v2972 = vadd.f32 %v2844, %v2971
        %v2973 = vpop.f32.mrb[0].mxu0
        %2974 = vmatprep.mubr.f32.mxu0 %v2883
        %2975 = vmatmul.mubr.f32.gmra.mrb[0].mxu0 %v2815
        %v2976 = vpop.f32.mrb[0].mxu0
        %v2977 = vadd.f32 %v2849, %v2976
        %v2978 = vpop.f32.mrb[0].mxu0
        %2979 = vmatprep.mubr.f32.mxu0 %v2886
        %2980 = vmatmul.mubr.f32.gmra.mrb[0].mxu0 %v2817
        %v2981 = vpop.f32.mrb[0].mxu0
        %v2982 = vadd.f32 %v2854, %v2981
        %v2983 = vpop.f32.mrb[0].mxu0
        %2984 = vmatprep.mubr.f32.mxu0 %v2889
        %2985 = vmatmul.mubr.f32.gmra.mrb[0].mxu0 %v2819
        %v2986 = vpop.f32.mrb[0].mxu0
        %v2987 = vadd.f32 %v2859, %v2986
        %v2988 = vpop.f32.mrb[0].mxu0
        %2989 = vmatprep.mubr.f32.mxu0 %v2892
        %2990 = vmatmul.mubr.f32.gmra.mrb[0].mxu0 %v2821
        %v2991 = vpop.f32.mrb[0].mxu0
        %v2992 = vadd.f32 %v2864, %v2991
        %v2993 = vpop.f32.mrb[0].mxu0
        %2994 = vmatprep.mubr.f32.mxu0 %v2895
        %2995 = vmatmul.mubr.f32.gmra.mrb[0].mxu0 %v2823
        %v2996 = vpop.f32.mrb[0].mxu0
        %v2997 = vadd.f32 %v2869, %v2996
        %v2998 = vpop.f32.mrb[0].mxu0
        %2999 = vmatprep.mubr.f32.mxu0 %v2898
        %3000 = vmatmul.mubr.f32.gmra.mrb[0].mxu0 %v2825
        %v3001 = vpop.f32.mrb[0].mxu0
        %v3002 = vadd.f32 %v2874, %v3001
        %v3003 = vpop.f32.mrb[0].mxu0
        %3004 = vdwg.mxu0
        %v3005 = vtanh.pop %v2967
        %v3006 = vtanh.pop %v2972
        %v3007 = vtanh.pop %v2977
        %v3008 = vtanh.pop %v2982
        %v3009 = vxor.u32 %v2987, 2147483648
        %v3010 = vxor.u32 %v2992, 2147483648
        %v3011 = vxor.u32 %v2997, 2147483648
        %v3012 = vxor.u32 %v3002, 2147483648
        %v3013 = vmul.f32 %v3009, 1.442695
        %v3014 = vpow.pop %v3013
        %v3015 = vmul.f32 %v3010, 1.442695
        %v3016 = vpow.pop %v3015
        %v3017 = vmul.f32 %v3011, 1.442695
        %v3018 = vpow.pop %v3017
        %v3019 = vmul.f32 %v3012, 1.442695
        %v3020 = vpow.pop %v3019
        %v3021 = vadd.f32 %v3014, 1.0
        %v3022 = vadd.f32 %v3016, 1.0
        %v3023 = vadd.f32 %v3018, 1.0
        %v3024 = vadd.f32 %v3020, 1.0
        %v3025 = vrcp.pop %v3021
        %v3026 = vmul.f32 1.0, %v3025
        %v3027 = vrcp.pop %v3022
        %v3028 = vmul.f32 1.0, %v3027
        %v3029 = vrcp.pop %v3023
        %v3030 = vmul.f32 1.0, %v3029
        %v3031 = vrcp.pop %v3024
        %v3032 = vmul.f32 1.0, %v3031
        %v3033 = vmul.f32 %v3005, %v3026
        %v3034 = vmul.f32 %v3006, %v3028
        %v3035 = vmul.f32 %v3007, %v3030
        %v3036 = vmul.f32 %v3008, %v3032
        %s3037 = scalar_lea.vmem %s6, 256
        %v3038 = vld [vmem:[%s3037] sm:$0xff]
        %v3039 = vld [vmem:[%s3037 + $0x8] sm:$0xff]
        %v3040 = vld [vmem:[%s3037 + $0x10] sm:$0xff]
        %v3041 = vld [vmem:[%s3037 + $0x18] sm:$0xff]
        %v3042 = vld [vmem:[%s3037 + $0x20] sm:$0xff]
        %v3043 = vld [vmem:[%s3037 + $0x28] sm:$0xff]
        %v3044 = vld [vmem:[%s3037 + $0x30] sm:$0xff]
        %v3045 = vld [vmem:[%s3037 + $0x38] sm:$0xff]
        %s3046 = scalar_lea.vmem %s7, 256
        %v3047 = vld [vmem:[%s3046] sm:$0xff]
        %v3048 = vld [vmem:[%s3046 + $0x8] sm:$0xff]
        %v3049 = vld [vmem:[%s3046 + $0x10] sm:$0xff]
        %v3050 = vld [vmem:[%s3046 + $0x18] sm:$0xff]
        %v3051 = vld [vmem:[%s3046 + $0x20] sm:$0xff]
        %v3052 = vld [vmem:[%s3046 + $0x28] sm:$0xff]
        %v3053 = vld [vmem:[%s3046 + $0x30] sm:$0xff]
        %v3054 = vld [vmem:[%s3046 + $0x38] sm:$0xff]
        %3056 = vset.pattern.permute.xlu0 0
        %3057 = vperm.xlu0 %3056, %v3047
        %v3058 = vpop.permute.xlu0 %3057
        %3061 = vset.pattern.permute.xlu0 0
        %3062 = vperm.xlu0 %3061, %v3048
        %v3063 = vpop.permute.xlu0 %3062
        %3066 = vset.pattern.permute.xlu0 0
        %3067 = vperm.xlu0 %3066, %v3049
        %v3068 = vpop.permute.xlu0 %3067
        %3071 = vset.pattern.permute.xlu0 0
        %3072 = vperm.xlu0 %3071, %v3050
        %v3073 = vpop.permute.xlu0 %3072
        %3076 = vset.pattern.permute.xlu0 0
        %3077 = vperm.xlu0 %3076, %v3051
        %v3078 = vpop.permute.xlu0 %3077
        %3081 = vset.pattern.permute.xlu0 0
        %3082 = vperm.xlu0 %3081, %v3052
        %v3083 = vpop.permute.xlu0 %3082
        %3086 = vset.pattern.permute.xlu0 0
        %3087 = vperm.xlu0 %3086, %v3053
        %v3088 = vpop.permute.xlu0 %3087
        %3091 = vset.pattern.permute.xlu0 0
        %3092 = vperm.xlu0 %3091, %v3054
        %v3093 = vpop.permute.xlu0 %3092
        %v3096 = vsel %vm694, %v3038, 0
        %v3099 = vsel %vm694, %v3039, 0
        %v3102 = vsel %vm694, %v3040, 0
        %v3105 = vsel %vm694, %v3041, 0
        %v3108 = vsel %vm694, %v3042, 0
        %v3111 = vsel %vm694, %v3043, 0
        %v3114 = vsel %vm694, %v3044, 0
        %v3117 = vsel %vm694, %v3045, 0
        %3119 = vmatprep.subr.mxu0 0.0
        %3120 = vmatpush1.msra.mxu0 %v3033
        %3121 = vmatprep.subr.mxu0 0.0
        %3122 = vmatpush1.msra.mxu0 %v3034
        %3123 = vmatprep.subr.mxu0 0.0
        %3124 = vmatpush1.msra.mxu0 %v3035
        %3125 = vmatprep.subr.mxu0 0.0
        %3126 = vmatpush1.msra.mxu0 %v3036
        %3127 = vmatprep.subr.mxu0 0.0
        %3128 = vmatpush1.msra.mxu0 0.0
        %3129 = vmatprep.subr.mxu0 0.0
        %3130 = vmatpush1.msra.mxu0 0.0
        %3131 = vmatprep.subr.mxu0 0.0
        %3132 = vmatpush1.msra.mxu0 0.0
        %3133 = vmatprep.subr.mxu0 0.0
        %3134 = vmatpush1.msra.mxu0 0.0
        %3135 = vmatprep.subr.mxu0 0.0
        %3136 = vmatpush1.msra.mxu0 0.0
        %3137 = vmatprep.subr.mxu0 0.0
        %3138 = vmatpush1.msra.mxu0 0.0
        %3139 = vmatprep.subr.mxu0 0.0
        %3140 = vmatpush1.msra.mxu0 0.0
        %3141 = vmatprep.subr.mxu0 0.0
        %3142 = vmatpush1.msra.mxu0 0.0
        %3143 = vmatprep.subr.mxu0 0.0
        %3144 = vmatpush1.msra.mxu0 0.0
        %3145 = vmatprep.subr.mxu0 0.0
        %3146 = vmatpush1.msra.mxu0 0.0
        %3147 = vmatprep.subr.mxu0 0.0
        %3148 = vmatpush1.msra.mxu0 0.0
        %3149 = vmatprep.subr.mxu0 0.0
        %3150 = vmatpush1.msra.mxu0 0.0
        %3151 = vmatprep.subr.mxu0 0.0
        %3152 = vmatpush1.msra.mxu0 0.0
        %3153 = vmatprep.subr.mxu0 0.0
        %3154 = vmatpush1.msra.mxu0 0.0
        %3155 = vmatprep.subr.mxu0 0.0
        %3156 = vmatpush1.msra.mxu0 0.0
        %3157 = vmatprep.subr.mxu0 0.0
        %3158 = vmatpush1.msra.mxu0 0.0
        %3159 = vmatprep.subr.mxu0 0.0
        %3160 = vmatpush1.msra.mxu0 0.0
        %3161 = vmatprep.subr.mxu0 0.0
        %3162 = vmatpush1.msra.mxu0 0.0
        %3163 = vmatprep.subr.mxu0 0.0
        %3164 = vmatpush1.msra.mxu0 0.0
        %3165 = vmatprep.subr.mxu0 0.0
        %3166 = vmatpush1.msra.mxu0 0.0
        %3167 = vmatprep.subr.mxu0 0.0
        %3168 = vmatpush1.msra.mxu0 0.0
        %3169 = vmatprep.subr.mxu0 0.0
        %3170 = vmatpush1.msra.mxu0 0.0
        %3171 = vmatprep.subr.mxu0 0.0
        %3172 = vmatpush1.msra.mxu0 0.0
        %3173 = vmatprep.subr.mxu0 0.0
        %3174 = vmatpush1.msra.mxu0 0.0
        %3175 = vmatprep.subr.mxu0 0.0
        %3176 = vmatpush1.msra.mxu0 0.0
        %3177 = vmatprep.subr.mxu0 0.0
        %3178 = vmatpush1.msra.mxu0 0.0
        %3179 = vmatprep.subr.mxu0 0.0
        %3180 = vmatpush1.msra.mxu0 0.0
        %3181 = vmatprep.subr.mxu0 0.0
        %3182 = vmatpush1.msra.mxu0 0.0
        %3183 = vmatprep.mubr.f32.mxu0 0.0
        %3184 = vmatmul.mubr.f32.gmra.mrb[0].mxu0 %v3096
        %v3185 = vpop.f32.mrb[0].mxu0
        %v3186 = vadd.f32 %v3058, %v3185
        %v3187 = vpop.f32.mrb[0].mxu0
        %3188 = vmatprep.mubr.f32.mxu0 0.0
        %3189 = vmatmul.mubr.f32.gmra.mrb[0].mxu0 %v3099
        %v3190 = vpop.f32.mrb[0].mxu0
        %v3191 = vadd.f32 %v3063, %v3190
        %v3192 = vpop.f32.mrb[0].mxu0
        %3193 = vmatprep.mubr.f32.mxu0 0.0
        %3194 = vmatmul.mubr.f32.gmra.mrb[0].mxu0 %v3102
        %v3195 = vpop.f32.mrb[0].mxu0
        %v3196 = vadd.f32 %v3068, %v3195
        %v3197 = vpop.f32.mrb[0].mxu0
        %3198 = vmatprep.mubr.f32.mxu0 0.0
        %3199 = vmatmul.mubr.f32.gmra.mrb[0].mxu0 %v3105
        %v3200 = vpop.f32.mrb[0].mxu0
        %v3201 = vadd.f32 %v3073, %v3200
        %v3202 = vpop.f32.mrb[0].mxu0
        %3203 = vmatprep.mubr.f32.mxu0 0.0
        %3204 = vmatmul.mubr.f32.gmra.mrb[0].mxu0 %v3108
        %v3205 = vpop.f32.mrb[0].mxu0
        %v3206 = vadd.f32 %v3078, %v3205
        %v3207 = vpop.f32.mrb[0].mxu0
        %3208 = vmatprep.mubr.f32.mxu0 0.0
        %3209 = vmatmul.mubr.f32.gmra.mrb[0].mxu0 %v3111
        %v3210 = vpop.f32.mrb[0].mxu0
        %v3211 = vadd.f32 %v3083, %v3210
        %v3212 = vpop.f32.mrb[0].mxu0
        %3213 = vmatprep.mubr.f32.mxu0 0.0
        %3214 = vmatmul.mubr.f32.gmra.mrb[0].mxu0 %v3114
        %v3215 = vpop.f32.mrb[0].mxu0
        %v3216 = vadd.f32 %v3088, %v3215
        %v3217 = vpop.f32.mrb[0].mxu0
        %3218 = vmatprep.mubr.f32.mxu0 0.0
        %3219 = vmatmul.mubr.f32.gmra.mrb[0].mxu0 %v3117
        %v3220 = vpop.f32.mrb[0].mxu0
        %v3221 = vadd.f32 %v3093, %v3220
        %v3222 = vpop.f32.mrb[0].mxu0
        %3223 = vdwg.mxu0
        %v3224 = vadd.f32 %v2730, %v3186
        %v3225 = vadd.f32 %v2731, %v3191
        %v3226 = vadd.f32 %v2732, %v3196
        %v3227 = vadd.f32 %v2733, %v3201
        %v3228 = vmul.f32 %v3224, %v547
        %v3229 = vmul.f32 %v3225, %v547
        %v3230 = vmul.f32 %v3226, %v547
        %v3231 = vmul.f32 %v3227, %v547
        %v3232 = vadd.f32 %v3206, 0.0
        %v3233 = vadd.f32 %v3211, 0.0
        %v3234 = vadd.f32 %v3216, 0.0
        %v3235 = vadd.f32 %v3221, 0.0
        %3240 = vrot.lane.b32.xlu0 %v3228, 2
        %v3241 = vpop.permute.xlu0 %3240
        %3242 = vrot.lane.b32.xlu0 %v3229, 2
        %v3243 = vpop.permute.xlu0 %3242
        %3244 = vrot.lane.b32.xlu0 %v3230, 2
        %v3245 = vpop.permute.xlu0 %3244
        %3246 = vrot.lane.b32.xlu0 %v3231, 2
        %v3247 = vpop.permute.xlu0 %3246
        %3252 = vst.msk [vmem:[#allocation2] sm:$0xff] %vm569, %v3241
        %3253 = vst.msk [vmem:[#allocation2 + $0x8] sm:$0xff] %vm569, %v3243
        %3254 = vst.msk [vmem:[#allocation2 + $0x10] sm:$0xff] %vm569, %v3245
        %3255 = vst.msk [vmem:[#allocation2 + $0x18] sm:$0xff] %vm569, %v3247
        %v3256 = vld [vmem:[#allocation2] sm:$0xff]
        %v3257 = vld [vmem:[#allocation2 + $0x8] sm:$0xff]
        %v3258 = vld [vmem:[#allocation2 + $0x10] sm:$0xff]
        %v3259 = vld [vmem:[#allocation2 + $0x18] sm:$0xff]
        %3264 = vrot.lane.b32.xlu0 %v3256, 127
        %v3265 = vpop.permute.xlu0 %3264
        %3266 = vrot.lane.b32.xlu0 %v3257, 127
        %v3267 = vpop.permute.xlu0 %3266
        %3268 = vrot.lane.b32.xlu0 %v3258, 127
        %v3269 = vpop.permute.xlu0 %3268
        %3270 = vrot.lane.b32.xlu0 %v3259, 127
        %v3271 = vpop.permute.xlu0 %3270
        %3276 = vrot.lane.b32.xlu0 %v3256, 126
        %v3277 = vpop.permute.xlu0 %3276
        %3278 = vrot.lane.b32.xlu0 %v3257, 126
        %v3279 = vpop.permute.xlu0 %3278
        %3280 = vrot.lane.b32.xlu0 %v3258, 126
        %v3281 = vpop.permute.xlu0 %3280
        %3282 = vrot.lane.b32.xlu0 %v3259, 126
        %v3283 = vpop.permute.xlu0 %3282
        %3288 = vrot.lane.b32.xlu0 %v3256, 125
        %v3289 = vpop.permute.xlu0 %3288
        %3290 = vrot.lane.b32.xlu0 %v3257, 125
        %v3291 = vpop.permute.xlu0 %3290
        %3292 = vrot.lane.b32.xlu0 %v3258, 125
        %v3293 = vpop.permute.xlu0 %3292
        %3294 = vrot.lane.b32.xlu0 %v3259, 125
        %v3295 = vpop.permute.xlu0 %3294
        %3300 = vrot.lane.b32.xlu0 %v3256, 124
        %v3301 = vpop.permute.xlu0 %3300
        %3302 = vrot.lane.b32.xlu0 %v3257, 124
        %v3303 = vpop.permute.xlu0 %3302
        %3304 = vrot.lane.b32.xlu0 %v3258, 124
        %v3305 = vpop.permute.xlu0 %3304
        %3306 = vrot.lane.b32.xlu0 %v3259, 124
        %v3307 = vpop.permute.xlu0 %3306
        %s3312 = scalar_lea.vmem %s4, 640
        %v3313 = vld [vmem:[%s3312] sm:$0xff]
        %v3314 = vld [vmem:[%s3312 + $0x8] sm:$0xff]
        %v3315 = vld [vmem:[%s3312 + $0x10] sm:$0xff]
        %v3316 = vld [vmem:[%s3312 + $0x18] sm:$0xff]
        %v3317 = vld [vmem:[%s3312 + $0x20] sm:$0xff]
        %v3318 = vld [vmem:[%s3312 + $0x28] sm:$0xff]
        %v3319 = vld [vmem:[%s3312 + $0x30] sm:$0xff]
        %v3320 = vld [vmem:[%s3312 + $0x38] sm:$0xff]
        %v3321 = vld [vmem:[%s3312 + $0x40] sm:$0xff]
        %v3322 = vld [vmem:[%s3312 + $0x48] sm:$0xff]
        %v3323 = vld [vmem:[%s3312 + $0x50] sm:$0xff]
        %v3324 = vld [vmem:[%s3312 + $0x58] sm:$0xff]
        %v3325 = vld [vmem:[%s3312 + $0x60] sm:$0xff]
        %v3326 = vld [vmem:[%s3312 + $0x68] sm:$0xff]
        %v3327 = vld [vmem:[%s3312 + $0x70] sm:$0xff]
        %v3328 = vld [vmem:[%s3312 + $0x78] sm:$0xff]
        %s3329 = scalar_lea.vmem %s5, 320
        %v3330 = vld [vmem:[%s3329] sm:$0xff]
        %v3331 = vld [vmem:[%s3329 + $0x8] sm:$0xff]
        %v3332 = vld [vmem:[%s3329 + $0x10] sm:$0xff]
        %v3333 = vld [vmem:[%s3329 + $0x18] sm:$0xff]
        %v3334 = vld [vmem:[%s3329 + $0x20] sm:$0xff]
        %v3335 = vld [vmem:[%s3329 + $0x28] sm:$0xff]
        %v3336 = vld [vmem:[%s3329 + $0x30] sm:$0xff]
        %v3337 = vld [vmem:[%s3329 + $0x38] sm:$0xff]
        %3339 = vset.pattern.permute.xlu0 0
        %3340 = vperm.xlu0 %3339, %v3330
        %v3341 = vpop.permute.xlu0 %3340
        %3344 = vset.pattern.permute.xlu0 0
        %3345 = vperm.xlu0 %3344, %v3331
        %v3346 = vpop.permute.xlu0 %3345
        %3349 = vset.pattern.permute.xlu0 0
        %3350 = vperm.xlu0 %3349, %v3332
        %v3351 = vpop.permute.xlu0 %3350
        %3354 = vset.pattern.permute.xlu0 0
        %3355 = vperm.xlu0 %3354, %v3333
        %v3356 = vpop.permute.xlu0 %3355
        %3359 = vset.pattern.permute.xlu0 0
        %3360 = vperm.xlu0 %3359, %v3334
        %v3361 = vpop.permute.xlu0 %3360
        %3364 = vset.pattern.permute.xlu0 0
        %3365 = vperm.xlu0 %3364, %v3335
        %v3366 = vpop.permute.xlu0 %3365
        %3369 = vset.pattern.permute.xlu0 0
        %3370 = vperm.xlu0 %3369, %v3336
        %v3371 = vpop.permute.xlu0 %3370
        %3374 = vset.pattern.permute.xlu0 0
        %3375 = vperm.xlu0 %3374, %v3337
        %v3376 = vpop.permute.xlu0 %3375
        %v3379 = vsel %vm694, %v3314, 0
        %v3382 = vsel %vm694, %v3316, 0
        %v3385 = vsel %vm694, %v3318, 0
        %v3388 = vsel %vm694, %v3320, 0
        %v3391 = vsel %vm694, %v3322, 0
        %v3394 = vsel %vm694, %v3324, 0
        %v3397 = vsel %vm694, %v3326, 0
        %v3400 = vsel %vm694, %v3328, 0
        %3402 = vmatprep.subr.mxu0 0.0
        %3403 = vmatpush1.msra.mxu0 %v3256
        %3404 = vmatprep.subr.mxu0 0.0
        %3405 = vmatpush1.msra.mxu0 %v3257
        %3406 = vmatprep.subr.mxu0 0.0
        %3407 = vmatpush1.msra.mxu0 %v3258
        %3408 = vmatprep.subr.mxu0 0.0
        %3409 = vmatpush1.msra.mxu0 %v3259
        %3410 = vmatprep.subr.mxu0 0.0
        %3411 = vmatpush1.msra.mxu0 %v3265
        %3412 = vmatprep.subr.mxu0 0.0
        %3413 = vmatpush1.msra.mxu0 %v3267
        %3414 = vmatprep.subr.mxu0 0.0
        %3415 = vmatpush1.msra.mxu0 %v3269
        %3416 = vmatprep.subr.mxu0 0.0
        %3417 = vmatpush1.msra.mxu0 %v3271
        %3418 = vmatprep.subr.mxu0 0.0
        %3419 = vmatpush1.msra.mxu0 %v3277
        %3420 = vmatprep.subr.mxu0 0.0
        %3421 = vmatpush1.msra.mxu0 %v3279
        %3422 = vmatprep.subr.mxu0 0.0
        %3423 = vmatpush1.msra.mxu0 %v3281
        %3424 = vmatprep.subr.mxu0 0.0
        %3425 = vmatpush1.msra.mxu0 %v3283
        %3426 = vmatprep.subr.mxu0 0.0
        %3427 = vmatpush1.msra.mxu0 %v3289
        %3428 = vmatprep.subr.mxu0 0.0
        %3429 = vmatpush1.msra.mxu0 %v3291
        %3430 = vmatprep.subr.mxu0 0.0
        %3431 = vmatpush1.msra.mxu0 %v3293
        %3432 = vmatprep.subr.mxu0 0.0
        %3433 = vmatpush1.msra.mxu0 %v3295
        %3434 = vmatprep.subr.mxu0 0.0
        %3435 = vmatpush1.msra.mxu0 %v3301
        %3436 = vmatprep.subr.mxu0 0.0
        %3437 = vmatpush1.msra.mxu0 %v3303
        %3438 = vmatprep.subr.mxu0 0.0
        %3439 = vmatpush1.msra.mxu0 %v3305
        %3440 = vmatprep.subr.mxu0 0.0
        %3441 = vmatpush1.msra.mxu0 %v3307
        %3442 = vmatprep.subr.mxu0 0.0
        %3443 = vmatpush1.msra.mxu0 0.0
        %3444 = vmatprep.subr.mxu0 0.0
        %3445 = vmatpush1.msra.mxu0 0.0
        %3446 = vmatprep.subr.mxu0 0.0
        %3447 = vmatpush1.msra.mxu0 0.0
        %3448 = vmatprep.subr.mxu0 0.0
        %3449 = vmatpush1.msra.mxu0 0.0
        %3450 = vmatprep.subr.mxu0 0.0
        %3451 = vmatpush1.msra.mxu0 0.0
        %3452 = vmatprep.subr.mxu0 0.0
        %3453 = vmatpush1.msra.mxu0 0.0
        %3454 = vmatprep.subr.mxu0 0.0
        %3455 = vmatpush1.msra.mxu0 0.0
        %3456 = vmatprep.subr.mxu0 0.0
        %3457 = vmatpush1.msra.mxu0 0.0
        %3458 = vmatprep.subr.mxu0 0.0
        %3459 = vmatpush1.msra.mxu0 0.0
        %3460 = vmatprep.subr.mxu0 0.0
        %3461 = vmatpush1.msra.mxu0 0.0
        %3462 = vmatprep.subr.mxu0 0.0
        %3463 = vmatpush1.msra.mxu0 0.0
        %3464 = vmatprep.subr.mxu0 0.0
        %3465 = vmatpush1.msra.mxu0 0.0
        %3466 = vmatprep.mubr.f32.mxu0 %v3379
        %3467 = vmatmul.mubr.f32.gmra.mrb[0].mxu0 %v3313
        %v3468 = vpop.f32.mrb[0].mxu0
        %v3469 = vadd.f32 %v3341, %v3468
        %v3470 = vpop.f32.mrb[0].mxu0
        %3471 = vmatprep.mubr.f32.mxu0 %v3382
        %3472 = vmatmul.mubr.f32.gmra.mrb[0].mxu0 %v3315
        %v3473 = vpop.f32.mrb[0].mxu0
        %v3474 = vadd.f32 %v3346, %v3473
        %v3475 = vpop.f32.mrb[0].mxu0
        %3476 = vmatprep.mubr.f32.mxu0 %v3385
        %3477 = vmatmul.mubr.f32.gmra.mrb[0].mxu0 %v3317
        %v3478 = vpop.f32.mrb[0].mxu0
        %v3479 = vadd.f32 %v3351, %v3478
        %v3480 = vpop.f32.mrb[0].mxu0
        %3481 = vmatprep.mubr.f32.mxu0 %v3388
        %3482 = vmatmul.mubr.f32.gmra.mrb[0].mxu0 %v3319
        %v3483 = vpop.f32.mrb[0].mxu0
        %v3484 = vadd.f32 %v3356, %v3483
        %v3485 = vpop.f32.mrb[0].mxu0
        %3486 = vmatprep.mubr.f32.mxu0 %v3391
        %3487 = vmatmul.mubr.f32.gmra.mrb[0].mxu0 %v3321
        %v3488 = vpop.f32.mrb[0].mxu0
        %v3489 = vadd.f32 %v3361, %v3488
        %v3490 = vpop.f32.mrb[0].mxu0
        %3491 = vmatprep.mubr.f32.mxu0 %v3394
        %3492 = vmatmul.mubr.f32.gmra.mrb[0].mxu0 %v3323
        %v3493 = vpop.f32.mrb[0].mxu0
        %v3494 = vadd.f32 %v3366, %v3493
        %v3495 = vpop.f32.mrb[0].mxu0
        %3496 = vmatprep.mubr.f32.mxu0 %v3397
        %3497 = vmatmul.mubr.f32.gmra.mrb[0].mxu0 %v3325
        %v3498 = vpop.f32.mrb[0].mxu0
        %v3499 = vadd.f32 %v3371, %v3498
        %v3500 = vpop.f32.mrb[0].mxu0
        %3501 = vmatprep.mubr.f32.mxu0 %v3400
        %3502 = vmatmul.mubr.f32.gmra.mrb[0].mxu0 %v3327
        %v3503 = vpop.f32.mrb[0].mxu0
        %v3504 = vadd.f32 %v3376, %v3503
        %v3505 = vpop.f32.mrb[0].mxu0
        %3506 = vdwg.mxu0
        %v3507 = vtanh.pop %v3469
        %v3508 = vtanh.pop %v3474
        %v3509 = vtanh.pop %v3479
        %v3510 = vtanh.pop %v3484
        %v3511 = vxor.u32 %v3489, 2147483648
        %v3512 = vxor.u32 %v3494, 2147483648
        %v3513 = vxor.u32 %v3499, 2147483648
        %v3514 = vxor.u32 %v3504, 2147483648
        %v3515 = vmul.f32 %v3511, 1.442695
        %v3516 = vpow.pop %v3515
        %v3517 = vmul.f32 %v3512, 1.442695
        %v3518 = vpow.pop %v3517
        %v3519 = vmul.f32 %v3513, 1.442695
        %v3520 = vpow.pop %v3519
        %v3521 = vmul.f32 %v3514, 1.442695
        %v3522 = vpow.pop %v3521
        %v3523 = vadd.f32 %v3516, 1.0
        %v3524 = vadd.f32 %v3518, 1.0
        %v3525 = vadd.f32 %v3520, 1.0
        %v3526 = vadd.f32 %v3522, 1.0
        %v3527 = vrcp.pop %v3523
        %v3528 = vmul.f32 1.0, %v3527
        %v3529 = vrcp.pop %v3524
        %v3530 = vmul.f32 1.0, %v3529
        %v3531 = vrcp.pop %v3525
        %v3532 = vmul.f32 1.0, %v3531
        %v3533 = vrcp.pop %v3526
        %v3534 = vmul.f32 1.0, %v3533
        %v3535 = vmul.f32 %v3507, %v3528
        %v3536 = vmul.f32 %v3508, %v3530
        %v3537 = vmul.f32 %v3509, %v3532
        %v3538 = vmul.f32 %v3510, %v3534
        %s3539 = scalar_lea.vmem %s6, 320
        %v3540 = vld [vmem:[%s3539] sm:$0xff]
        %v3541 = vld [vmem:[%s3539 + $0x8] sm:$0xff]
        %v3542 = vld [vmem:[%s3539 + $0x10] sm:$0xff]
        %v3543 = vld [vmem:[%s3539 + $0x18] sm:$0xff]
        %v3544 = vld [vmem:[%s3539 + $0x20] sm:$0xff]
        %v3545 = vld [vmem:[%s3539 + $0x28] sm:$0xff]
        %v3546 = vld [vmem:[%s3539 + $0x30] sm:$0xff]
        %v3547 = vld [vmem:[%s3539 + $0x38] sm:$0xff]
        %s3548 = scalar_lea.vmem %s7, 320
        %v3549 = vld [vmem:[%s3548] sm:$0xff]
        %v3550 = vld [vmem:[%s3548 + $0x8] sm:$0xff]
        %v3551 = vld [vmem:[%s3548 + $0x10] sm:$0xff]
        %v3552 = vld [vmem:[%s3548 + $0x18] sm:$0xff]
        %v3553 = vld [vmem:[%s3548 + $0x20] sm:$0xff]
        %v3554 = vld [vmem:[%s3548 + $0x28] sm:$0xff]
        %v3555 = vld [vmem:[%s3548 + $0x30] sm:$0xff]
        %v3556 = vld [vmem:[%s3548 + $0x38] sm:$0xff]
        %3558 = vset.pattern.permute.xlu0 0
        %3559 = vperm.xlu0 %3558, %v3549
        %v3560 = vpop.permute.xlu0 %3559
        %3563 = vset.pattern.permute.xlu0 0
        %3564 = vperm.xlu0 %3563, %v3550
        %v3565 = vpop.permute.xlu0 %3564
        %3568 = vset.pattern.permute.xlu0 0
        %3569 = vperm.xlu0 %3568, %v3551
        %v3570 = vpop.permute.xlu0 %3569
        %3573 = vset.pattern.permute.xlu0 0
        %3574 = vperm.xlu0 %3573, %v3552
        %v3575 = vpop.permute.xlu0 %3574
        %3578 = vset.pattern.permute.xlu0 0
        %3579 = vperm.xlu0 %3578, %v3553
        %v3580 = vpop.permute.xlu0 %3579
        %3583 = vset.pattern.permute.xlu0 0
        %3584 = vperm.xlu0 %3583, %v3554
        %v3585 = vpop.permute.xlu0 %3584
        %3588 = vset.pattern.permute.xlu0 0
        %3589 = vperm.xlu0 %3588, %v3555
        %v3590 = vpop.permute.xlu0 %3589
        %3593 = vset.pattern.permute.xlu0 0
        %3594 = vperm.xlu0 %3593, %v3556
        %v3595 = vpop.permute.xlu0 %3594
        %v3598 = vsel %vm694, %v3540, 0
        %v3601 = vsel %vm694, %v3541, 0
        %v3604 = vsel %vm694, %v3542, 0
        %v3607 = vsel %vm694, %v3543, 0
        %v3610 = vsel %vm694, %v3544, 0
        %v3613 = vsel %vm694, %v3545, 0
        %v3616 = vsel %vm694, %v3546, 0
        %v3619 = vsel %vm694, %v3547, 0
        %3621 = vmatprep.subr.mxu0 0.0
        %3622 = vmatpush1.msra.mxu0 %v3535
        %3623 = vmatprep.subr.mxu0 0.0
        %3624 = vmatpush1.msra.mxu0 %v3536
        %3625 = vmatprep.subr.mxu0 0.0
        %3626 = vmatpush1.msra.mxu0 %v3537
        %3627 = vmatprep.subr.mxu0 0.0
        %3628 = vmatpush1.msra.mxu0 %v3538
        %3629 = vmatprep.subr.mxu0 0.0
        %3630 = vmatpush1.msra.mxu0 0.0
        %3631 = vmatprep.subr.mxu0 0.0
        %3632 = vmatpush1.msra.mxu0 0.0
        %3633 = vmatprep.subr.mxu0 0.0
        %3634 = vmatpush1.msra.mxu0 0.0
        %3635 = vmatprep.subr.mxu0 0.0
        %3636 = vmatpush1.msra.mxu0 0.0
        %3637 = vmatprep.subr.mxu0 0.0
        %3638 = vmatpush1.msra.mxu0 0.0
        %3639 = vmatprep.subr.mxu0 0.0
        %3640 = vmatpush1.msra.mxu0 0.0
        %3641 = vmatprep.subr.mxu0 0.0
        %3642 = vmatpush1.msra.mxu0 0.0
        %3643 = vmatprep.subr.mxu0 0.0
        %3644 = vmatpush1.msra.mxu0 0.0
        %3645 = vmatprep.subr.mxu0 0.0
        %3646 = vmatpush1.msra.mxu0 0.0
        %3647 = vmatprep.subr.mxu0 0.0
        %3648 = vmatpush1.msra.mxu0 0.0
        %3649 = vmatprep.subr.mxu0 0.0
        %3650 = vmatpush1.msra.mxu0 0.0
        %3651 = vmatprep.subr.mxu0 0.0
        %3652 = vmatpush1.msra.mxu0 0.0
        %3653 = vmatprep.subr.mxu0 0.0
        %3654 = vmatpush1.msra.mxu0 0.0
        %3655 = vmatprep.subr.mxu0 0.0
        %3656 = vmatpush1.msra.mxu0 0.0
        %3657 = vmatprep.subr.mxu0 0.0
        %3658 = vmatpush1.msra.mxu0 0.0
        %3659 = vmatprep.subr.mxu0 0.0
        %3660 = vmatpush1.msra.mxu0 0.0
        %3661 = vmatprep.subr.mxu0 0.0
        %3662 = vmatpush1.msra.mxu0 0.0
        %3663 = vmatprep.subr.mxu0 0.0
        %3664 = vmatpush1.msra.mxu0 0.0
        %3665 = vmatprep.subr.mxu0 0.0
        %3666 = vmatpush1.msra.mxu0 0.0
        %3667 = vmatprep.subr.mxu0 0.0
        %3668 = vmatpush1.msra.mxu0 0.0
        %3669 = vmatprep.subr.mxu0 0.0
        %3670 = vmatpush1.msra.mxu0 0.0
        %3671 = vmatprep.subr.mxu0 0.0
        %3672 = vmatpush1.msra.mxu0 0.0
        %3673 = vmatprep.subr.mxu0 0.0
        %3674 = vmatpush1.msra.mxu0 0.0
        %3675 = vmatprep.subr.mxu0 0.0
        %3676 = vmatpush1.msra.mxu0 0.0
        %3677 = vmatprep.subr.mxu0 0.0
        %3678 = vmatpush1.msra.mxu0 0.0
        %3679 = vmatprep.subr.mxu0 0.0
        %3680 = vmatpush1.msra.mxu0 0.0
        %3681 = vmatprep.subr.mxu0 0.0
        %3682 = vmatpush1.msra.mxu0 0.0
        %3683 = vmatprep.subr.mxu0 0.0
        %3684 = vmatpush1.msra.mxu0 0.0
        %3685 = vmatprep.mubr.f32.mxu0 0.0
        %3686 = vmatmul.mubr.f32.gmra.mrb[0].mxu0 %v3598
        %v3687 = vpop.f32.mrb[0].mxu0
        %v3688 = vadd.f32 %v3560, %v3687
        %v3689 = vpop.f32.mrb[0].mxu0
        %3690 = vmatprep.mubr.f32.mxu0 0.0
        %3691 = vmatmul.mubr.f32.gmra.mrb[0].mxu0 %v3601
        %v3692 = vpop.f32.mrb[0].mxu0
        %v3693 = vadd.f32 %v3565, %v3692
        %v3694 = vpop.f32.mrb[0].mxu0
        %3695 = vmatprep.mubr.f32.mxu0 0.0
        %3696 = vmatmul.mubr.f32.gmra.mrb[0].mxu0 %v3604
        %v3697 = vpop.f32.mrb[0].mxu0
        %v3698 = vadd.f32 %v3570, %v3697
        %v3699 = vpop.f32.mrb[0].mxu0
        %3700 = vmatprep.mubr.f32.mxu0 0.0
        %3701 = vmatmul.mubr.f32.gmra.mrb[0].mxu0 %v3607
        %v3702 = vpop.f32.mrb[0].mxu0
        %v3703 = vadd.f32 %v3575, %v3702
        %v3704 = vpop.f32.mrb[0].mxu0
        %3705 = vmatprep.mubr.f32.mxu0 0.0
        %3706 = vmatmul.mubr.f32.gmra.mrb[0].mxu0 %v3610
        %v3707 = vpop.f32.mrb[0].mxu0
        %v3708 = vadd.f32 %v3580, %v3707
        %v3709 = vpop.f32.mrb[0].mxu0
        %3710 = vmatprep.mubr.f32.mxu0 0.0
        %3711 = vmatmul.mubr.f32.gmra.mrb[0].mxu0 %v3613
        %v3712 = vpop.f32.mrb[0].mxu0
        %v3713 = vadd.f32 %v3585, %v3712
        %v3714 = vpop.f32.mrb[0].mxu0
        %3715 = vmatprep.mubr.f32.mxu0 0.0
        %3716 = vmatmul.mubr.f32.gmra.mrb[0].mxu0 %v3616
        %v3717 = vpop.f32.mrb[0].mxu0
        %v3718 = vadd.f32 %v3590, %v3717
        %v3719 = vpop.f32.mrb[0].mxu0
        %3720 = vmatprep.mubr.f32.mxu0 0.0
        %3721 = vmatmul.mubr.f32.gmra.mrb[0].mxu0 %v3619
        %v3722 = vpop.f32.mrb[0].mxu0
        %v3723 = vadd.f32 %v3595, %v3722
        %v3724 = vpop.f32.mrb[0].mxu0
        %3725 = vdwg.mxu0
        %v3726 = vadd.f32 %v3228, %v3688
        %v3727 = vadd.f32 %v3229, %v3693
        %v3728 = vadd.f32 %v3230, %v3698
        %v3729 = vadd.f32 %v3231, %v3703
        %v3730 = vmul.f32 %v3726, %v547
        %v3731 = vmul.f32 %v3727, %v547
        %v3732 = vmul.f32 %v3728, %v547
        %v3733 = vmul.f32 %v3729, %v547
        %v3734 = vadd.f32 %v3232, %v3708
        %v3735 = vadd.f32 %v3233, %v3713
        %v3736 = vadd.f32 %v3234, %v3718
        %v3737 = vadd.f32 %v3235, %v3723
        %3742 = vrot.lane.b32.xlu0 %v3730, 2
        %v3743 = vpop.permute.xlu0 %3742
        %3744 = vrot.lane.b32.xlu0 %v3731, 2
        %v3745 = vpop.permute.xlu0 %3744
        %3746 = vrot.lane.b32.xlu0 %v3732, 2
        %v3747 = vpop.permute.xlu0 %3746
        %3748 = vrot.lane.b32.xlu0 %v3733, 2
        %v3749 = vpop.permute.xlu0 %3748
        %3754 = vst.msk [vmem:[#allocation2] sm:$0xff] %vm569, %v3743
        %3755 = vst.msk [vmem:[#allocation2 + $0x8] sm:$0xff] %vm569, %v3745
        %3756 = vst.msk [vmem:[#allocation2 + $0x10] sm:$0xff] %vm569, %v3747
        %3757 = vst.msk [vmem:[#allocation2 + $0x18] sm:$0xff] %vm569, %v3749
        %v3758 = vld [vmem:[#allocation2] sm:$0xff]
        %v3759 = vld [vmem:[#allocation2 + $0x8] sm:$0xff]
        %v3760 = vld [vmem:[#allocation2 + $0x10] sm:$0xff]
        %v3761 = vld [vmem:[#allocation2 + $0x18] sm:$0xff]
        %3766 = vrot.lane.b32.xlu0 %v3758, 127
        %v3767 = vpop.permute.xlu0 %3766
        %3768 = vrot.lane.b32.xlu0 %v3759, 127
        %v3769 = vpop.permute.xlu0 %3768
        %3770 = vrot.lane.b32.xlu0 %v3760, 127
        %v3771 = vpop.permute.xlu0 %3770
        %3772 = vrot.lane.b32.xlu0 %v3761, 127
        %v3773 = vpop.permute.xlu0 %3772
        %3778 = vrot.lane.b32.xlu0 %v3758, 126
        %v3779 = vpop.permute.xlu0 %3778
        %3780 = vrot.lane.b32.xlu0 %v3759, 126
        %v3781 = vpop.permute.xlu0 %3780
        %3782 = vrot.lane.b32.xlu0 %v3760, 126
        %v3783 = vpop.permute.xlu0 %3782
        %3784 = vrot.lane.b32.xlu0 %v3761, 126
        %v3785 = vpop.permute.xlu0 %3784
        %3790 = vrot.lane.b32.xlu0 %v3758, 125
        %v3791 = vpop.permute.xlu0 %3790
        %3792 = vrot.lane.b32.xlu0 %v3759, 125
        %v3793 = vpop.permute.xlu0 %3792
        %3794 = vrot.lane.b32.xlu0 %v3760, 125
        %v3795 = vpop.permute.xlu0 %3794
        %3796 = vrot.lane.b32.xlu0 %v3761, 125
        %v3797 = vpop.permute.xlu0 %3796
        %3802 = vrot.lane.b32.xlu0 %v3758, 124
        %v3803 = vpop.permute.xlu0 %3802
        %3804 = vrot.lane.b32.xlu0 %v3759, 124
        %v3805 = vpop.permute.xlu0 %3804
        %3806 = vrot.lane.b32.xlu0 %v3760, 124
        %v3807 = vpop.permute.xlu0 %3806
        %3808 = vrot.lane.b32.xlu0 %v3761, 124
        %v3809 = vpop.permute.xlu0 %3808
        %s3814 = scalar_lea.vmem %s4, 768
        %v3815 = vld [vmem:[%s3814] sm:$0xff]
        %v3816 = vld [vmem:[%s3814 + $0x8] sm:$0xff]
        %v3817 = vld [vmem:[%s3814 + $0x10] sm:$0xff]
        %v3818 = vld [vmem:[%s3814 + $0x18] sm:$0xff]
        %v3819 = vld [vmem:[%s3814 + $0x20] sm:$0xff]
        %v3820 = vld [vmem:[%s3814 + $0x28] sm:$0xff]
        %v3821 = vld [vmem:[%s3814 + $0x30] sm:$0xff]
        %v3822 = vld [vmem:[%s3814 + $0x38] sm:$0xff]
        %v3823 = vld [vmem:[%s3814 + $0x40] sm:$0xff]
        %v3824 = vld [vmem:[%s3814 + $0x48] sm:$0xff]
        %v3825 = vld [vmem:[%s3814 + $0x50] sm:$0xff]
        %v3826 = vld [vmem:[%s3814 + $0x58] sm:$0xff]
        %v3827 = vld [vmem:[%s3814 + $0x60] sm:$0xff]
        %v3828 = vld [vmem:[%s3814 + $0x68] sm:$0xff]
        %v3829 = vld [vmem:[%s3814 + $0x70] sm:$0xff]
        %v3830 = vld [vmem:[%s3814 + $0x78] sm:$0xff]
        %s3831 = scalar_lea.vmem %s5, 384
        %v3832 = vld [vmem:[%s3831] sm:$0xff]
        %v3833 = vld [vmem:[%s3831 + $0x8] sm:$0xff]
        %v3834 = vld [vmem:[%s3831 + $0x10] sm:$0xff]
        %v3835 = vld [vmem:[%s3831 + $0x18] sm:$0xff]
        %v3836 = vld [vmem:[%s3831 + $0x20] sm:$0xff]
        %v3837 = vld [vmem:[%s3831 + $0x28] sm:$0xff]
        %v3838 = vld [vmem:[%s3831 + $0x30] sm:$0xff]
        %v3839 = vld [vmem:[%s3831 + $0x38] sm:$0xff]
        %3841 = vset.pattern.permute.xlu0 0
        %3842 = vperm.xlu0 %3841, %v3832
        %v3843 = vpop.permute.xlu0 %3842
        %3846 = vset.pattern.permute.xlu0 0
        %3847 = vperm.xlu0 %3846, %v3833
        %v3848 = vpop.permute.xlu0 %3847
        %3851 = vset.pattern.permute.xlu0 0
        %3852 = vperm.xlu0 %3851, %v3834
        %v3853 = vpop.permute.xlu0 %3852
        %3856 = vset.pattern.permute.xlu0 0
        %3857 = vperm.xlu0 %3856, %v3835
        %v3858 = vpop.permute.xlu0 %3857
        %3861 = vset.pattern.permute.xlu0 0
        %3862 = vperm.xlu0 %3861, %v3836
        %v3863 = vpop.permute.xlu0 %3862
        %3866 = vset.pattern.permute.xlu0 0
        %3867 = vperm.xlu0 %3866, %v3837
        %v3868 = vpop.permute.xlu0 %3867
        %3871 = vset.pattern.permute.xlu0 0
        %3872 = vperm.xlu0 %3871, %v3838
        %v3873 = vpop.permute.xlu0 %3872
        %3876 = vset.pattern.permute.xlu0 0
        %3877 = vperm.xlu0 %3876, %v3839
        %v3878 = vpop.permute.xlu0 %3877
        %v3881 = vsel %vm694, %v3816, 0
        %v3884 = vsel %vm694, %v3818, 0
        %v3887 = vsel %vm694, %v3820, 0
        %v3890 = vsel %vm694, %v3822, 0
        %v3893 = vsel %vm694, %v3824, 0
        %v3896 = vsel %vm694, %v3826, 0
        %v3899 = vsel %vm694, %v3828, 0
        %v3902 = vsel %vm694, %v3830, 0
        %3904 = vmatprep.subr.mxu0 0.0
        %3905 = vmatpush1.msra.mxu0 %v3758
        %3906 = vmatprep.subr.mxu0 0.0
        %3907 = vmatpush1.msra.mxu0 %v3759
        %3908 = vmatprep.subr.mxu0 0.0
        %3909 = vmatpush1.msra.mxu0 %v3760
        %3910 = vmatprep.subr.mxu0 0.0
        %3911 = vmatpush1.msra.mxu0 %v3761
        %3912 = vmatprep.subr.mxu0 0.0
        %3913 = vmatpush1.msra.mxu0 %v3767
        %3914 = vmatprep.subr.mxu0 0.0
        %3915 = vmatpush1.msra.mxu0 %v3769
        %3916 = vmatprep.subr.mxu0 0.0
        %3917 = vmatpush1.msra.mxu0 %v3771
        %3918 = vmatprep.subr.mxu0 0.0
        %3919 = vmatpush1.msra.mxu0 %v3773
        %3920 = vmatprep.subr.mxu0 0.0
        %3921 = vmatpush1.msra.mxu0 %v3779
        %3922 = vmatprep.subr.mxu0 0.0
        %3923 = vmatpush1.msra.mxu0 %v3781
        %3924 = vmatprep.subr.mxu0 0.0
        %3925 = vmatpush1.msra.mxu0 %v3783
        %3926 = vmatprep.subr.mxu0 0.0
        %3927 = vmatpush1.msra.mxu0 %v3785
        %3928 = vmatprep.subr.mxu0 0.0
        %3929 = vmatpush1.msra.mxu0 %v3791
        %3930 = vmatprep.subr.mxu0 0.0
        %3931 = vmatpush1.msra.mxu0 %v3793
        %3932 = vmatprep.subr.mxu0 0.0
        %3933 = vmatpush1.msra.mxu0 %v3795
        %3934 = vmatprep.subr.mxu0 0.0
        %3935 = vmatpush1.msra.mxu0 %v3797
        %3936 = vmatprep.subr.mxu0 0.0
        %3937 = vmatpush1.msra.mxu0 %v3803
        %3938 = vmatprep.subr.mxu0 0.0
        %3939 = vmatpush1.msra.mxu0 %v3805
        %3940 = vmatprep.subr.mxu0 0.0
        %3941 = vmatpush1.msra.mxu0 %v3807
        %3942 = vmatprep.subr.mxu0 0.0
        %3943 = vmatpush1.msra.mxu0 %v3809
        %3944 = vmatprep.subr.mxu0 0.0
        %3945 = vmatpush1.msra.mxu0 0.0
        %3946 = vmatprep.subr.mxu0 0.0
        %3947 = vmatpush1.msra.mxu0 0.0
        %3948 = vmatprep.subr.mxu0 0.0
        %3949 = vmatpush1.msra.mxu0 0.0
        %3950 = vmatprep.subr.mxu0 0.0
        %3951 = vmatpush1.msra.mxu0 0.0
        %3952 = vmatprep.subr.mxu0 0.0
        %3953 = vmatpush1.msra.mxu0 0.0
        %3954 = vmatprep.subr.mxu0 0.0
        %3955 = vmatpush1.msra.mxu0 0.0
        %3956 = vmatprep.subr.mxu0 0.0
        %3957 = vmatpush1.msra.mxu0 0.0
        %3958 = vmatprep.subr.mxu0 0.0
        %3959 = vmatpush1.msra.mxu0 0.0
        %3960 = vmatprep.subr.mxu0 0.0
        %3961 = vmatpush1.msra.mxu0 0.0
        %3962 = vmatprep.subr.mxu0 0.0
        %3963 = vmatpush1.msra.mxu0 0.0
        %3964 = vmatprep.subr.mxu0 0.0
        %3965 = vmatpush1.msra.mxu0 0.0
        %3966 = vmatprep.subr.mxu0 0.0
        %3967 = vmatpush1.msra.mxu0 0.0
        %3968 = vmatprep.mubr.f32.mxu0 %v3881
        %3969 = vmatmul.mubr.f32.gmra.mrb[0].mxu0 %v3815
        %v3970 = vpop.f32.mrb[0].mxu0
        %v3971 = vadd.f32 %v3843, %v3970
        %v3972 = vpop.f32.mrb[0].mxu0
        %3973 = vmatprep.mubr.f32.mxu0 %v3884
        %3974 = vmatmul.mubr.f32.gmra.mrb[0].mxu0 %v3817
        %v3975 = vpop.f32.mrb[0].mxu0
        %v3976 = vadd.f32 %v3848, %v3975
        %v3977 = vpop.f32.mrb[0].mxu0
        %3978 = vmatprep.mubr.f32.mxu0 %v3887
        %3979 = vmatmul.mubr.f32.gmra.mrb[0].mxu0 %v3819
        %v3980 = vpop.f32.mrb[0].mxu0
        %v3981 = vadd.f32 %v3853, %v3980
        %v3982 = vpop.f32.mrb[0].mxu0
        %3983 = vmatprep.mubr.f32.mxu0 %v3890
        %3984 = vmatmul.mubr.f32.gmra.mrb[0].mxu0 %v3821
        %v3985 = vpop.f32.mrb[0].mxu0
        %v3986 = vadd.f32 %v3858, %v3985
        %v3987 = vpop.f32.mrb[0].mxu0
        %3988 = vmatprep.mubr.f32.mxu0 %v3893
        %3989 = vmatmul.mubr.f32.gmra.mrb[0].mxu0 %v3823
        %v3990 = vpop.f32.mrb[0].mxu0
        %v3991 = vadd.f32 %v3863, %v3990
        %v3992 = vpop.f32.mrb[0].mxu0
        %3993 = vmatprep.mubr.f32.mxu0 %v3896
        %3994 = vmatmul.mubr.f32.gmra.mrb[0].mxu0 %v3825
        %v3995 = vpop.f32.mrb[0].mxu0
        %v3996 = vadd.f32 %v3868, %v3995
        %v3997 = vpop.f32.mrb[0].mxu0
        %3998 = vmatprep.mubr.f32.mxu0 %v3899
        %3999 = vmatmul.mubr.f32.gmra.mrb[0].mxu0 %v3827
        %v4000 = vpop.f32.mrb[0].mxu0
        %v4001 = vadd.f32 %v3873, %v4000
        %v4002 = vpop.f32.mrb[0].mxu0
        %4003 = vmatprep.mubr.f32.mxu0 %v3902
        %4004 = vmatmul.mubr.f32.gmra.mrb[0].mxu0 %v3829
        %v4005 = vpop.f32.mrb[0].mxu0
        %v4006 = vadd.f32 %v3878, %v4005
        %v4007 = vpop.f32.mrb[0].mxu0
        %4008 = vdwg.mxu0
        %v4009 = vtanh.pop %v3971
        %v4010 = vtanh.pop %v3976
        %v4011 = vtanh.pop %v3981
        %v4012 = vtanh.pop %v3986
        %v4013 = vxor.u32 %v3991, 2147483648
        %v4014 = vxor.u32 %v3996, 2147483648
        %v4015 = vxor.u32 %v4001, 2147483648
        %v4016 = vxor.u32 %v4006, 2147483648
        %v4017 = vmul.f32 %v4013, 1.442695
        %v4018 = vpow.pop %v4017
        %v4019 = vmul.f32 %v4014, 1.442695
        %v4020 = vpow.pop %v4019
        %v4021 = vmul.f32 %v4015, 1.442695
        %v4022 = vpow.pop %v4021
        %v4023 = vmul.f32 %v4016, 1.442695
        %v4024 = vpow.pop %v4023
        %v4025 = vadd.f32 %v4018, 1.0
        %v4026 = vadd.f32 %v4020, 1.0
        %v4027 = vadd.f32 %v4022, 1.0
        %v4028 = vadd.f32 %v4024, 1.0
        %v4029 = vrcp.pop %v4025
        %v4030 = vmul.f32 1.0, %v4029
        %v4031 = vrcp.pop %v4026
        %v4032 = vmul.f32 1.0, %v4031
        %v4033 = vrcp.pop %v4027
        %v4034 = vmul.f32 1.0, %v4033
        %v4035 = vrcp.pop %v4028
        %v4036 = vmul.f32 1.0, %v4035
        %v4037 = vmul.f32 %v4009, %v4030
        %v4038 = vmul.f32 %v4010, %v4032
        %v4039 = vmul.f32 %v4011, %v4034
        %v4040 = vmul.f32 %v4012, %v4036
        %s4041 = scalar_lea.vmem %s6, 384
        %v4042 = vld [vmem:[%s4041] sm:$0xff]
        %v4043 = vld [vmem:[%s4041 + $0x8] sm:$0xff]
        %v4044 = vld [vmem:[%s4041 + $0x10] sm:$0xff]
        %v4045 = vld [vmem:[%s4041 + $0x18] sm:$0xff]
        %v4046 = vld [vmem:[%s4041 + $0x20] sm:$0xff]
        %v4047 = vld [vmem:[%s4041 + $0x28] sm:$0xff]
        %v4048 = vld [vmem:[%s4041 + $0x30] sm:$0xff]
        %v4049 = vld [vmem:[%s4041 + $0x38] sm:$0xff]
        %s4050 = scalar_lea.vmem %s7, 384
        %v4051 = vld [vmem:[%s4050] sm:$0xff]
        %v4052 = vld [vmem:[%s4050 + $0x8] sm:$0xff]
        %v4053 = vld [vmem:[%s4050 + $0x10] sm:$0xff]
        %v4054 = vld [vmem:[%s4050 + $0x18] sm:$0xff]
        %v4055 = vld [vmem:[%s4050 + $0x20] sm:$0xff]
        %v4056 = vld [vmem:[%s4050 + $0x28] sm:$0xff]
        %v4057 = vld [vmem:[%s4050 + $0x30] sm:$0xff]
        %v4058 = vld [vmem:[%s4050 + $0x38] sm:$0xff]
        %4060 = vset.pattern.permute.xlu0 0
        %4061 = vperm.xlu0 %4060, %v4051
        %v4062 = vpop.permute.xlu0 %4061
        %4065 = vset.pattern.permute.xlu0 0
        %4066 = vperm.xlu0 %4065, %v4052
        %v4067 = vpop.permute.xlu0 %4066
        %4070 = vset.pattern.permute.xlu0 0
        %4071 = vperm.xlu0 %4070, %v4053
        %v4072 = vpop.permute.xlu0 %4071
        %4075 = vset.pattern.permute.xlu0 0
        %4076 = vperm.xlu0 %4075, %v4054
        %v4077 = vpop.permute.xlu0 %4076
        %4080 = vset.pattern.permute.xlu0 0
        %4081 = vperm.xlu0 %4080, %v4055
        %v4082 = vpop.permute.xlu0 %4081
        %4085 = vset.pattern.permute.xlu0 0
        %4086 = vperm.xlu0 %4085, %v4056
        %v4087 = vpop.permute.xlu0 %4086
        %4090 = vset.pattern.permute.xlu0 0
        %4091 = vperm.xlu0 %4090, %v4057
        %v4092 = vpop.permute.xlu0 %4091
        %4095 = vset.pattern.permute.xlu0 0
        %4096 = vperm.xlu0 %4095, %v4058
        %v4097 = vpop.permute.xlu0 %4096
        %v4100 = vsel %vm694, %v4042, 0
        %v4103 = vsel %vm694, %v4043, 0
        %v4106 = vsel %vm694, %v4044, 0
        %v4109 = vsel %vm694, %v4045, 0
        %v4112 = vsel %vm694, %v4046, 0
        %v4115 = vsel %vm694, %v4047, 0
        %v4118 = vsel %vm694, %v4048, 0
        %v4121 = vsel %vm694, %v4049, 0
        %4123 = vmatprep.subr.mxu0 0.0
        %4124 = vmatpush1.msra.mxu0 %v4037
        %4125 = vmatprep.subr.mxu0 0.0
        %4126 = vmatpush1.msra.mxu0 %v4038
        %4127 = vmatprep.subr.mxu0 0.0
        %4128 = vmatpush1.msra.mxu0 %v4039
        %4129 = vmatprep.subr.mxu0 0.0
        %4130 = vmatpush1.msra.mxu0 %v4040
        %4131 = vmatprep.subr.mxu0 0.0
        %4132 = vmatpush1.msra.mxu0 0.0
        %4133 = vmatprep.subr.mxu0 0.0
        %4134 = vmatpush1.msra.mxu0 0.0
        %4135 = vmatprep.subr.mxu0 0.0
        %4136 = vmatpush1.msra.mxu0 0.0
        %4137 = vmatprep.subr.mxu0 0.0
        %4138 = vmatpush1.msra.mxu0 0.0
        %4139 = vmatprep.subr.mxu0 0.0
        %4140 = vmatpush1.msra.mxu0 0.0
        %4141 = vmatprep.subr.mxu0 0.0
        %4142 = vmatpush1.msra.mxu0 0.0
        %4143 = vmatprep.subr.mxu0 0.0
        %4144 = vmatpush1.msra.mxu0 0.0
        %4145 = vmatprep.subr.mxu0 0.0
        %4146 = vmatpush1.msra.mxu0 0.0
        %4147 = vmatprep.subr.mxu0 0.0
        %4148 = vmatpush1.msra.mxu0 0.0
        %4149 = vmatprep.subr.mxu0 0.0
        %4150 = vmatpush1.msra.mxu0 0.0
        %4151 = vmatprep.subr.mxu0 0.0
        %4152 = vmatpush1.msra.mxu0 0.0
        %4153 = vmatprep.subr.mxu0 0.0
        %4154 = vmatpush1.msra.mxu0 0.0
        %4155 = vmatprep.subr.mxu0 0.0
        %4156 = vmatpush1.msra.mxu0 0.0
        %4157 = vmatprep.subr.mxu0 0.0
        %4158 = vmatpush1.msra.mxu0 0.0
        %4159 = vmatprep.subr.mxu0 0.0
        %4160 = vmatpush1.msra.mxu0 0.0
        %4161 = vmatprep.subr.mxu0 0.0
        %4162 = vmatpush1.msra.mxu0 0.0
        %4163 = vmatprep.subr.mxu0 0.0
        %4164 = vmatpush1.msra.mxu0 0.0
        %4165 = vmatprep.subr.mxu0 0.0
        %4166 = vmatpush1.msra.mxu0 0.0
        %4167 = vmatprep.subr.mxu0 0.0
        %4168 = vmatpush1.msra.mxu0 0.0
        %4169 = vmatprep.subr.mxu0 0.0
        %4170 = vmatpush1.msra.mxu0 0.0
        %4171 = vmatprep.subr.mxu0 0.0
        %4172 = vmatpush1.msra.mxu0 0.0
        %4173 = vmatprep.subr.mxu0 0.0
        %4174 = vmatpush1.msra.mxu0 0.0
        %4175 = vmatprep.subr.mxu0 0.0
        %4176 = vmatpush1.msra.mxu0 0.0
        %4177 = vmatprep.subr.mxu0 0.0
        %4178 = vmatpush1.msra.mxu0 0.0
        %4179 = vmatprep.subr.mxu0 0.0
        %4180 = vmatpush1.msra.mxu0 0.0
        %4181 = vmatprep.subr.mxu0 0.0
        %4182 = vmatpush1.msra.mxu0 0.0
        %4183 = vmatprep.subr.mxu0 0.0
        %4184 = vmatpush1.msra.mxu0 0.0
        %4185 = vmatprep.subr.mxu0 0.0
        %4186 = vmatpush1.msra.mxu0 0.0
        %4187 = vmatprep.mubr.f32.mxu0 0.0
        %4188 = vmatmul.mubr.f32.gmra.mrb[0].mxu0 %v4100
        %v4189 = vpop.f32.mrb[0].mxu0
        %v4190 = vadd.f32 %v4062, %v4189
        %v4191 = vpop.f32.mrb[0].mxu0
        %4192 = vmatprep.mubr.f32.mxu0 0.0
        %4193 = vmatmul.mubr.f32.gmra.mrb[0].mxu0 %v4103
        %v4194 = vpop.f32.mrb[0].mxu0
        %v4195 = vadd.f32 %v4067, %v4194
        %v4196 = vpop.f32.mrb[0].mxu0
        %4197 = vmatprep.mubr.f32.mxu0 0.0
        %4198 = vmatmul.mubr.f32.gmra.mrb[0].mxu0 %v4106
        %v4199 = vpop.f32.mrb[0].mxu0
        %v4200 = vadd.f32 %v4072, %v4199
        %v4201 = vpop.f32.mrb[0].mxu0
        %4202 = vmatprep.mubr.f32.mxu0 0.0
        %4203 = vmatmul.mubr.f32.gmra.mrb[0].mxu0 %v4109
        %v4204 = vpop.f32.mrb[0].mxu0
        %v4205 = vadd.f32 %v4077, %v4204
        %v4206 = vpop.f32.mrb[0].mxu0
        %4207 = vmatprep.mubr.f32.mxu0 0.0
        %4208 = vmatmul.mubr.f32.gmra.mrb[0].mxu0 %v4112
        %v4209 = vpop.f32.mrb[0].mxu0
        %v4210 = vadd.f32 %v4082, %v4209
        %v4211 = vpop.f32.mrb[0].mxu0
        %4212 = vmatprep.mubr.f32.mxu0 0.0
        %4213 = vmatmul.mubr.f32.gmra.mrb[0].mxu0 %v4115
        %v4214 = vpop.f32.mrb[0].mxu0
        %v4215 = vadd.f32 %v4087, %v4214
        %v4216 = vpop.f32.mrb[0].mxu0
        %4217 = vmatprep.mubr.f32.mxu0 0.0
        %4218 = vmatmul.mubr.f32.gmra.mrb[0].mxu0 %v4118
        %v4219 = vpop.f32.mrb[0].mxu0
        %v4220 = vadd.f32 %v4092, %v4219
        %v4221 = vpop.f32.mrb[0].mxu0
        %4222 = vmatprep.mubr.f32.mxu0 0.0
        %4223 = vmatmul.mubr.f32.gmra.mrb[0].mxu0 %v4121
        %v4224 = vpop.f32.mrb[0].mxu0
        %v4225 = vadd.f32 %v4097, %v4224
        %v4226 = vpop.f32.mrb[0].mxu0
        %4227 = vdwg.mxu0
        %v4228 = vadd.f32 %v3730, %v4190
        %v4229 = vadd.f32 %v3731, %v4195
        %v4230 = vadd.f32 %v3732, %v4200
        %v4231 = vadd.f32 %v3733, %v4205
        %v4232 = vmul.f32 %v4228, %v547
        %v4233 = vmul.f32 %v4229, %v547
        %v4234 = vmul.f32 %v4230, %v547
        %v4235 = vmul.f32 %v4231, %v547
        %v4236 = vadd.f32 %v3734, %v4210
        %v4237 = vadd.f32 %v3735, %v4215
        %v4238 = vadd.f32 %v3736, %v4220
        %v4239 = vadd.f32 %v3737, %v4225
        %4244 = vrot.lane.b32.xlu0 %v4232, 2
        %v4245 = vpop.permute.xlu0 %4244
        %4246 = vrot.lane.b32.xlu0 %v4233, 2
        %v4247 = vpop.permute.xlu0 %4246
        %4248 = vrot.lane.b32.xlu0 %v4234, 2
        %v4249 = vpop.permute.xlu0 %4248
        %4250 = vrot.lane.b32.xlu0 %v4235, 2
        %v4251 = vpop.permute.xlu0 %4250
        %4256 = vst.msk [vmem:[#allocation2] sm:$0xff] %vm569, %v4245
        %4257 = vst.msk [vmem:[#allocation2 + $0x8] sm:$0xff] %vm569, %v4247
        %4258 = vst.msk [vmem:[#allocation2 + $0x10] sm:$0xff] %vm569, %v4249
        %4259 = vst.msk [vmem:[#allocation2 + $0x18] sm:$0xff] %vm569, %v4251
        %v4260 = vld [vmem:[#allocation2] sm:$0xff]
        %v4261 = vld [vmem:[#allocation2 + $0x8] sm:$0xff]
        %v4262 = vld [vmem:[#allocation2 + $0x10] sm:$0xff]
        %v4263 = vld [vmem:[#allocation2 + $0x18] sm:$0xff]
        %4268 = vrot.lane.b32.xlu0 %v4260, 127
        %v4269 = vpop.permute.xlu0 %4268
        %4270 = vrot.lane.b32.xlu0 %v4261, 127
        %v4271 = vpop.permute.xlu0 %4270
        %4272 = vrot.lane.b32.xlu0 %v4262, 127
        %v4273 = vpop.permute.xlu0 %4272
        %4274 = vrot.lane.b32.xlu0 %v4263, 127
        %v4275 = vpop.permute.xlu0 %4274
        %4280 = vrot.lane.b32.xlu0 %v4260, 126
        %v4281 = vpop.permute.xlu0 %4280
        %4282 = vrot.lane.b32.xlu0 %v4261, 126
        %v4283 = vpop.permute.xlu0 %4282
        %4284 = vrot.lane.b32.xlu0 %v4262, 126
        %v4285 = vpop.permute.xlu0 %4284
        %4286 = vrot.lane.b32.xlu0 %v4263, 126
        %v4287 = vpop.permute.xlu0 %4286
        %4292 = vrot.lane.b32.xlu0 %v4260, 125
        %v4293 = vpop.permute.xlu0 %4292
        %4294 = vrot.lane.b32.xlu0 %v4261, 125
        %v4295 = vpop.permute.xlu0 %4294
        %4296 = vrot.lane.b32.xlu0 %v4262, 125
        %v4297 = vpop.permute.xlu0 %4296
        %4298 = vrot.lane.b32.xlu0 %v4263, 125
        %v4299 = vpop.permute.xlu0 %4298
        %4304 = vrot.lane.b32.xlu0 %v4260, 124
        %v4305 = vpop.permute.xlu0 %4304
        %4306 = vrot.lane.b32.xlu0 %v4261, 124
        %v4307 = vpop.permute.xlu0 %4306
        %4308 = vrot.lane.b32.xlu0 %v4262, 124
        %v4309 = vpop.permute.xlu0 %4308
        %4310 = vrot.lane.b32.xlu0 %v4263, 124
        %v4311 = vpop.permute.xlu0 %4310
        %s4316 = scalar_lea.vmem %s4, 896
        %v4317 = vld [vmem:[%s4316] sm:$0xff]
        %v4318 = vld [vmem:[%s4316 + $0x8] sm:$0xff]
        %v4319 = vld [vmem:[%s4316 + $0x10] sm:$0xff]
        %v4320 = vld [vmem:[%s4316 + $0x18] sm:$0xff]
        %v4321 = vld [vmem:[%s4316 + $0x20] sm:$0xff]
        %v4322 = vld [vmem:[%s4316 + $0x28] sm:$0xff]
        %v4323 = vld [vmem:[%s4316 + $0x30] sm:$0xff]
        %v4324 = vld [vmem:[%s4316 + $0x38] sm:$0xff]
        %v4325 = vld [vmem:[%s4316 + $0x40] sm:$0xff]
        %v4326 = vld [vmem:[%s4316 + $0x48] sm:$0xff]
        %v4327 = vld [vmem:[%s4316 + $0x50] sm:$0xff]
        %v4328 = vld [vmem:[%s4316 + $0x58] sm:$0xff]
        %v4329 = vld [vmem:[%s4316 + $0x60] sm:$0xff]
        %v4330 = vld [vmem:[%s4316 + $0x68] sm:$0xff]
        %v4331 = vld [vmem:[%s4316 + $0x70] sm:$0xff]
        %v4332 = vld [vmem:[%s4316 + $0x78] sm:$0xff]
        %s4333 = scalar_lea.vmem %s5, 448
        %v4334 = vld [vmem:[%s4333] sm:$0xff]
        %v4335 = vld [vmem:[%s4333 + $0x8] sm:$0xff]
        %v4336 = vld [vmem:[%s4333 + $0x10] sm:$0xff]
        %v4337 = vld [vmem:[%s4333 + $0x18] sm:$0xff]
        %v4338 = vld [vmem:[%s4333 + $0x20] sm:$0xff]
        %v4339 = vld [vmem:[%s4333 + $0x28] sm:$0xff]
        %v4340 = vld [vmem:[%s4333 + $0x30] sm:$0xff]
        %v4341 = vld [vmem:[%s4333 + $0x38] sm:$0xff]
        %4343 = vset.pattern.permute.xlu0 0
        %4344 = vperm.xlu0 %4343, %v4334
        %v4345 = vpop.permute.xlu0 %4344
        %4348 = vset.pattern.permute.xlu0 0
        %4349 = vperm.xlu0 %4348, %v4335
        %v4350 = vpop.permute.xlu0 %4349
        %4353 = vset.pattern.permute.xlu0 0
        %4354 = vperm.xlu0 %4353, %v4336
        %v4355 = vpop.permute.xlu0 %4354
        %4358 = vset.pattern.permute.xlu0 0
        %4359 = vperm.xlu0 %4358, %v4337
        %v4360 = vpop.permute.xlu0 %4359
        %4363 = vset.pattern.permute.xlu0 0
        %4364 = vperm.xlu0 %4363, %v4338
        %v4365 = vpop.permute.xlu0 %4364
        %4368 = vset.pattern.permute.xlu0 0
        %4369 = vperm.xlu0 %4368, %v4339
        %v4370 = vpop.permute.xlu0 %4369
        %4373 = vset.pattern.permute.xlu0 0
        %4374 = vperm.xlu0 %4373, %v4340
        %v4375 = vpop.permute.xlu0 %4374
        %4378 = vset.pattern.permute.xlu0 0
        %4379 = vperm.xlu0 %4378, %v4341
        %v4380 = vpop.permute.xlu0 %4379
        %v4383 = vsel %vm694, %v4318, 0
        %v4386 = vsel %vm694, %v4320, 0
        %v4389 = vsel %vm694, %v4322, 0
        %v4392 = vsel %vm694, %v4324, 0
        %v4395 = vsel %vm694, %v4326, 0
        %v4398 = vsel %vm694, %v4328, 0
        %v4401 = vsel %vm694, %v4330, 0
        %v4404 = vsel %vm694, %v4332, 0
        %4406 = vmatprep.subr.mxu0 0.0
        %4407 = vmatpush1.msra.mxu0 %v4260
        %4408 = vmatprep.subr.mxu0 0.0
        %4409 = vmatpush1.msra.mxu0 %v4261
        %4410 = vmatprep.subr.mxu0 0.0
        %4411 = vmatpush1.msra.mxu0 %v4262
        %4412 = vmatprep.subr.mxu0 0.0
        %4413 = vmatpush1.msra.mxu0 %v4263
        %4414 = vmatprep.subr.mxu0 0.0
        %4415 = vmatpush1.msra.mxu0 %v4269
        %4416 = vmatprep.subr.mxu0 0.0
        %4417 = vmatpush1.msra.mxu0 %v4271
        %4418 = vmatprep.subr.mxu0 0.0
        %4419 = vmatpush1.msra.mxu0 %v4273
        %4420 = vmatprep.subr.mxu0 0.0
        %4421 = vmatpush1.msra.mxu0 %v4275
        %4422 = vmatprep.subr.mxu0 0.0
        %4423 = vmatpush1.msra.mxu0 %v4281
        %4424 = vmatprep.subr.mxu0 0.0
        %4425 = vmatpush1.msra.mxu0 %v4283
        %4426 = vmatprep.subr.mxu0 0.0
        %4427 = vmatpush1.msra.mxu0 %v4285
        %4428 = vmatprep.subr.mxu0 0.0
        %4429 = vmatpush1.msra.mxu0 %v4287
        %4430 = vmatprep.subr.mxu0 0.0
        %4431 = vmatpush1.msra.mxu0 %v4293
        %4432 = vmatprep.subr.mxu0 0.0
        %4433 = vmatpush1.msra.mxu0 %v4295
        %4434 = vmatprep.subr.mxu0 0.0
        %4435 = vmatpush1.msra.mxu0 %v4297
        %4436 = vmatprep.subr.mxu0 0.0
        %4437 = vmatpush1.msra.mxu0 %v4299
        %4438 = vmatprep.subr.mxu0 0.0
        %4439 = vmatpush1.msra.mxu0 %v4305
        %4440 = vmatprep.subr.mxu0 0.0
        %4441 = vmatpush1.msra.mxu0 %v4307
        %4442 = vmatprep.subr.mxu0 0.0
        %4443 = vmatpush1.msra.mxu0 %v4309
        %4444 = vmatprep.subr.mxu0 0.0
        %4445 = vmatpush1.msra.mxu0 %v4311
        %4446 = vmatprep.subr.mxu0 0.0
        %4447 = vmatpush1.msra.mxu0 0.0
        %4448 = vmatprep.subr.mxu0 0.0
        %4449 = vmatpush1.msra.mxu0 0.0
        %4450 = vmatprep.subr.mxu0 0.0
        %4451 = vmatpush1.msra.mxu0 0.0
        %4452 = vmatprep.subr.mxu0 0.0
        %4453 = vmatpush1.msra.mxu0 0.0
        %4454 = vmatprep.subr.mxu0 0.0
        %4455 = vmatpush1.msra.mxu0 0.0
        %4456 = vmatprep.subr.mxu0 0.0
        %4457 = vmatpush1.msra.mxu0 0.0
        %4458 = vmatprep.subr.mxu0 0.0
        %4459 = vmatpush1.msra.mxu0 0.0
        %4460 = vmatprep.subr.mxu0 0.0
        %4461 = vmatpush1.msra.mxu0 0.0
        %4462 = vmatprep.subr.mxu0 0.0
        %4463 = vmatpush1.msra.mxu0 0.0
        %4464 = vmatprep.subr.mxu0 0.0
        %4465 = vmatpush1.msra.mxu0 0.0
        %4466 = vmatprep.subr.mxu0 0.0
        %4467 = vmatpush1.msra.mxu0 0.0
        %4468 = vmatprep.subr.mxu0 0.0
        %4469 = vmatpush1.msra.mxu0 0.0
        %4470 = vmatprep.mubr.f32.mxu0 %v4383
        %4471 = vmatmul.mubr.f32.gmra.mrb[0].mxu0 %v4317
        %v4472 = vpop.f32.mrb[0].mxu0
        %v4473 = vadd.f32 %v4345, %v4472
        %v4474 = vpop.f32.mrb[0].mxu0
        %4475 = vmatprep.mubr.f32.mxu0 %v4386
        %4476 = vmatmul.mubr.f32.gmra.mrb[0].mxu0 %v4319
        %v4477 = vpop.f32.mrb[0].mxu0
        %v4478 = vadd.f32 %v4350, %v4477
        %v4479 = vpop.f32.mrb[0].mxu0
        %4480 = vmatprep.mubr.f32.mxu0 %v4389
        %4481 = vmatmul.mubr.f32.gmra.mrb[0].mxu0 %v4321
        %v4482 = vpop.f32.mrb[0].mxu0
        %v4483 = vadd.f32 %v4355, %v4482
        %v4484 = vpop.f32.mrb[0].mxu0
        %4485 = vmatprep.mubr.f32.mxu0 %v4392
        %4486 = vmatmul.mubr.f32.gmra.mrb[0].mxu0 %v4323
        %v4487 = vpop.f32.mrb[0].mxu0
        %v4488 = vadd.f32 %v4360, %v4487
        %v4489 = vpop.f32.mrb[0].mxu0
        %4490 = vmatprep.mubr.f32.mxu0 %v4395
        %4491 = vmatmul.mubr.f32.gmra.mrb[0].mxu0 %v4325
        %v4492 = vpop.f32.mrb[0].mxu0
        %v4493 = vadd.f32 %v4365, %v4492
        %v4494 = vpop.f32.mrb[0].mxu0
        %4495 = vmatprep.mubr.f32.mxu0 %v4398
        %4496 = vmatmul.mubr.f32.gmra.mrb[0].mxu0 %v4327
        %v4497 = vpop.f32.mrb[0].mxu0
        %v4498 = vadd.f32 %v4370, %v4497
        %v4499 = vpop.f32.mrb[0].mxu0
        %4500 = vmatprep.mubr.f32.mxu0 %v4401
        %4501 = vmatmul.mubr.f32.gmra.mrb[0].mxu0 %v4329
        %v4502 = vpop.f32.mrb[0].mxu0
        %v4503 = vadd.f32 %v4375, %v4502
        %v4504 = vpop.f32.mrb[0].mxu0
        %4505 = vmatprep.mubr.f32.mxu0 %v4404
        %4506 = vmatmul.mubr.f32.gmra.mrb[0].mxu0 %v4331
        %v4507 = vpop.f32.mrb[0].mxu0
        %v4508 = vadd.f32 %v4380, %v4507
        %v4509 = vpop.f32.mrb[0].mxu0
        %4510 = vdwg.mxu0
        %v4511 = vtanh.pop %v4473
        %v4512 = vtanh.pop %v4478
        %v4513 = vtanh.pop %v4483
        %v4514 = vtanh.pop %v4488
        %v4515 = vxor.u32 %v4493, 2147483648
        %v4516 = vxor.u32 %v4498, 2147483648
        %v4517 = vxor.u32 %v4503, 2147483648
        %v4518 = vxor.u32 %v4508, 2147483648
        %v4519 = vmul.f32 %v4515, 1.442695
        %v4520 = vpow.pop %v4519
        %v4521 = vmul.f32 %v4516, 1.442695
        %v4522 = vpow.pop %v4521
        %v4523 = vmul.f32 %v4517, 1.442695
        %v4524 = vpow.pop %v4523
        %v4525 = vmul.f32 %v4518, 1.442695
        %v4526 = vpow.pop %v4525
        %v4527 = vadd.f32 %v4520, 1.0
        %v4528 = vadd.f32 %v4522, 1.0
        %v4529 = vadd.f32 %v4524, 1.0
        %v4530 = vadd.f32 %v4526, 1.0
        %v4531 = vrcp.pop %v4527
        %v4532 = vmul.f32 1.0, %v4531
        %v4533 = vrcp.pop %v4528
        %v4534 = vmul.f32 1.0, %v4533
        %v4535 = vrcp.pop %v4529
        %v4536 = vmul.f32 1.0, %v4535
        %v4537 = vrcp.pop %v4530
        %v4538 = vmul.f32 1.0, %v4537
        %v4539 = vmul.f32 %v4511, %v4532
        %v4540 = vmul.f32 %v4512, %v4534
        %v4541 = vmul.f32 %v4513, %v4536
        %v4542 = vmul.f32 %v4514, %v4538
        %s4543 = scalar_lea.vmem %s6, 448
        %v4544 = vld [vmem:[%s4543] sm:$0xff]
        %v4545 = vld [vmem:[%s4543 + $0x8] sm:$0xff]
        %v4546 = vld [vmem:[%s4543 + $0x10] sm:$0xff]
        %v4547 = vld [vmem:[%s4543 + $0x18] sm:$0xff]
        %s4548 = scalar_lea.vmem %s7, 448
        %v4549 = vld [vmem:[%s4548] sm:$0xff]
        %v4550 = vld [vmem:[%s4548 + $0x8] sm:$0xff]
        %v4551 = vld [vmem:[%s4548 + $0x10] sm:$0xff]
        %v4552 = vld [vmem:[%s4548 + $0x18] sm:$0xff]
        %4554 = vset.pattern.permute.xlu0 0
        %4555 = vperm.xlu0 %4554, %v4549
        %v4556 = vpop.permute.xlu0 %4555
        %4559 = vset.pattern.permute.xlu0 0
        %4560 = vperm.xlu0 %4559, %v4550
        %v4561 = vpop.permute.xlu0 %4560
        %4564 = vset.pattern.permute.xlu0 0
        %4565 = vperm.xlu0 %4564, %v4551
        %v4566 = vpop.permute.xlu0 %4565
        %4569 = vset.pattern.permute.xlu0 0
        %4570 = vperm.xlu0 %4569, %v4552
        %v4571 = vpop.permute.xlu0 %4570
        %v4574 = vsel %vm694, %v4544, 0
        %v4577 = vsel %vm694, %v4545, 0
        %v4580 = vsel %vm694, %v4546, 0
        %v4583 = vsel %vm694, %v4547, 0
        %4585 = vmatprep.subr.mxu0 0.0
        %4586 = vmatpush1.msra.mxu0 %v4539
        %4587 = vmatprep.subr.mxu0 0.0
        %4588 = vmatpush1.msra.mxu0 %v4540
        %4589 = vmatprep.subr.mxu0 0.0
        %4590 = vmatpush1.msra.mxu0 %v4541
        %4591 = vmatprep.subr.mxu0 0.0
        %4592 = vmatpush1.msra.mxu0 %v4542
        %4593 = vmatprep.subr.mxu0 0.0
        %4594 = vmatpush1.msra.mxu0 0.0
        %4595 = vmatprep.subr.mxu0 0.0
        %4596 = vmatpush1.msra.mxu0 0.0
        %4597 = vmatprep.subr.mxu0 0.0
        %4598 = vmatpush1.msra.mxu0 0.0
        %4599 = vmatprep.subr.mxu0 0.0
        %4600 = vmatpush1.msra.mxu0 0.0
        %4601 = vmatprep.subr.mxu0 0.0
        %4602 = vmatpush1.msra.mxu0 0.0
        %4603 = vmatprep.subr.mxu0 0.0
        %4604 = vmatpush1.msra.mxu0 0.0
        %4605 = vmatprep.subr.mxu0 0.0
        %4606 = vmatpush1.msra.mxu0 0.0
        %4607 = vmatprep.subr.mxu0 0.0
        %4608 = vmatpush1.msra.mxu0 0.0
        %4609 = vmatprep.subr.mxu0 0.0
        %4610 = vmatpush1.msra.mxu0 0.0
        %4611 = vmatprep.subr.mxu0 0.0
        %4612 = vmatpush1.msra.mxu0 0.0
        %4613 = vmatprep.subr.mxu0 0.0
        %4614 = vmatpush1.msra.mxu0 0.0
        %4615 = vmatprep.subr.mxu0 0.0
        %4616 = vmatpush1.msra.mxu0 0.0
        %4617 = vmatprep.subr.mxu0 0.0
        %4618 = vmatpush1.msra.mxu0 0.0
        %4619 = vmatprep.subr.mxu0 0.0
        %4620 = vmatpush1.msra.mxu0 0.0
        %4621 = vmatprep.subr.mxu0 0.0
        %4622 = vmatpush1.msra.mxu0 0.0
        %4623 = vmatprep.subr.mxu0 0.0
        %4624 = vmatpush1.msra.mxu0 0.0
        %4625 = vmatprep.subr.mxu0 0.0
        %4626 = vmatpush1.msra.mxu0 0.0
        %4627 = vmatprep.subr.mxu0 0.0
        %4628 = vmatpush1.msra.mxu0 0.0
        %4629 = vmatprep.subr.mxu0 0.0
        %4630 = vmatpush1.msra.mxu0 0.0
        %4631 = vmatprep.subr.mxu0 0.0
        %4632 = vmatpush1.msra.mxu0 0.0
        %4633 = vmatprep.subr.mxu0 0.0
        %4634 = vmatpush1.msra.mxu0 0.0
        %4635 = vmatprep.subr.mxu0 0.0
        %4636 = vmatpush1.msra.mxu0 0.0
        %4637 = vmatprep.subr.mxu0 0.0
        %4638 = vmatpush1.msra.mxu0 0.0
        %4639 = vmatprep.subr.mxu0 0.0
        %4640 = vmatpush1.msra.mxu0 0.0
        %4641 = vmatprep.subr.mxu0 0.0
        %4642 = vmatpush1.msra.mxu0 0.0
        %4643 = vmatprep.subr.mxu0 0.0
        %4644 = vmatpush1.msra.mxu0 0.0
        %4645 = vmatprep.subr.mxu0 0.0
        %4646 = vmatpush1.msra.mxu0 0.0
        %4647 = vmatprep.subr.mxu0 0.0
        %4648 = vmatpush1.msra.mxu0 0.0
        %4649 = vmatprep.mubr.f32.mxu0 0.0
        %4650 = vmatmul.mubr.f32.gmra.mrb[0].mxu0 %v4574
        %v4651 = vpop.f32.mrb[0].mxu0
        %v4652 = vadd.f32 %v4556, %v4651
        %v4653 = vpop.f32.mrb[0].mxu0
        %4654 = vmatprep.mubr.f32.mxu0 0.0
        %4655 = vmatmul.mubr.f32.gmra.mrb[0].mxu0 %v4577
        %v4656 = vpop.f32.mrb[0].mxu0
        %v4657 = vadd.f32 %v4561, %v4656
        %v4658 = vpop.f32.mrb[0].mxu0
        %4659 = vmatprep.mubr.f32.mxu0 0.0
        %4660 = vmatmul.mubr.f32.gmra.mrb[0].mxu0 %v4580
        %v4661 = vpop.f32.mrb[0].mxu0
        %v4662 = vadd.f32 %v4566, %v4661
        %v4663 = vpop.f32.mrb[0].mxu0
        %4664 = vmatprep.mubr.f32.mxu0 0.0
        %4665 = vmatmul.mubr.f32.gmra.mrb[0].mxu0 %v4583
        %v4666 = vpop.f32.mrb[0].mxu0
        %v4667 = vadd.f32 %v4571, %v4666
        %v4668 = vpop.f32.mrb[0].mxu0
        %4669 = vdwg.mxu0
        %v4670 = vadd.f32 %v4236, %v4652
        %v4671 = vadd.f32 %v4237, %v4657
        %v4672 = vadd.f32 %v4238, %v4662
        %v4673 = vadd.f32 %v4239, %v4667
        %v4674 = vmul.f32 %v4670, %v547
        %v4675 = vmul.f32 %v4671, %v547
        %v4676 = vmul.f32 %v4672, %v547
        %v4677 = vmul.f32 %v4673, %v547
        %s4678 = scalar_lea.vmem %s8, 4
        %v4679 = vld [vmem:[%s4678] sm:$0xf]
        %s4680 = scalar_lea.vmem %s9, 4
        %v4681 = vld [vmem:[%s4680] sm:$0xf]
        %4683 = vset.pattern.permute.xlu0 0
        %4684 = vperm.xlu0 %4683, %v4681
        %v4685 = vpop.permute.xlu0 %4684
        %v4688 = vsel %vm694, %v4679, 0
        %4690 = vmatprep.subr.mxu0 0.0
        %4691 = vmatpush1.msra.mxu0 %v4674
        %4692 = vmatprep.subr.mxu0 0.0
        %4693 = vmatpush1.msra.mxu0 %v4675
        %4694 = vmatprep.subr.mxu0 0.0
        %4695 = vmatpush1.msra.mxu0 %v4676
        %4696 = vmatprep.subr.mxu0 0.0
        %4697 = vmatpush1.msra.mxu0 %v4677
        %4698 = vmatprep.subr.mxu0 0.0
        %4699 = vmatpush1.msra.mxu0 0.0
        %4700 = vmatprep.subr.mxu0 0.0
        %4701 = vmatpush1.msra.mxu0 0.0
        %4702 = vmatprep.subr.mxu0 0.0
        %4703 = vmatpush1.msra.mxu0 0.0
        %4704 = vmatprep.subr.mxu0 0.0
        %4705 = vmatpush1.msra.mxu0 0.0
        %4706 = vmatprep.subr.mxu0 0.0
        %4707 = vmatpush1.msra.mxu0 0.0
        %4708 = vmatprep.subr.mxu0 0.0
        %4709 = vmatpush1.msra.mxu0 0.0
        %4710 = vmatprep.subr.mxu0 0.0
        %4711 = vmatpush1.msra.mxu0 0.0
        %4712 = vmatprep.subr.mxu0 0.0
        %4713 = vmatpush1.msra.mxu0 0.0
        %4714 = vmatprep.subr.mxu0 0.0
        %4715 = vmatpush1.msra.mxu0 0.0
        %4716 = vmatprep.subr.mxu0 0.0
        %4717 = vmatpush1.msra.mxu0 0.0
        %4718 = vmatprep.subr.mxu0 0.0
        %4719 = vmatpush1.msra.mxu0 0.0
        %4720 = vmatprep.subr.mxu0 0.0
        %4721 = vmatpush1.msra.mxu0 0.0
        %4722 = vmatprep.subr.mxu0 0.0
        %4723 = vmatpush1.msra.mxu0 0.0
        %4724 = vmatprep.subr.mxu0 0.0
        %4725 = vmatpush1.msra.mxu0 0.0
        %4726 = vmatprep.subr.mxu0 0.0
        %4727 = vmatpush1.msra.mxu0 0.0
        %4728 = vmatprep.subr.mxu0 0.0
        %4729 = vmatpush1.msra.mxu0 0.0
        %4730 = vmatprep.subr.mxu0 0.0
        %4731 = vmatpush1.msra.mxu0 0.0
        %4732 = vmatprep.subr.mxu0 0.0
        %4733 = vmatpush1.msra.mxu0 0.0
        %4734 = vmatprep.subr.mxu0 0.0
        %4735 = vmatpush1.msra.mxu0 0.0
        %4736 = vmatprep.subr.mxu0 0.0
        %4737 = vmatpush1.msra.mxu0 0.0
        %4738 = vmatprep.subr.mxu0 0.0
        %4739 = vmatpush1.msra.mxu0 0.0
        %4740 = vmatprep.subr.mxu0 0.0
        %4741 = vmatpush1.msra.mxu0 0.0
        %4742 = vmatprep.subr.mxu0 0.0
        %4743 = vmatpush1.msra.mxu0 0.0
        %4744 = vmatprep.subr.mxu0 0.0
        %4745 = vmatpush1.msra.mxu0 0.0
        %4746 = vmatprep.subr.mxu0 0.0
        %4747 = vmatpush1.msra.mxu0 0.0
        %4748 = vmatprep.subr.mxu0 0.0
        %4749 = vmatpush1.msra.mxu0 0.0
        %4750 = vmatprep.subr.mxu0 0.0
        %4751 = vmatpush1.msra.mxu0 0.0
        %4752 = vmatprep.subr.mxu0 0.0
        %4753 = vmatpush1.msra.mxu0 0.0
        %4754 = vmatprep.mubr.f32.mxu0 0.0
        %4755 = vmatmul.mubr.f32.gmra.mrb[0].mxu0 %v4688
        %v4756 = vpop.f32.mrb[0].mxu0
        %v4757 = vadd.f32 %v4685, %v4756
        %v4758 = vpop.f32.mrb[0].mxu0
        %4759 = vdwg.mxu0
        %v4760 = vmul.f32 %v4757, %v547
        %v4761 = vmul.f32 %v4760, 1.442695
        %v4762 = vpow.pop %v4761
        %v4764 = vrot.slane %v4762, 2
        %v4766 = vmul.f32 %v406, %v4764
        %v4767 = vmul.f32 %v4766, %v547
        %v4768 = vadd.f32 %v4760, %v4767
        %v4770 = vrot.slane %v4760, 2
        %v4772 = vsel %vm2587, %v4770, 0.0
        %v4773 = vrot.slane %v4772, 4
        %v4774 = vadd.f32 %v4772, %v4773
        %v4775 = vrot.slane %v4774, 2
        %v4776 = vadd.f32 %v4774, %v4775
        %v4777 = vrot.slane %v4776, 1
        %v4778 = vadd.f32 %v4776, %v4777
        %v4779 = vsel %vm2595, %v4778, 0.0
        %4780 = vadd.xlane.f32.xlu0 %v4779
        %v4781 = vpop.xlane.xlu0 %4780
        %v4782 = vadd.f32 %v2599, %v4781
        %s4783 = scalar_lea.vmem %s2, 64
        %v4784 = vld [vmem:[%s4783] sm:$0xff]
        %v4785 = vld [vmem:[%s4783 + $0x8] sm:$0xff]
        %v4786 = vld [vmem:[%s4783 + $0x10] sm:$0xff]
        %v4787 = vld [vmem:[%s4783 + $0x18] sm:$0xff]
        %s4788 = scalar_lea.vmem %s3, 64
        %v4789 = vld [vmem:[%s4788] sm:$0xff]
        %v4790 = vld [vmem:[%s4788 + $0x8] sm:$0xff]
        %v4791 = vld [vmem:[%s4788 + $0x10] sm:$0xff]
        %v4792 = vld [vmem:[%s4788 + $0x18] sm:$0xff]
        %4794 = vset.pattern.permute.xlu0 0
        %4795 = vperm.xlu0 %4794, %v4789
        %v4796 = vpop.permute.xlu0 %4795
        %4799 = vset.pattern.permute.xlu0 0
        %4800 = vperm.xlu0 %4799, %v4790
        %v4801 = vpop.permute.xlu0 %4800
        %4804 = vset.pattern.permute.xlu0 0
        %4805 = vperm.xlu0 %4804, %v4791
        %v4806 = vpop.permute.xlu0 %4805
        %4809 = vset.pattern.permute.xlu0 0
        %4810 = vperm.xlu0 %4809, %v4792
        %v4811 = vpop.permute.xlu0 %4810
        %v4814 = vsel %vm441, %v4784, 0
        %v4817 = vsel %vm441, %v4785, 0
        %v4820 = vsel %vm441, %v4786, 0
        %v4823 = vsel %vm441, %v4787, 0
        %v4826 = vsel %vm454, %v4768, 0
        %4828 = vmatprep.subr.mxu0 0.0
        %4829 = vmatpush1.msra.mxu0 %v4826
        %4830 = vmatprep.subr.mxu0 0.0
        %4831 = vmatpush1.msra.mxu0 0.0
        %4832 = vmatprep.subr.mxu0 0.0
        %4833 = vmatpush1.msra.mxu0 0.0
        %4834 = vmatprep.subr.mxu0 0.0
        %4835 = vmatpush1.msra.mxu0 0.0
        %4836 = vmatprep.subr.mxu0 0.0
        %4837 = vmatpush1.msra.mxu0 0.0
        %4838 = vmatprep.subr.mxu0 0.0
        %4839 = vmatpush1.msra.mxu0 0.0
        %4840 = vmatprep.subr.mxu0 0.0
        %4841 = vmatpush1.msra.mxu0 0.0
        %4842 = vmatprep.subr.mxu0 0.0
        %4843 = vmatpush1.msra.mxu0 0.0
        %4844 = vmatprep.subr.mxu0 0.0
        %4845 = vmatpush1.msra.mxu0 0.0
        %4846 = vmatprep.subr.mxu0 0.0
        %4847 = vmatpush1.msra.mxu0 0.0
        %4848 = vmatprep.subr.mxu0 0.0
        %4849 = vmatpush1.msra.mxu0 0.0
        %4850 = vmatprep.subr.mxu0 0.0
        %4851 = vmatpush1.msra.mxu0 0.0
        %4852 = vmatprep.subr.mxu0 0.0
        %4853 = vmatpush1.msra.mxu0 0.0
        %4854 = vmatprep.subr.mxu0 0.0
        %4855 = vmatpush1.msra.mxu0 0.0
        %4856 = vmatprep.subr.mxu0 0.0
        %4857 = vmatpush1.msra.mxu0 0.0
        %4858 = vmatprep.subr.mxu0 0.0
        %4859 = vmatpush1.msra.mxu0 0.0
        %4860 = vmatprep.subr.mxu0 0.0
        %4861 = vmatpush1.msra.mxu0 0.0
        %4862 = vmatprep.subr.mxu0 0.0
        %4863 = vmatpush1.msra.mxu0 0.0
        %4864 = vmatprep.subr.mxu0 0.0
        %4865 = vmatpush1.msra.mxu0 0.0
        %4866 = vmatprep.subr.mxu0 0.0
        %4867 = vmatpush1.msra.mxu0 0.0
        %4868 = vmatprep.subr.mxu0 0.0
        %4869 = vmatpush1.msra.mxu0 0.0
        %4870 = vmatprep.subr.mxu0 0.0
        %4871 = vmatpush1.msra.mxu0 0.0
        %4872 = vmatprep.subr.mxu0 0.0
        %4873 = vmatpush1.msra.mxu0 0.0
        %4874 = vmatprep.subr.mxu0 0.0
        %4875 = vmatpush1.msra.mxu0 0.0
        %4876 = vmatprep.subr.mxu0 0.0
        %4877 = vmatpush1.msra.mxu0 0.0
        %4878 = vmatprep.subr.mxu0 0.0
        %4879 = vmatpush1.msra.mxu0 0.0
        %4880 = vmatprep.subr.mxu0 0.0
        %4881 = vmatpush1.msra.mxu0 0.0
        %4882 = vmatprep.subr.mxu0 0.0
        %4883 = vmatpush1.msra.mxu0 0.0
        %4884 = vmatprep.subr.mxu0 0.0
        %4885 = vmatpush1.msra.mxu0 0.0
        %4886 = vmatprep.subr.mxu0 0.0
        %4887 = vmatpush1.msra.mxu0 0.0
        %4888 = vmatprep.subr.mxu0 0.0
        %4889 = vmatpush1.msra.mxu0 0.0
        %4890 = vmatprep.subr.mxu0 0.0
        %4891 = vmatpush1.msra.mxu0 0.0
        %4892 = vmatprep.mubr.f32.mxu0 0.0
        %4893 = vmatmul.mubr.f32.gmra.mrb[0].mxu0 %v4814
        %v4894 = vpop.f32.mrb[0].mxu0
        %v4895 = vadd.f32 %v4796, %v4894
        %v4896 = vpop.f32.mrb[0].mxu0
        %4897 = vmatprep.mubr.f32.mxu0 0.0
        %4898 = vmatmul.mubr.f32.gmra.mrb[0].mxu0 %v4817
        %v4899 = vpop.f32.mrb[0].mxu0
        %v4900 = vadd.f32 %v4801, %v4899
        %v4901 = vpop.f32.mrb[0].mxu0
        %4902 = vmatprep.mubr.f32.mxu0 0.0
        %4903 = vmatmul.mubr.f32.gmra.mrb[0].mxu0 %v4820
        %v4904 = vpop.f32.mrb[0].mxu0
        %v4905 = vadd.f32 %v4806, %v4904
        %v4906 = vpop.f32.mrb[0].mxu0
        %4907 = vmatprep.mubr.f32.mxu0 0.0
        %4908 = vmatmul.mubr.f32.gmra.mrb[0].mxu0 %v4823
        %v4909 = vpop.f32.mrb[0].mxu0
        %v4910 = vadd.f32 %v4811, %v4909
        %v4911 = vpop.f32.mrb[0].mxu0
        %4912 = vdwg.mxu0
        %v4913 = vmul.f32 %v4895, %v547
        %v4914 = vmul.f32 %v4900, %v547
        %v4915 = vmul.f32 %v4905, %v547
        %v4916 = vmul.f32 %v4910, %v547
        %4921 = vrot.lane.b32.xlu0 %v4913, 2
        %v4922 = vpop.permute.xlu0 %4921
        %4923 = vrot.lane.b32.xlu0 %v4914, 2
        %v4924 = vpop.permute.xlu0 %4923
        %4925 = vrot.lane.b32.xlu0 %v4915, 2
        %v4926 = vpop.permute.xlu0 %4925
        %4927 = vrot.lane.b32.xlu0 %v4916, 2
        %v4928 = vpop.permute.xlu0 %4927
        %4933 = vst.msk [vmem:[#allocation2] sm:$0xff] %vm569, %v4922
        %4934 = vst.msk [vmem:[#allocation2 + $0x8] sm:$0xff] %vm569, %v4924
        %4935 = vst.msk [vmem:[#allocation2 + $0x10] sm:$0xff] %vm569, %v4926
        %4936 = vst.msk [vmem:[#allocation2 + $0x18] sm:$0xff] %vm569, %v4928
        %v4937 = vld [vmem:[#allocation2] sm:$0xff]
        %v4938 = vld [vmem:[#allocation2 + $0x8] sm:$0xff]
        %v4939 = vld [vmem:[#allocation2 + $0x10] sm:$0xff]
        %v4940 = vld [vmem:[#allocation2 + $0x18] sm:$0xff]
        %4945 = vrot.lane.b32.xlu0 %v4937, 127
        %v4946 = vpop.permute.xlu0 %4945
        %4947 = vrot.lane.b32.xlu0 %v4938, 127
        %v4948 = vpop.permute.xlu0 %4947
        %4949 = vrot.lane.b32.xlu0 %v4939, 127
        %v4950 = vpop.permute.xlu0 %4949
        %4951 = vrot.lane.b32.xlu0 %v4940, 127
        %v4952 = vpop.permute.xlu0 %4951
        %4957 = vrot.lane.b32.xlu0 %v4937, 126
        %v4958 = vpop.permute.xlu0 %4957
        %4959 = vrot.lane.b32.xlu0 %v4938, 126
        %v4960 = vpop.permute.xlu0 %4959
        %4961 = vrot.lane.b32.xlu0 %v4939, 126
        %v4962 = vpop.permute.xlu0 %4961
        %4963 = vrot.lane.b32.xlu0 %v4940, 126
        %v4964 = vpop.permute.xlu0 %4963
        %4969 = vrot.lane.b32.xlu0 %v4937, 125
        %v4970 = vpop.permute.xlu0 %4969
        %4971 = vrot.lane.b32.xlu0 %v4938, 125
        %v4972 = vpop.permute.xlu0 %4971
        %4973 = vrot.lane.b32.xlu0 %v4939, 125
        %v4974 = vpop.permute.xlu0 %4973
        %4975 = vrot.lane.b32.xlu0 %v4940, 125
        %v4976 = vpop.permute.xlu0 %4975
        %4981 = vrot.lane.b32.xlu0 %v4937, 124
        %v4982 = vpop.permute.xlu0 %4981
        %4983 = vrot.lane.b32.xlu0 %v4938, 124
        %v4984 = vpop.permute.xlu0 %4983
        %4985 = vrot.lane.b32.xlu0 %v4939, 124
        %v4986 = vpop.permute.xlu0 %4985
        %4987 = vrot.lane.b32.xlu0 %v4940, 124
        %v4988 = vpop.permute.xlu0 %4987
        %s4993 = scalar_lea.vmem %s4, 1024
        %v4994 = vld [vmem:[%s4993] sm:$0xff]
        %v4995 = vld [vmem:[%s4993 + $0x8] sm:$0xff]
        %v4996 = vld [vmem:[%s4993 + $0x10] sm:$0xff]
        %v4997 = vld [vmem:[%s4993 + $0x18] sm:$0xff]
        %v4998 = vld [vmem:[%s4993 + $0x20] sm:$0xff]
        %v4999 = vld [vmem:[%s4993 + $0x28] sm:$0xff]
        %v5000 = vld [vmem:[%s4993 + $0x30] sm:$0xff]
        %v5001 = vld [vmem:[%s4993 + $0x38] sm:$0xff]
        %v5002 = vld [vmem:[%s4993 + $0x40] sm:$0xff]
        %v5003 = vld [vmem:[%s4993 + $0x48] sm:$0xff]
        %v5004 = vld [vmem:[%s4993 + $0x50] sm:$0xff]
        %v5005 = vld [vmem:[%s4993 + $0x58] sm:$0xff]
        %v5006 = vld [vmem:[%s4993 + $0x60] sm:$0xff]
        %v5007 = vld [vmem:[%s4993 + $0x68] sm:$0xff]
        %v5008 = vld [vmem:[%s4993 + $0x70] sm:$0xff]
        %v5009 = vld [vmem:[%s4993 + $0x78] sm:$0xff]
        %s5010 = scalar_lea.vmem %s5, 512
        %v5011 = vld [vmem:[%s5010] sm:$0xff]
        %v5012 = vld [vmem:[%s5010 + $0x8] sm:$0xff]
        %v5013 = vld [vmem:[%s5010 + $0x10] sm:$0xff]
        %v5014 = vld [vmem:[%s5010 + $0x18] sm:$0xff]
        %v5015 = vld [vmem:[%s5010 + $0x20] sm:$0xff]
        %v5016 = vld [vmem:[%s5010 + $0x28] sm:$0xff]
        %v5017 = vld [vmem:[%s5010 + $0x30] sm:$0xff]
        %v5018 = vld [vmem:[%s5010 + $0x38] sm:$0xff]
        %5020 = vset.pattern.permute.xlu0 0
        %5021 = vperm.xlu0 %5020, %v5011
        %v5022 = vpop.permute.xlu0 %5021
        %5025 = vset.pattern.permute.xlu0 0
        %5026 = vperm.xlu0 %5025, %v5012
        %v5027 = vpop.permute.xlu0 %5026
        %5030 = vset.pattern.permute.xlu0 0
        %5031 = vperm.xlu0 %5030, %v5013
        %v5032 = vpop.permute.xlu0 %5031
        %5035 = vset.pattern.permute.xlu0 0
        %5036 = vperm.xlu0 %5035, %v5014
        %v5037 = vpop.permute.xlu0 %5036
        %5040 = vset.pattern.permute.xlu0 0
        %5041 = vperm.xlu0 %5040, %v5015
        %v5042 = vpop.permute.xlu0 %5041
        %5045 = vset.pattern.permute.xlu0 0
        %5046 = vperm.xlu0 %5045, %v5016
        %v5047 = vpop.permute.xlu0 %5046
        %5050 = vset.pattern.permute.xlu0 0
        %5051 = vperm.xlu0 %5050, %v5017
        %v5052 = vpop.permute.xlu0 %5051
        %5055 = vset.pattern.permute.xlu0 0
        %5056 = vperm.xlu0 %5055, %v5018
        %v5057 = vpop.permute.xlu0 %5056
        %v5060 = vsel %vm694, %v4995, 0
        %v5063 = vsel %vm694, %v4997, 0
        %v5066 = vsel %vm694, %v4999, 0
        %v5069 = vsel %vm694, %v5001, 0
        %v5072 = vsel %vm694, %v5003, 0
        %v5075 = vsel %vm694, %v5005, 0
        %v5078 = vsel %vm694, %v5007, 0
        %v5081 = vsel %vm694, %v5009, 0
        %5083 = vmatprep.subr.mxu0 0.0
        %5084 = vmatpush1.msra.mxu0 %v4937
        %5085 = vmatprep.subr.mxu0 0.0
        %5086 = vmatpush1.msra.mxu0 %v4938
        %5087 = vmatprep.subr.mxu0 0.0
        %5088 = vmatpush1.msra.mxu0 %v4939
        %5089 = vmatprep.subr.mxu0 0.0
        %5090 = vmatpush1.msra.mxu0 %v4940
        %5091 = vmatprep.subr.mxu0 0.0
        %5092 = vmatpush1.msra.mxu0 %v4946
        %5093 = vmatprep.subr.mxu0 0.0
        %5094 = vmatpush1.msra.mxu0 %v4948
        %5095 = vmatprep.subr.mxu0 0.0
        %5096 = vmatpush1.msra.mxu0 %v4950
        %5097 = vmatprep.subr.mxu0 0.0
        %5098 = vmatpush1.msra.mxu0 %v4952
        %5099 = vmatprep.subr.mxu0 0.0
        %5100 = vmatpush1.msra.mxu0 %v4958
        %5101 = vmatprep.subr.mxu0 0.0
        %5102 = vmatpush1.msra.mxu0 %v4960
        %5103 = vmatprep.subr.mxu0 0.0
        %5104 = vmatpush1.msra.mxu0 %v4962
        %5105 = vmatprep.subr.mxu0 0.0
        %5106 = vmatpush1.msra.mxu0 %v4964
        %5107 = vmatprep.subr.mxu0 0.0
        %5108 = vmatpush1.msra.mxu0 %v4970
        %5109 = vmatprep.subr.mxu0 0.0
        %5110 = vmatpush1.msra.mxu0 %v4972
        %5111 = vmatprep.subr.mxu0 0.0
        %5112 = vmatpush1.msra.mxu0 %v4974
        %5113 = vmatprep.subr.mxu0 0.0
        %5114 = vmatpush1.msra.mxu0 %v4976
        %5115 = vmatprep.subr.mxu0 0.0
        %5116 = vmatpush1.msra.mxu0 %v4982
        %5117 = vmatprep.subr.mxu0 0.0
        %5118 = vmatpush1.msra.mxu0 %v4984
        %5119 = vmatprep.subr.mxu0 0.0
        %5120 = vmatpush1.msra.mxu0 %v4986
        %5121 = vmatprep.subr.mxu0 0.0
        %5122 = vmatpush1.msra.mxu0 %v4988
        %5123 = vmatprep.subr.mxu0 0.0
        %5124 = vmatpush1.msra.mxu0 0.0
        %5125 = vmatprep.subr.mxu0 0.0
        %5126 = vmatpush1.msra.mxu0 0.0
        %5127 = vmatprep.subr.mxu0 0.0
        %5128 = vmatpush1.msra.mxu0 0.0
        %5129 = vmatprep.subr.mxu0 0.0
        %5130 = vmatpush1.msra.mxu0 0.0
        %5131 = vmatprep.subr.mxu0 0.0
        %5132 = vmatpush1.msra.mxu0 0.0
        %5133 = vmatprep.subr.mxu0 0.0
        %5134 = vmatpush1.msra.mxu0 0.0
        %5135 = vmatprep.subr.mxu0 0.0
        %5136 = vmatpush1.msra.mxu0 0.0
        %5137 = vmatprep.subr.mxu0 0.0
        %5138 = vmatpush1.msra.mxu0 0.0
        %5139 = vmatprep.subr.mxu0 0.0
        %5140 = vmatpush1.msra.mxu0 0.0
        %5141 = vmatprep.subr.mxu0 0.0
        %5142 = vmatpush1.msra.mxu0 0.0
        %5143 = vmatprep.subr.mxu0 0.0
        %5144 = vmatpush1.msra.mxu0 0.0
        %5145 = vmatprep.subr.mxu0 0.0
        %5146 = vmatpush1.msra.mxu0 0.0
        %5147 = vmatprep.mubr.f32.mxu0 %v5060
        %5148 = vmatmul.mubr.f32.gmra.mrb[0].mxu0 %v4994
        %v5149 = vpop.f32.mrb[0].mxu0
        %v5150 = vadd.f32 %v5022, %v5149
        %v5151 = vpop.f32.mrb[0].mxu0
        %5152 = vmatprep.mubr.f32.mxu0 %v5063
        %5153 = vmatmul.mubr.f32.gmra.mrb[0].mxu0 %v4996
        %v5154 = vpop.f32.mrb[0].mxu0
        %v5155 = vadd.f32 %v5027, %v5154
        %v5156 = vpop.f32.mrb[0].mxu0
        %5157 = vmatprep.mubr.f32.mxu0 %v5066
        %5158 = vmatmul.mubr.f32.gmra.mrb[0].mxu0 %v4998
        %v5159 = vpop.f32.mrb[0].mxu0
        %v5160 = vadd.f32 %v5032, %v5159
        %v5161 = vpop.f32.mrb[0].mxu0
        %5162 = vmatprep.mubr.f32.mxu0 %v5069
        %5163 = vmatmul.mubr.f32.gmra.mrb[0].mxu0 %v5000
        %v5164 = vpop.f32.mrb[0].mxu0
        %v5165 = vadd.f32 %v5037, %v5164
        %v5166 = vpop.f32.mrb[0].mxu0
        %5167 = vmatprep.mubr.f32.mxu0 %v5072
        %5168 = vmatmul.mubr.f32.gmra.mrb[0].mxu0 %v5002
        %v5169 = vpop.f32.mrb[0].mxu0
        %v5170 = vadd.f32 %v5042, %v5169
        %v5171 = vpop.f32.mrb[0].mxu0
        %5172 = vmatprep.mubr.f32.mxu0 %v5075
        %5173 = vmatmul.mubr.f32.gmra.mrb[0].mxu0 %v5004
        %v5174 = vpop.f32.mrb[0].mxu0
        %v5175 = vadd.f32 %v5047, %v5174
        %v5176 = vpop.f32.mrb[0].mxu0
        %5177 = vmatprep.mubr.f32.mxu0 %v5078
        %5178 = vmatmul.mubr.f32.gmra.mrb[0].mxu0 %v5006
        %v5179 = vpop.f32.mrb[0].mxu0
        %v5180 = vadd.f32 %v5052, %v5179
        %v5181 = vpop.f32.mrb[0].mxu0
        %5182 = vmatprep.mubr.f32.mxu0 %v5081
        %5183 = vmatmul.mubr.f32.gmra.mrb[0].mxu0 %v5008
        %v5184 = vpop.f32.mrb[0].mxu0
        %v5185 = vadd.f32 %v5057, %v5184
        %v5186 = vpop.f32.mrb[0].mxu0
        %5187 = vdwg.mxu0
        %v5188 = vtanh.pop %v5150
        %v5189 = vtanh.pop %v5155
        %v5190 = vtanh.pop %v5160
        %v5191 = vtanh.pop %v5165
        %v5192 = vxor.u32 %v5170, 2147483648
        %v5193 = vxor.u32 %v5175, 2147483648
        %v5194 = vxor.u32 %v5180, 2147483648
        %v5195 = vxor.u32 %v5185, 2147483648
        %v5196 = vmul.f32 %v5192, 1.442695
        %v5197 = vpow.pop %v5196
        %v5198 = vmul.f32 %v5193, 1.442695
        %v5199 = vpow.pop %v5198
        %v5200 = vmul.f32 %v5194, 1.442695
        %v5201 = vpow.pop %v5200
        %v5202 = vmul.f32 %v5195, 1.442695
        %v5203 = vpow.pop %v5202
        %v5204 = vadd.f32 %v5197, 1.0
        %v5205 = vadd.f32 %v5199, 1.0
        %v5206 = vadd.f32 %v5201, 1.0
        %v5207 = vadd.f32 %v5203, 1.0
        %v5208 = vrcp.pop %v5204
        %v5209 = vmul.f32 1.0, %v5208
        %v5210 = vrcp.pop %v5205
        %v5211 = vmul.f32 1.0, %v5210
        %v5212 = vrcp.pop %v5206
        %v5213 = vmul.f32 1.0, %v5212
        %v5214 = vrcp.pop %v5207
        %v5215 = vmul.f32 1.0, %v5214
        %v5216 = vmul.f32 %v5188, %v5209
        %v5217 = vmul.f32 %v5189, %v5211
        %v5218 = vmul.f32 %v5190, %v5213
        %v5219 = vmul.f32 %v5191, %v5215
        %s5220 = scalar_lea.vmem %s6, 512
        %v5221 = vld [vmem:[%s5220] sm:$0xff]
        %v5222 = vld [vmem:[%s5220 + $0x8] sm:$0xff]
        %v5223 = vld [vmem:[%s5220 + $0x10] sm:$0xff]
        %v5224 = vld [vmem:[%s5220 + $0x18] sm:$0xff]
        %v5225 = vld [vmem:[%s5220 + $0x20] sm:$0xff]
        %v5226 = vld [vmem:[%s5220 + $0x28] sm:$0xff]
        %v5227 = vld [vmem:[%s5220 + $0x30] sm:$0xff]
        %v5228 = vld [vmem:[%s5220 + $0x38] sm:$0xff]
        %s5229 = scalar_lea.vmem %s7, 512
        %v5230 = vld [vmem:[%s5229] sm:$0xff]
        %v5231 = vld [vmem:[%s5229 + $0x8] sm:$0xff]
        %v5232 = vld [vmem:[%s5229 + $0x10] sm:$0xff]
        %v5233 = vld [vmem:[%s5229 + $0x18] sm:$0xff]
        %v5234 = vld [vmem:[%s5229 + $0x20] sm:$0xff]
        %v5235 = vld [vmem:[%s5229 + $0x28] sm:$0xff]
        %v5236 = vld [vmem:[%s5229 + $0x30] sm:$0xff]
        %v5237 = vld [vmem:[%s5229 + $0x38] sm:$0xff]
        %5239 = vset.pattern.permute.xlu0 0
        %5240 = vperm.xlu0 %5239, %v5230
        %v5241 = vpop.permute.xlu0 %5240
        %5244 = vset.pattern.permute.xlu0 0
        %5245 = vperm.xlu0 %5244, %v5231
        %v5246 = vpop.permute.xlu0 %5245
        %5249 = vset.pattern.permute.xlu0 0
        %5250 = vperm.xlu0 %5249, %v5232
        %v5251 = vpop.permute.xlu0 %5250
        %5254 = vset.pattern.permute.xlu0 0
        %5255 = vperm.xlu0 %5254, %v5233
        %v5256 = vpop.permute.xlu0 %5255
        %5259 = vset.pattern.permute.xlu0 0
        %5260 = vperm.xlu0 %5259, %v5234
        %v5261 = vpop.permute.xlu0 %5260
        %5264 = vset.pattern.permute.xlu0 0
        %5265 = vperm.xlu0 %5264, %v5235
        %v5266 = vpop.permute.xlu0 %5265
        %5269 = vset.pattern.permute.xlu0 0
        %5270 = vperm.xlu0 %5269, %v5236
        %v5271 = vpop.permute.xlu0 %5270
        %5274 = vset.pattern.permute.xlu0 0
        %5275 = vperm.xlu0 %5274, %v5237
        %v5276 = vpop.permute.xlu0 %5275
        %v5279 = vsel %vm694, %v5221, 0
        %v5282 = vsel %vm694, %v5222, 0
        %v5285 = vsel %vm694, %v5223, 0
        %v5288 = vsel %vm694, %v5224, 0
        %v5291 = vsel %vm694, %v5225, 0
        %v5294 = vsel %vm694, %v5226, 0
        %v5297 = vsel %vm694, %v5227, 0
        %v5300 = vsel %vm694, %v5228, 0
        %5302 = vmatprep.subr.mxu0 0.0
        %5303 = vmatpush1.msra.mxu0 %v5216
        %5304 = vmatprep.subr.mxu0 0.0
        %5305 = vmatpush1.msra.mxu0 %v5217
        %5306 = vmatprep.subr.mxu0 0.0
        %5307 = vmatpush1.msra.mxu0 %v5218
        %5308 = vmatprep.subr.mxu0 0.0
        %5309 = vmatpush1.msra.mxu0 %v5219
        %5310 = vmatprep.subr.mxu0 0.0
        %5311 = vmatpush1.msra.mxu0 0.0
        %5312 = vmatprep.subr.mxu0 0.0
        %5313 = vmatpush1.msra.mxu0 0.0
        %5314 = vmatprep.subr.mxu0 0.0
        %5315 = vmatpush1.msra.mxu0 0.0
        %5316 = vmatprep.subr.mxu0 0.0
        %5317 = vmatpush1.msra.mxu0 0.0
        %5318 = vmatprep.subr.mxu0 0.0
        %5319 = vmatpush1.msra.mxu0 0.0
        %5320 = vmatprep.subr.mxu0 0.0
        %5321 = vmatpush1.msra.mxu0 0.0
        %5322 = vmatprep.subr.mxu0 0.0
        %5323 = vmatpush1.msra.mxu0 0.0
        %5324 = vmatprep.subr.mxu0 0.0
        %5325 = vmatpush1.msra.mxu0 0.0
        %5326 = vmatprep.subr.mxu0 0.0
        %5327 = vmatpush1.msra.mxu0 0.0
        %5328 = vmatprep.subr.mxu0 0.0
        %5329 = vmatpush1.msra.mxu0 0.0
        %5330 = vmatprep.subr.mxu0 0.0
        %5331 = vmatpush1.msra.mxu0 0.0
        %5332 = vmatprep.subr.mxu0 0.0
        %5333 = vmatpush1.msra.mxu0 0.0
        %5334 = vmatprep.subr.mxu0 0.0
        %5335 = vmatpush1.msra.mxu0 0.0
        %5336 = vmatprep.subr.mxu0 0.0
        %5337 = vmatpush1.msra.mxu0 0.0
        %5338 = vmatprep.subr.mxu0 0.0
        %5339 = vmatpush1.msra.mxu0 0.0
        %5340 = vmatprep.subr.mxu0 0.0
        %5341 = vmatpush1.msra.mxu0 0.0
        %5342 = vmatprep.subr.mxu0 0.0
        %5343 = vmatpush1.msra.mxu0 0.0
        %5344 = vmatprep.subr.mxu0 0.0
        %5345 = vmatpush1.msra.mxu0 0.0
        %5346 = vmatprep.subr.mxu0 0.0
        %5347 = vmatpush1.msra.mxu0 0.0
        %5348 = vmatprep.subr.mxu0 0.0
        %5349 = vmatpush1.msra.mxu0 0.0
        %5350 = vmatprep.subr.mxu0 0.0
        %5351 = vmatpush1.msra.mxu0 0.0
        %5352 = vmatprep.subr.mxu0 0.0
        %5353 = vmatpush1.msra.mxu0 0.0
        %5354 = vmatprep.subr.mxu0 0.0
        %5355 = vmatpush1.msra.mxu0 0.0
        %5356 = vmatprep.subr.mxu0 0.0
        %5357 = vmatpush1.msra.mxu0 0.0
        %5358 = vmatprep.subr.mxu0 0.0
        %5359 = vmatpush1.msra.mxu0 0.0
        %5360 = vmatprep.subr.mxu0 0.0
        %5361 = vmatpush1.msra.mxu0 0.0
        %5362 = vmatprep.subr.mxu0 0.0
        %5363 = vmatpush1.msra.mxu0 0.0
        %5364 = vmatprep.subr.mxu0 0.0
        %5365 = vmatpush1.msra.mxu0 0.0
        %5366 = vmatprep.mubr.f32.mxu0 0.0
        %5367 = vmatmul.mubr.f32.gmra.mrb[0].mxu0 %v5279
        %v5368 = vpop.f32.mrb[0].mxu0
        %v5369 = vadd.f32 %v5241, %v5368
        %v5370 = vpop.f32.mrb[0].mxu0
        %5371 = vmatprep.mubr.f32.mxu0 0.0
        %5372 = vmatmul.mubr.f32.gmra.mrb[0].mxu0 %v5282
        %v5373 = vpop.f32.mrb[0].mxu0
        %v5374 = vadd.f32 %v5246, %v5373
        %v5375 = vpop.f32.mrb[0].mxu0
        %5376 = vmatprep.mubr.f32.mxu0 0.0
        %5377 = vmatmul.mubr.f32.gmra.mrb[0].mxu0 %v5285
        %v5378 = vpop.f32.mrb[0].mxu0
        %v5379 = vadd.f32 %v5251, %v5378
        %v5380 = vpop.f32.mrb[0].mxu0
        %5381 = vmatprep.mubr.f32.mxu0 0.0
        %5382 = vmatmul.mubr.f32.gmra.mrb[0].mxu0 %v5288
        %v5383 = vpop.f32.mrb[0].mxu0
        %v5384 = vadd.f32 %v5256, %v5383
        %v5385 = vpop.f32.mrb[0].mxu0
        %5386 = vmatprep.mubr.f32.mxu0 0.0
        %5387 = vmatmul.mubr.f32.gmra.mrb[0].mxu0 %v5291
        %v5388 = vpop.f32.mrb[0].mxu0
        %v5389 = vadd.f32 %v5261, %v5388
        %v5390 = vpop.f32.mrb[0].mxu0
        %5391 = vmatprep.mubr.f32.mxu0 0.0
        %5392 = vmatmul.mubr.f32.gmra.mrb[0].mxu0 %v5294
        %v5393 = vpop.f32.mrb[0].mxu0
        %v5394 = vadd.f32 %v5266, %v5393
        %v5395 = vpop.f32.mrb[0].mxu0
        %5396 = vmatprep.mubr.f32.mxu0 0.0
        %5397 = vmatmul.mubr.f32.gmra.mrb[0].mxu0 %v5297
        %v5398 = vpop.f32.mrb[0].mxu0
        %v5399 = vadd.f32 %v5271, %v5398
        %v5400 = vpop.f32.mrb[0].mxu0
        %5401 = vmatprep.mubr.f32.mxu0 0.0
        %5402 = vmatmul.mubr.f32.gmra.mrb[0].mxu0 %v5300
        %v5403 = vpop.f32.mrb[0].mxu0
        %v5404 = vadd.f32 %v5276, %v5403
        %v5405 = vpop.f32.mrb[0].mxu0
        %5406 = vdwg.mxu0
        %v5407 = vadd.f32 %v4913, %v5369
        %v5408 = vadd.f32 %v4914, %v5374
        %v5409 = vadd.f32 %v4915, %v5379
        %v5410 = vadd.f32 %v4916, %v5384
        %v5411 = vmul.f32 %v5407, %v547
        %v5412 = vmul.f32 %v5408, %v547
        %v5413 = vmul.f32 %v5409, %v547
        %v5414 = vmul.f32 %v5410, %v547
        %v5415 = vadd.f32 %v5389, 0.0
        %v5416 = vadd.f32 %v5394, 0.0
        %v5417 = vadd.f32 %v5399, 0.0
        %v5418 = vadd.f32 %v5404, 0.0
        %5423 = vrot.lane.b32.xlu0 %v5411, 2
        %v5424 = vpop.permute.xlu0 %5423
        %5425 = vrot.lane.b32.xlu0 %v5412, 2
        %v5426 = vpop.permute.xlu0 %5425
        %5427 = vrot.lane.b32.xlu0 %v5413, 2
        %v5428 = vpop.permute.xlu0 %5427
        %5429 = vrot.lane.b32.xlu0 %v5414, 2
        %v5430 = vpop.permute.xlu0 %5429
        %5435 = vst.msk [vmem:[#allocation2] sm:$0xff] %vm569, %v5424
        %5436 = vst.msk [vmem:[#allocation2 + $0x8] sm:$0xff] %vm569, %v5426
        %5437 = vst.msk [vmem:[#allocation2 + $0x10] sm:$0xff] %vm569, %v5428
        %5438 = vst.msk [vmem:[#allocation2 + $0x18] sm:$0xff] %vm569, %v5430
        %v5439 = vld [vmem:[#allocation2] sm:$0xff]
        %v5440 = vld [vmem:[#allocation2 + $0x8] sm:$0xff]
        %v5441 = vld [vmem:[#allocation2 + $0x10] sm:$0xff]
        %v5442 = vld [vmem:[#allocation2 + $0x18] sm:$0xff]
        %5447 = vrot.lane.b32.xlu0 %v5439, 127
        %v5448 = vpop.permute.xlu0 %5447
        %5449 = vrot.lane.b32.xlu0 %v5440, 127
        %v5450 = vpop.permute.xlu0 %5449
        %5451 = vrot.lane.b32.xlu0 %v5441, 127
        %v5452 = vpop.permute.xlu0 %5451
        %5453 = vrot.lane.b32.xlu0 %v5442, 127
        %v5454 = vpop.permute.xlu0 %5453
        %5459 = vrot.lane.b32.xlu0 %v5439, 126
        %v5460 = vpop.permute.xlu0 %5459
        %5461 = vrot.lane.b32.xlu0 %v5440, 126
        %v5462 = vpop.permute.xlu0 %5461
        %5463 = vrot.lane.b32.xlu0 %v5441, 126
        %v5464 = vpop.permute.xlu0 %5463
        %5465 = vrot.lane.b32.xlu0 %v5442, 126
        %v5466 = vpop.permute.xlu0 %5465
        %5471 = vrot.lane.b32.xlu0 %v5439, 125
        %v5472 = vpop.permute.xlu0 %5471
        %5473 = vrot.lane.b32.xlu0 %v5440, 125
        %v5474 = vpop.permute.xlu0 %5473
        %5475 = vrot.lane.b32.xlu0 %v5441, 125
        %v5476 = vpop.permute.xlu0 %5475
        %5477 = vrot.lane.b32.xlu0 %v5442, 125
        %v5478 = vpop.permute.xlu0 %5477
        %5483 = vrot.lane.b32.xlu0 %v5439, 124
        %v5484 = vpop.permute.xlu0 %5483
        %5485 = vrot.lane.b32.xlu0 %v5440, 124
        %v5486 = vpop.permute.xlu0 %5485
        %5487 = vrot.lane.b32.xlu0 %v5441, 124
        %v5488 = vpop.permute.xlu0 %5487
        %5489 = vrot.lane.b32.xlu0 %v5442, 124
        %v5490 = vpop.permute.xlu0 %5489
        %s5495 = scalar_lea.vmem %s4, 1152
        %v5496 = vld [vmem:[%s5495] sm:$0xff]
        %v5497 = vld [vmem:[%s5495 + $0x8] sm:$0xff]
        %v5498 = vld [vmem:[%s5495 + $0x10] sm:$0xff]
        %v5499 = vld [vmem:[%s5495 + $0x18] sm:$0xff]
        %v5500 = vld [vmem:[%s5495 + $0x20] sm:$0xff]
        %v5501 = vld [vmem:[%s5495 + $0x28] sm:$0xff]
        %v5502 = vld [vmem:[%s5495 + $0x30] sm:$0xff]
        %v5503 = vld [vmem:[%s5495 + $0x38] sm:$0xff]
        %v5504 = vld [vmem:[%s5495 + $0x40] sm:$0xff]
        %v5505 = vld [vmem:[%s5495 + $0x48] sm:$0xff]
        %v5506 = vld [vmem:[%s5495 + $0x50] sm:$0xff]
        %v5507 = vld [vmem:[%s5495 + $0x58] sm:$0xff]
        %v5508 = vld [vmem:[%s5495 + $0x60] sm:$0xff]
        %v5509 = vld [vmem:[%s5495 + $0x68] sm:$0xff]
        %v5510 = vld [vmem:[%s5495 + $0x70] sm:$0xff]
        %v5511 = vld [vmem:[%s5495 + $0x78] sm:$0xff]
        %s5512 = scalar_lea.vmem %s5, 576
        %v5513 = vld [vmem:[%s5512] sm:$0xff]
        %v5514 = vld [vmem:[%s5512 + $0x8] sm:$0xff]
        %v5515 = vld [vmem:[%s5512 + $0x10] sm:$0xff]
        %v5516 = vld [vmem:[%s5512 + $0x18] sm:$0xff]
        %v5517 = vld [vmem:[%s5512 + $0x20] sm:$0xff]
        %v5518 = vld [vmem:[%s5512 + $0x28] sm:$0xff]
        %v5519 = vld [vmem:[%s5512 + $0x30] sm:$0xff]
        %v5520 = vld [vmem:[%s5512 + $0x38] sm:$0xff]
        %5522 = vset.pattern.permute.xlu0 0
        %5523 = vperm.xlu0 %5522, %v5513
        %v5524 = vpop.permute.xlu0 %5523
        %5527 = vset.pattern.permute.xlu0 0
        %5528 = vperm.xlu0 %5527, %v5514
        %v5529 = vpop.permute.xlu0 %5528
        %5532 = vset.pattern.permute.xlu0 0
        %5533 = vperm.xlu0 %5532, %v5515
        %v5534 = vpop.permute.xlu0 %5533
        %5537 = vset.pattern.permute.xlu0 0
        %5538 = vperm.xlu0 %5537, %v5516
        %v5539 = vpop.permute.xlu0 %5538
        %5542 = vset.pattern.permute.xlu0 0
        %5543 = vperm.xlu0 %5542, %v5517
        %v5544 = vpop.permute.xlu0 %5543
        %5547 = vset.pattern.permute.xlu0 0
        %5548 = vperm.xlu0 %5547, %v5518
        %v5549 = vpop.permute.xlu0 %5548
        %5552 = vset.pattern.permute.xlu0 0
        %5553 = vperm.xlu0 %5552, %v5519
        %v5554 = vpop.permute.xlu0 %5553
        %5557 = vset.pattern.permute.xlu0 0
        %5558 = vperm.xlu0 %5557, %v5520
        %v5559 = vpop.permute.xlu0 %5558
        %v5562 = vsel %vm694, %v5497, 0
        %v5565 = vsel %vm694, %v5499, 0
        %v5568 = vsel %vm694, %v5501, 0
        %v5571 = vsel %vm694, %v5503, 0
        %v5574 = vsel %vm694, %v5505, 0
        %v5577 = vsel %vm694, %v5507, 0
        %v5580 = vsel %vm694, %v5509, 0
        %v5583 = vsel %vm694, %v5511, 0
        %5585 = vmatprep.subr.mxu0 0.0
        %5586 = vmatpush1.msra.mxu0 %v5439
        %5587 = vmatprep.subr.mxu0 0.0
        %5588 = vmatpush1.msra.mxu0 %v5440
        %5589 = vmatprep.subr.mxu0 0.0
        %5590 = vmatpush1.msra.mxu0 %v5441
        %5591 = vmatprep.subr.mxu0 0.0
        %5592 = vmatpush1.msra.mxu0 %v5442
        %5593 = vmatprep.subr.mxu0 0.0
        %5594 = vmatpush1.msra.mxu0 %v5448
        %5595 = vmatprep.subr.mxu0 0.0
        %5596 = vmatpush1.msra.mxu0 %v5450
        %5597 = vmatprep.subr.mxu0 0.0
        %5598 = vmatpush1.msra.mxu0 %v5452
        %5599 = vmatprep.subr.mxu0 0.0
        %5600 = vmatpush1.msra.mxu0 %v5454
        %5601 = vmatprep.subr.mxu0 0.0
        %5602 = vmatpush1.msra.mxu0 %v5460
        %5603 = vmatprep.subr.mxu0 0.0
        %5604 = vmatpush1.msra.mxu0 %v5462
        %5605 = vmatprep.subr.mxu0 0.0
        %5606 = vmatpush1.msra.mxu0 %v5464
        %5607 = vmatprep.subr.mxu0 0.0
        %5608 = vmatpush1.msra.mxu0 %v5466
        %5609 = vmatprep.subr.mxu0 0.0
        %5610 = vmatpush1.msra.mxu0 %v5472
        %5611 = vmatprep.subr.mxu0 0.0
        %5612 = vmatpush1.msra.mxu0 %v5474
        %5613 = vmatprep.subr.mxu0 0.0
        %5614 = vmatpush1.msra.mxu0 %v5476
        %5615 = vmatprep.subr.mxu0 0.0
        %5616 = vmatpush1.msra.mxu0 %v5478
        %5617 = vmatprep.subr.mxu0 0.0
        %5618 = vmatpush1.msra.mxu0 %v5484
        %5619 = vmatprep.subr.mxu0 0.0
        %5620 = vmatpush1.msra.mxu0 %v5486
        %5621 = vmatprep.subr.mxu0 0.0
        %5622 = vmatpush1.msra.mxu0 %v5488
        %5623 = vmatprep.subr.mxu0 0.0
        %5624 = vmatpush1.msra.mxu0 %v5490
        %5625 = vmatprep.subr.mxu0 0.0
        %5626 = vmatpush1.msra.mxu0 0.0
        %5627 = vmatprep.subr.mxu0 0.0
        %5628 = vmatpush1.msra.mxu0 0.0
        %5629 = vmatprep.subr.mxu0 0.0
        %5630 = vmatpush1.msra.mxu0 0.0
        %5631 = vmatprep.subr.mxu0 0.0
        %5632 = vmatpush1.msra.mxu0 0.0
        %5633 = vmatprep.subr.mxu0 0.0
        %5634 = vmatpush1.msra.mxu0 0.0
        %5635 = vmatprep.subr.mxu0 0.0
        %5636 = vmatpush1.msra.mxu0 0.0
        %5637 = vmatprep.subr.mxu0 0.0
        %5638 = vmatpush1.msra.mxu0 0.0
        %5639 = vmatprep.subr.mxu0 0.0
        %5640 = vmatpush1.msra.mxu0 0.0
        %5641 = vmatprep.subr.mxu0 0.0
        %5642 = vmatpush1.msra.mxu0 0.0
        %5643 = vmatprep.subr.mxu0 0.0
        %5644 = vmatpush1.msra.mxu0 0.0
        %5645 = vmatprep.subr.mxu0 0.0
        %5646 = vmatpush1.msra.mxu0 0.0
        %5647 = vmatprep.subr.mxu0 0.0
        %5648 = vmatpush1.msra.mxu0 0.0
        %5649 = vmatprep.mubr.f32.mxu0 %v5562
        %5650 = vmatmul.mubr.f32.gmra.mrb[0].mxu0 %v5496
        %v5651 = vpop.f32.mrb[0].mxu0
        %v5652 = vadd.f32 %v5524, %v5651
        %v5653 = vpop.f32.mrb[0].mxu0
        %5654 = vmatprep.mubr.f32.mxu0 %v5565
        %5655 = vmatmul.mubr.f32.gmra.mrb[0].mxu0 %v5498
        %v5656 = vpop.f32.mrb[0].mxu0
        %v5657 = vadd.f32 %v5529, %v5656
        %v5658 = vpop.f32.mrb[0].mxu0
        %5659 = vmatprep.mubr.f32.mxu0 %v5568
        %5660 = vmatmul.mubr.f32.gmra.mrb[0].mxu0 %v5500
        %v5661 = vpop.f32.mrb[0].mxu0
        %v5662 = vadd.f32 %v5534, %v5661
        %v5663 = vpop.f32.mrb[0].mxu0
        %5664 = vmatprep.mubr.f32.mxu0 %v5571
        %5665 = vmatmul.mubr.f32.gmra.mrb[0].mxu0 %v5502
        %v5666 = vpop.f32.mrb[0].mxu0
        %v5667 = vadd.f32 %v5539, %v5666
        %v5668 = vpop.f32.mrb[0].mxu0
        %5669 = vmatprep.mubr.f32.mxu0 %v5574
        %5670 = vmatmul.mubr.f32.gmra.mrb[0].mxu0 %v5504
        %v5671 = vpop.f32.mrb[0].mxu0
        %v5672 = vadd.f32 %v5544, %v5671
        %v5673 = vpop.f32.mrb[0].mxu0
        %5674 = vmatprep.mubr.f32.mxu0 %v5577
        %5675 = vmatmul.mubr.f32.gmra.mrb[0].mxu0 %v5506
        %v5676 = vpop.f32.mrb[0].mxu0
        %v5677 = vadd.f32 %v5549, %v5676
        %v5678 = vpop.f32.mrb[0].mxu0
        %5679 = vmatprep.mubr.f32.mxu0 %v5580
        %5680 = vmatmul.mubr.f32.gmra.mrb[0].mxu0 %v5508
        %v5681 = vpop.f32.mrb[0].mxu0
        %v5682 = vadd.f32 %v5554, %v5681
        %v5683 = vpop.f32.mrb[0].mxu0
        %5684 = vmatprep.mubr.f32.mxu0 %v5583
        %5685 = vmatmul.mubr.f32.gmra.mrb[0].mxu0 %v5510
        %v5686 = vpop.f32.mrb[0].mxu0
        %v5687 = vadd.f32 %v5559, %v5686
        %v5688 = vpop.f32.mrb[0].mxu0
        %5689 = vdwg.mxu0
        %v5690 = vtanh.pop %v5652
        %v5691 = vtanh.pop %v5657
        %v5692 = vtanh.pop %v5662
        %v5693 = vtanh.pop %v5667
        %v5694 = vxor.u32 %v5672, 2147483648
        %v5695 = vxor.u32 %v5677, 2147483648
        %v5696 = vxor.u32 %v5682, 2147483648
        %v5697 = vxor.u32 %v5687, 2147483648
        %v5698 = vmul.f32 %v5694, 1.442695
        %v5699 = vpow.pop %v5698
        %v5700 = vmul.f32 %v5695, 1.442695
        %v5701 = vpow.pop %v5700
        %v5702 = vmul.f32 %v5696, 1.442695
        %v5703 = vpow.pop %v5702
        %v5704 = vmul.f32 %v5697, 1.442695
        %v5705 = vpow.pop %v5704
        %v5706 = vadd.f32 %v5699, 1.0
        %v5707 = vadd.f32 %v5701, 1.0
        %v5708 = vadd.f32 %v5703, 1.0
        %v5709 = vadd.f32 %v5705, 1.0
        %v5710 = vrcp.pop %v5706
        %v5711 = vmul.f32 1.0, %v5710
        %v5712 = vrcp.pop %v5707
        %v5713 = vmul.f32 1.0, %v5712
        %v5714 = vrcp.pop %v5708
        %v5715 = vmul.f32 1.0, %v5714
        %v5716 = vrcp.pop %v5709
        %v5717 = vmul.f32 1.0, %v5716
        %v5718 = vmul.f32 %v5690, %v5711
        %v5719 = vmul.f32 %v5691, %v5713
        %v5720 = vmul.f32 %v5692, %v5715
        %v5721 = vmul.f32 %v5693, %v5717
        %s5722 = scalar_lea.vmem %s6, 576
        %v5723 = vld [vmem:[%s5722] sm:$0xff]
        %v5724 = vld [vmem:[%s5722 + $0x8] sm:$0xff]
        %v5725 = vld [vmem:[%s5722 + $0x10] sm:$0xff]
        %v5726 = vld [vmem:[%s5722 + $0x18] sm:$0xff]
        %v5727 = vld [vmem:[%s5722 + $0x20] sm:$0xff]
        %v5728 = vld [vmem:[%s5722 + $0x28] sm:$0xff]
        %v5729 = vld [vmem:[%s5722 + $0x30] sm:$0xff]
        %v5730 = vld [vmem:[%s5722 + $0x38] sm:$0xff]
        %s5731 = scalar_lea.vmem %s7, 576
        %v5732 = vld [vmem:[%s5731] sm:$0xff]
        %v5733 = vld [vmem:[%s5731 + $0x8] sm:$0xff]
        %v5734 = vld [vmem:[%s5731 + $0x10] sm:$0xff]
        %v5735 = vld [vmem:[%s5731 + $0x18] sm:$0xff]
        %v5736 = vld [vmem:[%s5731 + $0x20] sm:$0xff]
        %v5737 = vld [vmem:[%s5731 + $0x28] sm:$0xff]
        %v5738 = vld [vmem:[%s5731 + $0x30] sm:$0xff]
        %v5739 = vld [vmem:[%s5731 + $0x38] sm:$0xff]
        %5741 = vset.pattern.permute.xlu0 0
        %5742 = vperm.xlu0 %5741, %v5732
        %v5743 = vpop.permute.xlu0 %5742
        %5746 = vset.pattern.permute.xlu0 0
        %5747 = vperm.xlu0 %5746, %v5733
        %v5748 = vpop.permute.xlu0 %5747
        %5751 = vset.pattern.permute.xlu0 0
        %5752 = vperm.xlu0 %5751, %v5734
        %v5753 = vpop.permute.xlu0 %5752
        %5756 = vset.pattern.permute.xlu0 0
        %5757 = vperm.xlu0 %5756, %v5735
        %v5758 = vpop.permute.xlu0 %5757
        %5761 = vset.pattern.permute.xlu0 0
        %5762 = vperm.xlu0 %5761, %v5736
        %v5763 = vpop.permute.xlu0 %5762
        %5766 = vset.pattern.permute.xlu0 0
        %5767 = vperm.xlu0 %5766, %v5737
        %v5768 = vpop.permute.xlu0 %5767
        %5771 = vset.pattern.permute.xlu0 0
        %5772 = vperm.xlu0 %5771, %v5738
        %v5773 = vpop.permute.xlu0 %5772
        %5776 = vset.pattern.permute.xlu0 0
        %5777 = vperm.xlu0 %5776, %v5739
        %v5778 = vpop.permute.xlu0 %5777
        %v5781 = vsel %vm694, %v5723, 0
        %v5784 = vsel %vm694, %v5724, 0
        %v5787 = vsel %vm694, %v5725, 0
        %v5790 = vsel %vm694, %v5726, 0
        %v5793 = vsel %vm694, %v5727, 0
        %v5796 = vsel %vm694, %v5728, 0
        %v5799 = vsel %vm694, %v5729, 0
        %v5802 = vsel %vm694, %v5730, 0
        %5804 = vmatprep.subr.mxu0 0.0
        %5805 = vmatpush1.msra.mxu0 %v5718
        %5806 = vmatprep.subr.mxu0 0.0
        %5807 = vmatpush1.msra.mxu0 %v5719
        %5808 = vmatprep.subr.mxu0 0.0
        %5809 = vmatpush1.msra.mxu0 %v5720
        %5810 = vmatprep.subr.mxu0 0.0
        %5811 = vmatpush1.msra.mxu0 %v5721
        %5812 = vmatprep.subr.mxu0 0.0
        %5813 = vmatpush1.msra.mxu0 0.0
        %5814 = vmatprep.subr.mxu0 0.0
        %5815 = vmatpush1.msra.mxu0 0.0
        %5816 = vmatprep.subr.mxu0 0.0
        %5817 = vmatpush1.msra.mxu0 0.0
        %5818 = vmatprep.subr.mxu0 0.0
        %5819 = vmatpush1.msra.mxu0 0.0
        %5820 = vmatprep.subr.mxu0 0.0
        %5821 = vmatpush1.msra.mxu0 0.0
        %5822 = vmatprep.subr.mxu0 0.0
        %5823 = vmatpush1.msra.mxu0 0.0
        %5824 = vmatprep.subr.mxu0 0.0
        %5825 = vmatpush1.msra.mxu0 0.0
        %5826 = vmatprep.subr.mxu0 0.0
        %5827 = vmatpush1.msra.mxu0 0.0
        %5828 = vmatprep.subr.mxu0 0.0
        %5829 = vmatpush1.msra.mxu0 0.0
        %5830 = vmatprep.subr.mxu0 0.0
        %5831 = vmatpush1.msra.mxu0 0.0
        %5832 = vmatprep.subr.mxu0 0.0
        %5833 = vmatpush1.msra.mxu0 0.0
        %5834 = vmatprep.subr.mxu0 0.0
        %5835 = vmatpush1.msra.mxu0 0.0
        %5836 = vmatprep.subr.mxu0 0.0
        %5837 = vmatpush1.msra.mxu0 0.0
        %5838 = vmatprep.subr.mxu0 0.0
        %5839 = vmatpush1.msra.mxu0 0.0
        %5840 = vmatprep.subr.mxu0 0.0
        %5841 = vmatpush1.msra.mxu0 0.0
        %5842 = vmatprep.subr.mxu0 0.0
        %5843 = vmatpush1.msra.mxu0 0.0
        %5844 = vmatprep.subr.mxu0 0.0
        %5845 = vmatpush1.msra.mxu0 0.0
        %5846 = vmatprep.subr.mxu0 0.0
        %5847 = vmatpush1.msra.mxu0 0.0
        %5848 = vmatprep.subr.mxu0 0.0
        %5849 = vmatpush1.msra.mxu0 0.0
        %5850 = vmatprep.subr.mxu0 0.0
        %5851 = vmatpush1.msra.mxu0 0.0
        %5852 = vmatprep.subr.mxu0 0.0
        %5853 = vmatpush1.msra.mxu0 0.0
        %5854 = vmatprep.subr.mxu0 0.0
        %5855 = vmatpush1.msra.mxu0 0.0
        %5856 = vmatprep.subr.mxu0 0.0
        %5857 = vmatpush1.msra.mxu0 0.0
        %5858 = vmatprep.subr.mxu0 0.0
        %5859 = vmatpush1.msra.mxu0 0.0
        %5860 = vmatprep.subr.mxu0 0.0
        %5861 = vmatpush1.msra.mxu0 0.0
        %5862 = vmatprep.subr.mxu0 0.0
        %5863 = vmatpush1.msra.mxu0 0.0
        %5864 = vmatprep.subr.mxu0 0.0
        %5865 = vmatpush1.msra.mxu0 0.0
        %5866 = vmatprep.subr.mxu0 0.0
        %5867 = vmatpush1.msra.mxu0 0.0
        %5868 = vmatprep.mubr.f32.mxu0 0.0
        %5869 = vmatmul.mubr.f32.gmra.mrb[0].mxu0 %v5781
        %v5870 = vpop.f32.mrb[0].mxu0
        %v5871 = vadd.f32 %v5743, %v5870
        %v5872 = vpop.f32.mrb[0].mxu0
        %5873 = vmatprep.mubr.f32.mxu0 0.0
        %5874 = vmatmul.mubr.f32.gmra.mrb[0].mxu0 %v5784
        %v5875 = vpop.f32.mrb[0].mxu0
        %v5876 = vadd.f32 %v5748, %v5875
        %v5877 = vpop.f32.mrb[0].mxu0
        %5878 = vmatprep.mubr.f32.mxu0 0.0
        %5879 = vmatmul.mubr.f32.gmra.mrb[0].mxu0 %v5787
        %v5880 = vpop.f32.mrb[0].mxu0
        %v5881 = vadd.f32 %v5753, %v5880
        %v5882 = vpop.f32.mrb[0].mxu0
        %5883 = vmatprep.mubr.f32.mxu0 0.0
        %5884 = vmatmul.mubr.f32.gmra.mrb[0].mxu0 %v5790
        %v5885 = vpop.f32.mrb[0].mxu0
        %v5886 = vadd.f32 %v5758, %v5885
        %v5887 = vpop.f32.mrb[0].mxu0
        %5888 = vmatprep.mubr.f32.mxu0 0.0
        %5889 = vmatmul.mubr.f32.gmra.mrb[0].mxu0 %v5793
        %v5890 = vpop.f32.mrb[0].mxu0
        %v5891 = vadd.f32 %v5763, %v5890
        %v5892 = vpop.f32.mrb[0].mxu0
        %5893 = vmatprep.mubr.f32.mxu0 0.0
        %5894 = vmatmul.mubr.f32.gmra.mrb[0].mxu0 %v5796
        %v5895 = vpop.f32.mrb[0].mxu0
        %v5896 = vadd.f32 %v5768, %v5895
        %v5897 = vpop.f32.mrb[0].mxu0
        %5898 = vmatprep.mubr.f32.mxu0 0.0
        %5899 = vmatmul.mubr.f32.gmra.mrb[0].mxu0 %v5799
        %v5900 = vpop.f32.mrb[0].mxu0
        %v5901 = vadd.f32 %v5773, %v5900
        %v5902 = vpop.f32.mrb[0].mxu0
        %5903 = vmatprep.mubr.f32.mxu0 0.0
        %5904 = vmatmul.mubr.f32.gmra.mrb[0].mxu0 %v5802
        %v5905 = vpop.f32.mrb[0].mxu0
        %v5906 = vadd.f32 %v5778, %v5905
        %v5907 = vpop.f32.mrb[0].mxu0
        %5908 = vdwg.mxu0
        %v5909 = vadd.f32 %v5411, %v5871
        %v5910 = vadd.f32 %v5412, %v5876
        %v5911 = vadd.f32 %v5413, %v5881
        %v5912 = vadd.f32 %v5414, %v5886
        %v5913 = vmul.f32 %v5909, %v547
        %v5914 = vmul.f32 %v5910, %v547
        %v5915 = vmul.f32 %v5911, %v547
        %v5916 = vmul.f32 %v5912, %v547
        %v5917 = vadd.f32 %v5415, %v5891
        %v5918 = vadd.f32 %v5416, %v5896
        %v5919 = vadd.f32 %v5417, %v5901
        %v5920 = vadd.f32 %v5418, %v5906
        %5925 = vrot.lane.b32.xlu0 %v5913, 2
        %v5926 = vpop.permute.xlu0 %5925
        %5927 = vrot.lane.b32.xlu0 %v5914, 2
        %v5928 = vpop.permute.xlu0 %5927
        %5929 = vrot.lane.b32.xlu0 %v5915, 2
        %v5930 = vpop.permute.xlu0 %5929
        %5931 = vrot.lane.b32.xlu0 %v5916, 2
        %v5932 = vpop.permute.xlu0 %5931
        %5937 = vst.msk [vmem:[#allocation2] sm:$0xff] %vm569, %v5926
        %5938 = vst.msk [vmem:[#allocation2 + $0x8] sm:$0xff] %vm569, %v5928
        %5939 = vst.msk [vmem:[#allocation2 + $0x10] sm:$0xff] %vm569, %v5930
        %5940 = vst.msk [vmem:[#allocation2 + $0x18] sm:$0xff] %vm569, %v5932
        %v5941 = vld [vmem:[#allocation2] sm:$0xff]
        %v5942 = vld [vmem:[#allocation2 + $0x8] sm:$0xff]
        %v5943 = vld [vmem:[#allocation2 + $0x10] sm:$0xff]
        %v5944 = vld [vmem:[#allocation2 + $0x18] sm:$0xff]
        %5949 = vrot.lane.b32.xlu0 %v5941, 127
        %v5950 = vpop.permute.xlu0 %5949
        %5951 = vrot.lane.b32.xlu0 %v5942, 127
        %v5952 = vpop.permute.xlu0 %5951
        %5953 = vrot.lane.b32.xlu0 %v5943, 127
        %v5954 = vpop.permute.xlu0 %5953
        %5955 = vrot.lane.b32.xlu0 %v5944, 127
        %v5956 = vpop.permute.xlu0 %5955
        %5961 = vrot.lane.b32.xlu0 %v5941, 126
        %v5962 = vpop.permute.xlu0 %5961
        %5963 = vrot.lane.b32.xlu0 %v5942, 126
        %v5964 = vpop.permute.xlu0 %5963
        %5965 = vrot.lane.b32.xlu0 %v5943, 126
        %v5966 = vpop.permute.xlu0 %5965
        %5967 = vrot.lane.b32.xlu0 %v5944, 126
        %v5968 = vpop.permute.xlu0 %5967
        %5973 = vrot.lane.b32.xlu0 %v5941, 125
        %v5974 = vpop.permute.xlu0 %5973
        %5975 = vrot.lane.b32.xlu0 %v5942, 125
        %v5976 = vpop.permute.xlu0 %5975
        %5977 = vrot.lane.b32.xlu0 %v5943, 125
        %v5978 = vpop.permute.xlu0 %5977
        %5979 = vrot.lane.b32.xlu0 %v5944, 125
        %v5980 = vpop.permute.xlu0 %5979
        %5985 = vrot.lane.b32.xlu0 %v5941, 124
        %v5986 = vpop.permute.xlu0 %5985
        %5987 = vrot.lane.b32.xlu0 %v5942, 124
        %v5988 = vpop.permute.xlu0 %5987
        %5989 = vrot.lane.b32.xlu0 %v5943, 124
        %v5990 = vpop.permute.xlu0 %5989
        %5991 = vrot.lane.b32.xlu0 %v5944, 124
        %v5992 = vpop.permute.xlu0 %5991
        %s5997 = scalar_lea.vmem %s4, 1280
        %v5998 = vld [vmem:[%s5997] sm:$0xff]
        %v5999 = vld [vmem:[%s5997 + $0x8] sm:$0xff]
        %v6000 = vld [vmem:[%s5997 + $0x10] sm:$0xff]
        %v6001 = vld [vmem:[%s5997 + $0x18] sm:$0xff]
        %v6002 = vld [vmem:[%s5997 + $0x20] sm:$0xff]
        %v6003 = vld [vmem:[%s5997 + $0x28] sm:$0xff]
        %v6004 = vld [vmem:[%s5997 + $0x30] sm:$0xff]
        %v6005 = vld [vmem:[%s5997 + $0x38] sm:$0xff]
        %v6006 = vld [vmem:[%s5997 + $0x40] sm:$0xff]
        %v6007 = vld [vmem:[%s5997 + $0x48] sm:$0xff]
        %v6008 = vld [vmem:[%s5997 + $0x50] sm:$0xff]
        %v6009 = vld [vmem:[%s5997 + $0x58] sm:$0xff]
        %v6010 = vld [vmem:[%s5997 + $0x60] sm:$0xff]
        %v6011 = vld [vmem:[%s5997 + $0x68] sm:$0xff]
        %v6012 = vld [vmem:[%s5997 + $0x70] sm:$0xff]
        %v6013 = vld [vmem:[%s5997 + $0x78] sm:$0xff]
        %s6014 = scalar_lea.vmem %s5, 640
        %v6015 = vld [vmem:[%s6014] sm:$0xff]
        %v6016 = vld [vmem:[%s6014 + $0x8] sm:$0xff]
        %v6017 = vld [vmem:[%s6014 + $0x10] sm:$0xff]
        %v6018 = vld [vmem:[%s6014 + $0x18] sm:$0xff]
        %v6019 = vld [vmem:[%s6014 + $0x20] sm:$0xff]
        %v6020 = vld [vmem:[%s6014 + $0x28] sm:$0xff]
        %v6021 = vld [vmem:[%s6014 + $0x30] sm:$0xff]
        %v6022 = vld [vmem:[%s6014 + $0x38] sm:$0xff]
        %6024 = vset.pattern.permute.xlu0 0
        %6025 = vperm.xlu0 %6024, %v6015
        %v6026 = vpop.permute.xlu0 %6025
        %6029 = vset.pattern.permute.xlu0 0
        %6030 = vperm.xlu0 %6029, %v6016
        %v6031 = vpop.permute.xlu0 %6030
        %6034 = vset.pattern.permute.xlu0 0
        %6035 = vperm.xlu0 %6034, %v6017
        %v6036 = vpop.permute.xlu0 %6035
        %6039 = vset.pattern.permute.xlu0 0
        %6040 = vperm.xlu0 %6039, %v6018
        %v6041 = vpop.permute.xlu0 %6040
        %6044 = vset.pattern.permute.xlu0 0
        %6045 = vperm.xlu0 %6044, %v6019
        %v6046 = vpop.permute.xlu0 %6045
        %6049 = vset.pattern.permute.xlu0 0
        %6050 = vperm.xlu0 %6049, %v6020
        %v6051 = vpop.permute.xlu0 %6050
        %6054 = vset.pattern.permute.xlu0 0
        %6055 = vperm.xlu0 %6054, %v6021
        %v6056 = vpop.permute.xlu0 %6055
        %6059 = vset.pattern.permute.xlu0 0
        %6060 = vperm.xlu0 %6059, %v6022
        %v6061 = vpop.permute.xlu0 %6060
        %v6064 = vsel %vm694, %v5999, 0
        %v6067 = vsel %vm694, %v6001, 0
        %v6070 = vsel %vm694, %v6003, 0
        %v6073 = vsel %vm694, %v6005, 0
        %v6076 = vsel %vm694, %v6007, 0
        %v6079 = vsel %vm694, %v6009, 0
        %v6082 = vsel %vm694, %v6011, 0
        %v6085 = vsel %vm694, %v6013, 0
        %6087 = vmatprep.subr.mxu0 0.0
        %6088 = vmatpush1.msra.mxu0 %v5941
        %6089 = vmatprep.subr.mxu0 0.0
        %6090 = vmatpush1.msra.mxu0 %v5942
        %6091 = vmatprep.subr.mxu0 0.0
        %6092 = vmatpush1.msra.mxu0 %v5943
        %6093 = vmatprep.subr.mxu0 0.0
        %6094 = vmatpush1.msra.mxu0 %v5944
        %6095 = vmatprep.subr.mxu0 0.0
        %6096 = vmatpush1.msra.mxu0 %v5950
        %6097 = vmatprep.subr.mxu0 0.0
        %6098 = vmatpush1.msra.mxu0 %v5952
        %6099 = vmatprep.subr.mxu0 0.0
        %6100 = vmatpush1.msra.mxu0 %v5954
        %6101 = vmatprep.subr.mxu0 0.0
        %6102 = vmatpush1.msra.mxu0 %v5956
        %6103 = vmatprep.subr.mxu0 0.0
        %6104 = vmatpush1.msra.mxu0 %v5962
        %6105 = vmatprep.subr.mxu0 0.0
        %6106 = vmatpush1.msra.mxu0 %v5964
        %6107 = vmatprep.subr.mxu0 0.0
        %6108 = vmatpush1.msra.mxu0 %v5966
        %6109 = vmatprep.subr.mxu0 0.0
        %6110 = vmatpush1.msra.mxu0 %v5968
        %6111 = vmatprep.subr.mxu0 0.0
        %6112 = vmatpush1.msra.mxu0 %v5974
        %6113 = vmatprep.subr.mxu0 0.0
        %6114 = vmatpush1.msra.mxu0 %v5976
        %6115 = vmatprep.subr.mxu0 0.0
        %6116 = vmatpush1.msra.mxu0 %v5978
        %6117 = vmatprep.subr.mxu0 0.0
        %6118 = vmatpush1.msra.mxu0 %v5980
        %6119 = vmatprep.subr.mxu0 0.0
        %6120 = vmatpush1.msra.mxu0 %v5986
        %6121 = vmatprep.subr.mxu0 0.0
        %6122 = vmatpush1.msra.mxu0 %v5988
        %6123 = vmatprep.subr.mxu0 0.0
        %6124 = vmatpush1.msra.mxu0 %v5990
        %6125 = vmatprep.subr.mxu0 0.0
        %6126 = vmatpush1.msra.mxu0 %v5992
        %6127 = vmatprep.subr.mxu0 0.0
        %6128 = vmatpush1.msra.mxu0 0.0
        %6129 = vmatprep.subr.mxu0 0.0
        %6130 = vmatpush1.msra.mxu0 0.0
        %6131 = vmatprep.subr.mxu0 0.0
        %6132 = vmatpush1.msra.mxu0 0.0
        %6133 = vmatprep.subr.mxu0 0.0
        %6134 = vmatpush1.msra.mxu0 0.0
        %6135 = vmatprep.subr.mxu0 0.0
        %6136 = vmatpush1.msra.mxu0 0.0
        %6137 = vmatprep.subr.mxu0 0.0
        %6138 = vmatpush1.msra.mxu0 0.0
        %6139 = vmatprep.subr.mxu0 0.0
        %6140 = vmatpush1.msra.mxu0 0.0
        %6141 = vmatprep.subr.mxu0 0.0
        %6142 = vmatpush1.msra.mxu0 0.0
        %6143 = vmatprep.subr.mxu0 0.0
        %6144 = vmatpush1.msra.mxu0 0.0
        %6145 = vmatprep.subr.mxu0 0.0
        %6146 = vmatpush1.msra.mxu0 0.0
        %6147 = vmatprep.subr.mxu0 0.0
        %6148 = vmatpush1.msra.mxu0 0.0
        %6149 = vmatprep.subr.mxu0 0.0
        %6150 = vmatpush1.msra.mxu0 0.0
        %6151 = vmatprep.mubr.f32.mxu0 %v6064
        %6152 = vmatmul.mubr.f32.gmra.mrb[0].mxu0 %v5998
        %v6153 = vpop.f32.mrb[0].mxu0
        %v6154 = vadd.f32 %v6026, %v6153
        %v6155 = vpop.f32.mrb[0].mxu0
        %6156 = vmatprep.mubr.f32.mxu0 %v6067
        %6157 = vmatmul.mubr.f32.gmra.mrb[0].mxu0 %v6000
        %v6158 = vpop.f32.mrb[0].mxu0
        %v6159 = vadd.f32 %v6031, %v6158
        %v6160 = vpop.f32.mrb[0].mxu0
        %6161 = vmatprep.mubr.f32.mxu0 %v6070
        %6162 = vmatmul.mubr.f32.gmra.mrb[0].mxu0 %v6002
        %v6163 = vpop.f32.mrb[0].mxu0
        %v6164 = vadd.f32 %v6036, %v6163
        %v6165 = vpop.f32.mrb[0].mxu0
        %6166 = vmatprep.mubr.f32.mxu0 %v6073
        %6167 = vmatmul.mubr.f32.gmra.mrb[0].mxu0 %v6004
        %v6168 = vpop.f32.mrb[0].mxu0
        %v6169 = vadd.f32 %v6041, %v6168
        %v6170 = vpop.f32.mrb[0].mxu0
        %6171 = vmatprep.mubr.f32.mxu0 %v6076
        %6172 = vmatmul.mubr.f32.gmra.mrb[0].mxu0 %v6006
        %v6173 = vpop.f32.mrb[0].mxu0
        %v6174 = vadd.f32 %v6046, %v6173
        %v6175 = vpop.f32.mrb[0].mxu0
        %6176 = vmatprep.mubr.f32.mxu0 %v6079
        %6177 = vmatmul.mubr.f32.gmra.mrb[0].mxu0 %v6008
        %v6178 = vpop.f32.mrb[0].mxu0
        %v6179 = vadd.f32 %v6051, %v6178
        %v6180 = vpop.f32.mrb[0].mxu0
        %6181 = vmatprep.mubr.f32.mxu0 %v6082
        %6182 = vmatmul.mubr.f32.gmra.mrb[0].mxu0 %v6010
        %v6183 = vpop.f32.mrb[0].mxu0
        %v6184 = vadd.f32 %v6056, %v6183
        %v6185 = vpop.f32.mrb[0].mxu0
        %6186 = vmatprep.mubr.f32.mxu0 %v6085
        %6187 = vmatmul.mubr.f32.gmra.mrb[0].mxu0 %v6012
        %v6188 = vpop.f32.mrb[0].mxu0
        %v6189 = vadd.f32 %v6061, %v6188
        %v6190 = vpop.f32.mrb[0].mxu0
        %6191 = vdwg.mxu0
        %v6192 = vtanh.pop %v6154
        %v6193 = vtanh.pop %v6159
        %v6194 = vtanh.pop %v6164
        %v6195 = vtanh.pop %v6169
        %v6196 = vxor.u32 %v6174, 2147483648
        %v6197 = vxor.u32 %v6179, 2147483648
        %v6198 = vxor.u32 %v6184, 2147483648
        %v6199 = vxor.u32 %v6189, 2147483648
        %v6200 = vmul.f32 %v6196, 1.442695
        %v6201 = vpow.pop %v6200
        %v6202 = vmul.f32 %v6197, 1.442695
        %v6203 = vpow.pop %v6202
        %v6204 = vmul.f32 %v6198, 1.442695
        %v6205 = vpow.pop %v6204
        %v6206 = vmul.f32 %v6199, 1.442695
        %v6207 = vpow.pop %v6206
        %v6208 = vadd.f32 %v6201, 1.0
        %v6209 = vadd.f32 %v6203, 1.0
        %v6210 = vadd.f32 %v6205, 1.0
        %v6211 = vadd.f32 %v6207, 1.0
        %v6212 = vrcp.pop %v6208
        %v6213 = vmul.f32 1.0, %v6212
        %v6214 = vrcp.pop %v6209
        %v6215 = vmul.f32 1.0, %v6214
        %v6216 = vrcp.pop %v6210
        %v6217 = vmul.f32 1.0, %v6216
        %v6218 = vrcp.pop %v6211
        %v6219 = vmul.f32 1.0, %v6218
        %v6220 = vmul.f32 %v6192, %v6213
        %v6221 = vmul.f32 %v6193, %v6215
        %v6222 = vmul.f32 %v6194, %v6217
        %v6223 = vmul.f32 %v6195, %v6219
        %s6224 = scalar_lea.vmem %s6, 640
        %v6225 = vld [vmem:[%s6224] sm:$0xff]
        %v6226 = vld [vmem:[%s6224 + $0x8] sm:$0xff]
        %v6227 = vld [vmem:[%s6224 + $0x10] sm:$0xff]
        %v6228 = vld [vmem:[%s6224 + $0x18] sm:$0xff]
        %v6229 = vld [vmem:[%s6224 + $0x20] sm:$0xff]
        %v6230 = vld [vmem:[%s6224 + $0x28] sm:$0xff]
        %v6231 = vld [vmem:[%s6224 + $0x30] sm:$0xff]
        %v6232 = vld [vmem:[%s6224 + $0x38] sm:$0xff]
        %s6233 = scalar_lea.vmem %s7, 640
        %v6234 = vld [vmem:[%s6233] sm:$0xff]
        %v6235 = vld [vmem:[%s6233 + $0x8] sm:$0xff]
        %v6236 = vld [vmem:[%s6233 + $0x10] sm:$0xff]
        %v6237 = vld [vmem:[%s6233 + $0x18] sm:$0xff]
        %v6238 = vld [vmem:[%s6233 + $0x20] sm:$0xff]
        %v6239 = vld [vmem:[%s6233 + $0x28] sm:$0xff]
        %v6240 = vld [vmem:[%s6233 + $0x30] sm:$0xff]
        %v6241 = vld [vmem:[%s6233 + $0x38] sm:$0xff]
        %6243 = vset.pattern.permute.xlu0 0
        %6244 = vperm.xlu0 %6243, %v6234
        %v6245 = vpop.permute.xlu0 %6244
        %6248 = vset.pattern.permute.xlu0 0
        %6249 = vperm.xlu0 %6248, %v6235
        %v6250 = vpop.permute.xlu0 %6249
        %6253 = vset.pattern.permute.xlu0 0
        %6254 = vperm.xlu0 %6253, %v6236
        %v6255 = vpop.permute.xlu0 %6254
        %6258 = vset.pattern.permute.xlu0 0
        %6259 = vperm.xlu0 %6258, %v6237
        %v6260 = vpop.permute.xlu0 %6259
        %6263 = vset.pattern.permute.xlu0 0
        %6264 = vperm.xlu0 %6263, %v6238
        %v6265 = vpop.permute.xlu0 %6264
        %6268 = vset.pattern.permute.xlu0 0
        %6269 = vperm.xlu0 %6268, %v6239
        %v6270 = vpop.permute.xlu0 %6269
        %6273 = vset.pattern.permute.xlu0 0
        %6274 = vperm.xlu0 %6273, %v6240
        %v6275 = vpop.permute.xlu0 %6274
        %6278 = vset.pattern.permute.xlu0 0
        %6279 = vperm.xlu0 %6278, %v6241
        %v6280 = vpop.permute.xlu0 %6279
        %v6283 = vsel %vm694, %v6225, 0
        %v6286 = vsel %vm694, %v6226, 0
        %v6289 = vsel %vm694, %v6227, 0
        %v6292 = vsel %vm694, %v6228, 0
        %v6295 = vsel %vm694, %v6229, 0
        %v6298 = vsel %vm694, %v6230, 0
        %v6301 = vsel %vm694, %v6231, 0
        %v6304 = vsel %vm694, %v6232, 0
        %6306 = vmatprep.subr.mxu0 0.0
        %6307 = vmatpush1.msra.mxu0 %v6220
        %6308 = vmatprep.subr.mxu0 0.0
        %6309 = vmatpush1.msra.mxu0 %v6221
        %6310 = vmatprep.subr.mxu0 0.0
        %6311 = vmatpush1.msra.mxu0 %v6222
        %6312 = vmatprep.subr.mxu0 0.0
        %6313 = vmatpush1.msra.mxu0 %v6223
        %6314 = vmatprep.subr.mxu0 0.0
        %6315 = vmatpush1.msra.mxu0 0.0
        %6316 = vmatprep.subr.mxu0 0.0
        %6317 = vmatpush1.msra.mxu0 0.0
        %6318 = vmatprep.subr.mxu0 0.0
        %6319 = vmatpush1.msra.mxu0 0.0
        %6320 = vmatprep.subr.mxu0 0.0
        %6321 = vmatpush1.msra.mxu0 0.0
        %6322 = vmatprep.subr.mxu0 0.0
        %6323 = vmatpush1.msra.mxu0 0.0
        %6324 = vmatprep.subr.mxu0 0.0
        %6325 = vmatpush1.msra.mxu0 0.0
        %6326 = vmatprep.subr.mxu0 0.0
        %6327 = vmatpush1.msra.mxu0 0.0
        %6328 = vmatprep.subr.mxu0 0.0
        %6329 = vmatpush1.msra.mxu0 0.0
        %6330 = vmatprep.subr.mxu0 0.0
        %6331 = vmatpush1.msra.mxu0 0.0
        %6332 = vmatprep.subr.mxu0 0.0
        %6333 = vmatpush1.msra.mxu0 0.0
        %6334 = vmatprep.subr.mxu0 0.0
        %6335 = vmatpush1.msra.mxu0 0.0
        %6336 = vmatprep.subr.mxu0 0.0
        %6337 = vmatpush1.msra.mxu0 0.0
        %6338 = vmatprep.subr.mxu0 0.0
        %6339 = vmatpush1.msra.mxu0 0.0
        %6340 = vmatprep.subr.mxu0 0.0
        %6341 = vmatpush1.msra.mxu0 0.0
        %6342 = vmatprep.subr.mxu0 0.0
        %6343 = vmatpush1.msra.mxu0 0.0
        %6344 = vmatprep.subr.mxu0 0.0
        %6345 = vmatpush1.msra.mxu0 0.0
        %6346 = vmatprep.subr.mxu0 0.0
        %6347 = vmatpush1.msra.mxu0 0.0
        %6348 = vmatprep.subr.mxu0 0.0
        %6349 = vmatpush1.msra.mxu0 0.0
        %6350 = vmatprep.subr.mxu0 0.0
        %6351 = vmatpush1.msra.mxu0 0.0
        %6352 = vmatprep.subr.mxu0 0.0
        %6353 = vmatpush1.msra.mxu0 0.0
        %6354 = vmatprep.subr.mxu0 0.0
        %6355 = vmatpush1.msra.mxu0 0.0
        %6356 = vmatprep.subr.mxu0 0.0
        %6357 = vmatpush1.msra.mxu0 0.0
        %6358 = vmatprep.subr.mxu0 0.0
        %6359 = vmatpush1.msra.mxu0 0.0
        %6360 = vmatprep.subr.mxu0 0.0
        %6361 = vmatpush1.msra.mxu0 0.0
        %6362 = vmatprep.subr.mxu0 0.0
        %6363 = vmatpush1.msra.mxu0 0.0
        %6364 = vmatprep.subr.mxu0 0.0
        %6365 = vmatpush1.msra.mxu0 0.0
        %6366 = vmatprep.subr.mxu0 0.0
        %6367 = vmatpush1.msra.mxu0 0.0
        %6368 = vmatprep.subr.mxu0 0.0
        %6369 = vmatpush1.msra.mxu0 0.0
        %6370 = vmatprep.mubr.f32.mxu0 0.0
        %6371 = vmatmul.mubr.f32.gmra.mrb[0].mxu0 %v6283
        %v6372 = vpop.f32.mrb[0].mxu0
        %v6373 = vadd.f32 %v6245, %v6372
        %v6374 = vpop.f32.mrb[0].mxu0
        %6375 = vmatprep.mubr.f32.mxu0 0.0
        %6376 = vmatmul.mubr.f32.gmra.mrb[0].mxu0 %v6286
        %v6377 = vpop.f32.mrb[0].mxu0
        %v6378 = vadd.f32 %v6250, %v6377
        %v6379 = vpop.f32.mrb[0].mxu0
        %6380 = vmatprep.mubr.f32.mxu0 0.0
        %6381 = vmatmul.mubr.f32.gmra.mrb[0].mxu0 %v6289
        %v6382 = vpop.f32.mrb[0].mxu0
        %v6383 = vadd.f32 %v6255, %v6382
        %v6384 = vpop.f32.mrb[0].mxu0
        %6385 = vmatprep.mubr.f32.mxu0 0.0
        %6386 = vmatmul.mubr.f32.gmra.mrb[0].mxu0 %v6292
        %v6387 = vpop.f32.mrb[0].mxu0
        %v6388 = vadd.f32 %v6260, %v6387
        %v6389 = vpop.f32.mrb[0].mxu0
        %6390 = vmatprep.mubr.f32.mxu0 0.0
        %6391 = vmatmul.mubr.f32.gmra.mrb[0].mxu0 %v6295
        %v6392 = vpop.f32.mrb[0].mxu0
        %v6393 = vadd.f32 %v6265, %v6392
        %v6394 = vpop.f32.mrb[0].mxu0
        %6395 = vmatprep.mubr.f32.mxu0 0.0
        %6396 = vmatmul.mubr.f32.gmra.mrb[0].mxu0 %v6298
        %v6397 = vpop.f32.mrb[0].mxu0
        %v6398 = vadd.f32 %v6270, %v6397
        %v6399 = vpop.f32.mrb[0].mxu0
        %6400 = vmatprep.mubr.f32.mxu0 0.0
        %6401 = vmatmul.mubr.f32.gmra.mrb[0].mxu0 %v6301
        %v6402 = vpop.f32.mrb[0].mxu0
        %v6403 = vadd.f32 %v6275, %v6402
        %v6404 = vpop.f32.mrb[0].mxu0
        %6405 = vmatprep.mubr.f32.mxu0 0.0
        %6406 = vmatmul.mubr.f32.gmra.mrb[0].mxu0 %v6304
        %v6407 = vpop.f32.mrb[0].mxu0
        %v6408 = vadd.f32 %v6280, %v6407
        %v6409 = vpop.f32.mrb[0].mxu0
        %6410 = vdwg.mxu0
        %v6411 = vadd.f32 %v5913, %v6373
        %v6412 = vadd.f32 %v5914, %v6378
        %v6413 = vadd.f32 %v5915, %v6383
        %v6414 = vadd.f32 %v5916, %v6388
        %v6415 = vmul.f32 %v6411, %v547
        %v6416 = vmul.f32 %v6412, %v547
        %v6417 = vmul.f32 %v6413, %v547
        %v6418 = vmul.f32 %v6414, %v547
        %v6419 = vadd.f32 %v5917, %v6393
        %v6420 = vadd.f32 %v5918, %v6398
        %v6421 = vadd.f32 %v5919, %v6403
        %v6422 = vadd.f32 %v5920, %v6408
        %6427 = vrot.lane.b32.xlu0 %v6415, 2
        %v6428 = vpop.permute.xlu0 %6427
        %6429 = vrot.lane.b32.xlu0 %v6416, 2
        %v6430 = vpop.permute.xlu0 %6429
        %6431 = vrot.lane.b32.xlu0 %v6417, 2
        %v6432 = vpop.permute.xlu0 %6431
        %6433 = vrot.lane.b32.xlu0 %v6418, 2
        %v6434 = vpop.permute.xlu0 %6433
        %6439 = vst.msk [vmem:[#allocation2] sm:$0xff] %vm569, %v6428
        %6440 = vst.msk [vmem:[#allocation2 + $0x8] sm:$0xff] %vm569, %v6430
        %6441 = vst.msk [vmem:[#allocation2 + $0x10] sm:$0xff] %vm569, %v6432
        %6442 = vst.msk [vmem:[#allocation2 + $0x18] sm:$0xff] %vm569, %v6434
        %v6443 = vld [vmem:[#allocation2] sm:$0xff]
        %v6444 = vld [vmem:[#allocation2 + $0x8] sm:$0xff]
        %v6445 = vld [vmem:[#allocation2 + $0x10] sm:$0xff]
        %v6446 = vld [vmem:[#allocation2 + $0x18] sm:$0xff]
        %6451 = vrot.lane.b32.xlu0 %v6443, 127
        %v6452 = vpop.permute.xlu0 %6451
        %6453 = vrot.lane.b32.xlu0 %v6444, 127
        %v6454 = vpop.permute.xlu0 %6453
        %6455 = vrot.lane.b32.xlu0 %v6445, 127
        %v6456 = vpop.permute.xlu0 %6455
        %6457 = vrot.lane.b32.xlu0 %v6446, 127
        %v6458 = vpop.permute.xlu0 %6457
        %6463 = vrot.lane.b32.xlu0 %v6443, 126
        %v6464 = vpop.permute.xlu0 %6463
        %6465 = vrot.lane.b32.xlu0 %v6444, 126
        %v6466 = vpop.permute.xlu0 %6465
        %6467 = vrot.lane.b32.xlu0 %v6445, 126
        %v6468 = vpop.permute.xlu0 %6467
        %6469 = vrot.lane.b32.xlu0 %v6446, 126
        %v6470 = vpop.permute.xlu0 %6469
        %6475 = vrot.lane.b32.xlu0 %v6443, 125
        %v6476 = vpop.permute.xlu0 %6475
        %6477 = vrot.lane.b32.xlu0 %v6444, 125
        %v6478 = vpop.permute.xlu0 %6477
        %6479 = vrot.lane.b32.xlu0 %v6445, 125
        %v6480 = vpop.permute.xlu0 %6479
        %6481 = vrot.lane.b32.xlu0 %v6446, 125
        %v6482 = vpop.permute.xlu0 %6481
        %6487 = vrot.lane.b32.xlu0 %v6443, 124
        %v6488 = vpop.permute.xlu0 %6487
        %6489 = vrot.lane.b32.xlu0 %v6444, 124
        %v6490 = vpop.permute.xlu0 %6489
        %6491 = vrot.lane.b32.xlu0 %v6445, 124
        %v6492 = vpop.permute.xlu0 %6491
        %6493 = vrot.lane.b32.xlu0 %v6446, 124
        %v6494 = vpop.permute.xlu0 %6493
        %s6499 = scalar_lea.vmem %s4, 1408
        %v6500 = vld [vmem:[%s6499] sm:$0xff]
        %v6501 = vld [vmem:[%s6499 + $0x8] sm:$0xff]
        %v6502 = vld [vmem:[%s6499 + $0x10] sm:$0xff]
        %v6503 = vld [vmem:[%s6499 + $0x18] sm:$0xff]
        %v6504 = vld [vmem:[%s6499 + $0x20] sm:$0xff]
        %v6505 = vld [vmem:[%s6499 + $0x28] sm:$0xff]
        %v6506 = vld [vmem:[%s6499 + $0x30] sm:$0xff]
        %v6507 = vld [vmem:[%s6499 + $0x38] sm:$0xff]
        %v6508 = vld [vmem:[%s6499 + $0x40] sm:$0xff]
        %v6509 = vld [vmem:[%s6499 + $0x48] sm:$0xff]
        %v6510 = vld [vmem:[%s6499 + $0x50] sm:$0xff]
        %v6511 = vld [vmem:[%s6499 + $0x58] sm:$0xff]
        %v6512 = vld [vmem:[%s6499 + $0x60] sm:$0xff]
        %v6513 = vld [vmem:[%s6499 + $0x68] sm:$0xff]
        %v6514 = vld [vmem:[%s6499 + $0x70] sm:$0xff]
        %v6515 = vld [vmem:[%s6499 + $0x78] sm:$0xff]
        %s6516 = scalar_lea.vmem %s5, 704
        %v6517 = vld [vmem:[%s6516] sm:$0xff]
        %v6518 = vld [vmem:[%s6516 + $0x8] sm:$0xff]
        %v6519 = vld [vmem:[%s6516 + $0x10] sm:$0xff]
        %v6520 = vld [vmem:[%s6516 + $0x18] sm:$0xff]
        %v6521 = vld [vmem:[%s6516 + $0x20] sm:$0xff]
        %v6522 = vld [vmem:[%s6516 + $0x28] sm:$0xff]
        %v6523 = vld [vmem:[%s6516 + $0x30] sm:$0xff]
        %v6524 = vld [vmem:[%s6516 + $0x38] sm:$0xff]
        %6526 = vset.pattern.permute.xlu0 0
        %6527 = vperm.xlu0 %6526, %v6517
        %v6528 = vpop.permute.xlu0 %6527
        %6531 = vset.pattern.permute.xlu0 0
        %6532 = vperm.xlu0 %6531, %v6518
        %v6533 = vpop.permute.xlu0 %6532
        %6536 = vset.pattern.permute.xlu0 0
        %6537 = vperm.xlu0 %6536, %v6519
        %v6538 = vpop.permute.xlu0 %6537
        %6541 = vset.pattern.permute.xlu0 0
        %6542 = vperm.xlu0 %6541, %v6520
        %v6543 = vpop.permute.xlu0 %6542
        %6546 = vset.pattern.permute.xlu0 0
        %6547 = vperm.xlu0 %6546, %v6521
        %v6548 = vpop.permute.xlu0 %6547
        %6551 = vset.pattern.permute.xlu0 0
        %6552 = vperm.xlu0 %6551, %v6522
        %v6553 = vpop.permute.xlu0 %6552
        %6556 = vset.pattern.permute.xlu0 0
        %6557 = vperm.xlu0 %6556, %v6523
        %v6558 = vpop.permute.xlu0 %6557
        %6561 = vset.pattern.permute.xlu0 0
        %6562 = vperm.xlu0 %6561, %v6524
        %v6563 = vpop.permute.xlu0 %6562
        %v6566 = vsel %vm694, %v6501, 0
        %v6569 = vsel %vm694, %v6503, 0
        %v6572 = vsel %vm694, %v6505, 0
        %v6575 = vsel %vm694, %v6507, 0
        %v6578 = vsel %vm694, %v6509, 0
        %v6581 = vsel %vm694, %v6511, 0
        %v6584 = vsel %vm694, %v6513, 0
        %v6587 = vsel %vm694, %v6515, 0
        %6589 = vmatprep.subr.mxu0 0.0
        %6590 = vmatpush1.msra.mxu0 %v6443
        %6591 = vmatprep.subr.mxu0 0.0
        %6592 = vmatpush1.msra.mxu0 %v6444
        %6593 = vmatprep.subr.mxu0 0.0
        %6594 = vmatpush1.msra.mxu0 %v6445
        %6595 = vmatprep.subr.mxu0 0.0
        %6596 = vmatpush1.msra.mxu0 %v6446
        %6597 = vmatprep.subr.mxu0 0.0
        %6598 = vmatpush1.msra.mxu0 %v6452
        %6599 = vmatprep.subr.mxu0 0.0
        %6600 = vmatpush1.msra.mxu0 %v6454
        %6601 = vmatprep.subr.mxu0 0.0
        %6602 = vmatpush1.msra.mxu0 %v6456
        %6603 = vmatprep.subr.mxu0 0.0
        %6604 = vmatpush1.msra.mxu0 %v6458
        %6605 = vmatprep.subr.mxu0 0.0
        %6606 = vmatpush1.msra.mxu0 %v6464
        %6607 = vmatprep.subr.mxu0 0.0
        %6608 = vmatpush1.msra.mxu0 %v6466
        %6609 = vmatprep.subr.mxu0 0.0
        %6610 = vmatpush1.msra.mxu0 %v6468
        %6611 = vmatprep.subr.mxu0 0.0
        %6612 = vmatpush1.msra.mxu0 %v6470
        %6613 = vmatprep.subr.mxu0 0.0
        %6614 = vmatpush1.msra.mxu0 %v6476
        %6615 = vmatprep.subr.mxu0 0.0
        %6616 = vmatpush1.msra.mxu0 %v6478
        %6617 = vmatprep.subr.mxu0 0.0
        %6618 = vmatpush1.msra.mxu0 %v6480
        %6619 = vmatprep.subr.mxu0 0.0
        %6620 = vmatpush1.msra.mxu0 %v6482
        %6621 = vmatprep.subr.mxu0 0.0
        %6622 = vmatpush1.msra.mxu0 %v6488
        %6623 = vmatprep.subr.mxu0 0.0
        %6624 = vmatpush1.msra.mxu0 %v6490
        %6625 = vmatprep.subr.mxu0 0.0
        %6626 = vmatpush1.msra.mxu0 %v6492
        %6627 = vmatprep.subr.mxu0 0.0
        %6628 = vmatpush1.msra.mxu0 %v6494
        %6629 = vmatprep.subr.mxu0 0.0
        %6630 = vmatpush1.msra.mxu0 0.0
        %6631 = vmatprep.subr.mxu0 0.0
        %6632 = vmatpush1.msra.mxu0 0.0
        %6633 = vmatprep.subr.mxu0 0.0
        %6634 = vmatpush1.msra.mxu0 0.0
        %6635 = vmatprep.subr.mxu0 0.0
        %6636 = vmatpush1.msra.mxu0 0.0
        %6637 = vmatprep.subr.mxu0 0.0
        %6638 = vmatpush1.msra.mxu0 0.0
        %6639 = vmatprep.subr.mxu0 0.0
        %6640 = vmatpush1.msra.mxu0 0.0
        %6641 = vmatprep.subr.mxu0 0.0
        %6642 = vmatpush1.msra.mxu0 0.0
        %6643 = vmatprep.subr.mxu0 0.0
        %6644 = vmatpush1.msra.mxu0 0.0
        %6645 = vmatprep.subr.mxu0 0.0
        %6646 = vmatpush1.msra.mxu0 0.0
        %6647 = vmatprep.subr.mxu0 0.0
        %6648 = vmatpush1.msra.mxu0 0.0
        %6649 = vmatprep.subr.mxu0 0.0
        %6650 = vmatpush1.msra.mxu0 0.0
        %6651 = vmatprep.subr.mxu0 0.0
        %6652 = vmatpush1.msra.mxu0 0.0
        %6653 = vmatprep.mubr.f32.mxu0 %v6566
        %6654 = vmatmul.mubr.f32.gmra.mrb[0].mxu0 %v6500
        %v6655 = vpop.f32.mrb[0].mxu0
        %v6656 = vadd.f32 %v6528, %v6655
        %v6657 = vpop.f32.mrb[0].mxu0
        %6658 = vmatprep.mubr.f32.mxu0 %v6569
        %6659 = vmatmul.mubr.f32.gmra.mrb[0].mxu0 %v6502
        %v6660 = vpop.f32.mrb[0].mxu0
        %v6661 = vadd.f32 %v6533, %v6660
        %v6662 = vpop.f32.mrb[0].mxu0
        %6663 = vmatprep.mubr.f32.mxu0 %v6572
        %6664 = vmatmul.mubr.f32.gmra.mrb[0].mxu0 %v6504
        %v6665 = vpop.f32.mrb[0].mxu0
        %v6666 = vadd.f32 %v6538, %v6665
        %v6667 = vpop.f32.mrb[0].mxu0
        %6668 = vmatprep.mubr.f32.mxu0 %v6575
        %6669 = vmatmul.mubr.f32.gmra.mrb[0].mxu0 %v6506
        %v6670 = vpop.f32.mrb[0].mxu0
        %v6671 = vadd.f32 %v6543, %v6670
        %v6672 = vpop.f32.mrb[0].mxu0
        %6673 = vmatprep.mubr.f32.mxu0 %v6578
        %6674 = vmatmul.mubr.f32.gmra.mrb[0].mxu0 %v6508
        %v6675 = vpop.f32.mrb[0].mxu0
        %v6676 = vadd.f32 %v6548, %v6675
        %v6677 = vpop.f32.mrb[0].mxu0
        %6678 = vmatprep.mubr.f32.mxu0 %v6581
        %6679 = vmatmul.mubr.f32.gmra.mrb[0].mxu0 %v6510
        %v6680 = vpop.f32.mrb[0].mxu0
        %v6681 = vadd.f32 %v6553, %v6680
        %v6682 = vpop.f32.mrb[0].mxu0
        %6683 = vmatprep.mubr.f32.mxu0 %v6584
        %6684 = vmatmul.mubr.f32.gmra.mrb[0].mxu0 %v6512
        %v6685 = vpop.f32.mrb[0].mxu0
        %v6686 = vadd.f32 %v6558, %v6685
        %v6687 = vpop.f32.mrb[0].mxu0
        %6688 = vmatprep.mubr.f32.mxu0 %v6587
        %6689 = vmatmul.mubr.f32.gmra.mrb[0].mxu0 %v6514
        %v6690 = vpop.f32.mrb[0].mxu0
        %v6691 = vadd.f32 %v6563, %v6690
        %v6692 = vpop.f32.mrb[0].mxu0
        %6693 = vdwg.mxu0
        %v6694 = vtanh.pop %v6656
        %v6695 = vtanh.pop %v6661
        %v6696 = vtanh.pop %v6666
        %v6697 = vtanh.pop %v6671
        %v6698 = vxor.u32 %v6676, 2147483648
        %v6699 = vxor.u32 %v6681, 2147483648
        %v6700 = vxor.u32 %v6686, 2147483648
        %v6701 = vxor.u32 %v6691, 2147483648
        %v6702 = vmul.f32 %v6698, 1.442695
        %v6703 = vpow.pop %v6702
        %v6704 = vmul.f32 %v6699, 1.442695
        %v6705 = vpow.pop %v6704
        %v6706 = vmul.f32 %v6700, 1.442695
        %v6707 = vpow.pop %v6706
        %v6708 = vmul.f32 %v6701, 1.442695
        %v6709 = vpow.pop %v6708
        %v6710 = vadd.f32 %v6703, 1.0
        %v6711 = vadd.f32 %v6705, 1.0
        %v6712 = vadd.f32 %v6707, 1.0
        %v6713 = vadd.f32 %v6709, 1.0
        %v6714 = vrcp.pop %v6710
        %v6715 = vmul.f32 1.0, %v6714
        %v6716 = vrcp.pop %v6711
        %v6717 = vmul.f32 1.0, %v6716
        %v6718 = vrcp.pop %v6712
        %v6719 = vmul.f32 1.0, %v6718
        %v6720 = vrcp.pop %v6713
        %v6721 = vmul.f32 1.0, %v6720
        %v6722 = vmul.f32 %v6694, %v6715
        %v6723 = vmul.f32 %v6695, %v6717
        %v6724 = vmul.f32 %v6696, %v6719
        %v6725 = vmul.f32 %v6697, %v6721
        %s6726 = scalar_lea.vmem %s6, 704
        %v6727 = vld [vmem:[%s6726] sm:$0xff]
        %v6728 = vld [vmem:[%s6726 + $0x8] sm:$0xff]
        %v6729 = vld [vmem:[%s6726 + $0x10] sm:$0xff]
        %v6730 = vld [vmem:[%s6726 + $0x18] sm:$0xff]
        %s6731 = scalar_lea.vmem %s7, 704
        %v6732 = vld [vmem:[%s6731] sm:$0xff]
        %v6733 = vld [vmem:[%s6731 + $0x8] sm:$0xff]
        %v6734 = vld [vmem:[%s6731 + $0x10] sm:$0xff]
        %v6735 = vld [vmem:[%s6731 + $0x18] sm:$0xff]
        %6737 = vset.pattern.permute.xlu0 0
        %6738 = vperm.xlu0 %6737, %v6732
        %v6739 = vpop.permute.xlu0 %6738
        %6742 = vset.pattern.permute.xlu0 0
        %6743 = vperm.xlu0 %6742, %v6733
        %v6744 = vpop.permute.xlu0 %6743
        %6747 = vset.pattern.permute.xlu0 0
        %6748 = vperm.xlu0 %6747, %v6734
        %v6749 = vpop.permute.xlu0 %6748
        %6752 = vset.pattern.permute.xlu0 0
        %6753 = vperm.xlu0 %6752, %v6735
        %v6754 = vpop.permute.xlu0 %6753
        %v6757 = vsel %vm694, %v6727, 0
        %v6760 = vsel %vm694, %v6728, 0
        %v6763 = vsel %vm694, %v6729, 0
        %v6766 = vsel %vm694, %v6730, 0
        %6768 = vmatprep.subr.mxu0 0.0
        %6769 = vmatpush1.msra.mxu0 %v6722
        %6770 = vmatprep.subr.mxu0 0.0
        %6771 = vmatpush1.msra.mxu0 %v6723
        %6772 = vmatprep.subr.mxu0 0.0
        %6773 = vmatpush1.msra.mxu0 %v6724
        %6774 = vmatprep.subr.mxu0 0.0
        %6775 = vmatpush1.msra.mxu0 %v6725
        %6776 = vmatprep.subr.mxu0 0.0
        %6777 = vmatpush1.msra.mxu0 0.0
        %6778 = vmatprep.subr.mxu0 0.0
        %6779 = vmatpush1.msra.mxu0 0.0
        %6780 = vmatprep.subr.mxu0 0.0
        %6781 = vmatpush1.msra.mxu0 0.0
        %6782 = vmatprep.subr.mxu0 0.0
        %6783 = vmatpush1.msra.mxu0 0.0
        %6784 = vmatprep.subr.mxu0 0.0
        %6785 = vmatpush1.msra.mxu0 0.0
        %6786 = vmatprep.subr.mxu0 0.0
        %6787 = vmatpush1.msra.mxu0 0.0
        %6788 = vmatprep.subr.mxu0 0.0
        %6789 = vmatpush1.msra.mxu0 0.0
        %6790 = vmatprep.subr.mxu0 0.0
        %6791 = vmatpush1.msra.mxu0 0.0
        %6792 = vmatprep.subr.mxu0 0.0
        %6793 = vmatpush1.msra.mxu0 0.0
        %6794 = vmatprep.subr.mxu0 0.0
        %6795 = vmatpush1.msra.mxu0 0.0
        %6796 = vmatprep.subr.mxu0 0.0
        %6797 = vmatpush1.msra.mxu0 0.0
        %6798 = vmatprep.subr.mxu0 0.0
        %6799 = vmatpush1.msra.mxu0 0.0
        %6800 = vmatprep.subr.mxu0 0.0
        %6801 = vmatpush1.msra.mxu0 0.0
        %6802 = vmatprep.subr.mxu0 0.0
        %6803 = vmatpush1.msra.mxu0 0.0
        %6804 = vmatprep.subr.mxu0 0.0
        %6805 = vmatpush1.msra.mxu0 0.0
        %6806 = vmatprep.subr.mxu0 0.0
        %6807 = vmatpush1.msra.mxu0 0.0
        %6808 = vmatprep.subr.mxu0 0.0
        %6809 = vmatpush1.msra.mxu0 0.0
        %6810 = vmatprep.subr.mxu0 0.0
        %6811 = vmatpush1.msra.mxu0 0.0
        %6812 = vmatprep.subr.mxu0 0.0
        %6813 = vmatpush1.msra.mxu0 0.0
        %6814 = vmatprep.subr.mxu0 0.0
        %6815 = vmatpush1.msra.mxu0 0.0
        %6816 = vmatprep.subr.mxu0 0.0
        %6817 = vmatpush1.msra.mxu0 0.0
        %6818 = vmatprep.subr.mxu0 0.0
        %6819 = vmatpush1.msra.mxu0 0.0
        %6820 = vmatprep.subr.mxu0 0.0
        %6821 = vmatpush1.msra.mxu0 0.0
        %6822 = vmatprep.subr.mxu0 0.0
        %6823 = vmatpush1.msra.mxu0 0.0
        %6824 = vmatprep.subr.mxu0 0.0
        %6825 = vmatpush1.msra.mxu0 0.0
        %6826 = vmatprep.subr.mxu0 0.0
        %6827 = vmatpush1.msra.mxu0 0.0
        %6828 = vmatprep.subr.mxu0 0.0
        %6829 = vmatpush1.msra.mxu0 0.0
        %6830 = vmatprep.subr.mxu0 0.0
        %6831 = vmatpush1.msra.mxu0 0.0
        %6832 = vmatprep.mubr.f32.mxu0 0.0
        %6833 = vmatmul.mubr.f32.gmra.mrb[0].mxu0 %v6757
        %v6834 = vpop.f32.mrb[0].mxu0
        %v6835 = vadd.f32 %v6739, %v6834
        %v6836 = vpop.f32.mrb[0].mxu0
        %6837 = vmatprep.mubr.f32.mxu0 0.0
        %6838 = vmatmul.mubr.f32.gmra.mrb[0].mxu0 %v6760
        %v6839 = vpop.f32.mrb[0].mxu0
        %v6840 = vadd.f32 %v6744, %v6839
        %v6841 = vpop.f32.mrb[0].mxu0
        %6842 = vmatprep.mubr.f32.mxu0 0.0
        %6843 = vmatmul.mubr.f32.gmra.mrb[0].mxu0 %v6763
        %v6844 = vpop.f32.mrb[0].mxu0
        %v6845 = vadd.f32 %v6749, %v6844
        %v6846 = vpop.f32.mrb[0].mxu0
        %6847 = vmatprep.mubr.f32.mxu0 0.0
        %6848 = vmatmul.mubr.f32.gmra.mrb[0].mxu0 %v6766
        %v6849 = vpop.f32.mrb[0].mxu0
        %v6850 = vadd.f32 %v6754, %v6849
        %v6851 = vpop.f32.mrb[0].mxu0
        %6852 = vdwg.mxu0
        %v6853 = vadd.f32 %v6419, %v6835
        %v6854 = vadd.f32 %v6420, %v6840
        %v6855 = vadd.f32 %v6421, %v6845
        %v6856 = vadd.f32 %v6422, %v6850
        %v6857 = vmul.f32 %v6853, %v547
        %v6858 = vmul.f32 %v6854, %v547
        %v6859 = vmul.f32 %v6855, %v547
        %v6860 = vmul.f32 %v6856, %v547
        %s6861 = scalar_lea.vmem %s8, 8
        %v6862 = vld [vmem:[%s6861] sm:$0xf]
        %s6863 = scalar_lea.vmem %s9, 8
        %v6864 = vld [vmem:[%s6863] sm:$0xf]
        %6866 = vset.pattern.permute.xlu0 0
        %6867 = vperm.xlu0 %6866, %v6864
        %v6868 = vpop.permute.xlu0 %6867
        %v6871 = vsel %vm694, %v6862, 0
        %6873 = vmatprep.subr.mxu0 0.0
        %6874 = vmatpush1.msra.mxu0 %v6857
        %6875 = vmatprep.subr.mxu0 0.0
        %6876 = vmatpush1.msra.mxu0 %v6858
        %6877 = vmatprep.subr.mxu0 0.0
        %6878 = vmatpush1.msra.mxu0 %v6859
        %6879 = vmatprep.subr.mxu0 0.0
        %6880 = vmatpush1.msra.mxu0 %v6860
        %6881 = vmatprep.subr.mxu0 0.0
        %6882 = vmatpush1.msra.mxu0 0.0
        %6883 = vmatprep.subr.mxu0 0.0
        %6884 = vmatpush1.msra.mxu0 0.0
        %6885 = vmatprep.subr.mxu0 0.0
        %6886 = vmatpush1.msra.mxu0 0.0
        %6887 = vmatprep.subr.mxu0 0.0
        %6888 = vmatpush1.msra.mxu0 0.0
        %6889 = vmatprep.subr.mxu0 0.0
        %6890 = vmatpush1.msra.mxu0 0.0
        %6891 = vmatprep.subr.mxu0 0.0
        %6892 = vmatpush1.msra.mxu0 0.0
        %6893 = vmatprep.subr.mxu0 0.0
        %6894 = vmatpush1.msra.mxu0 0.0
        %6895 = vmatprep.subr.mxu0 0.0
        %6896 = vmatpush1.msra.mxu0 0.0
        %6897 = vmatprep.subr.mxu0 0.0
        %6898 = vmatpush1.msra.mxu0 0.0
        %6899 = vmatprep.subr.mxu0 0.0
        %6900 = vmatpush1.msra.mxu0 0.0
        %6901 = vmatprep.subr.mxu0 0.0
        %6902 = vmatpush1.msra.mxu0 0.0
        %6903 = vmatprep.subr.mxu0 0.0
        %6904 = vmatpush1.msra.mxu0 0.0
        %6905 = vmatprep.subr.mxu0 0.0
        %6906 = vmatpush1.msra.mxu0 0.0
        %6907 = vmatprep.subr.mxu0 0.0
        %6908 = vmatpush1.msra.mxu0 0.0
        %6909 = vmatprep.subr.mxu0 0.0
        %6910 = vmatpush1.msra.mxu0 0.0
        %6911 = vmatprep.subr.mxu0 0.0
        %6912 = vmatpush1.msra.mxu0 0.0
        %6913 = vmatprep.subr.mxu0 0.0
        %6914 = vmatpush1.msra.mxu0 0.0
        %6915 = vmatprep.subr.mxu0 0.0
        %6916 = vmatpush1.msra.mxu0 0.0
        %6917 = vmatprep.subr.mxu0 0.0
        %6918 = vmatpush1.msra.mxu0 0.0
        %6919 = vmatprep.subr.mxu0 0.0
        %6920 = vmatpush1.msra.mxu0 0.0
        %6921 = vmatprep.subr.mxu0 0.0
        %6922 = vmatpush1.msra.mxu0 0.0
        %6923 = vmatprep.subr.mxu0 0.0
        %6924 = vmatpush1.msra.mxu0 0.0
        %6925 = vmatprep.subr.mxu0 0.0
        %6926 = vmatpush1.msra.mxu0 0.0
        %6927 = vmatprep.subr.mxu0 0.0
        %6928 = vmatpush1.msra.mxu0 0.0
        %6929 = vmatprep.subr.mxu0 0.0
        %6930 = vmatpush1.msra.mxu0 0.0
        %6931 = vmatprep.subr.mxu0 0.0
        %6932 = vmatpush1.msra.mxu0 0.0
        %6933 = vmatprep.subr.mxu0 0.0
        %6934 = vmatpush1.msra.mxu0 0.0
        %6935 = vmatprep.subr.mxu0 0.0
        %6936 = vmatpush1.msra.mxu0 0.0
        %6937 = vmatprep.mubr.f32.mxu0 0.0
        %6938 = vmatmul.mubr.f32.gmra.mrb[0].mxu0 %v6871
        %v6939 = vpop.f32.mrb[0].mxu0
        %v6940 = vadd.f32 %v6868, %v6939
        %v6941 = vpop.f32.mrb[0].mxu0
        %6942 = vdwg.mxu0
        %v6943 = vmul.f32 %v6940, %v547
        %v6944 = vmul.f32 %v6943, 1.442695
        %v6945 = vpow.pop %v6944
        %v6947 = vrot.slane %v6945, 2
        %v6949 = vmul.f32 %v2583, %v6947
        %v6950 = vmul.f32 %v6949, %v547
        %v6951 = vadd.f32 %v6943, %v6950
        %v6953 = vrot.slane %v6943, 2
        %v6955 = vsel %vm2587, %v6953, 0.0
        %v6956 = vrot.slane %v6955, 4
        %v6957 = vadd.f32 %v6955, %v6956
        %v6958 = vrot.slane %v6957, 2
        %v6959 = vadd.f32 %v6957, %v6958
        %v6960 = vrot.slane %v6959, 1
        %v6961 = vadd.f32 %v6959, %v6960
        %v6962 = vsel %vm2595, %v6961, 0.0
        %6963 = vadd.xlane.f32.xlu0 %v6962
        %v6964 = vpop.xlane.xlu0 %6963
        %v6965 = vadd.f32 %v4782, %v6964
        %s6966 = scalar_lea.vmem %s2, 96
        %v6967 = vld [vmem:[%s6966] sm:$0xff]
        %v6968 = vld [vmem:[%s6966 + $0x8] sm:$0xff]
        %v6969 = vld [vmem:[%s6966 + $0x10] sm:$0xff]
        %v6970 = vld [vmem:[%s6966 + $0x18] sm:$0xff]
        %s6971 = scalar_lea.vmem %s3, 96
        %v6972 = vld [vmem:[%s6971] sm:$0xff]
        %v6973 = vld [vmem:[%s6971 + $0x8] sm:$0xff]
        %v6974 = vld [vmem:[%s6971 + $0x10] sm:$0xff]
        %v6975 = vld [vmem:[%s6971 + $0x18] sm:$0xff]
        %6977 = vset.pattern.permute.xlu0 0
        %6978 = vperm.xlu0 %6977, %v6972
        %v6979 = vpop.permute.xlu0 %6978
        %6982 = vset.pattern.permute.xlu0 0
        %6983 = vperm.xlu0 %6982, %v6973
        %v6984 = vpop.permute.xlu0 %6983
        %6987 = vset.pattern.permute.xlu0 0
        %6988 = vperm.xlu0 %6987, %v6974
        %v6989 = vpop.permute.xlu0 %6988
        %6992 = vset.pattern.permute.xlu0 0
        %6993 = vperm.xlu0 %6992, %v6975
        %v6994 = vpop.permute.xlu0 %6993
        %v6997 = vsel %vm441, %v6967, 0
        %v7000 = vsel %vm441, %v6968, 0
        %v7003 = vsel %vm441, %v6969, 0
        %v7006 = vsel %vm441, %v6970, 0
        %v7009 = vsel %vm454, %v6951, 0
        %7011 = vmatprep.subr.mxu0 0.0
        %7012 = vmatpush1.msra.mxu0 %v7009
        %7013 = vmatprep.subr.mxu0 0.0
        %7014 = vmatpush1.msra.mxu0 0.0
        %7015 = vmatprep.subr.mxu0 0.0
        %7016 = vmatpush1.msra.mxu0 0.0
        %7017 = vmatprep.subr.mxu0 0.0
        %7018 = vmatpush1.msra.mxu0 0.0
        %7019 = vmatprep.subr.mxu0 0.0
        %7020 = vmatpush1.msra.mxu0 0.0
        %7021 = vmatprep.subr.mxu0 0.0
        %7022 = vmatpush1.msra.mxu0 0.0
        %7023 = vmatprep.subr.mxu0 0.0
        %7024 = vmatpush1.msra.mxu0 0.0
        %7025 = vmatprep.subr.mxu0 0.0
        %7026 = vmatpush1.msra.mxu0 0.0
        %7027 = vmatprep.subr.mxu0 0.0
        %7028 = vmatpush1.msra.mxu0 0.0
        %7029 = vmatprep.subr.mxu0 0.0
        %7030 = vmatpush1.msra.mxu0 0.0
        %7031 = vmatprep.subr.mxu0 0.0
        %7032 = vmatpush1.msra.mxu0 0.0
        %7033 = vmatprep.subr.mxu0 0.0
        %7034 = vmatpush1.msra.mxu0 0.0
        %7035 = vmatprep.subr.mxu0 0.0
        %7036 = vmatpush1.msra.mxu0 0.0
        %7037 = vmatprep.subr.mxu0 0.0
        %7038 = vmatpush1.msra.mxu0 0.0
        %7039 = vmatprep.subr.mxu0 0.0
        %7040 = vmatpush1.msra.mxu0 0.0
        %7041 = vmatprep.subr.mxu0 0.0
        %7042 = vmatpush1.msra.mxu0 0.0
        %7043 = vmatprep.subr.mxu0 0.0
        %7044 = vmatpush1.msra.mxu0 0.0
        %7045 = vmatprep.subr.mxu0 0.0
        %7046 = vmatpush1.msra.mxu0 0.0
        %7047 = vmatprep.subr.mxu0 0.0
        %7048 = vmatpush1.msra.mxu0 0.0
        %7049 = vmatprep.subr.mxu0 0.0
        %7050 = vmatpush1.msra.mxu0 0.0
        %7051 = vmatprep.subr.mxu0 0.0
        %7052 = vmatpush1.msra.mxu0 0.0
        %7053 = vmatprep.subr.mxu0 0.0
        %7054 = vmatpush1.msra.mxu0 0.0
        %7055 = vmatprep.subr.mxu0 0.0
        %7056 = vmatpush1.msra.mxu0 0.0
        %7057 = vmatprep.subr.mxu0 0.0
        %7058 = vmatpush1.msra.mxu0 0.0
        %7059 = vmatprep.subr.mxu0 0.0
        %7060 = vmatpush1.msra.mxu0 0.0
        %7061 = vmatprep.subr.mxu0 0.0
        %7062 = vmatpush1.msra.mxu0 0.0
        %7063 = vmatprep.subr.mxu0 0.0
        %7064 = vmatpush1.msra.mxu0 0.0
        %7065 = vmatprep.subr.mxu0 0.0
        %7066 = vmatpush1.msra.mxu0 0.0
        %7067 = vmatprep.subr.mxu0 0.0
        %7068 = vmatpush1.msra.mxu0 0.0
        %7069 = vmatprep.subr.mxu0 0.0
        %7070 = vmatpush1.msra.mxu0 0.0
        %7071 = vmatprep.subr.mxu0 0.0
        %7072 = vmatpush1.msra.mxu0 0.0
        %7073 = vmatprep.subr.mxu0 0.0
        %7074 = vmatpush1.msra.mxu0 0.0
        %7075 = vmatprep.mubr.f32.mxu0 0.0
        %7076 = vmatmul.mubr.f32.gmra.mrb[0].mxu0 %v6997
        %v7077 = vpop.f32.mrb[0].mxu0
        %v7078 = vadd.f32 %v6979, %v7077
        %v7079 = vpop.f32.mrb[0].mxu0
        %7080 = vmatprep.mubr.f32.mxu0 0.0
        %7081 = vmatmul.mubr.f32.gmra.mrb[0].mxu0 %v7000
        %v7082 = vpop.f32.mrb[0].mxu0
        %v7083 = vadd.f32 %v6984, %v7082
        %v7084 = vpop.f32.mrb[0].mxu0
        %7085 = vmatprep.mubr.f32.mxu0 0.0
        %7086 = vmatmul.mubr.f32.gmra.mrb[0].mxu0 %v7003
        %v7087 = vpop.f32.mrb[0].mxu0
        %v7088 = vadd.f32 %v6989, %v7087
        %v7089 = vpop.f32.mrb[0].mxu0
        %7090 = vmatprep.mubr.f32.mxu0 0.0
        %7091 = vmatmul.mubr.f32.gmra.mrb[0].mxu0 %v7006
        %v7092 = vpop.f32.mrb[0].mxu0
        %v7093 = vadd.f32 %v6994, %v7092
        %v7094 = vpop.f32.mrb[0].mxu0
        %7095 = vdwg.mxu0
        %v7096 = vmul.f32 %v7078, %v547
        %v7097 = vmul.f32 %v7083, %v547
        %v7098 = vmul.f32 %v7088, %v547
        %v7099 = vmul.f32 %v7093, %v547
        %7104 = vrot.lane.b32.xlu0 %v7096, 2
        %v7105 = vpop.permute.xlu0 %7104
        %7106 = vrot.lane.b32.xlu0 %v7097, 2
        %v7107 = vpop.permute.xlu0 %7106
        %7108 = vrot.lane.b32.xlu0 %v7098, 2
        %v7109 = vpop.permute.xlu0 %7108
        %7110 = vrot.lane.b32.xlu0 %v7099, 2
        %v7111 = vpop.permute.xlu0 %7110
        %7116 = vst.msk [vmem:[#allocation2] sm:$0xff] %vm569, %v7105
        %7117 = vst.msk [vmem:[#allocation2 + $0x8] sm:$0xff] %vm569, %v7107
        %7118 = vst.msk [vmem:[#allocation2 + $0x10] sm:$0xff] %vm569, %v7109
        %7119 = vst.msk [vmem:[#allocation2 + $0x18] sm:$0xff] %vm569, %v7111
        %v7120 = vld [vmem:[#allocation2] sm:$0xff]
        %v7121 = vld [vmem:[#allocation2 + $0x8] sm:$0xff]
        %v7122 = vld [vmem:[#allocation2 + $0x10] sm:$0xff]
        %v7123 = vld [vmem:[#allocation2 + $0x18] sm:$0xff]
        %7128 = vrot.lane.b32.xlu0 %v7120, 127
        %v7129 = vpop.permute.xlu0 %7128
        %7130 = vrot.lane.b32.xlu0 %v7121, 127
        %v7131 = vpop.permute.xlu0 %7130
        %7132 = vrot.lane.b32.xlu0 %v7122, 127
        %v7133 = vpop.permute.xlu0 %7132
        %7134 = vrot.lane.b32.xlu0 %v7123, 127
        %v7135 = vpop.permute.xlu0 %7134
        %7140 = vrot.lane.b32.xlu0 %v7120, 126
        %v7141 = vpop.permute.xlu0 %7140
        %7142 = vrot.lane.b32.xlu0 %v7121, 126
        %v7143 = vpop.permute.xlu0 %7142
        %7144 = vrot.lane.b32.xlu0 %v7122, 126
        %v7145 = vpop.permute.xlu0 %7144
        %7146 = vrot.lane.b32.xlu0 %v7123, 126
        %v7147 = vpop.permute.xlu0 %7146
        %7152 = vrot.lane.b32.xlu0 %v7120, 125
        %v7153 = vpop.permute.xlu0 %7152
        %7154 = vrot.lane.b32.xlu0 %v7121, 125
        %v7155 = vpop.permute.xlu0 %7154
        %7156 = vrot.lane.b32.xlu0 %v7122, 125
        %v7157 = vpop.permute.xlu0 %7156
        %7158 = vrot.lane.b32.xlu0 %v7123, 125
        %v7159 = vpop.permute.xlu0 %7158
        %7164 = vrot.lane.b32.xlu0 %v7120, 124
        %v7165 = vpop.permute.xlu0 %7164
        %7166 = vrot.lane.b32.xlu0 %v7121, 124
        %v7167 = vpop.permute.xlu0 %7166
        %7168 = vrot.lane.b32.xlu0 %v7122, 124
        %v7169 = vpop.permute.xlu0 %7168
        %7170 = vrot.lane.b32.xlu0 %v7123, 124
        %v7171 = vpop.permute.xlu0 %7170
        %s7176 = scalar_lea.vmem %s4, 1536
        %v7177 = vld [vmem:[%s7176] sm:$0xff]
        %v7178 = vld [vmem:[%s7176 + $0x8] sm:$0xff]
        %v7179 = vld [vmem:[%s7176 + $0x10] sm:$0xff]
        %v7180 = vld [vmem:[%s7176 + $0x18] sm:$0xff]
        %v7181 = vld [vmem:[%s7176 + $0x20] sm:$0xff]
        %v7182 = vld [vmem:[%s7176 + $0x28] sm:$0xff]
        %v7183 = vld [vmem:[%s7176 + $0x30] sm:$0xff]
        %v7184 = vld [vmem:[%s7176 + $0x38] sm:$0xff]
        %v7185 = vld [vmem:[%s7176 + $0x40] sm:$0xff]
        %v7186 = vld [vmem:[%s7176 + $0x48] sm:$0xff]
        %v7187 = vld [vmem:[%s7176 + $0x50] sm:$0xff]
        %v7188 = vld [vmem:[%s7176 + $0x58] sm:$0xff]
        %v7189 = vld [vmem:[%s7176 + $0x60] sm:$0xff]
        %v7190 = vld [vmem:[%s7176 + $0x68] sm:$0xff]
        %v7191 = vld [vmem:[%s7176 + $0x70] sm:$0xff]
        %v7192 = vld [vmem:[%s7176 + $0x78] sm:$0xff]
        %s7193 = scalar_lea.vmem %s5, 768
        %v7194 = vld [vmem:[%s7193] sm:$0xff]
        %v7195 = vld [vmem:[%s7193 + $0x8] sm:$0xff]
        %v7196 = vld [vmem:[%s7193 + $0x10] sm:$0xff]
        %v7197 = vld [vmem:[%s7193 + $0x18] sm:$0xff]
        %v7198 = vld [vmem:[%s7193 + $0x20] sm:$0xff]
        %v7199 = vld [vmem:[%s7193 + $0x28] sm:$0xff]
        %v7200 = vld [vmem:[%s7193 + $0x30] sm:$0xff]
        %v7201 = vld [vmem:[%s7193 + $0x38] sm:$0xff]
        %7203 = vset.pattern.permute.xlu0 0
        %7204 = vperm.xlu0 %7203, %v7194
        %v7205 = vpop.permute.xlu0 %7204
        %7208 = vset.pattern.permute.xlu0 0
        %7209 = vperm.xlu0 %7208, %v7195
        %v7210 = vpop.permute.xlu0 %7209
        %7213 = vset.pattern.permute.xlu0 0
        %7214 = vperm.xlu0 %7213, %v7196
        %v7215 = vpop.permute.xlu0 %7214
        %7218 = vset.pattern.permute.xlu0 0
        %7219 = vperm.xlu0 %7218, %v7197
        %v7220 = vpop.permute.xlu0 %7219
        %7223 = vset.pattern.permute.xlu0 0
        %7224 = vperm.xlu0 %7223, %v7198
        %v7225 = vpop.permute.xlu0 %7224
        %7228 = vset.pattern.permute.xlu0 0
        %7229 = vperm.xlu0 %7228, %v7199
        %v7230 = vpop.permute.xlu0 %7229
        %7233 = vset.pattern.permute.xlu0 0
        %7234 = vperm.xlu0 %7233, %v7200
        %v7235 = vpop.permute.xlu0 %7234
        %7238 = vset.pattern.permute.xlu0 0
        %7239 = vperm.xlu0 %7238, %v7201
        %v7240 = vpop.permute.xlu0 %7239
        %v7243 = vsel %vm694, %v7178, 0
        %v7246 = vsel %vm694, %v7180, 0
        %v7249 = vsel %vm694, %v7182, 0
        %v7252 = vsel %vm694, %v7184, 0
        %v7255 = vsel %vm694, %v7186, 0
        %v7258 = vsel %vm694, %v7188, 0
        %v7261 = vsel %vm694, %v7190, 0
        %v7264 = vsel %vm694, %v7192, 0
        %7266 = vmatprep.subr.mxu0 0.0
        %7267 = vmatpush1.msra.mxu0 %v7120
        %7268 = vmatprep.subr.mxu0 0.0
        %7269 = vmatpush1.msra.mxu0 %v7121
        %7270 = vmatprep.subr.mxu0 0.0
        %7271 = vmatpush1.msra.mxu0 %v7122
        %7272 = vmatprep.subr.mxu0 0.0
        %7273 = vmatpush1.msra.mxu0 %v7123
        %7274 = vmatprep.subr.mxu0 0.0
        %7275 = vmatpush1.msra.mxu0 %v7129
        %7276 = vmatprep.subr.mxu0 0.0
        %7277 = vmatpush1.msra.mxu0 %v7131
        %7278 = vmatprep.subr.mxu0 0.0
        %7279 = vmatpush1.msra.mxu0 %v7133
        %7280 = vmatprep.subr.mxu0 0.0
        %7281 = vmatpush1.msra.mxu0 %v7135
        %7282 = vmatprep.subr.mxu0 0.0
        %7283 = vmatpush1.msra.mxu0 %v7141
        %7284 = vmatprep.subr.mxu0 0.0
        %7285 = vmatpush1.msra.mxu0 %v7143
        %7286 = vmatprep.subr.mxu0 0.0
        %7287 = vmatpush1.msra.mxu0 %v7145
        %7288 = vmatprep.subr.mxu0 0.0
        %7289 = vmatpush1.msra.mxu0 %v7147
        %7290 = vmatprep.subr.mxu0 0.0
        %7291 = vmatpush1.msra.mxu0 %v7153
        %7292 = vmatprep.subr.mxu0 0.0
        %7293 = vmatpush1.msra.mxu0 %v7155
        %7294 = vmatprep.subr.mxu0 0.0
        %7295 = vmatpush1.msra.mxu0 %v7157
        %7296 = vmatprep.subr.mxu0 0.0
        %7297 = vmatpush1.msra.mxu0 %v7159
        %7298 = vmatprep.subr.mxu0 0.0
        %7299 = vmatpush1.msra.mxu0 %v7165
        %7300 = vmatprep.subr.mxu0 0.0
        %7301 = vmatpush1.msra.mxu0 %v7167
        %7302 = vmatprep.subr.mxu0 0.0
        %7303 = vmatpush1.msra.mxu0 %v7169
        %7304 = vmatprep.subr.mxu0 0.0
        %7305 = vmatpush1.msra.mxu0 %v7171
        %7306 = vmatprep.subr.mxu0 0.0
        %7307 = vmatpush1.msra.mxu0 0.0
        %7308 = vmatprep.subr.mxu0 0.0
        %7309 = vmatpush1.msra.mxu0 0.0
        %7310 = vmatprep.subr.mxu0 0.0
        %7311 = vmatpush1.msra.mxu0 0.0
        %7312 = vmatprep.subr.mxu0 0.0
        %7313 = vmatpush1.msra.mxu0 0.0
        %7314 = vmatprep.subr.mxu0 0.0
        %7315 = vmatpush1.msra.mxu0 0.0
        %7316 = vmatprep.subr.mxu0 0.0
        %7317 = vmatpush1.msra.mxu0 0.0
        %7318 = vmatprep.subr.mxu0 0.0
        %7319 = vmatpush1.msra.mxu0 0.0
        %7320 = vmatprep.subr.mxu0 0.0
        %7321 = vmatpush1.msra.mxu0 0.0
        %7322 = vmatprep.subr.mxu0 0.0
        %7323 = vmatpush1.msra.mxu0 0.0
        %7324 = vmatprep.subr.mxu0 0.0
        %7325 = vmatpush1.msra.mxu0 0.0
        %7326 = vmatprep.subr.mxu0 0.0
        %7327 = vmatpush1.msra.mxu0 0.0
        %7328 = vmatprep.subr.mxu0 0.0
        %7329 = vmatpush1.msra.mxu0 0.0
        %7330 = vmatprep.mubr.f32.mxu0 %v7243
        %7331 = vmatmul.mubr.f32.gmra.mrb[0].mxu0 %v7177
        %v7332 = vpop.f32.mrb[0].mxu0
        %v7333 = vadd.f32 %v7205, %v7332
        %v7334 = vpop.f32.mrb[0].mxu0
        %7335 = vmatprep.mubr.f32.mxu0 %v7246
        %7336 = vmatmul.mubr.f32.gmra.mrb[0].mxu0 %v7179
        %v7337 = vpop.f32.mrb[0].mxu0
        %v7338 = vadd.f32 %v7210, %v7337
        %v7339 = vpop.f32.mrb[0].mxu0
        %7340 = vmatprep.mubr.f32.mxu0 %v7249
        %7341 = vmatmul.mubr.f32.gmra.mrb[0].mxu0 %v7181
        %v7342 = vpop.f32.mrb[0].mxu0
        %v7343 = vadd.f32 %v7215, %v7342
        %v7344 = vpop.f32.mrb[0].mxu0
        %7345 = vmatprep.mubr.f32.mxu0 %v7252
        %7346 = vmatmul.mubr.f32.gmra.mrb[0].mxu0 %v7183
        %v7347 = vpop.f32.mrb[0].mxu0
        %v7348 = vadd.f32 %v7220, %v7347
        %v7349 = vpop.f32.mrb[0].mxu0
        %7350 = vmatprep.mubr.f32.mxu0 %v7255
        %7351 = vmatmul.mubr.f32.gmra.mrb[0].mxu0 %v7185
        %v7352 = vpop.f32.mrb[0].mxu0
        %v7353 = vadd.f32 %v7225, %v7352
        %v7354 = vpop.f32.mrb[0].mxu0
        %7355 = vmatprep.mubr.f32.mxu0 %v7258
        %7356 = vmatmul.mubr.f32.gmra.mrb[0].mxu0 %v7187
        %v7357 = vpop.f32.mrb[0].mxu0
        %v7358 = vadd.f32 %v7230, %v7357
        %v7359 = vpop.f32.mrb[0].mxu0
        %7360 = vmatprep.mubr.f32.mxu0 %v7261
        %7361 = vmatmul.mubr.f32.gmra.mrb[0].mxu0 %v7189
        %v7362 = vpop.f32.mrb[0].mxu0
        %v7363 = vadd.f32 %v7235, %v7362
        %v7364 = vpop.f32.mrb[0].mxu0
        %7365 = vmatprep.mubr.f32.mxu0 %v7264
        %7366 = vmatmul.mubr.f32.gmra.mrb[0].mxu0 %v7191
        %v7367 = vpop.f32.mrb[0].mxu0
        %v7368 = vadd.f32 %v7240, %v7367
        %v7369 = vpop.f32.mrb[0].mxu0
        %7370 = vdwg.mxu0
        %v7371 = vtanh.pop %v7333
        %v7372 = vtanh.pop %v7338
        %v7373 = vtanh.pop %v7343
        %v7374 = vtanh.pop %v7348
        %v7375 = vxor.u32 %v7353, 2147483648
        %v7376 = vxor.u32 %v7358, 2147483648
        %v7377 = vxor.u32 %v7363, 2147483648
        %v7378 = vxor.u32 %v7368, 2147483648
        %v7379 = vmul.f32 %v7375, 1.442695
        %v7380 = vpow.pop %v7379
        %v7381 = vmul.f32 %v7376, 1.442695
        %v7382 = vpow.pop %v7381
        %v7383 = vmul.f32 %v7377, 1.442695
        %v7384 = vpow.pop %v7383
        %v7385 = vmul.f32 %v7378, 1.442695
        %v7386 = vpow.pop %v7385
        %v7387 = vadd.f32 %v7380, 1.0
        %v7388 = vadd.f32 %v7382, 1.0
        %v7389 = vadd.f32 %v7384, 1.0
        %v7390 = vadd.f32 %v7386, 1.0
        %v7391 = vrcp.pop %v7387
        %v7392 = vmul.f32 1.0, %v7391
        %v7393 = vrcp.pop %v7388
        %v7394 = vmul.f32 1.0, %v7393
        %v7395 = vrcp.pop %v7389
        %v7396 = vmul.f32 1.0, %v7395
        %v7397 = vrcp.pop %v7390
        %v7398 = vmul.f32 1.0, %v7397
        %v7399 = vmul.f32 %v7371, %v7392
        %v7400 = vmul.f32 %v7372, %v7394
        %v7401 = vmul.f32 %v7373, %v7396
        %v7402 = vmul.f32 %v7374, %v7398
        %s7403 = scalar_lea.vmem %s6, 768
        %v7404 = vld [vmem:[%s7403] sm:$0xff]
        %v7405 = vld [vmem:[%s7403 + $0x8] sm:$0xff]
        %v7406 = vld [vmem:[%s7403 + $0x10] sm:$0xff]
        %v7407 = vld [vmem:[%s7403 + $0x18] sm:$0xff]
        %v7408 = vld [vmem:[%s7403 + $0x20] sm:$0xff]
        %v7409 = vld [vmem:[%s7403 + $0x28] sm:$0xff]
        %v7410 = vld [vmem:[%s7403 + $0x30] sm:$0xff]
        %v7411 = vld [vmem:[%s7403 + $0x38] sm:$0xff]
        %s7412 = scalar_lea.vmem %s7, 768
        %v7413 = vld [vmem:[%s7412] sm:$0xff]
        %v7414 = vld [vmem:[%s7412 + $0x8] sm:$0xff]
        %v7415 = vld [vmem:[%s7412 + $0x10] sm:$0xff]
        %v7416 = vld [vmem:[%s7412 + $0x18] sm:$0xff]
        %v7417 = vld [vmem:[%s7412 + $0x20] sm:$0xff]
        %v7418 = vld [vmem:[%s7412 + $0x28] sm:$0xff]
        %v7419 = vld [vmem:[%s7412 + $0x30] sm:$0xff]
        %v7420 = vld [vmem:[%s7412 + $0x38] sm:$0xff]
        %7422 = vset.pattern.permute.xlu0 0
        %7423 = vperm.xlu0 %7422, %v7413
        %v7424 = vpop.permute.xlu0 %7423
        %7427 = vset.pattern.permute.xlu0 0
        %7428 = vperm.xlu0 %7427, %v7414
        %v7429 = vpop.permute.xlu0 %7428
        %7432 = vset.pattern.permute.xlu0 0
        %7433 = vperm.xlu0 %7432, %v7415
        %v7434 = vpop.permute.xlu0 %7433
        %7437 = vset.pattern.permute.xlu0 0
        %7438 = vperm.xlu0 %7437, %v7416
        %v7439 = vpop.permute.xlu0 %7438
        %7442 = vset.pattern.permute.xlu0 0
        %7443 = vperm.xlu0 %7442, %v7417
        %v7444 = vpop.permute.xlu0 %7443
        %7447 = vset.pattern.permute.xlu0 0
        %7448 = vperm.xlu0 %7447, %v7418
        %v7449 = vpop.permute.xlu0 %7448
        %7452 = vset.pattern.permute.xlu0 0
        %7453 = vperm.xlu0 %7452, %v7419
        %v7454 = vpop.permute.xlu0 %7453
        %7457 = vset.pattern.permute.xlu0 0
        %7458 = vperm.xlu0 %7457, %v7420
        %v7459 = vpop.permute.xlu0 %7458
        %v7462 = vsel %vm694, %v7404, 0
        %v7465 = vsel %vm694, %v7405, 0
        %v7468 = vsel %vm694, %v7406, 0
        %v7471 = vsel %vm694, %v7407, 0
        %v7474 = vsel %vm694, %v7408, 0
        %v7477 = vsel %vm694, %v7409, 0
        %v7480 = vsel %vm694, %v7410, 0
        %v7483 = vsel %vm694, %v7411, 0
        %7485 = vmatprep.subr.mxu0 0.0
        %7486 = vmatpush1.msra.mxu0 %v7399
        %7487 = vmatprep.subr.mxu0 0.0
        %7488 = vmatpush1.msra.mxu0 %v7400
        %7489 = vmatprep.subr.mxu0 0.0
        %7490 = vmatpush1.msra.mxu0 %v7401
        %7491 = vmatprep.subr.mxu0 0.0
        %7492 = vmatpush1.msra.mxu0 %v7402
        %7493 = vmatprep.subr.mxu0 0.0
        %7494 = vmatpush1.msra.mxu0 0.0
        %7495 = vmatprep.subr.mxu0 0.0
        %7496 = vmatpush1.msra.mxu0 0.0
        %7497 = vmatprep.subr.mxu0 0.0
        %7498 = vmatpush1.msra.mxu0 0.0
        %7499 = vmatprep.subr.mxu0 0.0
        %7500 = vmatpush1.msra.mxu0 0.0
        %7501 = vmatprep.subr.mxu0 0.0
        %7502 = vmatpush1.msra.mxu0 0.0
        %7503 = vmatprep.subr.mxu0 0.0
        %7504 = vmatpush1.msra.mxu0 0.0
        %7505 = vmatprep.subr.mxu0 0.0
        %7506 = vmatpush1.msra.mxu0 0.0
        %7507 = vmatprep.subr.mxu0 0.0
        %7508 = vmatpush1.msra.mxu0 0.0
        %7509 = vmatprep.subr.mxu0 0.0
        %7510 = vmatpush1.msra.mxu0 0.0
        %7511 = vmatprep.subr.mxu0 0.0
        %7512 = vmatpush1.msra.mxu0 0.0
        %7513 = vmatprep.subr.mxu0 0.0
        %7514 = vmatpush1.msra.mxu0 0.0
        %7515 = vmatprep.subr.mxu0 0.0
        %7516 = vmatpush1.msra.mxu0 0.0
        %7517 = vmatprep.subr.mxu0 0.0
        %7518 = vmatpush1.msra.mxu0 0.0
        %7519 = vmatprep.subr.mxu0 0.0
        %7520 = vmatpush1.msra.mxu0 0.0
        %7521 = vmatprep.subr.mxu0 0.0
        %7522 = vmatpush1.msra.mxu0 0.0
        %7523 = vmatprep.subr.mxu0 0.0
        %7524 = vmatpush1.msra.mxu0 0.0
        %7525 = vmatprep.subr.mxu0 0.0
        %7526 = vmatpush1.msra.mxu0 0.0
        %7527 = vmatprep.subr.mxu0 0.0
        %7528 = vmatpush1.msra.mxu0 0.0
        %7529 = vmatprep.subr.mxu0 0.0
        %7530 = vmatpush1.msra.mxu0 0.0
        %7531 = vmatprep.subr.mxu0 0.0
        %7532 = vmatpush1.msra.mxu0 0.0
        %7533 = vmatprep.subr.mxu0 0.0
        %7534 = vmatpush1.msra.mxu0 0.0
        %7535 = vmatprep.subr.mxu0 0.0
        %7536 = vmatpush1.msra.mxu0 0.0
        %7537 = vmatprep.subr.mxu0 0.0
        %7538 = vmatpush1.msra.mxu0 0.0
        %7539 = vmatprep.subr.mxu0 0.0
        %7540 = vmatpush1.msra.mxu0 0.0
        %7541 = vmatprep.subr.mxu0 0.0
        %7542 = vmatpush1.msra.mxu0 0.0
        %7543 = vmatprep.subr.mxu0 0.0
        %7544 = vmatpush1.msra.mxu0 0.0
        %7545 = vmatprep.subr.mxu0 0.0
        %7546 = vmatpush1.msra.mxu0 0.0
        %7547 = vmatprep.subr.mxu0 0.0
        %7548 = vmatpush1.msra.mxu0 0.0
        %7549 = vmatprep.mubr.f32.mxu0 0.0
        %7550 = vmatmul.mubr.f32.gmra.mrb[0].mxu0 %v7462
        %v7551 = vpop.f32.mrb[0].mxu0
        %v7552 = vadd.f32 %v7424, %v7551
        %v7553 = vpop.f32.mrb[0].mxu0
        %7554 = vmatprep.mubr.f32.mxu0 0.0
        %7555 = vmatmul.mubr.f32.gmra.mrb[0].mxu0 %v7465
        %v7556 = vpop.f32.mrb[0].mxu0
        %v7557 = vadd.f32 %v7429, %v7556
        %v7558 = vpop.f32.mrb[0].mxu0
        %7559 = vmatprep.mubr.f32.mxu0 0.0
        %7560 = vmatmul.mubr.f32.gmra.mrb[0].mxu0 %v7468
        %v7561 = vpop.f32.mrb[0].mxu0
        %v7562 = vadd.f32 %v7434, %v7561
        %v7563 = vpop.f32.mrb[0].mxu0
        %7564 = vmatprep.mubr.f32.mxu0 0.0
        %7565 = vmatmul.mubr.f32.gmra.mrb[0].mxu0 %v7471
        %v7566 = vpop.f32.mrb[0].mxu0
        %v7567 = vadd.f32 %v7439, %v7566
        %v7568 = vpop.f32.mrb[0].mxu0
        %7569 = vmatprep.mubr.f32.mxu0 0.0
        %7570 = vmatmul.mubr.f32.gmra.mrb[0].mxu0 %v7474
        %v7571 = vpop.f32.mrb[0].mxu0
        %v7572 = vadd.f32 %v7444, %v7571
        %v7573 = vpop.f32.mrb[0].mxu0
        %7574 = vmatprep.mubr.f32.mxu0 0.0
        %7575 = vmatmul.mubr.f32.gmra.mrb[0].mxu0 %v7477
        %v7576 = vpop.f32.mrb[0].mxu0
        %v7577 = vadd.f32 %v7449, %v7576
        %v7578 = vpop.f32.mrb[0].mxu0
        %7579 = vmatprep.mubr.f32.mxu0 0.0
        %7580 = vmatmul.mubr.f32.gmra.mrb[0].mxu0 %v7480
        %v7581 = vpop.f32.mrb[0].mxu0
        %v7582 = vadd.f32 %v7454, %v7581
        %v7583 = vpop.f32.mrb[0].mxu0
        %7584 = vmatprep.mubr.f32.mxu0 0.0
        %7585 = vmatmul.mubr.f32.gmra.mrb[0].mxu0 %v7483
        %v7586 = vpop.f32.mrb[0].mxu0
        %v7587 = vadd.f32 %v7459, %v7586
        %v7588 = vpop.f32.mrb[0].mxu0
        %7589 = vdwg.mxu0
        %v7590 = vadd.f32 %v7096, %v7552
        %v7591 = vadd.f32 %v7097, %v7557
        %v7592 = vadd.f32 %v7098, %v7562
        %v7593 = vadd.f32 %v7099, %v7567
        %v7594 = vmul.f32 %v7590, %v547
        %v7595 = vmul.f32 %v7591, %v547
        %v7596 = vmul.f32 %v7592, %v547
        %v7597 = vmul.f32 %v7593, %v547
        %v7598 = vadd.f32 %v7572, 0.0
        %v7599 = vadd.f32 %v7577, 0.0
        %v7600 = vadd.f32 %v7582, 0.0
        %v7601 = vadd.f32 %v7587, 0.0
        %7606 = vrot.lane.b32.xlu0 %v7594, 2
        %v7607 = vpop.permute.xlu0 %7606
        %7608 = vrot.lane.b32.xlu0 %v7595, 2
        %v7609 = vpop.permute.xlu0 %7608
        %7610 = vrot.lane.b32.xlu0 %v7596, 2
        %v7611 = vpop.permute.xlu0 %7610
        %7612 = vrot.lane.b32.xlu0 %v7597, 2
        %v7613 = vpop.permute.xlu0 %7612
        %7618 = vst.msk [vmem:[#allocation2] sm:$0xff] %vm569, %v7607
        %7619 = vst.msk [vmem:[#allocation2 + $0x8] sm:$0xff] %vm569, %v7609
        %7620 = vst.msk [vmem:[#allocation2 + $0x10] sm:$0xff] %vm569, %v7611
        %7621 = vst.msk [vmem:[#allocation2 + $0x18] sm:$0xff] %vm569, %v7613
        %v7622 = vld [vmem:[#allocation2] sm:$0xff]
        %v7623 = vld [vmem:[#allocation2 + $0x8] sm:$0xff]
        %v7624 = vld [vmem:[#allocation2 + $0x10] sm:$0xff]
        %v7625 = vld [vmem:[#allocation2 + $0x18] sm:$0xff]
        %7630 = vrot.lane.b32.xlu0 %v7622, 127
        %v7631 = vpop.permute.xlu0 %7630
        %7632 = vrot.lane.b32.xlu0 %v7623, 127
        %v7633 = vpop.permute.xlu0 %7632
        %7634 = vrot.lane.b32.xlu0 %v7624, 127
        %v7635 = vpop.permute.xlu0 %7634
        %7636 = vrot.lane.b32.xlu0 %v7625, 127
        %v7637 = vpop.permute.xlu0 %7636
        %7642 = vrot.lane.b32.xlu0 %v7622, 126
        %v7643 = vpop.permute.xlu0 %7642
        %7644 = vrot.lane.b32.xlu0 %v7623, 126
        %v7645 = vpop.permute.xlu0 %7644
        %7646 = vrot.lane.b32.xlu0 %v7624, 126
        %v7647 = vpop.permute.xlu0 %7646
        %7648 = vrot.lane.b32.xlu0 %v7625, 126
        %v7649 = vpop.permute.xlu0 %7648
        %7654 = vrot.lane.b32.xlu0 %v7622, 125
        %v7655 = vpop.permute.xlu0 %7654
        %7656 = vrot.lane.b32.xlu0 %v7623, 125
        %v7657 = vpop.permute.xlu0 %7656
        %7658 = vrot.lane.b32.xlu0 %v7624, 125
        %v7659 = vpop.permute.xlu0 %7658
        %7660 = vrot.lane.b32.xlu0 %v7625, 125
        %v7661 = vpop.permute.xlu0 %7660
        %7666 = vrot.lane.b32.xlu0 %v7622, 124
        %v7667 = vpop.permute.xlu0 %7666
        %7668 = vrot.lane.b32.xlu0 %v7623, 124
        %v7669 = vpop.permute.xlu0 %7668
        %7670 = vrot.lane.b32.xlu0 %v7624, 124
        %v7671 = vpop.permute.xlu0 %7670
        %7672 = vrot.lane.b32.xlu0 %v7625, 124
        %v7673 = vpop.permute.xlu0 %7672
        %s7678 = scalar_lea.vmem %s4, 1664
        %v7679 = vld [vmem:[%s7678] sm:$0xff]
        %v7680 = vld [vmem:[%s7678 + $0x8] sm:$0xff]
        %v7681 = vld [vmem:[%s7678 + $0x10] sm:$0xff]
        %v7682 = vld [vmem:[%s7678 + $0x18] sm:$0xff]
        %v7683 = vld [vmem:[%s7678 + $0x20] sm:$0xff]
        %v7684 = vld [vmem:[%s7678 + $0x28] sm:$0xff]
        %v7685 = vld [vmem:[%s7678 + $0x30] sm:$0xff]
        %v7686 = vld [vmem:[%s7678 + $0x38] sm:$0xff]
        %v7687 = vld [vmem:[%s7678 + $0x40] sm:$0xff]
        %v7688 = vld [vmem:[%s7678 + $0x48] sm:$0xff]
        %v7689 = vld [vmem:[%s7678 + $0x50] sm:$0xff]
        %v7690 = vld [vmem:[%s7678 + $0x58] sm:$0xff]
        %v7691 = vld [vmem:[%s7678 + $0x60] sm:$0xff]
        %v7692 = vld [vmem:[%s7678 + $0x68] sm:$0xff]
        %v7693 = vld [vmem:[%s7678 + $0x70] sm:$0xff]
        %v7694 = vld [vmem:[%s7678 + $0x78] sm:$0xff]
        %s7695 = scalar_lea.vmem %s5, 832
        %v7696 = vld [vmem:[%s7695] sm:$0xff]
        %v7697 = vld [vmem:[%s7695 + $0x8] sm:$0xff]
        %v7698 = vld [vmem:[%s7695 + $0x10] sm:$0xff]
        %v7699 = vld [vmem:[%s7695 + $0x18] sm:$0xff]
        %v7700 = vld [vmem:[%s7695 + $0x20] sm:$0xff]
        %v7701 = vld [vmem:[%s7695 + $0x28] sm:$0xff]
        %v7702 = vld [vmem:[%s7695 + $0x30] sm:$0xff]
        %v7703 = vld [vmem:[%s7695 + $0x38] sm:$0xff]
        %7705 = vset.pattern.permute.xlu0 0
        %7706 = vperm.xlu0 %7705, %v7696
        %v7707 = vpop.permute.xlu0 %7706
        %7710 = vset.pattern.permute.xlu0 0
        %7711 = vperm.xlu0 %7710, %v7697
        %v7712 = vpop.permute.xlu0 %7711
        %7715 = vset.pattern.permute.xlu0 0
        %7716 = vperm.xlu0 %7715, %v7698
        %v7717 = vpop.permute.xlu0 %7716
        %7720 = vset.pattern.permute.xlu0 0
        %7721 = vperm.xlu0 %7720, %v7699
        %v7722 = vpop.permute.xlu0 %7721
        %7725 = vset.pattern.permute.xlu0 0
        %7726 = vperm.xlu0 %7725, %v7700
        %v7727 = vpop.permute.xlu0 %7726
        %7730 = vset.pattern.permute.xlu0 0
        %7731 = vperm.xlu0 %7730, %v7701
        %v7732 = vpop.permute.xlu0 %7731
        %7735 = vset.pattern.permute.xlu0 0
        %7736 = vperm.xlu0 %7735, %v7702
        %v7737 = vpop.permute.xlu0 %7736
        %7740 = vset.pattern.permute.xlu0 0
        %7741 = vperm.xlu0 %7740, %v7703
        %v7742 = vpop.permute.xlu0 %7741
        %v7745 = vsel %vm694, %v7680, 0
        %v7748 = vsel %vm694, %v7682, 0
        %v7751 = vsel %vm694, %v7684, 0
        %v7754 = vsel %vm694, %v7686, 0
        %v7757 = vsel %vm694, %v7688, 0
        %v7760 = vsel %vm694, %v7690, 0
        %v7763 = vsel %vm694, %v7692, 0
        %v7766 = vsel %vm694, %v7694, 0
        %7768 = vmatprep.subr.mxu0 0.0
        %7769 = vmatpush1.msra.mxu0 %v7622
        %7770 = vmatprep.subr.mxu0 0.0
        %7771 = vmatpush1.msra.mxu0 %v7623
        %7772 = vmatprep.subr.mxu0 0.0
        %7773 = vmatpush1.msra.mxu0 %v7624
        %7774 = vmatprep.subr.mxu0 0.0
        %7775 = vmatpush1.msra.mxu0 %v7625
        %7776 = vmatprep.subr.mxu0 0.0
        %7777 = vmatpush1.msra.mxu0 %v7631
        %7778 = vmatprep.subr.mxu0 0.0
        %7779 = vmatpush1.msra.mxu0 %v7633
        %7780 = vmatprep.subr.mxu0 0.0
        %7781 = vmatpush1.msra.mxu0 %v7635
        %7782 = vmatprep.subr.mxu0 0.0
        %7783 = vmatpush1.msra.mxu0 %v7637
        %7784 = vmatprep.subr.mxu0 0.0
        %7785 = vmatpush1.msra.mxu0 %v7643
        %7786 = vmatprep.subr.mxu0 0.0
        %7787 = vmatpush1.msra.mxu0 %v7645
        %7788 = vmatprep.subr.mxu0 0.0
        %7789 = vmatpush1.msra.mxu0 %v7647
        %7790 = vmatprep.subr.mxu0 0.0
        %7791 = vmatpush1.msra.mxu0 %v7649
        %7792 = vmatprep.subr.mxu0 0.0
        %7793 = vmatpush1.msra.mxu0 %v7655
        %7794 = vmatprep.subr.mxu0 0.0
        %7795 = vmatpush1.msra.mxu0 %v7657
        %7796 = vmatprep.subr.mxu0 0.0
        %7797 = vmatpush1.msra.mxu0 %v7659
        %7798 = vmatprep.subr.mxu0 0.0
        %7799 = vmatpush1.msra.mxu0 %v7661
        %7800 = vmatprep.subr.mxu0 0.0
        %7801 = vmatpush1.msra.mxu0 %v7667
        %7802 = vmatprep.subr.mxu0 0.0
        %7803 = vmatpush1.msra.mxu0 %v7669
        %7804 = vmatprep.subr.mxu0 0.0
        %7805 = vmatpush1.msra.mxu0 %v7671
        %7806 = vmatprep.subr.mxu0 0.0
        %7807 = vmatpush1.msra.mxu0 %v7673
        %7808 = vmatprep.subr.mxu0 0.0
        %7809 = vmatpush1.msra.mxu0 0.0
        %7810 = vmatprep.subr.mxu0 0.0
        %7811 = vmatpush1.msra.mxu0 0.0
        %7812 = vmatprep.subr.mxu0 0.0
        %7813 = vmatpush1.msra.mxu0 0.0
        %7814 = vmatprep.subr.mxu0 0.0
        %7815 = vmatpush1.msra.mxu0 0.0
        %7816 = vmatprep.subr.mxu0 0.0
        %7817 = vmatpush1.msra.mxu0 0.0
        %7818 = vmatprep.subr.mxu0 0.0
        %7819 = vmatpush1.msra.mxu0 0.0
        %7820 = vmatprep.subr.mxu0 0.0
        %7821 = vmatpush1.msra.mxu0 0.0
        %7822 = vmatprep.subr.mxu0 0.0
        %7823 = vmatpush1.msra.mxu0 0.0
        %7824 = vmatprep.subr.mxu0 0.0
        %7825 = vmatpush1.msra.mxu0 0.0
        %7826 = vmatprep.subr.mxu0 0.0
        %7827 = vmatpush1.msra.mxu0 0.0
        %7828 = vmatprep.subr.mxu0 0.0
        %7829 = vmatpush1.msra.mxu0 0.0
        %7830 = vmatprep.subr.mxu0 0.0
        %7831 = vmatpush1.msra.mxu0 0.0
        %7832 = vmatprep.mubr.f32.mxu0 %v7745
        %7833 = vmatmul.mubr.f32.gmra.mrb[0].mxu0 %v7679
        %v7834 = vpop.f32.mrb[0].mxu0
        %v7835 = vadd.f32 %v7707, %v7834
        %v7836 = vpop.f32.mrb[0].mxu0
        %7837 = vmatprep.mubr.f32.mxu0 %v7748
        %7838 = vmatmul.mubr.f32.gmra.mrb[0].mxu0 %v7681
        %v7839 = vpop.f32.mrb[0].mxu0
        %v7840 = vadd.f32 %v7712, %v7839
        %v7841 = vpop.f32.mrb[0].mxu0
        %7842 = vmatprep.mubr.f32.mxu0 %v7751
        %7843 = vmatmul.mubr.f32.gmra.mrb[0].mxu0 %v7683
        %v7844 = vpop.f32.mrb[0].mxu0
        %v7845 = vadd.f32 %v7717, %v7844
        %v7846 = vpop.f32.mrb[0].mxu0
        %7847 = vmatprep.mubr.f32.mxu0 %v7754
        %7848 = vmatmul.mubr.f32.gmra.mrb[0].mxu0 %v7685
        %v7849 = vpop.f32.mrb[0].mxu0
        %v7850 = vadd.f32 %v7722, %v7849
        %v7851 = vpop.f32.mrb[0].mxu0
        %7852 = vmatprep.mubr.f32.mxu0 %v7757
        %7853 = vmatmul.mubr.f32.gmra.mrb[0].mxu0 %v7687
        %v7854 = vpop.f32.mrb[0].mxu0
        %v7855 = vadd.f32 %v7727, %v7854
        %v7856 = vpop.f32.mrb[0].mxu0
        %7857 = vmatprep.mubr.f32.mxu0 %v7760
        %7858 = vmatmul.mubr.f32.gmra.mrb[0].mxu0 %v7689
        %v7859 = vpop.f32.mrb[0].mxu0
        %v7860 = vadd.f32 %v7732, %v7859
        %v7861 = vpop.f32.mrb[0].mxu0
        %7862 = vmatprep.mubr.f32.mxu0 %v7763
        %7863 = vmatmul.mubr.f32.gmra.mrb[0].mxu0 %v7691
        %v7864 = vpop.f32.mrb[0].mxu0
        %v7865 = vadd.f32 %v7737, %v7864
        %v7866 = vpop.f32.mrb[0].mxu0
        %7867 = vmatprep.mubr.f32.mxu0 %v7766
        %7868 = vmatmul.mubr.f32.gmra.mrb[0].mxu0 %v7693
        %v7869 = vpop.f32.mrb[0].mxu0
        %v7870 = vadd.f32 %v7742, %v7869
        %v7871 = vpop.f32.mrb[0].mxu0
        %7872 = vdwg.mxu0
        %v7873 = vtanh.pop %v7835
        %v7874 = vtanh.pop %v7840
        %v7875 = vtanh.pop %v7845
        %v7876 = vtanh.pop %v7850
        %v7877 = vxor.u32 %v7855, 2147483648
        %v7878 = vxor.u32 %v7860, 2147483648
        %v7879 = vxor.u32 %v7865, 2147483648
        %v7880 = vxor.u32 %v7870, 2147483648
        %v7881 = vmul.f32 %v7877, 1.442695
        %v7882 = vpow.pop %v7881
        %v7883 = vmul.f32 %v7878, 1.442695
        %v7884 = vpow.pop %v7883
        %v7885 = vmul.f32 %v7879, 1.442695
        %v7886 = vpow.pop %v7885
        %v7887 = vmul.f32 %v7880, 1.442695
        %v7888 = vpow.pop %v7887
        %v7889 = vadd.f32 %v7882, 1.0
        %v7890 = vadd.f32 %v7884, 1.0
        %v7891 = vadd.f32 %v7886, 1.0
        %v7892 = vadd.f32 %v7888, 1.0
        %v7893 = vrcp.pop %v7889
        %v7894 = vmul.f32 1.0, %v7893
        %v7895 = vrcp.pop %v7890
        %v7896 = vmul.f32 1.0, %v7895
        %v7897 = vrcp.pop %v7891
        %v7898 = vmul.f32 1.0, %v7897
        %v7899 = vrcp.pop %v7892
        %v7900 = vmul.f32 1.0, %v7899
        %v7901 = vmul.f32 %v7873, %v7894
        %v7902 = vmul.f32 %v7874, %v7896
        %v7903 = vmul.f32 %v7875, %v7898
        %v7904 = vmul.f32 %v7876, %v7900
        %s7905 = scalar_lea.vmem %s6, 832
        %v7906 = vld [vmem:[%s7905] sm:$0xff]
        %v7907 = vld [vmem:[%s7905 + $0x8] sm:$0xff]
        %v7908 = vld [vmem:[%s7905 + $0x10] sm:$0xff]
        %v7909 = vld [vmem:[%s7905 + $0x18] sm:$0xff]
        %v7910 = vld [vmem:[%s7905 + $0x20] sm:$0xff]
        %v7911 = vld [vmem:[%s7905 + $0x28] sm:$0xff]
        %v7912 = vld [vmem:[%s7905 + $0x30] sm:$0xff]
        %v7913 = vld [vmem:[%s7905 + $0x38] sm:$0xff]
        %s7914 = scalar_lea.vmem %s7, 832
        %v7915 = vld [vmem:[%s7914] sm:$0xff]
        %v7916 = vld [vmem:[%s7914 + $0x8] sm:$0xff]
        %v7917 = vld [vmem:[%s7914 + $0x10] sm:$0xff]
        %v7918 = vld [vmem:[%s7914 + $0x18] sm:$0xff]
        %v7919 = vld [vmem:[%s7914 + $0x20] sm:$0xff]
        %v7920 = vld [vmem:[%s7914 + $0x28] sm:$0xff]
        %v7921 = vld [vmem:[%s7914 + $0x30] sm:$0xff]
        %v7922 = vld [vmem:[%s7914 + $0x38] sm:$0xff]
        %7924 = vset.pattern.permute.xlu0 0
        %7925 = vperm.xlu0 %7924, %v7915
        %v7926 = vpop.permute.xlu0 %7925
        %7929 = vset.pattern.permute.xlu0 0
        %7930 = vperm.xlu0 %7929, %v7916
        %v7931 = vpop.permute.xlu0 %7930
        %7934 = vset.pattern.permute.xlu0 0
        %7935 = vperm.xlu0 %7934, %v7917
        %v7936 = vpop.permute.xlu0 %7935
        %7939 = vset.pattern.permute.xlu0 0
        %7940 = vperm.xlu0 %7939, %v7918
        %v7941 = vpop.permute.xlu0 %7940
        %7944 = vset.pattern.permute.xlu0 0
        %7945 = vperm.xlu0 %7944, %v7919
        %v7946 = vpop.permute.xlu0 %7945
        %7949 = vset.pattern.permute.xlu0 0
        %7950 = vperm.xlu0 %7949, %v7920
        %v7951 = vpop.permute.xlu0 %7950
        %7954 = vset.pattern.permute.xlu0 0
        %7955 = vperm.xlu0 %7954, %v7921
        %v7956 = vpop.permute.xlu0 %7955
        %7959 = vset.pattern.permute.xlu0 0
        %7960 = vperm.xlu0 %7959, %v7922
        %v7961 = vpop.permute.xlu0 %7960
        %v7964 = vsel %vm694, %v7906, 0
        %v7967 = vsel %vm694, %v7907, 0
        %v7970 = vsel %vm694, %v7908, 0
        %v7973 = vsel %vm694, %v7909, 0
        %v7976 = vsel %vm694, %v7910, 0
        %v7979 = vsel %vm694, %v7911, 0
        %v7982 = vsel %vm694, %v7912, 0
        %v7985 = vsel %vm694, %v7913, 0
        %7987 = vmatprep.subr.mxu0 0.0
        %7988 = vmatpush1.msra.mxu0 %v7901
        %7989 = vmatprep.subr.mxu0 0.0
        %7990 = vmatpush1.msra.mxu0 %v7902
        %7991 = vmatprep.subr.mxu0 0.0
        %7992 = vmatpush1.msra.mxu0 %v7903
        %7993 = vmatprep.subr.mxu0 0.0
        %7994 = vmatpush1.msra.mxu0 %v7904
        %7995 = vmatprep.subr.mxu0 0.0
        %7996 = vmatpush1.msra.mxu0 0.0
        %7997 = vmatprep.subr.mxu0 0.0
        %7998 = vmatpush1.msra.mxu0 0.0
        %7999 = vmatprep.subr.mxu0 0.0
        %8000 = vmatpush1.msra.mxu0 0.0
        %8001 = vmatprep.subr.mxu0 0.0
        %8002 = vmatpush1.msra.mxu0 0.0
        %8003 = vmatprep.subr.mxu0 0.0
        %8004 = vmatpush1.msra.mxu0 0.0
        %8005 = vmatprep.subr.mxu0 0.0
        %8006 = vmatpush1.msra.mxu0 0.0
        %8007 = vmatprep.subr.mxu0 0.0
        %8008 = vmatpush1.msra.mxu0 0.0
        %8009 = vmatprep.subr.mxu0 0.0
        %8010 = vmatpush1.msra.mxu0 0.0
        %8011 = vmatprep.subr.mxu0 0.0
        %8012 = vmatpush1.msra.mxu0 0.0
        %8013 = vmatprep.subr.mxu0 0.0
        %8014 = vmatpush1.msra.mxu0 0.0
        %8015 = vmatprep.subr.mxu0 0.0
        %8016 = vmatpush1.msra.mxu0 0.0
        %8017 = vmatprep.subr.mxu0 0.0
        %8018 = vmatpush1.msra.mxu0 0.0
        %8019 = vmatprep.subr.mxu0 0.0
        %8020 = vmatpush1.msra.mxu0 0.0
        %8021 = vmatprep.subr.mxu0 0.0
        %8022 = vmatpush1.msra.mxu0 0.0
        %8023 = vmatprep.subr.mxu0 0.0
        %8024 = vmatpush1.msra.mxu0 0.0
        %8025 = vmatprep.subr.mxu0 0.0
        %8026 = vmatpush1.msra.mxu0 0.0
        %8027 = vmatprep.subr.mxu0 0.0
        %8028 = vmatpush1.msra.mxu0 0.0
        %8029 = vmatprep.subr.mxu0 0.0
        %8030 = vmatpush1.msra.mxu0 0.0
        %8031 = vmatprep.subr.mxu0 0.0
        %8032 = vmatpush1.msra.mxu0 0.0
        %8033 = vmatprep.subr.mxu0 0.0
        %8034 = vmatpush1.msra.mxu0 0.0
        %8035 = vmatprep.subr.mxu0 0.0
        %8036 = vmatpush1.msra.mxu0 0.0
        %8037 = vmatprep.subr.mxu0 0.0
        %8038 = vmatpush1.msra.mxu0 0.0
        %8039 = vmatprep.subr.mxu0 0.0
        %8040 = vmatpush1.msra.mxu0 0.0
        %8041 = vmatprep.subr.mxu0 0.0
        %8042 = vmatpush1.msra.mxu0 0.0
        %8043 = vmatprep.subr.mxu0 0.0
        %8044 = vmatpush1.msra.mxu0 0.0
        %8045 = vmatprep.subr.mxu0 0.0
        %8046 = vmatpush1.msra.mxu0 0.0
        %8047 = vmatprep.subr.mxu0 0.0
        %8048 = vmatpush1.msra.mxu0 0.0
        %8049 = vmatprep.subr.mxu0 0.0
        %8050 = vmatpush1.msra.mxu0 0.0
        %8051 = vmatprep.mubr.f32.mxu0 0.0
        %8052 = vmatmul.mubr.f32.gmra.mrb[0].mxu0 %v7964
        %v8053 = vpop.f32.mrb[0].mxu0
        %v8054 = vadd.f32 %v7926, %v8053
        %v8055 = vpop.f32.mrb[0].mxu0
        %8056 = vmatprep.mubr.f32.mxu0 0.0
        %8057 = vmatmul.mubr.f32.gmra.mrb[0].mxu0 %v7967
        %v8058 = vpop.f32.mrb[0].mxu0
        %v8059 = vadd.f32 %v7931, %v8058
        %v8060 = vpop.f32.mrb[0].mxu0
        %8061 = vmatprep.mubr.f32.mxu0 0.0
        %8062 = vmatmul.mubr.f32.gmra.mrb[0].mxu0 %v7970
        %v8063 = vpop.f32.mrb[0].mxu0
        %v8064 = vadd.f32 %v7936, %v8063
        %v8065 = vpop.f32.mrb[0].mxu0
        %8066 = vmatprep.mubr.f32.mxu0 0.0
        %8067 = vmatmul.mubr.f32.gmra.mrb[0].mxu0 %v7973
        %v8068 = vpop.f32.mrb[0].mxu0
        %v8069 = vadd.f32 %v7941, %v8068
        %v8070 = vpop.f32.mrb[0].mxu0
        %8071 = vmatprep.mubr.f32.mxu0 0.0
        %8072 = vmatmul.mubr.f32.gmra.mrb[0].mxu0 %v7976
        %v8073 = vpop.f32.mrb[0].mxu0
        %v8074 = vadd.f32 %v7946, %v8073
        %v8075 = vpop.f32.mrb[0].mxu0
        %8076 = vmatprep.mubr.f32.mxu0 0.0
        %8077 = vmatmul.mubr.f32.gmra.mrb[0].mxu0 %v7979
        %v8078 = vpop.f32.mrb[0].mxu0
        %v8079 = vadd.f32 %v7951, %v8078
        %v8080 = vpop.f32.mrb[0].mxu0
        %8081 = vmatprep.mubr.f32.mxu0 0.0
        %8082 = vmatmul.mubr.f32.gmra.mrb[0].mxu0 %v7982
        %v8083 = vpop.f32.mrb[0].mxu0
        %v8084 = vadd.f32 %v7956, %v8083
        %v8085 = vpop.f32.mrb[0].mxu0
        %8086 = vmatprep.mubr.f32.mxu0 0.0
        %8087 = vmatmul.mubr.f32.gmra.mrb[0].mxu0 %v7985
        %v8088 = vpop.f32.mrb[0].mxu0
        %v8089 = vadd.f32 %v7961, %v8088
        %v8090 = vpop.f32.mrb[0].mxu0
        %8091 = vdwg.mxu0
        %v8092 = vadd.f32 %v7594, %v8054
        %v8093 = vadd.f32 %v7595, %v8059
        %v8094 = vadd.f32 %v7596, %v8064
        %v8095 = vadd.f32 %v7597, %v8069
        %v8096 = vmul.f32 %v8092, %v547
        %v8097 = vmul.f32 %v8093, %v547
        %v8098 = vmul.f32 %v8094, %v547
        %v8099 = vmul.f32 %v8095, %v547
        %v8100 = vadd.f32 %v7598, %v8074
        %v8101 = vadd.f32 %v7599, %v8079
        %v8102 = vadd.f32 %v7600, %v8084
        %v8103 = vadd.f32 %v7601, %v8089
        %8108 = vrot.lane.b32.xlu0 %v8096, 2
        %v8109 = vpop.permute.xlu0 %8108
        %8110 = vrot.lane.b32.xlu0 %v8097, 2
        %v8111 = vpop.permute.xlu0 %8110
        %8112 = vrot.lane.b32.xlu0 %v8098, 2
        %v8113 = vpop.permute.xlu0 %8112
        %8114 = vrot.lane.b32.xlu0 %v8099, 2
        %v8115 = vpop.permute.xlu0 %8114
        %8120 = vst.msk [vmem:[#allocation2] sm:$0xff] %vm569, %v8109
        %8121 = vst.msk [vmem:[#allocation2 + $0x8] sm:$0xff] %vm569, %v8111
        %8122 = vst.msk [vmem:[#allocation2 + $0x10] sm:$0xff] %vm569, %v8113
        %8123 = vst.msk [vmem:[#allocation2 + $0x18] sm:$0xff] %vm569, %v8115
        %v8124 = vld [vmem:[#allocation2] sm:$0xff]
        %v8125 = vld [vmem:[#allocation2 + $0x8] sm:$0xff]
        %v8126 = vld [vmem:[#allocation2 + $0x10] sm:$0xff]
        %v8127 = vld [vmem:[#allocation2 + $0x18] sm:$0xff]
        %8132 = vrot.lane.b32.xlu0 %v8124, 127
        %v8133 = vpop.permute.xlu0 %8132
        %8134 = vrot.lane.b32.xlu0 %v8125, 127
        %v8135 = vpop.permute.xlu0 %8134
        %8136 = vrot.lane.b32.xlu0 %v8126, 127
        %v8137 = vpop.permute.xlu0 %8136
        %8138 = vrot.lane.b32.xlu0 %v8127, 127
        %v8139 = vpop.permute.xlu0 %8138
        %8144 = vrot.lane.b32.xlu0 %v8124, 126
        %v8145 = vpop.permute.xlu0 %8144
        %8146 = vrot.lane.b32.xlu0 %v8125, 126
        %v8147 = vpop.permute.xlu0 %8146
        %8148 = vrot.lane.b32.xlu0 %v8126, 126
        %v8149 = vpop.permute.xlu0 %8148
        %8150 = vrot.lane.b32.xlu0 %v8127, 126
        %v8151 = vpop.permute.xlu0 %8150
        %8156 = vrot.lane.b32.xlu0 %v8124, 125
        %v8157 = vpop.permute.xlu0 %8156
        %8158 = vrot.lane.b32.xlu0 %v8125, 125
        %v8159 = vpop.permute.xlu0 %8158
        %8160 = vrot.lane.b32.xlu0 %v8126, 125
        %v8161 = vpop.permute.xlu0 %8160
        %8162 = vrot.lane.b32.xlu0 %v8127, 125
        %v8163 = vpop.permute.xlu0 %8162
        %8168 = vrot.lane.b32.xlu0 %v8124, 124
        %v8169 = vpop.permute.xlu0 %8168
        %8170 = vrot.lane.b32.xlu0 %v8125, 124
        %v8171 = vpop.permute.xlu0 %8170
        %8172 = vrot.lane.b32.xlu0 %v8126, 124
        %v8173 = vpop.permute.xlu0 %8172
        %8174 = vrot.lane.b32.xlu0 %v8127, 124
        %v8175 = vpop.permute.xlu0 %8174
        %s8180 = scalar_lea.vmem %s4, 1792
        %v8181 = vld [vmem:[%s8180] sm:$0xff]
        %v8182 = vld [vmem:[%s8180 + $0x8] sm:$0xff]
        %v8183 = vld [vmem:[%s8180 + $0x10] sm:$0xff]
        %v8184 = vld [vmem:[%s8180 + $0x18] sm:$0xff]
        %v8185 = vld [vmem:[%s8180 + $0x20] sm:$0xff]
        %v8186 = vld [vmem:[%s8180 + $0x28] sm:$0xff]
        %v8187 = vld [vmem:[%s8180 + $0x30] sm:$0xff]
        %v8188 = vld [vmem:[%s8180 + $0x38] sm:$0xff]
        %v8189 = vld [vmem:[%s8180 + $0x40] sm:$0xff]
        %v8190 = vld [vmem:[%s8180 + $0x48] sm:$0xff]
        %v8191 = vld [vmem:[%s8180 + $0x50] sm:$0xff]
        %v8192 = vld [vmem:[%s8180 + $0x58] sm:$0xff]
        %v8193 = vld [vmem:[%s8180 + $0x60] sm:$0xff]
        %v8194 = vld [vmem:[%s8180 + $0x68] sm:$0xff]
        %v8195 = vld [vmem:[%s8180 + $0x70] sm:$0xff]
        %v8196 = vld [vmem:[%s8180 + $0x78] sm:$0xff]
        %s8197 = scalar_lea.vmem %s5, 896
        %v8198 = vld [vmem:[%s8197] sm:$0xff]
        %v8199 = vld [vmem:[%s8197 + $0x8] sm:$0xff]
        %v8200 = vld [vmem:[%s8197 + $0x10] sm:$0xff]
        %v8201 = vld [vmem:[%s8197 + $0x18] sm:$0xff]
        %v8202 = vld [vmem:[%s8197 + $0x20] sm:$0xff]
        %v8203 = vld [vmem:[%s8197 + $0x28] sm:$0xff]
        %v8204 = vld [vmem:[%s8197 + $0x30] sm:$0xff]
        %v8205 = vld [vmem:[%s8197 + $0x38] sm:$0xff]
        %8207 = vset.pattern.permute.xlu0 0
        %8208 = vperm.xlu0 %8207, %v8198
        %v8209 = vpop.permute.xlu0 %8208
        %8212 = vset.pattern.permute.xlu0 0
        %8213 = vperm.xlu0 %8212, %v8199
        %v8214 = vpop.permute.xlu0 %8213
        %8217 = vset.pattern.permute.xlu0 0
        %8218 = vperm.xlu0 %8217, %v8200
        %v8219 = vpop.permute.xlu0 %8218
        %8222 = vset.pattern.permute.xlu0 0
        %8223 = vperm.xlu0 %8222, %v8201
        %v8224 = vpop.permute.xlu0 %8223
        %8227 = vset.pattern.permute.xlu0 0
        %8228 = vperm.xlu0 %8227, %v8202
        %v8229 = vpop.permute.xlu0 %8228
        %8232 = vset.pattern.permute.xlu0 0
        %8233 = vperm.xlu0 %8232, %v8203
        %v8234 = vpop.permute.xlu0 %8233
        %8237 = vset.pattern.permute.xlu0 0
        %8238 = vperm.xlu0 %8237, %v8204
        %v8239 = vpop.permute.xlu0 %8238
        %8242 = vset.pattern.permute.xlu0 0
        %8243 = vperm.xlu0 %8242, %v8205
        %v8244 = vpop.permute.xlu0 %8243
        %v8247 = vsel %vm694, %v8182, 0
        %v8250 = vsel %vm694, %v8184, 0
        %v8253 = vsel %vm694, %v8186, 0
        %v8256 = vsel %vm694, %v8188, 0
        %v8259 = vsel %vm694, %v8190, 0
        %v8262 = vsel %vm694, %v8192, 0
        %v8265 = vsel %vm694, %v8194, 0
        %v8268 = vsel %vm694, %v8196, 0
        %8270 = vmatprep.subr.mxu0 0.0
        %8271 = vmatpush1.msra.mxu0 %v8124
        %8272 = vmatprep.subr.mxu0 0.0
        %8273 = vmatpush1.msra.mxu0 %v8125
        %8274 = vmatprep.subr.mxu0 0.0
        %8275 = vmatpush1.msra.mxu0 %v8126
        %8276 = vmatprep.subr.mxu0 0.0
        %8277 = vmatpush1.msra.mxu0 %v8127
        %8278 = vmatprep.subr.mxu0 0.0
        %8279 = vmatpush1.msra.mxu0 %v8133
        %8280 = vmatprep.subr.mxu0 0.0
        %8281 = vmatpush1.msra.mxu0 %v8135
        %8282 = vmatprep.subr.mxu0 0.0
        %8283 = vmatpush1.msra.mxu0 %v8137
        %8284 = vmatprep.subr.mxu0 0.0
        %8285 = vmatpush1.msra.mxu0 %v8139
        %8286 = vmatprep.subr.mxu0 0.0
        %8287 = vmatpush1.msra.mxu0 %v8145
        %8288 = vmatprep.subr.mxu0 0.0
        %8289 = vmatpush1.msra.mxu0 %v8147
        %8290 = vmatprep.subr.mxu0 0.0
        %8291 = vmatpush1.msra.mxu0 %v8149
        %8292 = vmatprep.subr.mxu0 0.0
        %8293 = vmatpush1.msra.mxu0 %v8151
        %8294 = vmatprep.subr.mxu0 0.0
        %8295 = vmatpush1.msra.mxu0 %v8157
        %8296 = vmatprep.subr.mxu0 0.0
        %8297 = vmatpush1.msra.mxu0 %v8159
        %8298 = vmatprep.subr.mxu0 0.0
        %8299 = vmatpush1.msra.mxu0 %v8161
        %8300 = vmatprep.subr.mxu0 0.0
        %8301 = vmatpush1.msra.mxu0 %v8163
        %8302 = vmatprep.subr.mxu0 0.0
        %8303 = vmatpush1.msra.mxu0 %v8169
        %8304 = vmatprep.subr.mxu0 0.0
        %8305 = vmatpush1.msra.mxu0 %v8171
        %8306 = vmatprep.subr.mxu0 0.0
        %8307 = vmatpush1.msra.mxu0 %v8173
        %8308 = vmatprep.subr.mxu0 0.0
        %8309 = vmatpush1.msra.mxu0 %v8175
        %8310 = vmatprep.subr.mxu0 0.0
        %8311 = vmatpush1.msra.mxu0 0.0
        %8312 = vmatprep.subr.mxu0 0.0
        %8313 = vmatpush1.msra.mxu0 0.0
        %8314 = vmatprep.subr.mxu0 0.0
        %8315 = vmatpush1.msra.mxu0 0.0
        %8316 = vmatprep.subr.mxu0 0.0
        %8317 = vmatpush1.msra.mxu0 0.0
        %8318 = vmatprep.subr.mxu0 0.0
        %8319 = vmatpush1.msra.mxu0 0.0
        %8320 = vmatprep.subr.mxu0 0.0
        %8321 = vmatpush1.msra.mxu0 0.0
        %8322 = vmatprep.subr.mxu0 0.0
        %8323 = vmatpush1.msra.mxu0 0.0
        %8324 = vmatprep.subr.mxu0 0.0
        %8325 = vmatpush1.msra.mxu0 0.0
        %8326 = vmatprep.subr.mxu0 0.0
        %8327 = vmatpush1.msra.mxu0 0.0
        %8328 = vmatprep.subr.mxu0 0.0
        %8329 = vmatpush1.msra.mxu0 0.0
        %8330 = vmatprep.subr.mxu0 0.0
        %8331 = vmatpush1.msra.mxu0 0.0
        %8332 = vmatprep.subr.mxu0 0.0
        %8333 = vmatpush1.msra.mxu0 0.0
        %8334 = vmatprep.mubr.f32.mxu0 %v8247
        %8335 = vmatmul.mubr.f32.gmra.mrb[0].mxu0 %v8181
        %v8336 = vpop.f32.mrb[0].mxu0
        %v8337 = vadd.f32 %v8209, %v8336
        %v8338 = vpop.f32.mrb[0].mxu0
        %8339 = vmatprep.mubr.f32.mxu0 %v8250
        %8340 = vmatmul.mubr.f32.gmra.mrb[0].mxu0 %v8183
        %v8341 = vpop.f32.mrb[0].mxu0
        %v8342 = vadd.f32 %v8214, %v8341
        %v8343 = vpop.f32.mrb[0].mxu0
        %8344 = vmatprep.mubr.f32.mxu0 %v8253
        %8345 = vmatmul.mubr.f32.gmra.mrb[0].mxu0 %v8185
        %v8346 = vpop.f32.mrb[0].mxu0
        %v8347 = vadd.f32 %v8219, %v8346
        %v8348 = vpop.f32.mrb[0].mxu0
        %8349 = vmatprep.mubr.f32.mxu0 %v8256
        %8350 = vmatmul.mubr.f32.gmra.mrb[0].mxu0 %v8187
        %v8351 = vpop.f32.mrb[0].mxu0
        %v8352 = vadd.f32 %v8224, %v8351
        %v8353 = vpop.f32.mrb[0].mxu0
        %8354 = vmatprep.mubr.f32.mxu0 %v8259
        %8355 = vmatmul.mubr.f32.gmra.mrb[0].mxu0 %v8189
        %v8356 = vpop.f32.mrb[0].mxu0
        %v8357 = vadd.f32 %v8229, %v8356
        %v8358 = vpop.f32.mrb[0].mxu0
        %8359 = vmatprep.mubr.f32.mxu0 %v8262
        %8360 = vmatmul.mubr.f32.gmra.mrb[0].mxu0 %v8191
        %v8361 = vpop.f32.mrb[0].mxu0
        %v8362 = vadd.f32 %v8234, %v8361
        %v8363 = vpop.f32.mrb[0].mxu0
        %8364 = vmatprep.mubr.f32.mxu0 %v8265
        %8365 = vmatmul.mubr.f32.gmra.mrb[0].mxu0 %v8193
        %v8366 = vpop.f32.mrb[0].mxu0
        %v8367 = vadd.f32 %v8239, %v8366
        %v8368 = vpop.f32.mrb[0].mxu0
        %8369 = vmatprep.mubr.f32.mxu0 %v8268
        %8370 = vmatmul.mubr.f32.gmra.mrb[0].mxu0 %v8195
        %v8371 = vpop.f32.mrb[0].mxu0
        %v8372 = vadd.f32 %v8244, %v8371
        %v8373 = vpop.f32.mrb[0].mxu0
        %8374 = vdwg.mxu0
        %v8375 = vtanh.pop %v8337
        %v8376 = vtanh.pop %v8342
        %v8377 = vtanh.pop %v8347
        %v8378 = vtanh.pop %v8352
        %v8379 = vxor.u32 %v8357, 2147483648
        %v8380 = vxor.u32 %v8362, 2147483648
        %v8381 = vxor.u32 %v8367, 2147483648
        %v8382 = vxor.u32 %v8372, 2147483648
        %v8383 = vmul.f32 %v8379, 1.442695
        %v8384 = vpow.pop %v8383
        %v8385 = vmul.f32 %v8380, 1.442695
        %v8386 = vpow.pop %v8385
        %v8387 = vmul.f32 %v8381, 1.442695
        %v8388 = vpow.pop %v8387
        %v8389 = vmul.f32 %v8382, 1.442695
        %v8390 = vpow.pop %v8389
        %v8391 = vadd.f32 %v8384, 1.0
        %v8392 = vadd.f32 %v8386, 1.0
        %v8393 = vadd.f32 %v8388, 1.0
        %v8394 = vadd.f32 %v8390, 1.0
        %v8395 = vrcp.pop %v8391
        %v8396 = vmul.f32 1.0, %v8395
        %v8397 = vrcp.pop %v8392
        %v8398 = vmul.f32 1.0, %v8397
        %v8399 = vrcp.pop %v8393
        %v8400 = vmul.f32 1.0, %v8399
        %v8401 = vrcp.pop %v8394
        %v8402 = vmul.f32 1.0, %v8401
        %v8403 = vmul.f32 %v8375, %v8396
        %v8404 = vmul.f32 %v8376, %v8398
        %v8405 = vmul.f32 %v8377, %v8400
        %v8406 = vmul.f32 %v8378, %v8402
        %s8407 = scalar_lea.vmem %s6, 896
        %v8408 = vld [vmem:[%s8407] sm:$0xff]
        %v8409 = vld [vmem:[%s8407 + $0x8] sm:$0xff]
        %v8410 = vld [vmem:[%s8407 + $0x10] sm:$0xff]
        %v8411 = vld [vmem:[%s8407 + $0x18] sm:$0xff]
        %v8412 = vld [vmem:[%s8407 + $0x20] sm:$0xff]
        %v8413 = vld [vmem:[%s8407 + $0x28] sm:$0xff]
        %v8414 = vld [vmem:[%s8407 + $0x30] sm:$0xff]
        %v8415 = vld [vmem:[%s8407 + $0x38] sm:$0xff]
        %s8416 = scalar_lea.vmem %s7, 896
        %v8417 = vld [vmem:[%s8416] sm:$0xff]
        %v8418 = vld [vmem:[%s8416 + $0x8] sm:$0xff]
        %v8419 = vld [vmem:[%s8416 + $0x10] sm:$0xff]
        %v8420 = vld [vmem:[%s8416 + $0x18] sm:$0xff]
        %v8421 = vld [vmem:[%s8416 + $0x20] sm:$0xff]
        %v8422 = vld [vmem:[%s8416 + $0x28] sm:$0xff]
        %v8423 = vld [vmem:[%s8416 + $0x30] sm:$0xff]
        %v8424 = vld [vmem:[%s8416 + $0x38] sm:$0xff]
        %8426 = vset.pattern.permute.xlu0 0
        %8427 = vperm.xlu0 %8426, %v8417
        %v8428 = vpop.permute.xlu0 %8427
        %8431 = vset.pattern.permute.xlu0 0
        %8432 = vperm.xlu0 %8431, %v8418
        %v8433 = vpop.permute.xlu0 %8432
        %8436 = vset.pattern.permute.xlu0 0
        %8437 = vperm.xlu0 %8436, %v8419
        %v8438 = vpop.permute.xlu0 %8437
        %8441 = vset.pattern.permute.xlu0 0
        %8442 = vperm.xlu0 %8441, %v8420
        %v8443 = vpop.permute.xlu0 %8442
        %8446 = vset.pattern.permute.xlu0 0
        %8447 = vperm.xlu0 %8446, %v8421
        %v8448 = vpop.permute.xlu0 %8447
        %8451 = vset.pattern.permute.xlu0 0
        %8452 = vperm.xlu0 %8451, %v8422
        %v8453 = vpop.permute.xlu0 %8452
        %8456 = vset.pattern.permute.xlu0 0
        %8457 = vperm.xlu0 %8456, %v8423
        %v8458 = vpop.permute.xlu0 %8457
        %8461 = vset.pattern.permute.xlu0 0
        %8462 = vperm.xlu0 %8461, %v8424
        %v8463 = vpop.permute.xlu0 %8462
        %v8466 = vsel %vm694, %v8408, 0
        %v8469 = vsel %vm694, %v8409, 0
        %v8472 = vsel %vm694, %v8410, 0
        %v8475 = vsel %vm694, %v8411, 0
        %v8478 = vsel %vm694, %v8412, 0
        %v8481 = vsel %vm694, %v8413, 0
        %v8484 = vsel %vm694, %v8414, 0
        %v8487 = vsel %vm694, %v8415, 0
        %8489 = vmatprep.subr.mxu0 0.0
        %8490 = vmatpush1.msra.mxu0 %v8403
        %8491 = vmatprep.subr.mxu0 0.0
        %8492 = vmatpush1.msra.mxu0 %v8404
        %8493 = vmatprep.subr.mxu0 0.0
        %8494 = vmatpush1.msra.mxu0 %v8405
        %8495 = vmatprep.subr.mxu0 0.0
        %8496 = vmatpush1.msra.mxu0 %v8406
        %8497 = vmatprep.subr.mxu0 0.0
        %8498 = vmatpush1.msra.mxu0 0.0
        %8499 = vmatprep.subr.mxu0 0.0
        %8500 = vmatpush1.msra.mxu0 0.0
        %8501 = vmatprep.subr.mxu0 0.0
        %8502 = vmatpush1.msra.mxu0 0.0
        %8503 = vmatprep.subr.mxu0 0.0
        %8504 = vmatpush1.msra.mxu0 0.0
        %8505 = vmatprep.subr.mxu0 0.0
        %8506 = vmatpush1.msra.mxu0 0.0
        %8507 = vmatprep.subr.mxu0 0.0
        %8508 = vmatpush1.msra.mxu0 0.0
        %8509 = vmatprep.subr.mxu0 0.0
        %8510 = vmatpush1.msra.mxu0 0.0
        %8511 = vmatprep.subr.mxu0 0.0
        %8512 = vmatpush1.msra.mxu0 0.0
        %8513 = vmatprep.subr.mxu0 0.0
        %8514 = vmatpush1.msra.mxu0 0.0
        %8515 = vmatprep.subr.mxu0 0.0
        %8516 = vmatpush1.msra.mxu0 0.0
        %8517 = vmatprep.subr.mxu0 0.0
        %8518 = vmatpush1.msra.mxu0 0.0
        %8519 = vmatprep.subr.mxu0 0.0
        %8520 = vmatpush1.msra.mxu0 0.0
        %8521 = vmatprep.subr.mxu0 0.0
        %8522 = vmatpush1.msra.mxu0 0.0
        %8523 = vmatprep.subr.mxu0 0.0
        %8524 = vmatpush1.msra.mxu0 0.0
        %8525 = vmatprep.subr.mxu0 0.0
        %8526 = vmatpush1.msra.mxu0 0.0
        %8527 = vmatprep.subr.mxu0 0.0
        %8528 = vmatpush1.msra.mxu0 0.0
        %8529 = vmatprep.subr.mxu0 0.0
        %8530 = vmatpush1.msra.mxu0 0.0
        %8531 = vmatprep.subr.mxu0 0.0
        %8532 = vmatpush1.msra.mxu0 0.0
        %8533 = vmatprep.subr.mxu0 0.0
        %8534 = vmatpush1.msra.mxu0 0.0
        %8535 = vmatprep.subr.mxu0 0.0
        %8536 = vmatpush1.msra.mxu0 0.0
        %8537 = vmatprep.subr.mxu0 0.0
        %8538 = vmatpush1.msra.mxu0 0.0
        %8539 = vmatprep.subr.mxu0 0.0
        %8540 = vmatpush1.msra.mxu0 0.0
        %8541 = vmatprep.subr.mxu0 0.0
        %8542 = vmatpush1.msra.mxu0 0.0
        %8543 = vmatprep.subr.mxu0 0.0
        %8544 = vmatpush1.msra.mxu0 0.0
        %8545 = vmatprep.subr.mxu0 0.0
        %8546 = vmatpush1.msra.mxu0 0.0
        %8547 = vmatprep.subr.mxu0 0.0
        %8548 = vmatpush1.msra.mxu0 0.0
        %8549 = vmatprep.subr.mxu0 0.0
        %8550 = vmatpush1.msra.mxu0 0.0
        %8551 = vmatprep.subr.mxu0 0.0
        %8552 = vmatpush1.msra.mxu0 0.0
        %8553 = vmatprep.mubr.f32.mxu0 0.0
        %8554 = vmatmul.mubr.f32.gmra.mrb[0].mxu0 %v8466
        %v8555 = vpop.f32.mrb[0].mxu0
        %v8556 = vadd.f32 %v8428, %v8555
        %v8557 = vpop.f32.mrb[0].mxu0
        %8558 = vmatprep.mubr.f32.mxu0 0.0
        %8559 = vmatmul.mubr.f32.gmra.mrb[0].mxu0 %v8469
        %v8560 = vpop.f32.mrb[0].mxu0
        %v8561 = vadd.f32 %v8433, %v8560
        %v8562 = vpop.f32.mrb[0].mxu0
        %8563 = vmatprep.mubr.f32.mxu0 0.0
        %8564 = vmatmul.mubr.f32.gmra.mrb[0].mxu0 %v8472
        %v8565 = vpop.f32.mrb[0].mxu0
        %v8566 = vadd.f32 %v8438, %v8565
        %v8567 = vpop.f32.mrb[0].mxu0
        %8568 = vmatprep.mubr.f32.mxu0 0.0
        %8569 = vmatmul.mubr.f32.gmra.mrb[0].mxu0 %v8475
        %v8570 = vpop.f32.mrb[0].mxu0
        %v8571 = vadd.f32 %v8443, %v8570
        %v8572 = vpop.f32.mrb[0].mxu0
        %8573 = vmatprep.mubr.f32.mxu0 0.0
        %8574 = vmatmul.mubr.f32.gmra.mrb[0].mxu0 %v8478
        %v8575 = vpop.f32.mrb[0].mxu0
        %v8576 = vadd.f32 %v8448, %v8575
        %v8577 = vpop.f32.mrb[0].mxu0
        %8578 = vmatprep.mubr.f32.mxu0 0.0
        %8579 = vmatmul.mubr.f32.gmra.mrb[0].mxu0 %v8481
        %v8580 = vpop.f32.mrb[0].mxu0
        %v8581 = vadd.f32 %v8453, %v8580
        %v8582 = vpop.f32.mrb[0].mxu0
        %8583 = vmatprep.mubr.f32.mxu0 0.0
        %8584 = vmatmul.mubr.f32.gmra.mrb[0].mxu0 %v8484
        %v8585 = vpop.f32.mrb[0].mxu0
        %v8586 = vadd.f32 %v8458, %v8585
        %v8587 = vpop.f32.mrb[0].mxu0
        %8588 = vmatprep.mubr.f32.mxu0 0.0
        %8589 = vmatmul.mubr.f32.gmra.mrb[0].mxu0 %v8487
        %v8590 = vpop.f32.mrb[0].mxu0
        %v8591 = vadd.f32 %v8463, %v8590
        %v8592 = vpop.f32.mrb[0].mxu0
        %8593 = vdwg.mxu0
        %v8594 = vadd.f32 %v8096, %v8556
        %v8595 = vadd.f32 %v8097, %v8561
        %v8596 = vadd.f32 %v8098, %v8566
        %v8597 = vadd.f32 %v8099, %v8571
        %v8598 = vmul.f32 %v8594, %v547
        %v8599 = vmul.f32 %v8595, %v547
        %v8600 = vmul.f32 %v8596, %v547
        %v8601 = vmul.f32 %v8597, %v547
        %v8602 = vadd.f32 %v8100, %v8576
        %v8603 = vadd.f32 %v8101, %v8581
        %v8604 = vadd.f32 %v8102, %v8586
        %v8605 = vadd.f32 %v8103, %v8591
        %8610 = vrot.lane.b32.xlu0 %v8598, 2
        %v8611 = vpop.permute.xlu0 %8610
        %8612 = vrot.lane.b32.xlu0 %v8599, 2
        %v8613 = vpop.permute.xlu0 %8612
        %8614 = vrot.lane.b32.xlu0 %v8600, 2
        %v8615 = vpop.permute.xlu0 %8614
        %8616 = vrot.lane.b32.xlu0 %v8601, 2
        %v8617 = vpop.permute.xlu0 %8616
        %8622 = vst.msk [vmem:[#allocation2] sm:$0xff] %vm569, %v8611
        %8623 = vst.msk [vmem:[#allocation2 + $0x8] sm:$0xff] %vm569, %v8613
        %8624 = vst.msk [vmem:[#allocation2 + $0x10] sm:$0xff] %vm569, %v8615
        %8625 = vst.msk [vmem:[#allocation2 + $0x18] sm:$0xff] %vm569, %v8617
        %v8626 = vld [vmem:[#allocation2] sm:$0xff]
        %v8627 = vld [vmem:[#allocation2 + $0x8] sm:$0xff]
        %v8628 = vld [vmem:[#allocation2 + $0x10] sm:$0xff]
        %v8629 = vld [vmem:[#allocation2 + $0x18] sm:$0xff]
        %8634 = vrot.lane.b32.xlu0 %v8626, 127
        %v8635 = vpop.permute.xlu0 %8634
        %8636 = vrot.lane.b32.xlu0 %v8627, 127
        %v8637 = vpop.permute.xlu0 %8636
        %8638 = vrot.lane.b32.xlu0 %v8628, 127
        %v8639 = vpop.permute.xlu0 %8638
        %8640 = vrot.lane.b32.xlu0 %v8629, 127
        %v8641 = vpop.permute.xlu0 %8640
        %8646 = vrot.lane.b32.xlu0 %v8626, 126
        %v8647 = vpop.permute.xlu0 %8646
        %8648 = vrot.lane.b32.xlu0 %v8627, 126
        %v8649 = vpop.permute.xlu0 %8648
        %8650 = vrot.lane.b32.xlu0 %v8628, 126
        %v8651 = vpop.permute.xlu0 %8650
        %8652 = vrot.lane.b32.xlu0 %v8629, 126
        %v8653 = vpop.permute.xlu0 %8652
        %8658 = vrot.lane.b32.xlu0 %v8626, 125
        %v8659 = vpop.permute.xlu0 %8658
        %8660 = vrot.lane.b32.xlu0 %v8627, 125
        %v8661 = vpop.permute.xlu0 %8660
        %8662 = vrot.lane.b32.xlu0 %v8628, 125
        %v8663 = vpop.permute.xlu0 %8662
        %8664 = vrot.lane.b32.xlu0 %v8629, 125
        %v8665 = vpop.permute.xlu0 %8664
        %8670 = vrot.lane.b32.xlu0 %v8626, 124
        %v8671 = vpop.permute.xlu0 %8670
        %8672 = vrot.lane.b32.xlu0 %v8627, 124
        %v8673 = vpop.permute.xlu0 %8672
        %8674 = vrot.lane.b32.xlu0 %v8628, 124
        %v8675 = vpop.permute.xlu0 %8674
        %8676 = vrot.lane.b32.xlu0 %v8629, 124
        %v8677 = vpop.permute.xlu0 %8676
        %s8682 = scalar_lea.vmem %s4, 1920
        %v8683 = vld [vmem:[%s8682] sm:$0xff]
        %v8684 = vld [vmem:[%s8682 + $0x8] sm:$0xff]
        %v8685 = vld [vmem:[%s8682 + $0x10] sm:$0xff]
        %v8686 = vld [vmem:[%s8682 + $0x18] sm:$0xff]
        %v8687 = vld [vmem:[%s8682 + $0x20] sm:$0xff]
        %v8688 = vld [vmem:[%s8682 + $0x28] sm:$0xff]
        %v8689 = vld [vmem:[%s8682 + $0x30] sm:$0xff]
        %v8690 = vld [vmem:[%s8682 + $0x38] sm:$0xff]
        %v8691 = vld [vmem:[%s8682 + $0x40] sm:$0xff]
        %v8692 = vld [vmem:[%s8682 + $0x48] sm:$0xff]
        %v8693 = vld [vmem:[%s8682 + $0x50] sm:$0xff]
        %v8694 = vld [vmem:[%s8682 + $0x58] sm:$0xff]
        %v8695 = vld [vmem:[%s8682 + $0x60] sm:$0xff]
        %v8696 = vld [vmem:[%s8682 + $0x68] sm:$0xff]
        %v8697 = vld [vmem:[%s8682 + $0x70] sm:$0xff]
        %v8698 = vld [vmem:[%s8682 + $0x78] sm:$0xff]
        %s8699 = scalar_lea.vmem %s5, 960
        %v8700 = vld [vmem:[%s8699] sm:$0xff]
        %v8701 = vld [vmem:[%s8699 + $0x8] sm:$0xff]
        %v8702 = vld [vmem:[%s8699 + $0x10] sm:$0xff]
        %v8703 = vld [vmem:[%s8699 + $0x18] sm:$0xff]
        %v8704 = vld [vmem:[%s8699 + $0x20] sm:$0xff]
        %v8705 = vld [vmem:[%s8699 + $0x28] sm:$0xff]
        %v8706 = vld [vmem:[%s8699 + $0x30] sm:$0xff]
        %v8707 = vld [vmem:[%s8699 + $0x38] sm:$0xff]
        %8709 = vset.pattern.permute.xlu0 0
        %8710 = vperm.xlu0 %8709, %v8700
        %v8711 = vpop.permute.xlu0 %8710
        %8714 = vset.pattern.permute.xlu0 0
        %8715 = vperm.xlu0 %8714, %v8701
        %v8716 = vpop.permute.xlu0 %8715
        %8719 = vset.pattern.permute.xlu0 0
        %8720 = vperm.xlu0 %8719, %v8702
        %v8721 = vpop.permute.xlu0 %8720
        %8724 = vset.pattern.permute.xlu0 0
        %8725 = vperm.xlu0 %8724, %v8703
        %v8726 = vpop.permute.xlu0 %8725
        %8729 = vset.pattern.permute.xlu0 0
        %8730 = vperm.xlu0 %8729, %v8704
        %v8731 = vpop.permute.xlu0 %8730
        %8734 = vset.pattern.permute.xlu0 0
        %8735 = vperm.xlu0 %8734, %v8705
        %v8736 = vpop.permute.xlu0 %8735
        %8739 = vset.pattern.permute.xlu0 0
        %8740 = vperm.xlu0 %8739, %v8706
        %v8741 = vpop.permute.xlu0 %8740
        %8744 = vset.pattern.permute.xlu0 0
        %8745 = vperm.xlu0 %8744, %v8707
        %v8746 = vpop.permute.xlu0 %8745
        %v8749 = vsel %vm694, %v8684, 0
        %v8752 = vsel %vm694, %v8686, 0
        %v8755 = vsel %vm694, %v8688, 0
        %v8758 = vsel %vm694, %v8690, 0
        %v8761 = vsel %vm694, %v8692, 0
        %v8764 = vsel %vm694, %v8694, 0
        %v8767 = vsel %vm694, %v8696, 0
        %v8770 = vsel %vm694, %v8698, 0
        %8772 = vmatprep.subr.mxu0 0.0
        %8773 = vmatpush1.msra.mxu0 %v8626
        %8774 = vmatprep.subr.mxu0 0.0
        %8775 = vmatpush1.msra.mxu0 %v8627
        %8776 = vmatprep.subr.mxu0 0.0
        %8777 = vmatpush1.msra.mxu0 %v8628
        %8778 = vmatprep.subr.mxu0 0.0
        %8779 = vmatpush1.msra.mxu0 %v8629
        %8780 = vmatprep.subr.mxu0 0.0
        %8781 = vmatpush1.msra.mxu0 %v8635
        %8782 = vmatprep.subr.mxu0 0.0
        %8783 = vmatpush1.msra.mxu0 %v8637
        %8784 = vmatprep.subr.mxu0 0.0
        %8785 = vmatpush1.msra.mxu0 %v8639
        %8786 = vmatprep.subr.mxu0 0.0
        %8787 = vmatpush1.msra.mxu0 %v8641
        %8788 = vmatprep.subr.mxu0 0.0
        %8789 = vmatpush1.msra.mxu0 %v8647
        %8790 = vmatprep.subr.mxu0 0.0
        %8791 = vmatpush1.msra.mxu0 %v8649
        %8792 = vmatprep.subr.mxu0 0.0
        %8793 = vmatpush1.msra.mxu0 %v8651
        %8794 = vmatprep.subr.mxu0 0.0
        %8795 = vmatpush1.msra.mxu0 %v8653
        %8796 = vmatprep.subr.mxu0 0.0
        %8797 = vmatpush1.msra.mxu0 %v8659
        %8798 = vmatprep.subr.mxu0 0.0
        %8799 = vmatpush1.msra.mxu0 %v8661
        %8800 = vmatprep.subr.mxu0 0.0
        %8801 = vmatpush1.msra.mxu0 %v8663
        %8802 = vmatprep.subr.mxu0 0.0
        %8803 = vmatpush1.msra.mxu0 %v8665
        %8804 = vmatprep.subr.mxu0 0.0
        %8805 = vmatpush1.msra.mxu0 %v8671
        %8806 = vmatprep.subr.mxu0 0.0
        %8807 = vmatpush1.msra.mxu0 %v8673
        %8808 = vmatprep.subr.mxu0 0.0
        %8809 = vmatpush1.msra.mxu0 %v8675
        %8810 = vmatprep.subr.mxu0 0.0
        %8811 = vmatpush1.msra.mxu0 %v8677
        %8812 = vmatprep.subr.mxu0 0.0
        %8813 = vmatpush1.msra.mxu0 0.0
        %8814 = vmatprep.subr.mxu0 0.0
        %8815 = vmatpush1.msra.mxu0 0.0
        %8816 = vmatprep.subr.mxu0 0.0
        %8817 = vmatpush1.msra.mxu0 0.0
        %8818 = vmatprep.subr.mxu0 0.0
        %8819 = vmatpush1.msra.mxu0 0.0
        %8820 = vmatprep.subr.mxu0 0.0
        %8821 = vmatpush1.msra.mxu0 0.0
        %8822 = vmatprep.subr.mxu0 0.0
        %8823 = vmatpush1.msra.mxu0 0.0
        %8824 = vmatprep.subr.mxu0 0.0
        %8825 = vmatpush1.msra.mxu0 0.0
        %8826 = vmatprep.subr.mxu0 0.0
        %8827 = vmatpush1.msra.mxu0 0.0
        %8828 = vmatprep.subr.mxu0 0.0
        %8829 = vmatpush1.msra.mxu0 0.0
        %8830 = vmatprep.subr.mxu0 0.0
        %8831 = vmatpush1.msra.mxu0 0.0
        %8832 = vmatprep.subr.mxu0 0.0
        %8833 = vmatpush1.msra.mxu0 0.0
        %8834 = vmatprep.subr.mxu0 0.0
        %8835 = vmatpush1.msra.mxu0 0.0
        %8836 = vmatprep.mubr.f32.mxu0 %v8749
        %8837 = vmatmul.mubr.f32.gmra.mrb[0].mxu0 %v8683
        %v8838 = vpop.f32.mrb[0].mxu0
        %v8839 = vadd.f32 %v8711, %v8838
        %v8840 = vpop.f32.mrb[0].mxu0
        %8841 = vmatprep.mubr.f32.mxu0 %v8752
        %8842 = vmatmul.mubr.f32.gmra.mrb[0].mxu0 %v8685
        %v8843 = vpop.f32.mrb[0].mxu0
        %v8844 = vadd.f32 %v8716, %v8843
        %v8845 = vpop.f32.mrb[0].mxu0
        %8846 = vmatprep.mubr.f32.mxu0 %v8755
        %8847 = vmatmul.mubr.f32.gmra.mrb[0].mxu0 %v8687
        %v8848 = vpop.f32.mrb[0].mxu0
        %v8849 = vadd.f32 %v8721, %v8848
        %v8850 = vpop.f32.mrb[0].mxu0
        %8851 = vmatprep.mubr.f32.mxu0 %v8758
        %8852 = vmatmul.mubr.f32.gmra.mrb[0].mxu0 %v8689
        %v8853 = vpop.f32.mrb[0].mxu0
        %v8854 = vadd.f32 %v8726, %v8853
        %v8855 = vpop.f32.mrb[0].mxu0
        %8856 = vmatprep.mubr.f32.mxu0 %v8761
        %8857 = vmatmul.mubr.f32.gmra.mrb[0].mxu0 %v8691
        %v8858 = vpop.f32.mrb[0].mxu0
        %v8859 = vadd.f32 %v8731, %v8858
        %v8860 = vpop.f32.mrb[0].mxu0
        %8861 = vmatprep.mubr.f32.mxu0 %v8764
        %8862 = vmatmul.mubr.f32.gmra.mrb[0].mxu0 %v8693
        %v8863 = vpop.f32.mrb[0].mxu0
        %v8864 = vadd.f32 %v8736, %v8863
        %v8865 = vpop.f32.mrb[0].mxu0
        %8866 = vmatprep.mubr.f32.mxu0 %v8767
        %8867 = vmatmul.mubr.f32.gmra.mrb[0].mxu0 %v8695
        %v8868 = vpop.f32.mrb[0].mxu0
        %v8869 = vadd.f32 %v8741, %v8868
        %v8870 = vpop.f32.mrb[0].mxu0
        %8871 = vmatprep.mubr.f32.mxu0 %v8770
        %8872 = vmatmul.mubr.f32.gmra.mrb[0].mxu0 %v8697
        %v8873 = vpop.f32.mrb[0].mxu0
        %v8874 = vadd.f32 %v8746, %v8873
        %v8875 = vpop.f32.mrb[0].mxu0
        %8876 = vdwg.mxu0
        %v8877 = vtanh.pop %v8839
        %v8878 = vtanh.pop %v8844
        %v8879 = vtanh.pop %v8849
        %v8880 = vtanh.pop %v8854
        %v8881 = vxor.u32 %v8859, 2147483648
        %v8882 = vxor.u32 %v8864, 2147483648
        %v8883 = vxor.u32 %v8869, 2147483648
        %v8884 = vxor.u32 %v8874, 2147483648
        %v8885 = vmul.f32 %v8881, 1.442695
        %v8886 = vpow.pop %v8885
        %v8887 = vmul.f32 %v8882, 1.442695
        %v8888 = vpow.pop %v8887
        %v8889 = vmul.f32 %v8883, 1.442695
        %v8890 = vpow.pop %v8889
        %v8891 = vmul.f32 %v8884, 1.442695
        %v8892 = vpow.pop %v8891
        %v8893 = vadd.f32 %v8886, 1.0
        %v8894 = vadd.f32 %v8888, 1.0
        %v8895 = vadd.f32 %v8890, 1.0
        %v8896 = vadd.f32 %v8892, 1.0
        %v8897 = vrcp.pop %v8893
        %v8898 = vmul.f32 1.0, %v8897
        %v8899 = vrcp.pop %v8894
        %v8900 = vmul.f32 1.0, %v8899
        %v8901 = vrcp.pop %v8895
        %v8902 = vmul.f32 1.0, %v8901
        %v8903 = vrcp.pop %v8896
        %v8904 = vmul.f32 1.0, %v8903
        %v8905 = vmul.f32 %v8877, %v8898
        %v8906 = vmul.f32 %v8878, %v8900
        %v8907 = vmul.f32 %v8879, %v8902
        %v8908 = vmul.f32 %v8880, %v8904
        %s8909 = scalar_lea.vmem %s6, 960
        %v8910 = vld [vmem:[%s8909] sm:$0xff]
        %v8911 = vld [vmem:[%s8909 + $0x8] sm:$0xff]
        %v8912 = vld [vmem:[%s8909 + $0x10] sm:$0xff]
        %v8913 = vld [vmem:[%s8909 + $0x18] sm:$0xff]
        %s8914 = scalar_lea.vmem %s7, 960
        %v8915 = vld [vmem:[%s8914] sm:$0xff]
        %v8916 = vld [vmem:[%s8914 + $0x8] sm:$0xff]
        %v8917 = vld [vmem:[%s8914 + $0x10] sm:$0xff]
        %v8918 = vld [vmem:[%s8914 + $0x18] sm:$0xff]
        %8920 = vset.pattern.permute.xlu0 0
        %8921 = vperm.xlu0 %8920, %v8915
        %v8922 = vpop.permute.xlu0 %8921
        %8925 = vset.pattern.permute.xlu0 0
        %8926 = vperm.xlu0 %8925, %v8916
        %v8927 = vpop.permute.xlu0 %8926
        %8930 = vset.pattern.permute.xlu0 0
        %8931 = vperm.xlu0 %8930, %v8917
        %v8932 = vpop.permute.xlu0 %8931
        %8935 = vset.pattern.permute.xlu0 0
        %8936 = vperm.xlu0 %8935, %v8918
        %v8937 = vpop.permute.xlu0 %8936
        %v8940 = vsel %vm694, %v8910, 0
        %v8943 = vsel %vm694, %v8911, 0
        %v8946 = vsel %vm694, %v8912, 0
        %v8949 = vsel %vm694, %v8913, 0
        %8951 = vmatprep.subr.mxu0 0.0
        %8952 = vmatpush1.msra.mxu0 %v8905
        %8953 = vmatprep.subr.mxu0 0.0
        %8954 = vmatpush1.msra.mxu0 %v8906
        %8955 = vmatprep.subr.mxu0 0.0
        %8956 = vmatpush1.msra.mxu0 %v8907
        %8957 = vmatprep.subr.mxu0 0.0
        %8958 = vmatpush1.msra.mxu0 %v8908
        %8959 = vmatprep.subr.mxu0 0.0
        %8960 = vmatpush1.msra.mxu0 0.0
        %8961 = vmatprep.subr.mxu0 0.0
        %8962 = vmatpush1.msra.mxu0 0.0
        %8963 = vmatprep.subr.mxu0 0.0
        %8964 = vmatpush1.msra.mxu0 0.0
        %8965 = vmatprep.subr.mxu0 0.0
        %8966 = vmatpush1.msra.mxu0 0.0
        %8967 = vmatprep.subr.mxu0 0.0
        %8968 = vmatpush1.msra.mxu0 0.0
        %8969 = vmatprep.subr.mxu0 0.0
        %8970 = vmatpush1.msra.mxu0 0.0
        %8971 = vmatprep.subr.mxu0 0.0
        %8972 = vmatpush1.msra.mxu0 0.0
        %8973 = vmatprep.subr.mxu0 0.0
        %8974 = vmatpush1.msra.mxu0 0.0
        %8975 = vmatprep.subr.mxu0 0.0
        %8976 = vmatpush1.msra.mxu0 0.0
        %8977 = vmatprep.subr.mxu0 0.0
        %8978 = vmatpush1.msra.mxu0 0.0
        %8979 = vmatprep.subr.mxu0 0.0
        %8980 = vmatpush1.msra.mxu0 0.0
        %8981 = vmatprep.subr.mxu0 0.0
        %8982 = vmatpush1.msra.mxu0 0.0
        %8983 = vmatprep.subr.mxu0 0.0
        %8984 = vmatpush1.msra.mxu0 0.0
        %8985 = vmatprep.subr.mxu0 0.0
        %8986 = vmatpush1.msra.mxu0 0.0
        %8987 = vmatprep.subr.mxu0 0.0
        %8988 = vmatpush1.msra.mxu0 0.0
        %8989 = vmatprep.subr.mxu0 0.0
        %8990 = vmatpush1.msra.mxu0 0.0
        %8991 = vmatprep.subr.mxu0 0.0
        %8992 = vmatpush1.msra.mxu0 0.0
        %8993 = vmatprep.subr.mxu0 0.0
        %8994 = vmatpush1.msra.mxu0 0.0
        %8995 = vmatprep.subr.mxu0 0.0
        %8996 = vmatpush1.msra.mxu0 0.0
        %8997 = vmatprep.subr.mxu0 0.0
        %8998 = vmatpush1.msra.mxu0 0.0
        %8999 = vmatprep.subr.mxu0 0.0
        %9000 = vmatpush1.msra.mxu0 0.0
        %9001 = vmatprep.subr.mxu0 0.0
        %9002 = vmatpush1.msra.mxu0 0.0
        %9003 = vmatprep.subr.mxu0 0.0
        %9004 = vmatpush1.msra.mxu0 0.0
        %9005 = vmatprep.subr.mxu0 0.0
        %9006 = vmatpush1.msra.mxu0 0.0
        %9007 = vmatprep.subr.mxu0 0.0
        %9008 = vmatpush1.msra.mxu0 0.0
        %9009 = vmatprep.subr.mxu0 0.0
        %9010 = vmatpush1.msra.mxu0 0.0
        %9011 = vmatprep.subr.mxu0 0.0
        %9012 = vmatpush1.msra.mxu0 0.0
        %9013 = vmatprep.subr.mxu0 0.0
        %9014 = vmatpush1.msra.mxu0 0.0
        %9015 = vmatprep.mubr.f32.mxu0 0.0
        %9016 = vmatmul.mubr.f32.gmra.mrb[0].mxu0 %v8940
        %v9017 = vpop.f32.mrb[0].mxu0
        %v9018 = vadd.f32 %v8922, %v9017
        %v9019 = vpop.f32.mrb[0].mxu0
        %9020 = vmatprep.mubr.f32.mxu0 0.0
        %9021 = vmatmul.mubr.f32.gmra.mrb[0].mxu0 %v8943
        %v9022 = vpop.f32.mrb[0].mxu0
        %v9023 = vadd.f32 %v8927, %v9022
        %v9024 = vpop.f32.mrb[0].mxu0
        %9025 = vmatprep.mubr.f32.mxu0 0.0
        %9026 = vmatmul.mubr.f32.gmra.mrb[0].mxu0 %v8946
        %v9027 = vpop.f32.mrb[0].mxu0
        %v9028 = vadd.f32 %v8932, %v9027
        %v9029 = vpop.f32.mrb[0].mxu0
        %9030 = vmatprep.mubr.f32.mxu0 0.0
        %9031 = vmatmul.mubr.f32.gmra.mrb[0].mxu0 %v8949
        %v9032 = vpop.f32.mrb[0].mxu0
        %v9033 = vadd.f32 %v8937, %v9032
        %v9034 = vpop.f32.mrb[0].mxu0
        %9035 = vdwg.mxu0
        %v9036 = vadd.f32 %v8602, %v9018
        %v9037 = vadd.f32 %v8603, %v9023
        %v9038 = vadd.f32 %v8604, %v9028
        %v9039 = vadd.f32 %v8605, %v9033
        %v9040 = vmul.f32 %v9036, %v547
        %v9041 = vmul.f32 %v9037, %v547
        %v9042 = vmul.f32 %v9038, %v547
        %v9043 = vmul.f32 %v9039, %v547
        %s9044 = scalar_lea.vmem %s8, 12
        %v9045 = vld [vmem:[%s9044] sm:$0xf]
        %s9046 = scalar_lea.vmem %s9, 12
        %v9047 = vld [vmem:[%s9046] sm:$0xf]
        %9049 = vset.pattern.permute.xlu0 0
        %9050 = vperm.xlu0 %9049, %v9047
        %v9051 = vpop.permute.xlu0 %9050
        %v9054 = vsel %vm694, %v9045, 0
        %9056 = vmatprep.subr.mxu0 0.0
        %9057 = vmatpush1.msra.mxu0 %v9040
        %9058 = vmatprep.subr.mxu0 0.0
        %9059 = vmatpush1.msra.mxu0 %v9041
        %9060 = vmatprep.subr.mxu0 0.0
        %9061 = vmatpush1.msra.mxu0 %v9042
        %9062 = vmatprep.subr.mxu0 0.0
        %9063 = vmatpush1.msra.mxu0 %v9043
        %9064 = vmatprep.subr.mxu0 0.0
        %9065 = vmatpush1.msra.mxu0 0.0
        %9066 = vmatprep.subr.mxu0 0.0
        %9067 = vmatpush1.msra.mxu0 0.0
        %9068 = vmatprep.subr.mxu0 0.0
        %9069 = vmatpush1.msra.mxu0 0.0
        %9070 = vmatprep.subr.mxu0 0.0
        %9071 = vmatpush1.msra.mxu0 0.0
        %9072 = vmatprep.subr.mxu0 0.0
        %9073 = vmatpush1.msra.mxu0 0.0
        %9074 = vmatprep.subr.mxu0 0.0
        %9075 = vmatpush1.msra.mxu0 0.0
        %9076 = vmatprep.subr.mxu0 0.0
        %9077 = vmatpush1.msra.mxu0 0.0
        %9078 = vmatprep.subr.mxu0 0.0
        %9079 = vmatpush1.msra.mxu0 0.0
        %9080 = vmatprep.subr.mxu0 0.0
        %9081 = vmatpush1.msra.mxu0 0.0
        %9082 = vmatprep.subr.mxu0 0.0
        %9083 = vmatpush1.msra.mxu0 0.0
        %9084 = vmatprep.subr.mxu0 0.0
        %9085 = vmatpush1.msra.mxu0 0.0
        %9086 = vmatprep.subr.mxu0 0.0
        %9087 = vmatpush1.msra.mxu0 0.0
        %9088 = vmatprep.subr.mxu0 0.0
        %9089 = vmatpush1.msra.mxu0 0.0
        %9090 = vmatprep.subr.mxu0 0.0
        %9091 = vmatpush1.msra.mxu0 0.0
        %9092 = vmatprep.subr.mxu0 0.0
        %9093 = vmatpush1.msra.mxu0 0.0
        %9094 = vmatprep.subr.mxu0 0.0
        %9095 = vmatpush1.msra.mxu0 0.0
        %9096 = vmatprep.subr.mxu0 0.0
        %9097 = vmatpush1.msra.mxu0 0.0
        %9098 = vmatprep.subr.mxu0 0.0
        %9099 = vmatpush1.msra.mxu0 0.0
        %9100 = vmatprep.subr.mxu0 0.0
        %9101 = vmatpush1.msra.mxu0 0.0
        %9102 = vmatprep.subr.mxu0 0.0
        %9103 = vmatpush1.msra.mxu0 0.0
        %9104 = vmatprep.subr.mxu0 0.0
        %9105 = vmatpush1.msra.mxu0 0.0
        %9106 = vmatprep.subr.mxu0 0.0
        %9107 = vmatpush1.msra.mxu0 0.0
        %9108 = vmatprep.subr.mxu0 0.0
        %9109 = vmatpush1.msra.mxu0 0.0
        %9110 = vmatprep.subr.mxu0 0.0
        %9111 = vmatpush1.msra.mxu0 0.0
        %9112 = vmatprep.subr.mxu0 0.0
        %9113 = vmatpush1.msra.mxu0 0.0
        %9114 = vmatprep.subr.mxu0 0.0
        %9115 = vmatpush1.msra.mxu0 0.0
        %9116 = vmatprep.subr.mxu0 0.0
        %9117 = vmatpush1.msra.mxu0 0.0
        %9118 = vmatprep.subr.mxu0 0.0
        %9119 = vmatpush1.msra.mxu0 0.0
        %9120 = vmatprep.mubr.f32.mxu0 0.0
        %9121 = vmatmul.mubr.f32.gmra.mrb[0].mxu0 %v9054
        %v9122 = vpop.f32.mrb[0].mxu0
        %v9123 = vadd.f32 %v9051, %v9122
        %v9124 = vpop.f32.mrb[0].mxu0
        %9125 = vdwg.mxu0
        %v9126 = vmul.f32 %v9123, %v547
        %v9127 = vmul.f32 %v9126, 1.442695
        %v9128 = vpow.pop %v9127
        %v9130 = vrot.slane %v9128, 2
        %v9132 = vmul.f32 %v4768, %v9130
        %v9133 = vmul.f32 %v9132, %v547
        %v9134 = vadd.f32 %v9126, %v9133
        %v9136 = vrot.slane %v9126, 2
        %v9138 = vsel %vm2587, %v9136, 0.0
        %v9139 = vrot.slane %v9138, 4
        %v9140 = vadd.f32 %v9138, %v9139
        %v9141 = vrot.slane %v9140, 2
        %v9142 = vadd.f32 %v9140, %v9141
        %v9143 = vrot.slane %v9142, 1
        %v9144 = vadd.f32 %v9142, %v9143
        %v9145 = vsel %vm2595, %v9144, 0.0
        %9146 = vadd.xlane.f32.xlu0 %v9145
        %v9147 = vpop.xlane.xlu0 %9146
        %v9148 = vadd.f32 %v6965, %v9147
        %9149 = vst.msk [vmem:[%s389] sm:$0x3] %vm2587, %v9134
        %9150 = vst.msk [vmem:[%s389 + $0x2] sm:$0x3] %vm2587, %v6951
        %vm9151 = vcmask 0
        %9152 = vst.msk [vmem:[%s404] sm:$0x1] %vm9151, %v9148
        %s9153 = sand.u32 %s254, 1
        %s9154 = scalar_lea.sflag [#allocation4], %s9153
        %s9155 = sand.u32 %s254, 1
        %s9156 = smul.addr %s9155, 4
        %s9157 = scalar_lea.vmem [#allocation3], %s9156
        %p9158 = scmp.lt.s32.totalorder %s26, 1
        %s9159 = scalar_select %p9158, %s26, 1
        %s9160 = scalar_lea.vmem %s11, %s9159
        // Predicated region
        $region61: #{tpu_custom_call.1} parent=59 // pred_check
          %p9161 = pneg %p264
        $region62: #{tpu_custom_call.1} parent=59 // pred_check_branch
          %9163 = sbr.rel (%p9161) target = $region64
        $region63: #{tpu_custom_call.1} parent=59 // pred_region
          %s9165 = ssub.s32 64, 64
          %9166 = vsyncadd %s9154, %s9165
          %s9167 = smul.addr %s26, 64
          %s9168 = scalar_lea.hbm %s10, %s9167
          %s9170 = sshll.u32 %s9157, 4
          %s9171 = int_to_ptr.vmem [resolvable:$true] %s9170
          %9173 = dma.vmem_to_hbm [thread:$0]  %s9171, 64, %s9168, %s9154
        $region64: #{tpu_custom_call.1} parent=59 // pred_fallthru
          _
        // Predicated region
        $region65: #{tpu_custom_call.1} parent=59 // pred_check
          %p9174 = pneg %p290
        $region66: #{tpu_custom_call.1} parent=59 // pred_check_branch
          %9176 = sbr.rel (%p9174) target = $region68
        $region67: #{tpu_custom_call.1} parent=59 // pred_region
          _
        $region68: #{tpu_custom_call.1} parent=59 // pred_fallthru
          _
      $region60: #{tpu_custom_call.1} parent=5 // pred_fallthru
        _
      %p9177 = scmp.le.s32.totalorder 2, %s21
      // Predicated region
      $region69: #{tpu_custom_call.1} parent=5 // pred_check
        %p9178 = pneg %p9177
      $region70: #{tpu_custom_call.1} parent=5 // pred_check_branch
        %9180 = sbr.rel (%p9178) target = $region72
      $region71: #{tpu_custom_call.1} parent=5 // pred_region
        %s9181 = ssub.s32 %s21, 2
        // Predicated region
        $region73: #{tpu_custom_call.1} parent=71 // pred_check
          %p9182 = pneg %p270
        $region74: #{tpu_custom_call.1} parent=71 // pred_check_branch
          %9184 = sbr.rel (%p9182) target = $region76
        $region75: #{tpu_custom_call.1} parent=71 // pred_region
          %s9185 = sand.u32 %s255, 1
          %s9186 = scalar_lea.sflag [#allocation4], %s9185
          %s9187 = sand.u32 %s255, 1
          %s9188 = smul.addr %s9187, 4
          %s9189 = scalar_lea.vmem [#allocation3], %s9188
          %9190 = dma.done %s9186, 64
        $region76: #{tpu_custom_call.1} parent=71 // pred_fallthru
          _
        // Predicated region
        $region77: #{tpu_custom_call.1} parent=71 // pred_check
          %p9191 = pneg %p296
        $region78: #{tpu_custom_call.1} parent=71 // pred_check_branch
          %9193 = sbr.rel (%p9191) target = $region80
        $region79: #{tpu_custom_call.1} parent=71 // pred_region
          %p9194 = scmp.lt.s32.totalorder %s27, 1
          %s9195 = scalar_select %p9194, %s27, 1
          %s9196 = scalar_lea.vmem %s11, %s9195
        $region80: #{tpu_custom_call.1} parent=71 // pred_fallthru
          _
      $region72: #{tpu_custom_call.1} parent=5 // pred_fallthru
        _
    $region6: #{tpu_custom_call.1} parent=1 // loop_footer
      %s25 = sadd.s32 1, %s21
    $region7: #{tpu_custom_call.1} parent=1 // loop_footer_branch
      %20 = sbr.rel target = $region3
    $region8: #{tpu_custom_call.1} parent=1 // loop_exit
      _
    %9197 = vsyncpa [#allocation4], 1
    %s9198 = scalar_lea.sflag [#allocation4], 1
    %9199 = vsyncpa %s9198, 1

</llo_original>
